<compile_context>
chip_gen: v6e
topology: v6e:2x2x1
jax: 0.10.0
libtpu: 0.0.40
codegen_flags: <defaults>
</compile_context>

<pallas_src>
import math
import functools

import jax
import jax.numpy as jnp
from jax.experimental import pallas as pl
from jax.experimental.pallas import tpu as pltpu


# ---------------------------------------------------------------- in-kernel math

def _layer_norm(x, gamma, beta, eps=1e-5):
    # x: (N, D); gamma/beta: (1, D)
    mean = jnp.mean(x, axis=-1, keepdims=True)
    var = jnp.mean(jnp.square(x - mean), axis=-1, keepdims=True)
    return (x - mean) * jax.lax.rsqrt(var + eps) * gamma + beta


def _softmax(s):
    m = jnp.max(s, axis=-1, keepdims=True)
    e = jnp.exp(s - m)
    return e * pl.reciprocal(jnp.sum(e, axis=-1, keepdims=True), approx=True)


def _attention_core(q2d, k2d, v2d, bb, sq, skv, num_heads, dh, mask, wo, bo):
    """Multi-head attention core on batch-folded rows.

    q2d: (bb*sq, H*dh) f32 (1/sqrt(dh) already folded into the Q projection)
    k2d, v2d: (bb*skv, H*dh) f32
    mask: (sq, skv) additive mask
    wo: (H*dh, D) bf16 output projection, bo: (1, D) f32
    """
    q3 = q2d.reshape(bb, sq, num_heads * dh)
    k3 = k2d.reshape(bb, skv, num_heads * dh)
    v3 = v2d.reshape(bb, skv, num_heads * dh)

    # Hoisted: one broadcast per attention call (JAX does not CSE these).
    mask_b = mask[None]

    # Per-head score / softmax / A@V as bb-batched 3-D einsums (the Mosaic-safe
    # batched-matmul form).  Head outputs are concatenated once; there are no
    # per-head output-projection accumulations or wo row slices.
    heads = []
    for h in range(num_heads):  # static loop over heads
        lo = h * dh
        qh = q3[:, :, lo:lo + dh].astype(jnp.bfloat16)
        kh = k3[:, :, lo:lo + dh].astype(jnp.bfloat16)
        vh = v3[:, :, lo:lo + dh].astype(jnp.bfloat16)
        s = jnp.einsum("bqd,bkd->bqk", qh, kh,
                       preferred_element_type=jnp.float32)
        s = s + mask_b
        p = _softmax(s)
        heads.append(jnp.einsum("bqk,bkd->bqd", p.astype(jnp.bfloat16), vh,
                                preferred_element_type=jnp.float32))
    o = jnp.concatenate(heads, axis=-1).reshape(bb * sq, num_heads * dh)

    # Single output projection with full contraction K = D (fills the MXU).
    return jnp.dot(o.astype(jnp.bfloat16), wo,
                   preferred_element_type=jnp.float32) + bo


# ---------------------------------------------------------------- kernel

def decoder_block_kernel(
    xq_ref, xf_ref, enc_ref, mask_ref,
    wq1_ref, bq1_ref, wk1_ref, bk1_ref, wv1_ref, bv1_ref, wo1_ref, bo1_ref,
    wq2_ref, bq2_ref, wk2_ref, bk2_ref, wv2_ref, bv2_ref, wo2_ref, bo2_ref,
    g1_ref, be1_ref, g2_ref, be2_ref, g3_ref, be3_ref,
    w1_ref, b1_ref, w2_ref, b2_ref,
    out_ref,
    *, num_heads,
):
    bb, bs, d = xq_ref.shape          # query-row tile
    s_kv = xf_ref.shape[1]            # full sequence (self-attn keys/values)
    s_enc = enc_ref.shape[1]          # encoder sequence (cross-attn keys/values)
    dh = d // num_heads

    # fold batch into rows -> 2-D tiles for all dense math
    xq = xq_ref[...].reshape(bb * bs, d)
    xf = xf_ref[...].reshape(bb * s_kv, d)
    enc = enc_ref[...].reshape(bb * s_enc, d)
    mask = mask_ref[...]              # (bs, S) additive mask rows for this q tile

    xq_b = xq.astype(jnp.bfloat16)
    xf_b = xf.astype(jnp.bfloat16)
    enc_b = enc.astype(jnp.bfloat16)

    def proj(act_b, w_ref, b_ref):
        return (jnp.dot(act_b, w_ref[...], preferred_element_type=jnp.float32)
                + b_ref[...])

    # ---- masked multi-head self-attention + add & norm
    q1 = proj(xq_b, wq1_ref, bq1_ref)        # scale folded into wq1/bq1
    k1 = proj(xf_b, wk1_ref, bk1_ref)
    v1 = proj(xf_b, wv1_ref, bv1_ref)
    attn1 = _attention_core(q1, k1, v1, bb, bs, s_kv, num_heads, dh, mask,
                            wo1_ref[...], bo1_ref[...])
    h1 = _layer_norm(xq + attn1, g1_ref[...], be1_ref[...])

    # ---- cross-attention (Q from decoder rows, K/V from encoder) + add & norm
    # The PyTorch DecoderBlock passes `mask` to the cross-attention call too,
    # so it is applied here as well (wrapper asserts S_enc == S).
    q2 = proj(h1.astype(jnp.bfloat16), wq2_ref, bq2_ref)
    k2 = proj(enc_b, wk2_ref, bk2_ref)
    v2 = proj(enc_b, wv2_ref, bv2_ref)
    attn2 = _attention_core(q2, k2, v2, bb, bs, s_enc, num_heads, dh, mask,
                            wo2_ref[...], bo2_ref[...])
    h2 = _layer_norm(h1 + attn2, g2_ref[...], be2_ref[...])

    # ---- position-wise feed-forward (chunked over F) + add & norm
    f = w1_ref.shape[1]
    ff_chunk = f
    for cand in (2048, 1024, 512):
        if f > cand and f % cand == 0:
            ff_chunk = cand
            break
    h2_b = h2.astype(jnp.bfloat16)
    ff = None
    for c in range(f // ff_chunk):           # static loop over F chunks
        lo = c * ff_chunk
        hc = jnp.maximum(
            jnp.dot(h2_b, w1_ref[:, lo:lo + ff_chunk],
                    preferred_element_type=jnp.float32)
            + b1_ref[:, lo:lo + ff_chunk], 0.0)
        contrib = jnp.dot(hc.astype(jnp.bfloat16), w2_ref[lo:lo + ff_chunk, :],
                          preferred_element_type=jnp.float32)
        ff = contrib if ff is None else ff + contrib
    ff = ff + b2_ref[...]

    out = _layer_norm(h2 + ff, g3_ref[...], be3_ref[...])
    out_ref[...] = out.reshape(bb, bs, d)


# ---------------------------------------------------------------- wrapper

def _vmem_limit_bytes(fraction=0.75):
    cap = 128 * 1024 * 1024
    try:
        info = pltpu.get_tpu_info()
        cap = int(getattr(info, "vmem_capacity_bytes", cap))
    except Exception:
        pass
    return int(cap * fraction)


def decoder_block(x, enc, mask, params, num_heads, block_b=None, block_s=None):
    B, S, D = x.shape
    S_enc = enc.shape[1]
    assert D % num_heads == 0
    # The PyTorch module reuses the (S, S) mask for cross-attention, which only
    # makes sense when the encoder sequence length matches the decoder's.
    assert S_enc == S, "cross-attention reuses the (S, S) mask -> S_enc must equal S"
    assert mask.shape == (S, S)
    dh = D // num_heads
    scale = 1.0 / math.sqrt(dh)

    if block_b is None:
        # >= 4 grid steps on the batch axis when B allows (2 TCs on v7x,
        # >= 2 steps per core for DMA/compute overlap).
        block_b = max(1, B // 4)
        while B % block_b:
            block_b -= 1
    assert B % block_b == 0, "batch must be divisible by block_b"

    if block_s is None:
        # Tile the query rows for realistic S so the (bb, bs, S) score tensor
        # and (rows, F) FF intermediate stay small; keep whole S when small.
        block_s = S
        for cand in (256, 128):
            if S > cand and S % cand == 0:
                block_s = cand
                break
    assert S % block_s == 0, "sequence must be divisible by block_s"

    wdt = jnp.bfloat16  # MXU operand dtype (f32 accumulation in-kernel)

    # Separate Q/K/V projections (lane-alignment safe at any D); 1/sqrt(dh) is
    # folded into the Q projections.  For D % 128 == 0 a fused (D, 3D)
    # projection would also be fine; the split form shares the same bf16
    # activations and the same total MXU work.
    weights = [
        (params["wq1"] * scale).astype(wdt), params["bq1"] * scale,
        params["wk1"].astype(wdt), params["bk1"],
        params["wv1"].astype(wdt), params["bv1"],
        params["wo1"].astype(wdt), params["bo1"],
        (params["wq2"] * scale).astype(wdt), params["bq2"] * scale,
        params["wk2"].astype(wdt), params["bk2"],
        params["wv2"].astype(wdt), params["bv2"],
        params["wo2"].astype(wdt), params["bo2"],
        params["g1"], params["be1"], params["g2"], params["be2"],
        params["g3"], params["be3"],
        params["w1"].astype(wdt), params["b1"],
        params["w2"].astype(wdt), params["b2"],
    ]

    kernel = functools.partial(decoder_block_kernel, num_heads=num_heads)
    vmem_limit = _vmem_limit_bytes()

    def build(single_buffer_weights):
        def wspec(arr):
            zeros = (0,) * arr.ndim
            if single_buffer_weights:
                # Grid-invariant weights: single-buffer to halve weight VMEM.
                return pl.BlockSpec(arr.shape, lambda b, q, _z=zeros: _z,
                                    pipeline_mode=pl.Buffered(1))
            return pl.BlockSpec(arr.shape, lambda b, q, _z=zeros: _z)

        in_specs = [
            pl.BlockSpec((block_b, block_s, D), lambda b, q: (b, q, 0)),  # x (query rows)
            pl.BlockSpec((block_b, S, D), lambda b, q: (b, 0, 0)),        # x (full seq, self K/V)
            pl.BlockSpec((block_b, S_enc, D), lambda b, q: (b, 0, 0)),    # enc (cross K/V)
            pl.BlockSpec((block_s, S), lambda b, q: (q, 0)),              # mask rows for q tile
        ] + [wspec(w) for w in weights]

        return pl.pallas_call(
            kernel,
            out_shape=jax.ShapeDtypeStruct((B, S, D), jnp.float32),
            grid=(B // block_b, S // block_s),
            in_specs=in_specs,
            out_specs=pl.BlockSpec((block_b, block_s, D), lambda b, q: (b, q, 0)),
            compiler_params=pltpu.CompilerParams(
                dimension_semantics=("parallel", "parallel"),
                vmem_limit_bytes=vmem_limit,
            ),
        )

    try:
        return build(True)(x, x, enc, mask, *weights)
    except Exception:
        # pl.Buffered(1) not accepted on this jax version / config ->
        # fall back to default double-buffered weight specs.
        return build(False)(x, x, enc, mask, *weights)


# ---------------------------------------------------------------- pure-JAX reference

def _ref_forward(x, enc, mask, p, num_heads):
    def mha(xq, xkv, wq, bq, wk, bk, wv, bv, wo, bo, m):
        S, D = xq.shape
        dh = D // num_heads
        q = (xq @ wq + bq).reshape(S, num_heads, dh)
        k = (xkv @ wk + bk).reshape(-1, num_heads, dh)
        v = (xkv @ wv + bv).reshape(-1, num_heads, dh)
        s = jnp.einsum("qhd,khd->hqk", q, k) / math.sqrt(dh)
        if m is not None:
            s = s + m[None]
        a = jax.nn.softmax(s, axis=-1)
        o = jnp.einsum("hqk,khd->qhd", a, v).reshape(S, D)
        return o @ wo + bo

    def ln(v, g, b):
        mu = v.mean(-1, keepdims=True)
        var = ((v - mu) ** 2).mean(-1, keepdims=True)
        return (v - mu) / jnp.sqrt(var + 1e-5) * g + b

    def one(xb, eb):
        a1 = mha(xb, xb, p["wq1"], p["bq1"], p["wk1"], p["bk1"],
                 p["wv1"], p["bv1"], p["wo1"], p["bo1"], mask)
        h1 = ln(xb + a1, p["g1"], p["be1"])
        # mask is applied to cross-attention too, matching the PyTorch block
        a2 = mha(h1, eb, p["wq2"], p["bq2"], p["wk2"], p["bk2"],
                 p["wv2"], p["bv2"], p["wo2"], p["bo2"], mask)
        h2 = ln(h1 + a2, p["g2"], p["be2"])
        ff = jnp.maximum(h2 @ p["w1"] + p["b1"], 0.0) @ p["w2"] + p["b2"]
        return ln(h2 + ff, p["g3"], p["be3"])

    return jax.vmap(one)(x, enc)


# ---------------------------------------------------------------- main

if __name__ == "__main__":
    B, S, D, H = 2, 16, 32, 4
    F = 4 * D  # feed-forward hidden dim

    key = jax.random.PRNGKey(0)
    keys = jax.random.split(key, 32)
    ki = iter(keys)

    def w(shape):
        return jax.random.normal(next(ki), shape, jnp.float32) * 0.02

    params = {
        # self-attention
        "wq1": w((D, D)), "bq1": jnp.zeros((1, D), jnp.float32),
        "wk1": w((D, D)), "bk1": jnp.zeros((1, D), jnp.float32),
        "wv1": w((D, D)), "bv1": jnp.zeros((1, D), jnp.float32),
        "wo1": w((D, D)), "bo1": jnp.zeros((1, D), jnp.float32),
        # cross-attention
        "wq2": w((D, D)), "bq2": jnp.zeros((1, D), jnp.float32),
        "wk2": w((D, D)), "bk2": jnp.zeros((1, D), jnp.float32),
        "wv2": w((D, D)), "bv2": jnp.zeros((1, D), jnp.float32),
        "wo2": w((D, D)), "bo2": jnp.zeros((1, D), jnp.float32),
        # layer norms
        "g1": jnp.ones((1, D), jnp.float32), "be1": jnp.zeros((1, D), jnp.float32),
        "g2": jnp.ones((1, D), jnp.float32), "be2": jnp.zeros((1, D), jnp.float32),
        "g3": jnp.ones((1, D), jnp.float32), "be3": jnp.zeros((1, D), jnp.float32),
        # feed-forward
        "w1": w((D, F)), "b1": jnp.zeros((1, F), jnp.float32),
        "w2": w((F, D)), "b2": jnp.zeros((1, D), jnp.float32),
    }

    x = jax.random.normal(next(ki), (B, S, D), jnp.float32)
    enc = jax.random.normal(next(ki), (B, S, D), jnp.float32)
    # causal additive mask (0 = attend, -1e9 = masked)
    causal = jnp.tril(jnp.ones((S, S), jnp.float32))
    mask = jnp.where(causal > 0, 0.0, -1e9).astype(jnp.float32)

    # block_b=1, block_s=8 -> 2x2 grid: exercises both the batch tiling and
    # the query-row tiling paths.
    out = decoder_block(x, enc, mask, params, H, block_b=1, block_s=8)
    out = jax.block_until_ready(out)

    ref = _ref_forward(x, enc, mask, params, H)
    assert out.shape == (B, S, D)
    # tolerance accounts for bf16 MXU operands (f32 accumulation) in the kernel
    assert jnp.allclose(out, ref, atol=2e-2, rtol=2e-2), "mismatch vs reference"

    print("KERNEL_OK")
</pallas_src>

<mosaic_0001>
module attributes {stable_mosaic.version = 11 : i64} {
  func.func @decoder_block_kernel(%arg0: i32, %arg1: i32, %arg2: memref<1x8x32xf32, #tpu.memory_space<vmem>>, %arg3: memref<1x16x32xf32, #tpu.memory_space<vmem>>, %arg4: memref<1x16x32xf32, #tpu.memory_space<vmem>>, %arg5: memref<8x16xf32, #tpu.memory_space<vmem>>, %arg6: memref<32x32xbf16, #tpu.memory_space<vmem>>, %arg7: memref<1x32xf32, #tpu.memory_space<vmem>>, %arg8: memref<32x32xbf16, #tpu.memory_space<vmem>>, %arg9: memref<1x32xf32, #tpu.memory_space<vmem>>, %arg10: memref<32x32xbf16, #tpu.memory_space<vmem>>, %arg11: memref<1x32xf32, #tpu.memory_space<vmem>>, %arg12: memref<32x32xbf16, #tpu.memory_space<vmem>>, %arg13: memref<1x32xf32, #tpu.memory_space<vmem>>, %arg14: memref<32x32xbf16, #tpu.memory_space<vmem>>, %arg15: memref<1x32xf32, #tpu.memory_space<vmem>>, %arg16: memref<32x32xbf16, #tpu.memory_space<vmem>>, %arg17: memref<1x32xf32, #tpu.memory_space<vmem>>, %arg18: memref<32x32xbf16, #tpu.memory_space<vmem>>, %arg19: memref<1x32xf32, #tpu.memory_space<vmem>>, %arg20: memref<32x32xbf16, #tpu.memory_space<vmem>>, %arg21: memref<1x32xf32, #tpu.memory_space<vmem>>, %arg22: memref<1x32xf32, #tpu.memory_space<vmem>>, %arg23: memref<1x32xf32, #tpu.memory_space<vmem>>, %arg24: memref<1x32xf32, #tpu.memory_space<vmem>>, %arg25: memref<1x32xf32, #tpu.memory_space<vmem>>, %arg26: memref<1x32xf32, #tpu.memory_space<vmem>>, %arg27: memref<1x32xf32, #tpu.memory_space<vmem>>, %arg28: memref<32x128xbf16, #tpu.memory_space<vmem>>, %arg29: memref<1x128xf32, #tpu.memory_space<vmem>>, %arg30: memref<128x32xbf16, #tpu.memory_space<vmem>>, %arg31: memref<1x32xf32, #tpu.memory_space<vmem>>, %arg32: memref<1x8x32xf32, #tpu.memory_space<vmem>>) attributes {dimension_semantics = [#tpu.dimension_semantics<parallel>, #tpu.dimension_semantics<parallel>], iteration_bounds = array<i64: 2, 2>, scalar_prefetch = 0 : i64, scratch_operands = 0 : i64, tpu.core_type = #tpu.core_type<tc>, window_params = [{transform_indices = @transform_0, window_bounds = array<i64: 1, 8, 32>}, {transform_indices = @transform_1, window_bounds = array<i64: 1, 16, 32>}, {transform_indices = @transform_2, window_bounds = array<i64: 1, 16, 32>}, {transform_indices = @transform_3, window_bounds = array<i64: 8, 16>}, {pipeline_mode = #tpu.pipeline_mode<synchronous>, transform_indices = @transform_4, window_bounds = array<i64: 32, 32>}, {pipeline_mode = #tpu.pipeline_mode<synchronous>, transform_indices = @transform_5, window_bounds = array<i64: 1, 32>}, {pipeline_mode = #tpu.pipeline_mode<synchronous>, transform_indices = @transform_6, window_bounds = array<i64: 32, 32>}, {pipeline_mode = #tpu.pipeline_mode<synchronous>, transform_indices = @transform_7, window_bounds = array<i64: 1, 32>}, {pipeline_mode = #tpu.pipeline_mode<synchronous>, transform_indices = @transform_8, window_bounds = array<i64: 32, 32>}, {pipeline_mode = #tpu.pipeline_mode<synchronous>, transform_indices = @transform_9, window_bounds = array<i64: 1, 32>}, {pipeline_mode = #tpu.pipeline_mode<synchronous>, transform_indices = @transform_10, window_bounds = array<i64: 32, 32>}, {pipeline_mode = #tpu.pipeline_mode<synchronous>, transform_indices = @transform_11, window_bounds = array<i64: 1, 32>}, {pipeline_mode = #tpu.pipeline_mode<synchronous>, transform_indices = @transform_12, window_bounds = array<i64: 32, 32>}, {pipeline_mode = #tpu.pipeline_mode<synchronous>, transform_indices = @transform_13, window_bounds = array<i64: 1, 32>}, {pipeline_mode = #tpu.pipeline_mode<synchronous>, transform_indices = @transform_14, window_bounds = array<i64: 32, 32>}, {pipeline_mode = #tpu.pipeline_mode<synchronous>, transform_indices = @transform_15, window_bounds = array<i64: 1, 32>}, {pipeline_mode = #tpu.pipeline_mode<synchronous>, transform_indices = @transform_16, window_bounds = array<i64: 32, 32>}, {pipeline_mode = #tpu.pipeline_mode<synchronous>, transform_indices = @transform_17, window_bounds = array<i64: 1, 32>}, {pipeline_mode = #tpu.pipeline_mode<synchronous>, transform_indices = @transform_18, window_bounds = array<i64: 32, 32>}, {pipeline_mode = #tpu.pipeline_mode<synchronous>, transform_indices = @transform_19, window_bounds = array<i64: 1, 32>}, {pipeline_mode = #tpu.pipeline_mode<synchronous>, transform_indices = @transform_20, window_bounds = array<i64: 1, 32>}, {pipeline_mode = #tpu.pipeline_mode<synchronous>, transform_indices = @transform_21, window_bounds = array<i64: 1, 32>}, {pipeline_mode = #tpu.pipeline_mode<synchronous>, transform_indices = @transform_22, window_bounds = array<i64: 1, 32>}, {pipeline_mode = #tpu.pipeline_mode<synchronous>, transform_indices = @transform_23, window_bounds = array<i64: 1, 32>}, {pipeline_mode = #tpu.pipeline_mode<synchronous>, transform_indices = @transform_24, window_bounds = array<i64: 1, 32>}, {pipeline_mode = #tpu.pipeline_mode<synchronous>, transform_indices = @transform_25, window_bounds = array<i64: 1, 32>}, {pipeline_mode = #tpu.pipeline_mode<synchronous>, transform_indices = @transform_26, window_bounds = array<i64: 32, 128>}, {pipeline_mode = #tpu.pipeline_mode<synchronous>, transform_indices = @transform_27, window_bounds = array<i64: 1, 128>}, {pipeline_mode = #tpu.pipeline_mode<synchronous>, transform_indices = @transform_28, window_bounds = array<i64: 128, 32>}, {pipeline_mode = #tpu.pipeline_mode<synchronous>, transform_indices = @transform_29, window_bounds = array<i64: 1, 32>}, {transform_indices = @transform_30, window_bounds = array<i64: 1, 8, 32>}]} {
    %c0 = arith.constant 0 : index
    %c0_0 = arith.constant 0 : index
    %c0_1 = arith.constant 0 : index
    %0 = vector.load %arg2[%c0, %c0_0, %c0_1] : memref<1x8x32xf32, #tpu.memory_space<vmem>>, vector<1x8x32xf32>
    %1 = vector.shape_cast %0 : vector<1x8x32xf32> to vector<8x32xf32>
    %c0_2 = arith.constant 0 : index
    %c0_3 = arith.constant 0 : index
    %c0_4 = arith.constant 0 : index
    %2 = vector.load %arg3[%c0_2, %c0_3, %c0_4] : memref<1x16x32xf32, #tpu.memory_space<vmem>>, vector<1x16x32xf32>
    %3 = vector.shape_cast %2 : vector<1x16x32xf32> to vector<16x32xf32>
    %c0_5 = arith.constant 0 : index
    %c0_6 = arith.constant 0 : index
    %c0_7 = arith.constant 0 : index
    %4 = vector.load %arg4[%c0_5, %c0_6, %c0_7] : memref<1x16x32xf32, #tpu.memory_space<vmem>>, vector<1x16x32xf32>
    %5 = vector.shape_cast %4 : vector<1x16x32xf32> to vector<16x32xf32>
    %c0_8 = arith.constant 0 : index
    %c0_9 = arith.constant 0 : index
    %6 = vector.load %arg5[%c0_8, %c0_9] : memref<8x16xf32, #tpu.memory_space<vmem>>, vector<8x16xf32>
    %7 = arith.truncf %1 : vector<8x32xf32> to vector<8x32xbf16>
    %8 = arith.truncf %3 : vector<16x32xf32> to vector<16x32xbf16>
    %9 = arith.truncf %5 : vector<16x32xf32> to vector<16x32xbf16>
    %c0_10 = arith.constant 0 : index
    %c0_11 = arith.constant 0 : index
    %10 = vector.load %arg6[%c0_10, %c0_11] : memref<32x32xbf16, #tpu.memory_space<vmem>>, vector<32x32xbf16>
    %cst = arith.constant dense<0.000000e+00> : vector<8x32xf32>
    %11 = tpu.matmul %7, %10, %cst {dimension_numbers = #tpu.dot_dimension_numbers<[1], [0], [0], [1], [0, 0, 1, 1], [], []>} : vector<8x32xbf16>, vector<32x32xbf16>, vector<8x32xf32> -> vector<8x32xf32>
    %c0_12 = arith.constant 0 : index
    %c0_13 = arith.constant 0 : index
    %12 = vector.load %arg7[%c0_12, %c0_13] : memref<1x32xf32, #tpu.memory_space<vmem>>, vector<1x32xf32>
    %13 = vector.broadcast %12 : vector<1x32xf32> to vector<8x32xf32>
    %14 = arith.addf %11, %13 : vector<8x32xf32>
    %c0_14 = arith.constant 0 : index
    %c0_15 = arith.constant 0 : index
    %15 = vector.load %arg8[%c0_14, %c0_15] : memref<32x32xbf16, #tpu.memory_space<vmem>>, vector<32x32xbf16>
    %cst_16 = arith.constant dense<0.000000e+00> : vector<16x32xf32>
    %16 = tpu.matmul %8, %15, %cst_16 {dimension_numbers = #tpu.dot_dimension_numbers<[1], [0], [0], [1], [0, 0, 1, 1], [], []>} : vector<16x32xbf16>, vector<32x32xbf16>, vector<16x32xf32> -> vector<16x32xf32>
    %c0_17 = arith.constant 0 : index
    %c0_18 = arith.constant 0 : index
    %17 = vector.load %arg9[%c0_17, %c0_18] : memref<1x32xf32, #tpu.memory_space<vmem>>, vector<1x32xf32>
    %18 = vector.broadcast %17 : vector<1x32xf32> to vector<16x32xf32>
    %19 = arith.addf %16, %18 : vector<16x32xf32>
    %c0_19 = arith.constant 0 : index
    %c0_20 = arith.constant 0 : index
    %20 = vector.load %arg10[%c0_19, %c0_20] : memref<32x32xbf16, #tpu.memory_space<vmem>>, vector<32x32xbf16>
    %cst_21 = arith.constant dense<0.000000e+00> : vector<16x32xf32>
    %21 = tpu.matmul %8, %20, %cst_21 {dimension_numbers = #tpu.dot_dimension_numbers<[1], [0], [0], [1], [0, 0, 1, 1], [], []>} : vector<16x32xbf16>, vector<32x32xbf16>, vector<16x32xf32> -> vector<16x32xf32>
    %c0_22 = arith.constant 0 : index
    %c0_23 = arith.constant 0 : index
    %22 = vector.load %arg11[%c0_22, %c0_23] : memref<1x32xf32, #tpu.memory_space<vmem>>, vector<1x32xf32>
    %23 = vector.broadcast %22 : vector<1x32xf32> to vector<16x32xf32>
    %24 = arith.addf %21, %23 : vector<16x32xf32>
    %c0_24 = arith.constant 0 : index
    %c0_25 = arith.constant 0 : index
    %25 = vector.load %arg12[%c0_24, %c0_25] : memref<32x32xbf16, #tpu.memory_space<vmem>>, vector<32x32xbf16>
    %c0_26 = arith.constant 0 : index
    %c0_27 = arith.constant 0 : index
    %26 = vector.load %arg13[%c0_26, %c0_27] : memref<1x32xf32, #tpu.memory_space<vmem>>, vector<1x32xf32>
    %27 = vector.shape_cast %14 : vector<8x32xf32> to vector<1x8x32xf32>
    %28 = vector.shape_cast %19 : vector<16x32xf32> to vector<1x16x32xf32>
    %29 = vector.shape_cast %24 : vector<16x32xf32> to vector<1x16x32xf32>
    %30 = vector.shape_cast %6 : vector<8x16xf32> to vector<1x8x16xf32>
    %31 = vector.extract_strided_slice %27 {offsets = [0, 0, 0], sizes = [1, 8, 8], strides = [1, 1, 1]} : vector<1x8x32xf32> to vector<1x8x8xf32>
    %32 = arith.truncf %31 : vector<1x8x8xf32> to vector<1x8x8xbf16>
    %33 = vector.extract_strided_slice %28 {offsets = [0, 0, 0], sizes = [1, 16, 8], strides = [1, 1, 1]} : vector<1x16x32xf32> to vector<1x16x8xf32>
    %34 = arith.truncf %33 : vector<1x16x8xf32> to vector<1x16x8xbf16>
    %35 = vector.extract_strided_slice %29 {offsets = [0, 0, 0], sizes = [1, 16, 8], strides = [1, 1, 1]} : vector<1x16x32xf32> to vector<1x16x8xf32>
    %36 = arith.truncf %35 : vector<1x16x8xf32> to vector<1x16x8xbf16>
    "tpu.trace_start"() <{level = 10 : i32, message = "bqd,bkd->bqk"}> : () -> ()
    %cst_28 = arith.constant dense<0.000000e+00> : vector<1x8x16xf32>
    %37 = tpu.matmul %32, %34, %cst_28 {dimension_numbers = #tpu.dot_dimension_numbers<[2], [2], [1], [1], [0, 0, 0, 1, 1, 1], [0], [0]>} : vector<1x8x8xbf16>, vector<1x16x8xbf16>, vector<1x8x16xf32> -> vector<1x8x16xf32>
    "tpu.trace_stop"() : () -> ()
    %38 = arith.addf %37, %30 : vector<1x8x16xf32>
    %cst_29 = arith.constant dense<0xFF800000> : vector<1x8xf32>
    %39 = vector.multi_reduction <maximumf>, %38, %cst_29 [2] : vector<1x8x16xf32> to vector<1x8xf32>
    %40 = vector.shape_cast %39 : vector<1x8xf32> to vector<1x8x1xf32>
    %41 = vector.broadcast %40 : vector<1x8x1xf32> to vector<1x8x16xf32>
    %42 = arith.subf %38, %41 : vector<1x8x16xf32>
    %43 = math.exp %42 : vector<1x8x16xf32>
    %cst_30 = arith.constant dense<0.000000e+00> : vector<1x8xf32>
    %44 = vector.multi_reduction <add>, %43, %cst_30 [2] : vector<1x8x16xf32> to vector<1x8xf32>
    %45 = vector.shape_cast %44 : vector<1x8xf32> to vector<1x8x1xf32>
    %46 = tpu.reciprocal %45 {approx = true} : vector<1x8x1xf32> -> vector<1x8x1xf32>
    %47 = vector.broadcast %46 : vector<1x8x1xf32> to vector<1x8x16xf32>
    %48 = arith.mulf %43, %47 : vector<1x8x16xf32>
    %49 = arith.truncf %48 : vector<1x8x16xf32> to vector<1x8x16xbf16>
    "tpu.trace_start"() <{level = 10 : i32, message = "bqk,bkd->bqd"}> : () -> ()
    %cst_31 = arith.constant dense<0.000000e+00> : vector<1x8x8xf32>
    %50 = tpu.matmul %49, %36, %cst_31 {dimension_numbers = #tpu.dot_dimension_numbers<[2], [1], [1], [2], [0, 0, 0, 1, 1, 2], [0], [0]>} : vector<1x8x16xbf16>, vector<1x16x8xbf16>, vector<1x8x8xf32> -> vector<1x8x8xf32>
    "tpu.trace_stop"() : () -> ()
    %51 = vector.extract_strided_slice %27 {offsets = [0, 0, 8], sizes = [1, 8, 8], strides = [1, 1, 1]} : vector<1x8x32xf32> to vector<1x8x8xf32>
    %52 = arith.truncf %51 : vector<1x8x8xf32> to vector<1x8x8xbf16>
    %53 = vector.extract_strided_slice %28 {offsets = [0, 0, 8], sizes = [1, 16, 8], strides = [1, 1, 1]} : vector<1x16x32xf32> to vector<1x16x8xf32>
    %54 = arith.truncf %53 : vector<1x16x8xf32> to vector<1x16x8xbf16>
    %55 = vector.extract_strided_slice %29 {offsets = [0, 0, 8], sizes = [1, 16, 8], strides = [1, 1, 1]} : vector<1x16x32xf32> to vector<1x16x8xf32>
    %56 = arith.truncf %55 : vector<1x16x8xf32> to vector<1x16x8xbf16>
    "tpu.trace_start"() <{level = 10 : i32, message = "bqd,bkd->bqk"}> : () -> ()
    %cst_32 = arith.constant dense<0.000000e+00> : vector<1x8x16xf32>
    %57 = tpu.matmul %52, %54, %cst_32 {dimension_numbers = #tpu.dot_dimension_numbers<[2], [2], [1], [1], [0, 0, 0, 1, 1, 1], [0], [0]>} : vector<1x8x8xbf16>, vector<1x16x8xbf16>, vector<1x8x16xf32> -> vector<1x8x16xf32>
    "tpu.trace_stop"() : () -> ()
    %58 = arith.addf %57, %30 : vector<1x8x16xf32>
    %cst_33 = arith.constant dense<0xFF800000> : vector<1x8xf32>
    %59 = vector.multi_reduction <maximumf>, %58, %cst_33 [2] : vector<1x8x16xf32> to vector<1x8xf32>
    %60 = vector.shape_cast %59 : vector<1x8xf32> to vector<1x8x1xf32>
    %61 = vector.broadcast %60 : vector<1x8x1xf32> to vector<1x8x16xf32>
    %62 = arith.subf %58, %61 : vector<1x8x16xf32>
    %63 = math.exp %62 : vector<1x8x16xf32>
    %cst_34 = arith.constant dense<0.000000e+00> : vector<1x8xf32>
    %64 = vector.multi_reduction <add>, %63, %cst_34 [2] : vector<1x8x16xf32> to vector<1x8xf32>
    %65 = vector.shape_cast %64 : vector<1x8xf32> to vector<1x8x1xf32>
    %66 = tpu.reciprocal %65 {approx = true} : vector<1x8x1xf32> -> vector<1x8x1xf32>
    %67 = vector.broadcast %66 : vector<1x8x1xf32> to vector<1x8x16xf32>
    %68 = arith.mulf %63, %67 : vector<1x8x16xf32>
    %69 = arith.truncf %68 : vector<1x8x16xf32> to vector<1x8x16xbf16>
    "tpu.trace_start"() <{level = 10 : i32, message = "bqk,bkd->bqd"}> : () -> ()
    %cst_35 = arith.constant dense<0.000000e+00> : vector<1x8x8xf32>
    %70 = tpu.matmul %69, %56, %cst_35 {dimension_numbers = #tpu.dot_dimension_numbers<[2], [1], [1], [2], [0, 0, 0, 1, 1, 2], [0], [0]>} : vector<1x8x16xbf16>, vector<1x16x8xbf16>, vector<1x8x8xf32> -> vector<1x8x8xf32>
    "tpu.trace_stop"() : () -> ()
    %71 = vector.extract_strided_slice %27 {offsets = [0, 0, 16], sizes = [1, 8, 8], strides = [1, 1, 1]} : vector<1x8x32xf32> to vector<1x8x8xf32>
    %72 = arith.truncf %71 : vector<1x8x8xf32> to vector<1x8x8xbf16>
    %73 = vector.extract_strided_slice %28 {offsets = [0, 0, 16], sizes = [1, 16, 8], strides = [1, 1, 1]} : vector<1x16x32xf32> to vector<1x16x8xf32>
    %74 = arith.truncf %73 : vector<1x16x8xf32> to vector<1x16x8xbf16>
    %75 = vector.extract_strided_slice %29 {offsets = [0, 0, 16], sizes = [1, 16, 8], strides = [1, 1, 1]} : vector<1x16x32xf32> to vector<1x16x8xf32>
    %76 = arith.truncf %75 : vector<1x16x8xf32> to vector<1x16x8xbf16>
    "tpu.trace_start"() <{level = 10 : i32, message = "bqd,bkd->bqk"}> : () -> ()
    %cst_36 = arith.constant dense<0.000000e+00> : vector<1x8x16xf32>
    %77 = tpu.matmul %72, %74, %cst_36 {dimension_numbers = #tpu.dot_dimension_numbers<[2], [2], [1], [1], [0, 0, 0, 1, 1, 1], [0], [0]>} : vector<1x8x8xbf16>, vector<1x16x8xbf16>, vector<1x8x16xf32> -> vector<1x8x16xf32>
    "tpu.trace_stop"() : () -> ()
    %78 = arith.addf %77, %30 : vector<1x8x16xf32>
    %cst_37 = arith.constant dense<0xFF800000> : vector<1x8xf32>
    %79 = vector.multi_reduction <maximumf>, %78, %cst_37 [2] : vector<1x8x16xf32> to vector<1x8xf32>
    %80 = vector.shape_cast %79 : vector<1x8xf32> to vector<1x8x1xf32>
    %81 = vector.broadcast %80 : vector<1x8x1xf32> to vector<1x8x16xf32>
    %82 = arith.subf %78, %81 : vector<1x8x16xf32>
    %83 = math.exp %82 : vector<1x8x16xf32>
    %cst_38 = arith.constant dense<0.000000e+00> : vector<1x8xf32>
    %84 = vector.multi_reduction <add>, %83, %cst_38 [2] : vector<1x8x16xf32> to vector<1x8xf32>
    %85 = vector.shape_cast %84 : vector<1x8xf32> to vector<1x8x1xf32>
    %86 = tpu.reciprocal %85 {approx = true} : vector<1x8x1xf32> -> vector<1x8x1xf32>
    %87 = vector.broadcast %86 : vector<1x8x1xf32> to vector<1x8x16xf32>
    %88 = arith.mulf %83, %87 : vector<1x8x16xf32>
    %89 = arith.truncf %88 : vector<1x8x16xf32> to vector<1x8x16xbf16>
    "tpu.trace_start"() <{level = 10 : i32, message = "bqk,bkd->bqd"}> : () -> ()
    %cst_39 = arith.constant dense<0.000000e+00> : vector<1x8x8xf32>
    %90 = tpu.matmul %89, %76, %cst_39 {dimension_numbers = #tpu.dot_dimension_numbers<[2], [1], [1], [2], [0, 0, 0, 1, 1, 2], [0], [0]>} : vector<1x8x16xbf16>, vector<1x16x8xbf16>, vector<1x8x8xf32> -> vector<1x8x8xf32>
    "tpu.trace_stop"() : () -> ()
    %91 = vector.extract_strided_slice %27 {offsets = [0, 0, 24], sizes = [1, 8, 8], strides = [1, 1, 1]} : vector<1x8x32xf32> to vector<1x8x8xf32>
    %92 = arith.truncf %91 : vector<1x8x8xf32> to vector<1x8x8xbf16>
    %93 = vector.extract_strided_slice %28 {offsets = [0, 0, 24], sizes = [1, 16, 8], strides = [1, 1, 1]} : vector<1x16x32xf32> to vector<1x16x8xf32>
    %94 = arith.truncf %93 : vector<1x16x8xf32> to vector<1x16x8xbf16>
    %95 = vector.extract_strided_slice %29 {offsets = [0, 0, 24], sizes = [1, 16, 8], strides = [1, 1, 1]} : vector<1x16x32xf32> to vector<1x16x8xf32>
    %96 = arith.truncf %95 : vector<1x16x8xf32> to vector<1x16x8xbf16>
    "tpu.trace_start"() <{level = 10 : i32, message = "bqd,bkd->bqk"}> : () -> ()
    %cst_40 = arith.constant dense<0.000000e+00> : vector<1x8x16xf32>
    %97 = tpu.matmul %92, %94, %cst_40 {dimension_numbers = #tpu.dot_dimension_numbers<[2], [2], [1], [1], [0, 0, 0, 1, 1, 1], [0], [0]>} : vector<1x8x8xbf16>, vector<1x16x8xbf16>, vector<1x8x16xf32> -> vector<1x8x16xf32>
    "tpu.trace_stop"() : () -> ()
    %98 = arith.addf %97, %30 : vector<1x8x16xf32>
    %cst_41 = arith.constant dense<0xFF800000> : vector<1x8xf32>
    %99 = vector.multi_reduction <maximumf>, %98, %cst_41 [2] : vector<1x8x16xf32> to vector<1x8xf32>
    %100 = vector.shape_cast %99 : vector<1x8xf32> to vector<1x8x1xf32>
    %101 = vector.broadcast %100 : vector<1x8x1xf32> to vector<1x8x16xf32>
    %102 = arith.subf %98, %101 : vector<1x8x16xf32>
    %103 = math.exp %102 : vector<1x8x16xf32>
    %cst_42 = arith.constant dense<0.000000e+00> : vector<1x8xf32>
    %104 = vector.multi_reduction <add>, %103, %cst_42 [2] : vector<1x8x16xf32> to vector<1x8xf32>
    %105 = vector.shape_cast %104 : vector<1x8xf32> to vector<1x8x1xf32>
    %106 = tpu.reciprocal %105 {approx = true} : vector<1x8x1xf32> -> vector<1x8x1xf32>
    %107 = vector.broadcast %106 : vector<1x8x1xf32> to vector<1x8x16xf32>
    %108 = arith.mulf %103, %107 : vector<1x8x16xf32>
    %109 = arith.truncf %108 : vector<1x8x16xf32> to vector<1x8x16xbf16>
    "tpu.trace_start"() <{level = 10 : i32, message = "bqk,bkd->bqd"}> : () -> ()
    %cst_43 = arith.constant dense<0.000000e+00> : vector<1x8x8xf32>
    %110 = tpu.matmul %109, %96, %cst_43 {dimension_numbers = #tpu.dot_dimension_numbers<[2], [1], [1], [2], [0, 0, 0, 1, 1, 2], [0], [0]>} : vector<1x8x16xbf16>, vector<1x16x8xbf16>, vector<1x8x8xf32> -> vector<1x8x8xf32>
    "tpu.trace_stop"() : () -> ()
    %111 = tpu.concatenate %50, %70, %90, %110 in 2 : vector<1x8x8xf32>, vector<1x8x8xf32>, vector<1x8x8xf32>, vector<1x8x8xf32> -> vector<1x8x32xf32>
    %112 = vector.shape_cast %111 : vector<1x8x32xf32> to vector<8x32xf32>
    %113 = arith.truncf %112 : vector<8x32xf32> to vector<8x32xbf16>
    %cst_44 = arith.constant dense<0.000000e+00> : vector<8x32xf32>
    %114 = tpu.matmul %113, %25, %cst_44 {dimension_numbers = #tpu.dot_dimension_numbers<[1], [0], [0], [1], [0, 0, 1, 1], [], []>} : vector<8x32xbf16>, vector<32x32xbf16>, vector<8x32xf32> -> vector<8x32xf32>
    %115 = vector.broadcast %26 : vector<1x32xf32> to vector<8x32xf32>
    %116 = arith.addf %114, %115 : vector<8x32xf32>
    %117 = arith.addf %1, %116 : vector<8x32xf32>
    %c0_45 = arith.constant 0 : index
    %c0_46 = arith.constant 0 : index
    %118 = vector.load %arg22[%c0_45, %c0_46] : memref<1x32xf32, #tpu.memory_space<vmem>>, vector<1x32xf32>
    %c0_47 = arith.constant 0 : index
    %c0_48 = arith.constant 0 : index
    %119 = vector.load %arg23[%c0_47, %c0_48] : memref<1x32xf32, #tpu.memory_space<vmem>>, vector<1x32xf32>
    %cst_49 = arith.constant dense<0.000000e+00> : vector<8xf32>
    %120 = vector.multi_reduction <add>, %117, %cst_49 [1] : vector<8x32xf32> to vector<8xf32>
    %121 = vector.shape_cast %120 : vector<8xf32> to vector<8x1xf32>
    %cst_50 = arith.constant 3.200000e+01 : f32
    %122 = vector.broadcast %cst_50 : f32 to vector<8x1xf32>
    %123 = arith.divf %121, %122 : vector<8x1xf32>
    %124 = vector.broadcast %123 : vector<8x1xf32> to vector<8x32xf32>
    %125 = arith.subf %117, %124 : vector<8x32xf32>
    %126 = arith.mulf %125, %125 : vector<8x32xf32>
    %cst_51 = arith.constant dense<0.000000e+00> : vector<8xf32>
    %127 = vector.multi_reduction <add>, %126, %cst_51 [1] : vector<8x32xf32> to vector<8xf32>
    %128 = vector.shape_cast %127 : vector<8xf32> to vector<8x1xf32>
    %cst_52 = arith.constant 3.200000e+01 : f32
    %129 = vector.broadcast %cst_52 : f32 to vector<8x1xf32>
    %130 = arith.divf %128, %129 : vector<8x1xf32>
    %131 = vector.broadcast %123 : vector<8x1xf32> to vector<8x32xf32>
    %132 = arith.subf %117, %131 : vector<8x32xf32>
    %cst_53 = arith.constant 9.99999974E-6 : f32
    %133 = vector.broadcast %cst_53 : f32 to vector<8x1xf32>
    %134 = arith.addf %130, %133 : vector<8x1xf32>
    %135 = math.rsqrt %134 : vector<8x1xf32>
    %136 = vector.broadcast %135 : vector<8x1xf32> to vector<8x32xf32>
    %137 = arith.mulf %132, %136 : vector<8x32xf32>
    %138 = vector.broadcast %118 : vector<1x32xf32> to vector<8x32xf32>
    %139 = arith.mulf %137, %138 : vector<8x32xf32>
    %140 = vector.broadcast %119 : vector<1x32xf32> to vector<8x32xf32>
    %141 = arith.addf %139, %140 : vector<8x32xf32>
    %142 = arith.truncf %141 : vector<8x32xf32> to vector<8x32xbf16>
    %c0_54 = arith.constant 0 : index
    %c0_55 = arith.constant 0 : index
    %143 = vector.load %arg14[%c0_54, %c0_55] : memref<32x32xbf16, #tpu.memory_space<vmem>>, vector<32x32xbf16>
    %cst_56 = arith.constant dense<0.000000e+00> : vector<8x32xf32>
    %144 = tpu.matmul %142, %143, %cst_56 {dimension_numbers = #tpu.dot_dimension_numbers<[1], [0], [0], [1], [0, 0, 1, 1], [], []>} : vector<8x32xbf16>, vector<32x32xbf16>, vector<8x32xf32> -> vector<8x32xf32>
    %c0_57 = arith.constant 0 : index
    %c0_58 = arith.constant 0 : index
    %145 = vector.load %arg15[%c0_57, %c0_58] : memref<1x32xf32, #tpu.memory_space<vmem>>, vector<1x32xf32>
    %146 = vector.broadcast %145 : vector<1x32xf32> to vector<8x32xf32>
    %147 = arith.addf %144, %146 : vector<8x32xf32>
    %c0_59 = arith.constant 0 : index
    %c0_60 = arith.constant 0 : index
    %148 = vector.load %arg16[%c0_59, %c0_60] : memref<32x32xbf16, #tpu.memory_space<vmem>>, vector<32x32xbf16>
    %cst_61 = arith.constant dense<0.000000e+00> : vector<16x32xf32>
    %149 = tpu.matmul %9, %148, %cst_61 {dimension_numbers = #tpu.dot_dimension_numbers<[1], [0], [0], [1], [0, 0, 1, 1], [], []>} : vector<16x32xbf16>, vector<32x32xbf16>, vector<16x32xf32> -> vector<16x32xf32>
    %c0_62 = arith.constant 0 : index
    %c0_63 = arith.constant 0 : index
    %150 = vector.load %arg17[%c0_62, %c0_63] : memref<1x32xf32, #tpu.memory_space<vmem>>, vector<1x32xf32>
    %151 = vector.broadcast %150 : vector<1x32xf32> to vector<16x32xf32>
    %152 = arith.addf %149, %151 : vector<16x32xf32>
    %c0_64 = arith.constant 0 : index
    %c0_65 = arith.constant 0 : index
    %153 = vector.load %arg18[%c0_64, %c0_65] : memref<32x32xbf16, #tpu.memory_space<vmem>>, vector<32x32xbf16>
    %cst_66 = arith.constant dense<0.000000e+00> : vector<16x32xf32>
    %154 = tpu.matmul %9, %153, %cst_66 {dimension_numbers = #tpu.dot_dimension_numbers<[1], [0], [0], [1], [0, 0, 1, 1], [], []>} : vector<16x32xbf16>, vector<32x32xbf16>, vector<16x32xf32> -> vector<16x32xf32>
    %c0_67 = arith.constant 0 : index
    %c0_68 = arith.constant 0 : index
    %155 = vector.load %arg19[%c0_67, %c0_68] : memref<1x32xf32, #tpu.memory_space<vmem>>, vector<1x32xf32>
    %156 = vector.broadcast %155 : vector<1x32xf32> to vector<16x32xf32>
    %157 = arith.addf %154, %156 : vector<16x32xf32>
    %c0_69 = arith.constant 0 : index
    %c0_70 = arith.constant 0 : index
    %158 = vector.load %arg20[%c0_69, %c0_70] : memref<32x32xbf16, #tpu.memory_space<vmem>>, vector<32x32xbf16>
    %c0_71 = arith.constant 0 : index
    %c0_72 = arith.constant 0 : index
    %159 = vector.load %arg21[%c0_71, %c0_72] : memref<1x32xf32, #tpu.memory_space<vmem>>, vector<1x32xf32>
    %160 = vector.shape_cast %147 : vector<8x32xf32> to vector<1x8x32xf32>
    %161 = vector.shape_cast %152 : vector<16x32xf32> to vector<1x16x32xf32>
    %162 = vector.shape_cast %157 : vector<16x32xf32> to vector<1x16x32xf32>
    %163 = vector.shape_cast %6 : vector<8x16xf32> to vector<1x8x16xf32>
    %164 = vector.extract_strided_slice %160 {offsets = [0, 0, 0], sizes = [1, 8, 8], strides = [1, 1, 1]} : vector<1x8x32xf32> to vector<1x8x8xf32>
    %165 = arith.truncf %164 : vector<1x8x8xf32> to vector<1x8x8xbf16>
    %166 = vector.extract_strided_slice %161 {offsets = [0, 0, 0], sizes = [1, 16, 8], strides = [1, 1, 1]} : vector<1x16x32xf32> to vector<1x16x8xf32>
    %167 = arith.truncf %166 : vector<1x16x8xf32> to vector<1x16x8xbf16>
    %168 = vector.extract_strided_slice %162 {offsets = [0, 0, 0], sizes = [1, 16, 8], strides = [1, 1, 1]} : vector<1x16x32xf32> to vector<1x16x8xf32>
    %169 = arith.truncf %168 : vector<1x16x8xf32> to vector<1x16x8xbf16>
    "tpu.trace_start"() <{level = 10 : i32, message = "bqd,bkd->bqk"}> : () -> ()
    %cst_73 = arith.constant dense<0.000000e+00> : vector<1x8x16xf32>
    %170 = tpu.matmul %165, %167, %cst_73 {dimension_numbers = #tpu.dot_dimension_numbers<[2], [2], [1], [1], [0, 0, 0, 1, 1, 1], [0], [0]>} : vector<1x8x8xbf16>, vector<1x16x8xbf16>, vector<1x8x16xf32> -> vector<1x8x16xf32>
    "tpu.trace_stop"() : () -> ()
    %171 = arith.addf %170, %163 : vector<1x8x16xf32>
    %cst_74 = arith.constant dense<0xFF800000> : vector<1x8xf32>
    %172 = vector.multi_reduction <maximumf>, %171, %cst_74 [2] : vector<1x8x16xf32> to vector<1x8xf32>
    %173 = vector.shape_cast %172 : vector<1x8xf32> to vector<1x8x1xf32>
    %174 = vector.broadcast %173 : vector<1x8x1xf32> to vector<1x8x16xf32>
    %175 = arith.subf %171, %174 : vector<1x8x16xf32>
    %176 = math.exp %175 : vector<1x8x16xf32>
    %cst_75 = arith.constant dense<0.000000e+00> : vector<1x8xf32>
    %177 = vector.multi_reduction <add>, %176, %cst_75 [2] : vector<1x8x16xf32> to vector<1x8xf32>
    %178 = vector.shape_cast %177 : vector<1x8xf32> to vector<1x8x1xf32>
    %179 = tpu.reciprocal %178 {approx = true} : vector<1x8x1xf32> -> vector<1x8x1xf32>
    %180 = vector.broadcast %179 : vector<1x8x1xf32> to vector<1x8x16xf32>
    %181 = arith.mulf %176, %180 : vector<1x8x16xf32>
    %182 = arith.truncf %181 : vector<1x8x16xf32> to vector<1x8x16xbf16>
    "tpu.trace_start"() <{level = 10 : i32, message = "bqk,bkd->bqd"}> : () -> ()
    %cst_76 = arith.constant dense<0.000000e+00> : vector<1x8x8xf32>
    %183 = tpu.matmul %182, %169, %cst_76 {dimension_numbers = #tpu.dot_dimension_numbers<[2], [1], [1], [2], [0, 0, 0, 1, 1, 2], [0], [0]>} : vector<1x8x16xbf16>, vector<1x16x8xbf16>, vector<1x8x8xf32> -> vector<1x8x8xf32>
    "tpu.trace_stop"() : () -> ()
    %184 = vector.extract_strided_slice %160 {offsets = [0, 0, 8], sizes = [1, 8, 8], strides = [1, 1, 1]} : vector<1x8x32xf32> to vector<1x8x8xf32>
    %185 = arith.truncf %184 : vector<1x8x8xf32> to vector<1x8x8xbf16>
    %186 = vector.extract_strided_slice %161 {offsets = [0, 0, 8], sizes = [1, 16, 8], strides = [1, 1, 1]} : vector<1x16x32xf32> to vector<1x16x8xf32>
    %187 = arith.truncf %186 : vector<1x16x8xf32> to vector<1x16x8xbf16>
    %188 = vector.extract_strided_slice %162 {offsets = [0, 0, 8], sizes = [1, 16, 8], strides = [1, 1, 1]} : vector<1x16x32xf32> to vector<1x16x8xf32>
    %189 = arith.truncf %188 : vector<1x16x8xf32> to vector<1x16x8xbf16>
    "tpu.trace_start"() <{level = 10 : i32, message = "bqd,bkd->bqk"}> : () -> ()
    %cst_77 = arith.constant dense<0.000000e+00> : vector<1x8x16xf32>
    %190 = tpu.matmul %185, %187, %cst_77 {dimension_numbers = #tpu.dot_dimension_numbers<[2], [2], [1], [1], [0, 0, 0, 1, 1, 1], [0], [0]>} : vector<1x8x8xbf16>, vector<1x16x8xbf16>, vector<1x8x16xf32> -> vector<1x8x16xf32>
    "tpu.trace_stop"() : () -> ()
    %191 = arith.addf %190, %163 : vector<1x8x16xf32>
    %cst_78 = arith.constant dense<0xFF800000> : vector<1x8xf32>
    %192 = vector.multi_reduction <maximumf>, %191, %cst_78 [2] : vector<1x8x16xf32> to vector<1x8xf32>
    %193 = vector.shape_cast %192 : vector<1x8xf32> to vector<1x8x1xf32>
    %194 = vector.broadcast %193 : vector<1x8x1xf32> to vector<1x8x16xf32>
    %195 = arith.subf %191, %194 : vector<1x8x16xf32>
    %196 = math.exp %195 : vector<1x8x16xf32>
    %cst_79 = arith.constant dense<0.000000e+00> : vector<1x8xf32>
    %197 = vector.multi_reduction <add>, %196, %cst_79 [2] : vector<1x8x16xf32> to vector<1x8xf32>
    %198 = vector.shape_cast %197 : vector<1x8xf32> to vector<1x8x1xf32>
    %199 = tpu.reciprocal %198 {approx = true} : vector<1x8x1xf32> -> vector<1x8x1xf32>
    %200 = vector.broadcast %199 : vector<1x8x1xf32> to vector<1x8x16xf32>
    %201 = arith.mulf %196, %200 : vector<1x8x16xf32>
    %202 = arith.truncf %201 : vector<1x8x16xf32> to vector<1x8x16xbf16>
    "tpu.trace_start"() <{level = 10 : i32, message = "bqk,bkd->bqd"}> : () -> ()
    %cst_80 = arith.constant dense<0.000000e+00> : vector<1x8x8xf32>
    %203 = tpu.matmul %202, %189, %cst_80 {dimension_numbers = #tpu.dot_dimension_numbers<[2], [1], [1], [2], [0, 0, 0, 1, 1, 2], [0], [0]>} : vector<1x8x16xbf16>, vector<1x16x8xbf16>, vector<1x8x8xf32> -> vector<1x8x8xf32>
    "tpu.trace_stop"() : () -> ()
    %204 = vector.extract_strided_slice %160 {offsets = [0, 0, 16], sizes = [1, 8, 8], strides = [1, 1, 1]} : vector<1x8x32xf32> to vector<1x8x8xf32>
    %205 = arith.truncf %204 : vector<1x8x8xf32> to vector<1x8x8xbf16>
    %206 = vector.extract_strided_slice %161 {offsets = [0, 0, 16], sizes = [1, 16, 8], strides = [1, 1, 1]} : vector<1x16x32xf32> to vector<1x16x8xf32>
    %207 = arith.truncf %206 : vector<1x16x8xf32> to vector<1x16x8xbf16>
    %208 = vector.extract_strided_slice %162 {offsets = [0, 0, 16], sizes = [1, 16, 8], strides = [1, 1, 1]} : vector<1x16x32xf32> to vector<1x16x8xf32>
    %209 = arith.truncf %208 : vector<1x16x8xf32> to vector<1x16x8xbf16>
    "tpu.trace_start"() <{level = 10 : i32, message = "bqd,bkd->bqk"}> : () -> ()
    %cst_81 = arith.constant dense<0.000000e+00> : vector<1x8x16xf32>
    %210 = tpu.matmul %205, %207, %cst_81 {dimension_numbers = #tpu.dot_dimension_numbers<[2], [2], [1], [1], [0, 0, 0, 1, 1, 1], [0], [0]>} : vector<1x8x8xbf16>, vector<1x16x8xbf16>, vector<1x8x16xf32> -> vector<1x8x16xf32>
    "tpu.trace_stop"() : () -> ()
    %211 = arith.addf %210, %163 : vector<1x8x16xf32>
    %cst_82 = arith.constant dense<0xFF800000> : vector<1x8xf32>
    %212 = vector.multi_reduction <maximumf>, %211, %cst_82 [2] : vector<1x8x16xf32> to vector<1x8xf32>
    %213 = vector.shape_cast %212 : vector<1x8xf32> to vector<1x8x1xf32>
    %214 = vector.broadcast %213 : vector<1x8x1xf32> to vector<1x8x16xf32>
    %215 = arith.subf %211, %214 : vector<1x8x16xf32>
    %216 = math.exp %215 : vector<1x8x16xf32>
    %cst_83 = arith.constant dense<0.000000e+00> : vector<1x8xf32>
    %217 = vector.multi_reduction <add>, %216, %cst_83 [2] : vector<1x8x16xf32> to vector<1x8xf32>
    %218 = vector.shape_cast %217 : vector<1x8xf32> to vector<1x8x1xf32>
    %219 = tpu.reciprocal %218 {approx = true} : vector<1x8x1xf32> -> vector<1x8x1xf32>
    %220 = vector.broadcast %219 : vector<1x8x1xf32> to vector<1x8x16xf32>
    %221 = arith.mulf %216, %220 : vector<1x8x16xf32>
    %222 = arith.truncf %221 : vector<1x8x16xf32> to vector<1x8x16xbf16>
    "tpu.trace_start"() <{level = 10 : i32, message = "bqk,bkd->bqd"}> : () -> ()
    %cst_84 = arith.constant dense<0.000000e+00> : vector<1x8x8xf32>
    %223 = tpu.matmul %222, %209, %cst_84 {dimension_numbers = #tpu.dot_dimension_numbers<[2], [1], [1], [2], [0, 0, 0, 1, 1, 2], [0], [0]>} : vector<1x8x16xbf16>, vector<1x16x8xbf16>, vector<1x8x8xf32> -> vector<1x8x8xf32>
    "tpu.trace_stop"() : () -> ()
    %224 = vector.extract_strided_slice %160 {offsets = [0, 0, 24], sizes = [1, 8, 8], strides = [1, 1, 1]} : vector<1x8x32xf32> to vector<1x8x8xf32>
    %225 = arith.truncf %224 : vector<1x8x8xf32> to vector<1x8x8xbf16>
    %226 = vector.extract_strided_slice %161 {offsets = [0, 0, 24], sizes = [1, 16, 8], strides = [1, 1, 1]} : vector<1x16x32xf32> to vector<1x16x8xf32>
    %227 = arith.truncf %226 : vector<1x16x8xf32> to vector<1x16x8xbf16>
    %228 = vector.extract_strided_slice %162 {offsets = [0, 0, 24], sizes = [1, 16, 8], strides = [1, 1, 1]} : vector<1x16x32xf32> to vector<1x16x8xf32>
    %229 = arith.truncf %228 : vector<1x16x8xf32> to vector<1x16x8xbf16>
    "tpu.trace_start"() <{level = 10 : i32, message = "bqd,bkd->bqk"}> : () -> ()
    %cst_85 = arith.constant dense<0.000000e+00> : vector<1x8x16xf32>
    %230 = tpu.matmul %225, %227, %cst_85 {dimension_numbers = #tpu.dot_dimension_numbers<[2], [2], [1], [1], [0, 0, 0, 1, 1, 1], [0], [0]>} : vector<1x8x8xbf16>, vector<1x16x8xbf16>, vector<1x8x16xf32> -> vector<1x8x16xf32>
    "tpu.trace_stop"() : () -> ()
    %231 = arith.addf %230, %163 : vector<1x8x16xf32>
    %cst_86 = arith.constant dense<0xFF800000> : vector<1x8xf32>
    %232 = vector.multi_reduction <maximumf>, %231, %cst_86 [2] : vector<1x8x16xf32> to vector<1x8xf32>
    %233 = vector.shape_cast %232 : vector<1x8xf32> to vector<1x8x1xf32>
    %234 = vector.broadcast %233 : vector<1x8x1xf32> to vector<1x8x16xf32>
    %235 = arith.subf %231, %234 : vector<1x8x16xf32>
    %236 = math.exp %235 : vector<1x8x16xf32>
    %cst_87 = arith.constant dense<0.000000e+00> : vector<1x8xf32>
    %237 = vector.multi_reduction <add>, %236, %cst_87 [2] : vector<1x8x16xf32> to vector<1x8xf32>
    %238 = vector.shape_cast %237 : vector<1x8xf32> to vector<1x8x1xf32>
    %239 = tpu.reciprocal %238 {approx = true} : vector<1x8x1xf32> -> vector<1x8x1xf32>
    %240 = vector.broadcast %239 : vector<1x8x1xf32> to vector<1x8x16xf32>
    %241 = arith.mulf %236, %240 : vector<1x8x16xf32>
    %242 = arith.truncf %241 : vector<1x8x16xf32> to vector<1x8x16xbf16>
    "tpu.trace_start"() <{level = 10 : i32, message = "bqk,bkd->bqd"}> : () -> ()
    %cst_88 = arith.constant dense<0.000000e+00> : vector<1x8x8xf32>
    %243 = tpu.matmul %242, %229, %cst_88 {dimension_numbers = #tpu.dot_dimension_numbers<[2], [1], [1], [2], [0, 0, 0, 1, 1, 2], [0], [0]>} : vector<1x8x16xbf16>, vector<1x16x8xbf16>, vector<1x8x8xf32> -> vector<1x8x8xf32>
    "tpu.trace_stop"() : () -> ()
    %244 = tpu.concatenate %183, %203, %223, %243 in 2 : vector<1x8x8xf32>, vector<1x8x8xf32>, vector<1x8x8xf32>, vector<1x8x8xf32> -> vector<1x8x32xf32>
    %245 = vector.shape_cast %244 : vector<1x8x32xf32> to vector<8x32xf32>
    %246 = arith.truncf %245 : vector<8x32xf32> to vector<8x32xbf16>
    %cst_89 = arith.constant dense<0.000000e+00> : vector<8x32xf32>
    %247 = tpu.matmul %246, %158, %cst_89 {dimension_numbers = #tpu.dot_dimension_numbers<[1], [0], [0], [1], [0, 0, 1, 1], [], []>} : vector<8x32xbf16>, vector<32x32xbf16>, vector<8x32xf32> -> vector<8x32xf32>
    %248 = vector.broadcast %159 : vector<1x32xf32> to vector<8x32xf32>
    %249 = arith.addf %247, %248 : vector<8x32xf32>
    %250 = arith.addf %141, %249 : vector<8x32xf32>
    %c0_90 = arith.constant 0 : index
    %c0_91 = arith.constant 0 : index
    %251 = vector.load %arg24[%c0_90, %c0_91] : memref<1x32xf32, #tpu.memory_space<vmem>>, vector<1x32xf32>
    %c0_92 = arith.constant 0 : index
    %c0_93 = arith.constant 0 : index
    %252 = vector.load %arg25[%c0_92, %c0_93] : memref<1x32xf32, #tpu.memory_space<vmem>>, vector<1x32xf32>
    %cst_94 = arith.constant dense<0.000000e+00> : vector<8xf32>
    %253 = vector.multi_reduction <add>, %250, %cst_94 [1] : vector<8x32xf32> to vector<8xf32>
    %254 = vector.shape_cast %253 : vector<8xf32> to vector<8x1xf32>
    %cst_95 = arith.constant 3.200000e+01 : f32
    %255 = vector.broadcast %cst_95 : f32 to vector<8x1xf32>
    %256 = arith.divf %254, %255 : vector<8x1xf32>
    %257 = vector.broadcast %256 : vector<8x1xf32> to vector<8x32xf32>
    %258 = arith.subf %250, %257 : vector<8x32xf32>
    %259 = arith.mulf %258, %258 : vector<8x32xf32>
    %cst_96 = arith.constant dense<0.000000e+00> : vector<8xf32>
    %260 = vector.multi_reduction <add>, %259, %cst_96 [1] : vector<8x32xf32> to vector<8xf32>
    %261 = vector.shape_cast %260 : vector<8xf32> to vector<8x1xf32>
    %cst_97 = arith.constant 3.200000e+01 : f32
    %262 = vector.broadcast %cst_97 : f32 to vector<8x1xf32>
    %263 = arith.divf %261, %262 : vector<8x1xf32>
    %264 = vector.broadcast %256 : vector<8x1xf32> to vector<8x32xf32>
    %265 = arith.subf %250, %264 : vector<8x32xf32>
    %cst_98 = arith.constant 9.99999974E-6 : f32
    %266 = vector.broadcast %cst_98 : f32 to vector<8x1xf32>
    %267 = arith.addf %263, %266 : vector<8x1xf32>
    %268 = math.rsqrt %267 : vector<8x1xf32>
    %269 = vector.broadcast %268 : vector<8x1xf32> to vector<8x32xf32>
    %270 = arith.mulf %265, %269 : vector<8x32xf32>
    %271 = vector.broadcast %251 : vector<1x32xf32> to vector<8x32xf32>
    %272 = arith.mulf %270, %271 : vector<8x32xf32>
    %273 = vector.broadcast %252 : vector<1x32xf32> to vector<8x32xf32>
    %274 = arith.addf %272, %273 : vector<8x32xf32>
    %275 = arith.truncf %274 : vector<8x32xf32> to vector<8x32xbf16>
    %c0_99 = arith.constant 0 : index
    %c0_100 = arith.constant 0 : index
    %276 = vector.load %arg28[%c0_99, %c0_100] : memref<32x128xbf16, #tpu.memory_space<vmem>>, vector<32x128xbf16>
    %cst_101 = arith.constant dense<0.000000e+00> : vector<8x128xf32>
    %277 = tpu.matmul %275, %276, %cst_101 {dimension_numbers = #tpu.dot_dimension_numbers<[1], [0], [0], [1], [0, 0, 1, 1], [], []>} : vector<8x32xbf16>, vector<32x128xbf16>, vector<8x128xf32> -> vector<8x128xf32>
    %c0_102 = arith.constant 0 : index
    %c0_103 = arith.constant 0 : index
    %278 = vector.load %arg29[%c0_102, %c0_103] : memref<1x128xf32, #tpu.memory_space<vmem>>, vector<1x128xf32>
    %279 = vector.broadcast %278 : vector<1x128xf32> to vector<8x128xf32>
    %280 = arith.addf %277, %279 : vector<8x128xf32>
    %cst_104 = arith.constant 0.000000e+00 : f32
    %281 = vector.broadcast %cst_104 : f32 to vector<8x128xf32>
    %282 = arith.maximumf %280, %281 : vector<8x128xf32>
    %283 = arith.truncf %282 : vector<8x128xf32> to vector<8x128xbf16>
    %c0_105 = arith.constant 0 : index
    %c0_106 = arith.constant 0 : index
    %284 = vector.load %arg30[%c0_105, %c0_106] : memref<128x32xbf16, #tpu.memory_space<vmem>>, vector<128x32xbf16>
    %cst_107 = arith.constant dense<0.000000e+00> : vector<8x32xf32>
    %285 = tpu.matmul %283, %284, %cst_107 {dimension_numbers = #tpu.dot_dimension_numbers<[1], [0], [0], [1], [0, 0, 1, 1], [], []>} : vector<8x128xbf16>, vector<128x32xbf16>, vector<8x32xf32> -> vector<8x32xf32>
    %c0_108 = arith.constant 0 : index
    %c0_109 = arith.constant 0 : index
    %286 = vector.load %arg31[%c0_108, %c0_109] : memref<1x32xf32, #tpu.memory_space<vmem>>, vector<1x32xf32>
    %287 = vector.broadcast %286 : vector<1x32xf32> to vector<8x32xf32>
    %288 = arith.addf %285, %287 : vector<8x32xf32>
    %289 = arith.addf %274, %288 : vector<8x32xf32>
    %c0_110 = arith.constant 0 : index
    %c0_111 = arith.constant 0 : index
    %290 = vector.load %arg26[%c0_110, %c0_111] : memref<1x32xf32, #tpu.memory_space<vmem>>, vector<1x32xf32>
    %c0_112 = arith.constant 0 : index
    %c0_113 = arith.constant 0 : index
    %291 = vector.load %arg27[%c0_112, %c0_113] : memref<1x32xf32, #tpu.memory_space<vmem>>, vector<1x32xf32>
    %cst_114 = arith.constant dense<0.000000e+00> : vector<8xf32>
    %292 = vector.multi_reduction <add>, %289, %cst_114 [1] : vector<8x32xf32> to vector<8xf32>
    %293 = vector.shape_cast %292 : vector<8xf32> to vector<8x1xf32>
    %cst_115 = arith.constant 3.200000e+01 : f32
    %294 = vector.broadcast %cst_115 : f32 to vector<8x1xf32>
    %295 = arith.divf %293, %294 : vector<8x1xf32>
    %296 = vector.broadcast %295 : vector<8x1xf32> to vector<8x32xf32>
    %297 = arith.subf %289, %296 : vector<8x32xf32>
    %298 = arith.mulf %297, %297 : vector<8x32xf32>
    %cst_116 = arith.constant dense<0.000000e+00> : vector<8xf32>
    %299 = vector.multi_reduction <add>, %298, %cst_116 [1] : vector<8x32xf32> to vector<8xf32>
    %300 = vector.shape_cast %299 : vector<8xf32> to vector<8x1xf32>
    %cst_117 = arith.constant 3.200000e+01 : f32
    %301 = vector.broadcast %cst_117 : f32 to vector<8x1xf32>
    %302 = arith.divf %300, %301 : vector<8x1xf32>
    %303 = vector.broadcast %295 : vector<8x1xf32> to vector<8x32xf32>
    %304 = arith.subf %289, %303 : vector<8x32xf32>
    %cst_118 = arith.constant 9.99999974E-6 : f32
    %305 = vector.broadcast %cst_118 : f32 to vector<8x1xf32>
    %306 = arith.addf %302, %305 : vector<8x1xf32>
    %307 = math.rsqrt %306 : vector<8x1xf32>
    %308 = vector.broadcast %307 : vector<8x1xf32> to vector<8x32xf32>
    %309 = arith.mulf %304, %308 : vector<8x32xf32>
    %310 = vector.broadcast %290 : vector<1x32xf32> to vector<8x32xf32>
    %311 = arith.mulf %309, %310 : vector<8x32xf32>
    %312 = vector.broadcast %291 : vector<1x32xf32> to vector<8x32xf32>
    %313 = arith.addf %311, %312 : vector<8x32xf32>
    %314 = vector.shape_cast %313 : vector<8x32xf32> to vector<1x8x32xf32>
    %c0_119 = arith.constant 0 : index
    %c0_120 = arith.constant 0 : index
    %c0_121 = arith.constant 0 : index
    %315 = vector.load %arg32[%c0_119, %c0_120, %c0_121] : memref<1x8x32xf32, #tpu.memory_space<vmem>>, vector<1x8x32xf32>
    tpu.vector_store %arg32[%c0_119, %c0_120, %c0_121], %314 {strides = array<i32>} : memref<1x8x32xf32, #tpu.memory_space<vmem>>, vector<1x8x32xf32>,
    return
  }
  func.func @transform_0(%arg0: i32, %arg1: i32) -> (i32, i32, i32) {
    %c0_i32 = arith.constant 0 : i32
    %c0_i32_0 = arith.constant 0 : i32
    return %arg0, %arg1, %c0_i32 : i32, i32, i32
  }
  func.func @transform_1(%arg0: i32, %arg1: i32) -> (i32, i32, i32) {
    %c0_i32 = arith.constant 0 : i32
    %c0_i32_0 = arith.constant 0 : i32
    %c0_i32_1 = arith.constant 0 : i32
    return %arg0, %c0_i32, %c0_i32_0 : i32, i32, i32
  }
  func.func @transform_2(%arg0: i32, %arg1: i32) -> (i32, i32, i32) {
    %c0_i32 = arith.constant 0 : i32
    %c0_i32_0 = arith.constant 0 : i32
    %c0_i32_1 = arith.constant 0 : i32
    return %arg0, %c0_i32, %c0_i32_0 : i32, i32, i32
  }
  func.func @transform_3(%arg0: i32, %arg1: i32) -> (i32, i32) {
    %c0_i32 = arith.constant 0 : i32
    %c0_i32_0 = arith.constant 0 : i32
    return %arg1, %c0_i32 : i32, i32
  }
  func.func @transform_4(%arg0: i32, %arg1: i32) -> (i32, i32) {
    %c0_i32 = arith.constant 0 : i32
    %c0_i32_0 = arith.constant 0 : i32
    %c0_i32_1 = arith.constant 0 : i32
    return %c0_i32, %c0_i32_0 : i32, i32
  }
  func.func @transform_5(%arg0: i32, %arg1: i32) -> (i32, i32) {
    %c0_i32 = arith.constant 0 : i32
    %c0_i32_0 = arith.constant 0 : i32
    %c0_i32_1 = arith.constant 0 : i32
    return %c0_i32, %c0_i32_0 : i32, i32
  }
  func.func @transform_6(%arg0: i32, %arg1: i32) -> (i32, i32) {
    %c0_i32 = arith.constant 0 : i32
    %c0_i32_0 = arith.constant 0 : i32
    %c0_i32_1 = arith.constant 0 : i32
    return %c0_i32, %c0_i32_0 : i32, i32
  }
  func.func @transform_7(%arg0: i32, %arg1: i32) -> (i32, i32) {
    %c0_i32 = arith.constant 0 : i32
    %c0_i32_0 = arith.constant 0 : i32
    %c0_i32_1 = arith.constant 0 : i32
    return %c0_i32, %c0_i32_0 : i32, i32
  }
  func.func @transform_8(%arg0: i32, %arg1: i32) -> (i32, i32) {
    %c0_i32 = arith.constant 0 : i32
    %c0_i32_0 = arith.constant 0 : i32
    %c0_i32_1 = arith.constant 0 : i32
    return %c0_i32, %c0_i32_0 : i32, i32
  }
  func.func @transform_9(%arg0: i32, %arg1: i32) -> (i32, i32) {
    %c0_i32 = arith.constant 0 : i32
    %c0_i32_0 = arith.constant 0 : i32
    %c0_i32_1 = arith.constant 0 : i32
    return %c0_i32, %c0_i32_0 : i32, i32
  }
  func.func @transform_10(%arg0: i32, %arg1: i32) -> (i32, i32) {
    %c0_i32 = arith.constant 0 : i32
    %c0_i32_0 = arith.constant 0 : i32
    %c0_i32_1 = arith.constant 0 : i32
    return %c0_i32, %c0_i32_0 : i32, i32
  }
  func.func @transform_11(%arg0: i32, %arg1: i32) -> (i32, i32) {
    %c0_i32 = arith.constant 0 : i32
    %c0_i32_0 = arith.constant 0 : i32
    %c0_i32_1 = arith.constant 0 : i32
    return %c0_i32, %c0_i32_0 : i32, i32
  }
  func.func @transform_12(%arg0: i32, %arg1: i32) -> (i32, i32) {
    %c0_i32 = arith.constant 0 : i32
    %c0_i32_0 = arith.constant 0 : i32
    %c0_i32_1 = arith.constant 0 : i32
    return %c0_i32, %c0_i32_0 : i32, i32
  }
  func.func @transform_13(%arg0: i32, %arg1: i32) -> (i32, i32) {
    %c0_i32 = arith.constant 0 : i32
    %c0_i32_0 = arith.constant 0 : i32
    %c0_i32_1 = arith.constant 0 : i32
    return %c0_i32, %c0_i32_0 : i32, i32
  }
  func.func @transform_14(%arg0: i32, %arg1: i32) -> (i32, i32) {
    %c0_i32 = arith.constant 0 : i32
    %c0_i32_0 = arith.constant 0 : i32
    %c0_i32_1 = arith.constant 0 : i32
    return %c0_i32, %c0_i32_0 : i32, i32
  }
  func.func @transform_15(%arg0: i32, %arg1: i32) -> (i32, i32) {
    %c0_i32 = arith.constant 0 : i32
    %c0_i32_0 = arith.constant 0 : i32
    %c0_i32_1 = arith.constant 0 : i32
    return %c0_i32, %c0_i32_0 : i32, i32
  }
  func.func @transform_16(%arg0: i32, %arg1: i32) -> (i32, i32) {
    %c0_i32 = arith.constant 0 : i32
    %c0_i32_0 = arith.constant 0 : i32
    %c0_i32_1 = arith.constant 0 : i32
    return %c0_i32, %c0_i32_0 : i32, i32
  }
  func.func @transform_17(%arg0: i32, %arg1: i32) -> (i32, i32) {
    %c0_i32 = arith.constant 0 : i32
    %c0_i32_0 = arith.constant 0 : i32
    %c0_i32_1 = arith.constant 0 : i32
    return %c0_i32, %c0_i32_0 : i32, i32
  }
  func.func @transform_18(%arg0: i32, %arg1: i32) -> (i32, i32) {
    %c0_i32 = arith.constant 0 : i32
    %c0_i32_0 = arith.constant 0 : i32
    %c0_i32_1 = arith.constant 0 : i32
    return %c0_i32, %c0_i32_0 : i32, i32
  }
  func.func @transform_19(%arg0: i32, %arg1: i32) -> (i32, i32) {
    %c0_i32 = arith.constant 0 : i32
    %c0_i32_0 = arith.constant 0 : i32
    %c0_i32_1 = arith.constant 0 : i32
    return %c0_i32, %c0_i32_0 : i32, i32
  }
  func.func @transform_20(%arg0: i32, %arg1: i32) -> (i32, i32) {
    %c0_i32 = arith.constant 0 : i32
    %c0_i32_0 = arith.constant 0 : i32
    %c0_i32_1 = arith.constant 0 : i32
    return %c0_i32, %c0_i32_0 : i32, i32
  }
  func.func @transform_21(%arg0: i32, %arg1: i32) -> (i32, i32) {
    %c0_i32 = arith.constant 0 : i32
    %c0_i32_0 = arith.constant 0 : i32
    %c0_i32_1 = arith.constant 0 : i32
    return %c0_i32, %c0_i32_0 : i32, i32
  }
  func.func @transform_22(%arg0: i32, %arg1: i32) -> (i32, i32) {
    %c0_i32 = arith.constant 0 : i32
    %c0_i32_0 = arith.constant 0 : i32
    %c0_i32_1 = arith.constant 0 : i32
    return %c0_i32, %c0_i32_0 : i32, i32
  }
  func.func @transform_23(%arg0: i32, %arg1: i32) -> (i32, i32) {
    %c0_i32 = arith.constant 0 : i32
    %c0_i32_0 = arith.constant 0 : i32
    %c0_i32_1 = arith.constant 0 : i32
    return %c0_i32, %c0_i32_0 : i32, i32
  }
  func.func @transform_24(%arg0: i32, %arg1: i32) -> (i32, i32) {
    %c0_i32 = arith.constant 0 : i32
    %c0_i32_0 = arith.constant 0 : i32
    %c0_i32_1 = arith.constant 0 : i32
    return %c0_i32, %c0_i32_0 : i32, i32
  }
  func.func @transform_25(%arg0: i32, %arg1: i32) -> (i32, i32) {
    %c0_i32 = arith.constant 0 : i32
    %c0_i32_0 = arith.constant 0 : i32
    %c0_i32_1 = arith.constant 0 : i32
    return %c0_i32, %c0_i32_0 : i32, i32
  }
  func.func @transform_26(%arg0: i32, %arg1: i32) -> (i32, i32) {
    %c0_i32 = arith.constant 0 : i32
    %c0_i32_0 = arith.constant 0 : i32
    %c0_i32_1 = arith.constant 0 : i32
    return %c0_i32, %c0_i32_0 : i32, i32
  }
  func.func @transform_27(%arg0: i32, %arg1: i32) -> (i32, i32) {
    %c0_i32 = arith.constant 0 : i32
    %c0_i32_0 = arith.constant 0 : i32
    %c0_i32_1 = arith.constant 0 : i32
    return %c0_i32, %c0_i32_0 : i32, i32
  }
  func.func @transform_28(%arg0: i32, %arg1: i32) -> (i32, i32) {
    %c0_i32 = arith.constant 0 : i32
    %c0_i32_0 = arith.constant 0 : i32
    %c0_i32_1 = arith.constant 0 : i32
    return %c0_i32, %c0_i32_0 : i32, i32
  }
  func.func @transform_29(%arg0: i32, %arg1: i32) -> (i32, i32) {
    %c0_i32 = arith.constant 0 : i32
    %c0_i32_0 = arith.constant 0 : i32
    %c0_i32_1 = arith.constant 0 : i32
    return %c0_i32, %c0_i32_0 : i32, i32
  }
  func.func @transform_30(%arg0: i32, %arg1: i32) -> (i32, i32, i32) {
    %c0_i32 = arith.constant 0 : i32
    %c0_i32_0 = arith.constant 0 : i32
    return %arg0, %arg1, %c0_i32 : i32, i32, i32
  }
}

module attributes {stable_mosaic.version = 11 : i64} {
  func.func @decoder_block_kernel(%arg0: i32, %arg1: i32, %arg2: memref<1x8x32xf32, #tpu.memory_space<vmem>>, %arg3: memref<1x16x32xf32, #tpu.memory_space<vmem>>, %arg4: memref<1x16x32xf32, #tpu.memory_space<vmem>>, %arg5: memref<8x16xf32, #tpu.memory_space<vmem>>, %arg6: memref<32x32xbf16, #tpu.memory_space<vmem>>, %arg7: memref<1x32xf32, #tpu.memory_space<vmem>>, %arg8: memref<32x32xbf16, #tpu.memory_space<vmem>>, %arg9: memref<1x32xf32, #tpu.memory_space<vmem>>, %arg10: memref<32x32xbf16, #tpu.memory_space<vmem>>, %arg11: memref<1x32xf32, #tpu.memory_space<vmem>>, %arg12: memref<32x32xbf16, #tpu.memory_space<vmem>>, %arg13: memref<1x32xf32, #tpu.memory_space<vmem>>, %arg14: memref<32x32xbf16, #tpu.memory_space<vmem>>, %arg15: memref<1x32xf32, #tpu.memory_space<vmem>>, %arg16: memref<32x32xbf16, #tpu.memory_space<vmem>>, %arg17: memref<1x32xf32, #tpu.memory_space<vmem>>, %arg18: memref<32x32xbf16, #tpu.memory_space<vmem>>, %arg19: memref<1x32xf32, #tpu.memory_space<vmem>>, %arg20: memref<32x32xbf16, #tpu.memory_space<vmem>>, %arg21: memref<1x32xf32, #tpu.memory_space<vmem>>, %arg22: memref<1x32xf32, #tpu.memory_space<vmem>>, %arg23: memref<1x32xf32, #tpu.memory_space<vmem>>, %arg24: memref<1x32xf32, #tpu.memory_space<vmem>>, %arg25: memref<1x32xf32, #tpu.memory_space<vmem>>, %arg26: memref<1x32xf32, #tpu.memory_space<vmem>>, %arg27: memref<1x32xf32, #tpu.memory_space<vmem>>, %arg28: memref<32x128xbf16, #tpu.memory_space<vmem>>, %arg29: memref<1x128xf32, #tpu.memory_space<vmem>>, %arg30: memref<128x32xbf16, #tpu.memory_space<vmem>>, %arg31: memref<1x32xf32, #tpu.memory_space<vmem>>, %arg32: memref<1x8x32xf32, #tpu.memory_space<vmem>>) attributes {dimension_semantics = [#tpu.dimension_semantics<parallel>, #tpu.dimension_semantics<parallel>], iteration_bounds = array<i64: 2, 2>, scalar_prefetch = 0 : i64, scratch_operands = 0 : i64, tpu.core_type = #tpu.core_type<tc>, window_params = [{transform_indices = @transform_0, window_bounds = array<i64: 1, 8, 32>}, {transform_indices = @transform_1, window_bounds = array<i64: 1, 16, 32>}, {transform_indices = @transform_2, window_bounds = array<i64: 1, 16, 32>}, {transform_indices = @transform_3, window_bounds = array<i64: 8, 16>}, {pipeline_mode = #tpu.pipeline_mode<synchronous>, transform_indices = @transform_4, window_bounds = array<i64: 32, 32>}, {pipeline_mode = #tpu.pipeline_mode<synchronous>, transform_indices = @transform_5, window_bounds = array<i64: 1, 32>}, {pipeline_mode = #tpu.pipeline_mode<synchronous>, transform_indices = @transform_6, window_bounds = array<i64: 32, 32>}, {pipeline_mode = #tpu.pipeline_mode<synchronous>, transform_indices = @transform_7, window_bounds = array<i64: 1, 32>}, {pipeline_mode = #tpu.pipeline_mode<synchronous>, transform_indices = @transform_8, window_bounds = array<i64: 32, 32>}, {pipeline_mode = #tpu.pipeline_mode<synchronous>, transform_indices = @transform_9, window_bounds = array<i64: 1, 32>}, {pipeline_mode = #tpu.pipeline_mode<synchronous>, transform_indices = @transform_10, window_bounds = array<i64: 32, 32>}, {pipeline_mode = #tpu.pipeline_mode<synchronous>, transform_indices = @transform_11, window_bounds = array<i64: 1, 32>}, {pipeline_mode = #tpu.pipeline_mode<synchronous>, transform_indices = @transform_12, window_bounds = array<i64: 32, 32>}, {pipeline_mode = #tpu.pipeline_mode<synchronous>, transform_indices = @transform_13, window_bounds = array<i64: 1, 32>}, {pipeline_mode = #tpu.pipeline_mode<synchronous>, transform_indices = @transform_14, window_bounds = array<i64: 32, 32>}, {pipeline_mode = #tpu.pipeline_mode<synchronous>, transform_indices = @transform_15, window_bounds = array<i64: 1, 32>}, {pipeline_mode = #tpu.pipeline_mode<synchronous>, transform_indices = @transform_16, window_bounds = array<i64: 32, 32>}, {pipeline_mode = #tpu.pipeline_mode<synchronous>, transform_indices = @transform_17, window_bounds = array<i64: 1, 32>}, {pipeline_mode = #tpu.pipeline_mode<synchronous>, transform_indices = @transform_18, window_bounds = array<i64: 32, 32>}, {pipeline_mode = #tpu.pipeline_mode<synchronous>, transform_indices = @transform_19, window_bounds = array<i64: 1, 32>}, {pipeline_mode = #tpu.pipeline_mode<synchronous>, transform_indices = @transform_20, window_bounds = array<i64: 1, 32>}, {pipeline_mode = #tpu.pipeline_mode<synchronous>, transform_indices = @transform_21, window_bounds = array<i64: 1, 32>}, {pipeline_mode = #tpu.pipeline_mode<synchronous>, transform_indices = @transform_22, window_bounds = array<i64: 1, 32>}, {pipeline_mode = #tpu.pipeline_mode<synchronous>, transform_indices = @transform_23, window_bounds = array<i64: 1, 32>}, {pipeline_mode = #tpu.pipeline_mode<synchronous>, transform_indices = @transform_24, window_bounds = array<i64: 1, 32>}, {pipeline_mode = #tpu.pipeline_mode<synchronous>, transform_indices = @transform_25, window_bounds = array<i64: 1, 32>}, {pipeline_mode = #tpu.pipeline_mode<synchronous>, transform_indices = @transform_26, window_bounds = array<i64: 32, 128>}, {pipeline_mode = #tpu.pipeline_mode<synchronous>, transform_indices = @transform_27, window_bounds = array<i64: 1, 128>}, {pipeline_mode = #tpu.pipeline_mode<synchronous>, transform_indices = @transform_28, window_bounds = array<i64: 128, 32>}, {pipeline_mode = #tpu.pipeline_mode<synchronous>, transform_indices = @transform_29, window_bounds = array<i64: 1, 32>}, {transform_indices = @transform_30, window_bounds = array<i64: 1, 8, 32>}]} {
    %c0 = arith.constant 0 : index
    %c0_0 = arith.constant 0 : index
    %c0_1 = arith.constant 0 : index
    %0 = vector.load %arg2[%c0, %c0_0, %c0_1] : memref<1x8x32xf32, #tpu.memory_space<vmem>>, vector<1x8x32xf32>
    %1 = vector.shape_cast %0 : vector<1x8x32xf32> to vector<8x32xf32>
    %c0_2 = arith.constant 0 : index
    %c0_3 = arith.constant 0 : index
    %c0_4 = arith.constant 0 : index
    %2 = vector.load %arg3[%c0_2, %c0_3, %c0_4] : memref<1x16x32xf32, #tpu.memory_space<vmem>>, vector<1x16x32xf32>
    %3 = vector.shape_cast %2 : vector<1x16x32xf32> to vector<16x32xf32>
    %c0_5 = arith.constant 0 : index
    %c0_6 = arith.constant 0 : index
    %c0_7 = arith.constant 0 : index
    %4 = vector.load %arg4[%c0_5, %c0_6, %c0_7] : memref<1x16x32xf32, #tpu.memory_space<vmem>>, vector<1x16x32xf32>
    %5 = vector.shape_cast %4 : vector<1x16x32xf32> to vector<16x32xf32>
    %c0_8 = arith.constant 0 : index
    %c0_9 = arith.constant 0 : index
    %6 = vector.load %arg5[%c0_8, %c0_9] : memref<8x16xf32, #tpu.memory_space<vmem>>, vector<8x16xf32>
    %7 = arith.truncf %1 : vector<8x32xf32> to vector<8x32xbf16>
    %8 = arith.truncf %3 : vector<16x32xf32> to vector<16x32xbf16>
    %9 = arith.truncf %5 : vector<16x32xf32> to vector<16x32xbf16>
    %c0_10 = arith.constant 0 : index
    %c0_11 = arith.constant 0 : index
    %10 = vector.load %arg6[%c0_10, %c0_11] : memref<32x32xbf16, #tpu.memory_space<vmem>>, vector<32x32xbf16>
    %cst = arith.constant dense<0.000000e+00> : vector<8x32xf32>
    %11 = tpu.matmul %7, %10, %cst {dimension_numbers = #tpu.dot_dimension_numbers<[1], [0], [0], [1], [0, 0, 1, 1], [], []>} : vector<8x32xbf16>, vector<32x32xbf16>, vector<8x32xf32> -> vector<8x32xf32>
    %c0_12 = arith.constant 0 : index
    %c0_13 = arith.constant 0 : index
    %12 = vector.load %arg7[%c0_12, %c0_13] : memref<1x32xf32, #tpu.memory_space<vmem>>, vector<1x32xf32>
    %13 = vector.broadcast %12 : vector<1x32xf32> to vector<8x32xf32>
    %14 = arith.addf %11, %13 : vector<8x32xf32>
    %c0_14 = arith.constant 0 : index
    %c0_15 = arith.constant 0 : index
    %15 = vector.load %arg8[%c0_14, %c0_15] : memref<32x32xbf16, #tpu.memory_space<vmem>>, vector<32x32xbf16>
    %cst_16 = arith.constant dense<0.000000e+00> : vector<16x32xf32>
    %16 = tpu.matmul %8, %15, %cst_16 {dimension_numbers = #tpu.dot_dimension_numbers<[1], [0], [0], [1], [0, 0, 1, 1], [], []>} : vector<16x32xbf16>, vector<32x32xbf16>, vector<16x32xf32> -> vector<16x32xf32>
    %c0_17 = arith.constant 0 : index
    %c0_18 = arith.constant 0 : index
    %17 = vector.load %arg9[%c0_17, %c0_18] : memref<1x32xf32, #tpu.memory_space<vmem>>, vector<1x32xf32>
    %18 = vector.broadcast %17 : vector<1x32xf32> to vector<16x32xf32>
    %19 = arith.addf %16, %18 : vector<16x32xf32>
    %c0_19 = arith.constant 0 : index
    %c0_20 = arith.constant 0 : index
    %20 = vector.load %arg10[%c0_19, %c0_20] : memref<32x32xbf16, #tpu.memory_space<vmem>>, vector<32x32xbf16>
    %cst_21 = arith.constant dense<0.000000e+00> : vector<16x32xf32>
    %21 = tpu.matmul %8, %20, %cst_21 {dimension_numbers = #tpu.dot_dimension_numbers<[1], [0], [0], [1], [0, 0, 1, 1], [], []>} : vector<16x32xbf16>, vector<32x32xbf16>, vector<16x32xf32> -> vector<16x32xf32>
    %c0_22 = arith.constant 0 : index
    %c0_23 = arith.constant 0 : index
    %22 = vector.load %arg11[%c0_22, %c0_23] : memref<1x32xf32, #tpu.memory_space<vmem>>, vector<1x32xf32>
    %23 = vector.broadcast %22 : vector<1x32xf32> to vector<16x32xf32>
    %24 = arith.addf %21, %23 : vector<16x32xf32>
    %c0_24 = arith.constant 0 : index
    %c0_25 = arith.constant 0 : index
    %25 = vector.load %arg12[%c0_24, %c0_25] : memref<32x32xbf16, #tpu.memory_space<vmem>>, vector<32x32xbf16>
    %c0_26 = arith.constant 0 : index
    %c0_27 = arith.constant 0 : index
    %26 = vector.load %arg13[%c0_26, %c0_27] : memref<1x32xf32, #tpu.memory_space<vmem>>, vector<1x32xf32>
    %27 = vector.shape_cast %14 : vector<8x32xf32> to vector<1x8x32xf32>
    %28 = vector.shape_cast %19 : vector<16x32xf32> to vector<1x16x32xf32>
    %29 = vector.shape_cast %24 : vector<16x32xf32> to vector<1x16x32xf32>
    %30 = vector.shape_cast %6 : vector<8x16xf32> to vector<1x8x16xf32>
    %31 = vector.extract_strided_slice %27 {offsets = [0, 0, 0], sizes = [1, 8, 8], strides = [1, 1, 1]} : vector<1x8x32xf32> to vector<1x8x8xf32>
    %32 = arith.truncf %31 : vector<1x8x8xf32> to vector<1x8x8xbf16>
    %33 = vector.extract_strided_slice %28 {offsets = [0, 0, 0], sizes = [1, 16, 8], strides = [1, 1, 1]} : vector<1x16x32xf32> to vector<1x16x8xf32>
    %34 = arith.truncf %33 : vector<1x16x8xf32> to vector<1x16x8xbf16>
    %35 = vector.extract_strided_slice %29 {offsets = [0, 0, 0], sizes = [1, 16, 8], strides = [1, 1, 1]} : vector<1x16x32xf32> to vector<1x16x8xf32>
    %36 = arith.truncf %35 : vector<1x16x8xf32> to vector<1x16x8xbf16>
    "tpu.trace_start"() <{level = 10 : i32, message = "bqd,bkd->bqk"}> : () -> ()
    %cst_28 = arith.constant dense<0.000000e+00> : vector<1x8x16xf32>
    %37 = tpu.matmul %32, %34, %cst_28 {dimension_numbers = #tpu.dot_dimension_numbers<[2], [2], [1], [1], [0, 0, 0, 1, 1, 1], [0], [0]>} : vector<1x8x8xbf16>, vector<1x16x8xbf16>, vector<1x8x16xf32> -> vector<1x8x16xf32>
    "tpu.trace_stop"() : () -> ()
    %38 = arith.addf %37, %30 : vector<1x8x16xf32>
    %cst_29 = arith.constant dense<0xFF800000> : vector<1x8xf32>
    %39 = vector.multi_reduction <maximumf>, %38, %cst_29 [2] : vector<1x8x16xf32> to vector<1x8xf32>
    %40 = vector.shape_cast %39 : vector<1x8xf32> to vector<1x8x1xf32>
    %41 = vector.broadcast %40 : vector<1x8x1xf32> to vector<1x8x16xf32>
    %42 = arith.subf %38, %41 : vector<1x8x16xf32>
    %43 = math.exp %42 : vector<1x8x16xf32>
    %cst_30 = arith.constant dense<0.000000e+00> : vector<1x8xf32>
    %44 = vector.multi_reduction <add>, %43, %cst_30 [2] : vector<1x8x16xf32> to vector<1x8xf32>
    %45 = vector.shape_cast %44 : vector<1x8xf32> to vector<1x8x1xf32>
    %46 = tpu.reciprocal %45 {approx = true} : vector<1x8x1xf32> -> vector<1x8x1xf32>
    %47 = vector.broadcast %46 : vector<1x8x1xf32> to vector<1x8x16xf32>
    %48 = arith.mulf %43, %47 : vector<1x8x16xf32>
    %49 = arith.truncf %48 : vector<1x8x16xf32> to vector<1x8x16xbf16>
    "tpu.trace_start"() <{level = 10 : i32, message = "bqk,bkd->bqd"}> : () -> ()
    %cst_31 = arith.constant dense<0.000000e+00> : vector<1x8x8xf32>
    %50 = tpu.matmul %49, %36, %cst_31 {dimension_numbers = #tpu.dot_dimension_numbers<[2], [1], [1], [2], [0, 0, 0, 1, 1, 2], [0], [0]>} : vector<1x8x16xbf16>, vector<1x16x8xbf16>, vector<1x8x8xf32> -> vector<1x8x8xf32>
    "tpu.trace_stop"() : () -> ()
    %51 = vector.extract_strided_slice %27 {offsets = [0, 0, 8], sizes = [1, 8, 8], strides = [1, 1, 1]} : vector<1x8x32xf32> to vector<1x8x8xf32>
    %52 = arith.truncf %51 : vector<1x8x8xf32> to vector<1x8x8xbf16>
    %53 = vector.extract_strided_slice %28 {offsets = [0, 0, 8], sizes = [1, 16, 8], strides = [1, 1, 1]} : vector<1x16x32xf32> to vector<1x16x8xf32>
    %54 = arith.truncf %53 : vector<1x16x8xf32> to vector<1x16x8xbf16>
    %55 = vector.extract_strided_slice %29 {offsets = [0, 0, 8], sizes = [1, 16, 8], strides = [1, 1, 1]} : vector<1x16x32xf32> to vector<1x16x8xf32>
    %56 = arith.truncf %55 : vector<1x16x8xf32> to vector<1x16x8xbf16>
    "tpu.trace_start"() <{level = 10 : i32, message = "bqd,bkd->bqk"}> : () -> ()
    %cst_32 = arith.constant dense<0.000000e+00> : vector<1x8x16xf32>
    %57 = tpu.matmul %52, %54, %cst_32 {dimension_numbers = #tpu.dot_dimension_numbers<[2], [2], [1], [1], [0, 0, 0, 1, 1, 1], [0], [0]>} : vector<1x8x8xbf16>, vector<1x16x8xbf16>, vector<1x8x16xf32> -> vector<1x8x16xf32>
    "tpu.trace_stop"() : () -> ()
    %58 = arith.addf %57, %30 : vector<1x8x16xf32>
    %cst_33 = arith.constant dense<0xFF800000> : vector<1x8xf32>
    %59 = vector.multi_reduction <maximumf>, %58, %cst_33 [2] : vector<1x8x16xf32> to vector<1x8xf32>
    %60 = vector.shape_cast %59 : vector<1x8xf32> to vector<1x8x1xf32>
    %61 = vector.broadcast %60 : vector<1x8x1xf32> to vector<1x8x16xf32>
    %62 = arith.subf %58, %61 : vector<1x8x16xf32>
    %63 = math.exp %62 : vector<1x8x16xf32>
    %cst_34 = arith.constant dense<0.000000e+00> : vector<1x8xf32>
    %64 = vector.multi_reduction <add>, %63, %cst_34 [2] : vector<1x8x16xf32> to vector<1x8xf32>
    %65 = vector.shape_cast %64 : vector<1x8xf32> to vector<1x8x1xf32>
    %66 = tpu.reciprocal %65 {approx = true} : vector<1x8x1xf32> -> vector<1x8x1xf32>
    %67 = vector.broadcast %66 : vector<1x8x1xf32> to vector<1x8x16xf32>
    %68 = arith.mulf %63, %67 : vector<1x8x16xf32>
    %69 = arith.truncf %68 : vector<1x8x16xf32> to vector<1x8x16xbf16>
    "tpu.trace_start"() <{level = 10 : i32, message = "bqk,bkd->bqd"}> : () -> ()
    %cst_35 = arith.constant dense<0.000000e+00> : vector<1x8x8xf32>
    %70 = tpu.matmul %69, %56, %cst_35 {dimension_numbers = #tpu.dot_dimension_numbers<[2], [1], [1], [2], [0, 0, 0, 1, 1, 2], [0], [0]>} : vector<1x8x16xbf16>, vector<1x16x8xbf16>, vector<1x8x8xf32> -> vector<1x8x8xf32>
    "tpu.trace_stop"() : () -> ()
    %71 = vector.extract_strided_slice %27 {offsets = [0, 0, 16], sizes = [1, 8, 8], strides = [1, 1, 1]} : vector<1x8x32xf32> to vector<1x8x8xf32>
    %72 = arith.truncf %71 : vector<1x8x8xf32> to vector<1x8x8xbf16>
    %73 = vector.extract_strided_slice %28 {offsets = [0, 0, 16], sizes = [1, 16, 8], strides = [1, 1, 1]} : vector<1x16x32xf32> to vector<1x16x8xf32>
    %74 = arith.truncf %73 : vector<1x16x8xf32> to vector<1x16x8xbf16>
    %75 = vector.extract_strided_slice %29 {offsets = [0, 0, 16], sizes = [1, 16, 8], strides = [1, 1, 1]} : vector<1x16x32xf32> to vector<1x16x8xf32>
    %76 = arith.truncf %75 : vector<1x16x8xf32> to vector<1x16x8xbf16>
    "tpu.trace_start"() <{level = 10 : i32, message = "bqd,bkd->bqk"}> : () -> ()
    %cst_36 = arith.constant dense<0.000000e+00> : vector<1x8x16xf32>
    %77 = tpu.matmul %72, %74, %cst_36 {dimension_numbers = #tpu.dot_dimension_numbers<[2], [2], [1], [1], [0, 0, 0, 1, 1, 1], [0], [0]>} : vector<1x8x8xbf16>, vector<1x16x8xbf16>, vector<1x8x16xf32> -> vector<1x8x16xf32>
    "tpu.trace_stop"() : () -> ()
    %78 = arith.addf %77, %30 : vector<1x8x16xf32>
    %cst_37 = arith.constant dense<0xFF800000> : vector<1x8xf32>
    %79 = vector.multi_reduction <maximumf>, %78, %cst_37 [2] : vector<1x8x16xf32> to vector<1x8xf32>
    %80 = vector.shape_cast %79 : vector<1x8xf32> to vector<1x8x1xf32>
    %81 = vector.broadcast %80 : vector<1x8x1xf32> to vector<1x8x16xf32>
    %82 = arith.subf %78, %81 : vector<1x8x16xf32>
    %83 = math.exp %82 : vector<1x8x16xf32>
    %cst_38 = arith.constant dense<0.000000e+00> : vector<1x8xf32>
    %84 = vector.multi_reduction <add>, %83, %cst_38 [2] : vector<1x8x16xf32> to vector<1x8xf32>
    %85 = vector.shape_cast %84 : vector<1x8xf32> to vector<1x8x1xf32>
    %86 = tpu.reciprocal %85 {approx = true} : vector<1x8x1xf32> -> vector<1x8x1xf32>
    %87 = vector.broadcast %86 : vector<1x8x1xf32> to vector<1x8x16xf32>
    %88 = arith.mulf %83, %87 : vector<1x8x16xf32>
    %89 = arith.truncf %88 : vector<1x8x16xf32> to vector<1x8x16xbf16>
    "tpu.trace_start"() <{level = 10 : i32, message = "bqk,bkd->bqd"}> : () -> ()
    %cst_39 = arith.constant dense<0.000000e+00> : vector<1x8x8xf32>
    %90 = tpu.matmul %89, %76, %cst_39 {dimension_numbers = #tpu.dot_dimension_numbers<[2], [1], [1], [2], [0, 0, 0, 1, 1, 2], [0], [0]>} : vector<1x8x16xbf16>, vector<1x16x8xbf16>, vector<1x8x8xf32> -> vector<1x8x8xf32>
    "tpu.trace_stop"() : () -> ()
    %91 = vector.extract_strided_slice %27 {offsets = [0, 0, 24], sizes = [1, 8, 8], strides = [1, 1, 1]} : vector<1x8x32xf32> to vector<1x8x8xf32>
    %92 = arith.truncf %91 : vector<1x8x8xf32> to vector<1x8x8xbf16>
    %93 = vector.extract_strided_slice %28 {offsets = [0, 0, 24], sizes = [1, 16, 8], strides = [1, 1, 1]} : vector<1x16x32xf32> to vector<1x16x8xf32>
    %94 = arith.truncf %93 : vector<1x16x8xf32> to vector<1x16x8xbf16>
    %95 = vector.extract_strided_slice %29 {offsets = [0, 0, 24], sizes = [1, 16, 8], strides = [1, 1, 1]} : vector<1x16x32xf32> to vector<1x16x8xf32>
    %96 = arith.truncf %95 : vector<1x16x8xf32> to vector<1x16x8xbf16>
    "tpu.trace_start"() <{level = 10 : i32, message = "bqd,bkd->bqk"}> : () -> ()
    %cst_40 = arith.constant dense<0.000000e+00> : vector<1x8x16xf32>
    %97 = tpu.matmul %92, %94, %cst_40 {dimension_numbers = #tpu.dot_dimension_numbers<[2], [2], [1], [1], [0, 0, 0, 1, 1, 1], [0], [0]>} : vector<1x8x8xbf16>, vector<1x16x8xbf16>, vector<1x8x16xf32> -> vector<1x8x16xf32>
    "tpu.trace_stop"() : () -> ()
    %98 = arith.addf %97, %30 : vector<1x8x16xf32>
    %cst_41 = arith.constant dense<0xFF800000> : vector<1x8xf32>
    %99 = vector.multi_reduction <maximumf>, %98, %cst_41 [2] : vector<1x8x16xf32> to vector<1x8xf32>
    %100 = vector.shape_cast %99 : vector<1x8xf32> to vector<1x8x1xf32>
    %101 = vector.broadcast %100 : vector<1x8x1xf32> to vector<1x8x16xf32>
    %102 = arith.subf %98, %101 : vector<1x8x16xf32>
    %103 = math.exp %102 : vector<1x8x16xf32>
    %cst_42 = arith.constant dense<0.000000e+00> : vector<1x8xf32>
    %104 = vector.multi_reduction <add>, %103, %cst_42 [2] : vector<1x8x16xf32> to vector<1x8xf32>
    %105 = vector.shape_cast %104 : vector<1x8xf32> to vector<1x8x1xf32>
    %106 = tpu.reciprocal %105 {approx = true} : vector<1x8x1xf32> -> vector<1x8x1xf32>
    %107 = vector.broadcast %106 : vector<1x8x1xf32> to vector<1x8x16xf32>
    %108 = arith.mulf %103, %107 : vector<1x8x16xf32>
    %109 = arith.truncf %108 : vector<1x8x16xf32> to vector<1x8x16xbf16>
    "tpu.trace_start"() <{level = 10 : i32, message = "bqk,bkd->bqd"}> : () -> ()
    %cst_43 = arith.constant dense<0.000000e+00> : vector<1x8x8xf32>
    %110 = tpu.matmul %109, %96, %cst_43 {dimension_numbers = #tpu.dot_dimension_numbers<[2], [1], [1], [2], [0, 0, 0, 1, 1, 2], [0], [0]>} : vector<1x8x16xbf16>, vector<1x16x8xbf16>, vector<1x8x8xf32> -> vector<1x8x8xf32>
    "tpu.trace_stop"() : () -> ()
    %111 = tpu.concatenate %50, %70, %90, %110 in 2 : vector<1x8x8xf32>, vector<1x8x8xf32>, vector<1x8x8xf32>, vector<1x8x8xf32> -> vector<1x8x32xf32>
    %112 = vector.shape_cast %111 : vector<1x8x32xf32> to vector<8x32xf32>
    %113 = arith.truncf %112 : vector<8x32xf32> to vector<8x32xbf16>
    %cst_44 = arith.constant dense<0.000000e+00> : vector<8x32xf32>
    %114 = tpu.matmul %113, %25, %cst_44 {dimension_numbers = #tpu.dot_dimension_numbers<[1], [0], [0], [1], [0, 0, 1, 1], [], []>} : vector<8x32xbf16>, vector<32x32xbf16>, vector<8x32xf32> -> vector<8x32xf32>
    %115 = vector.broadcast %26 : vector<1x32xf32> to vector<8x32xf32>
    %116 = arith.addf %114, %115 : vector<8x32xf32>
    %117 = arith.addf %1, %116 : vector<8x32xf32>
    %c0_45 = arith.constant 0 : index
    %c0_46 = arith.constant 0 : index
    %118 = vector.load %arg22[%c0_45, %c0_46] : memref<1x32xf32, #tpu.memory_space<vmem>>, vector<1x32xf32>
    %c0_47 = arith.constant 0 : index
    %c0_48 = arith.constant 0 : index
    %119 = vector.load %arg23[%c0_47, %c0_48] : memref<1x32xf32, #tpu.memory_space<vmem>>, vector<1x32xf32>
    %cst_49 = arith.constant dense<0.000000e+00> : vector<8xf32>
    %120 = vector.multi_reduction <add>, %117, %cst_49 [1] : vector<8x32xf32> to vector<8xf32>
    %121 = vector.shape_cast %120 : vector<8xf32> to vector<8x1xf32>
    %cst_50 = arith.constant 3.200000e+01 : f32
    %122 = vector.broadcast %cst_50 : f32 to vector<8x1xf32>
    %123 = arith.divf %121, %122 : vector<8x1xf32>
    %124 = vector.broadcast %123 : vector<8x1xf32> to vector<8x32xf32>
    %125 = arith.subf %117, %124 : vector<8x32xf32>
    %126 = arith.mulf %125, %125 : vector<8x32xf32>
    %cst_51 = arith.constant dense<0.000000e+00> : vector<8xf32>
    %127 = vector.multi_reduction <add>, %126, %cst_51 [1] : vector<8x32xf32> to vector<8xf32>
    %128 = vector.shape_cast %127 : vector<8xf32> to vector<8x1xf32>
    %cst_52 = arith.constant 3.200000e+01 : f32
    %129 = vector.broadcast %cst_52 : f32 to vector<8x1xf32>
    %130 = arith.divf %128, %129 : vector<8x1xf32>
    %131 = vector.broadcast %123 : vector<8x1xf32> to vector<8x32xf32>
    %132 = arith.subf %117, %131 : vector<8x32xf32>
    %cst_53 = arith.constant 9.99999974E-6 : f32
    %133 = vector.broadcast %cst_53 : f32 to vector<8x1xf32>
    %134 = arith.addf %130, %133 : vector<8x1xf32>
    %135 = math.rsqrt %134 : vector<8x1xf32>
    %136 = vector.broadcast %135 : vector<8x1xf32> to vector<8x32xf32>
    %137 = arith.mulf %132, %136 : vector<8x32xf32>
    %138 = vector.broadcast %118 : vector<1x32xf32> to vector<8x32xf32>
    %139 = arith.mulf %137, %138 : vector<8x32xf32>
    %140 = vector.broadcast %119 : vector<1x32xf32> to vector<8x32xf32>
    %141 = arith.addf %139, %140 : vector<8x32xf32>
    %142 = arith.truncf %141 : vector<8x32xf32> to vector<8x32xbf16>
    %c0_54 = arith.constant 0 : index
    %c0_55 = arith.constant 0 : index
    %143 = vector.load %arg14[%c0_54, %c0_55] : memref<32x32xbf16, #tpu.memory_space<vmem>>, vector<32x32xbf16>
    %cst_56 = arith.constant dense<0.000000e+00> : vector<8x32xf32>
    %144 = tpu.matmul %142, %143, %cst_56 {dimension_numbers = #tpu.dot_dimension_numbers<[1], [0], [0], [1], [0, 0, 1, 1], [], []>} : vector<8x32xbf16>, vector<32x32xbf16>, vector<8x32xf32> -> vector<8x32xf32>
    %c0_57 = arith.constant 0 : index
    %c0_58 = arith.constant 0 : index
    %145 = vector.load %arg15[%c0_57, %c0_58] : memref<1x32xf32, #tpu.memory_space<vmem>>, vector<1x32xf32>
    %146 = vector.broadcast %145 : vector<1x32xf32> to vector<8x32xf32>
    %147 = arith.addf %144, %146 : vector<8x32xf32>
    %c0_59 = arith.constant 0 : index
    %c0_60 = arith.constant 0 : index
    %148 = vector.load %arg16[%c0_59, %c0_60] : memref<32x32xbf16, #tpu.memory_space<vmem>>, vector<32x32xbf16>
    %cst_61 = arith.constant dense<0.000000e+00> : vector<16x32xf32>
    %149 = tpu.matmul %9, %148, %cst_61 {dimension_numbers = #tpu.dot_dimension_numbers<[1], [0], [0], [1], [0, 0, 1, 1], [], []>} : vector<16x32xbf16>, vector<32x32xbf16>, vector<16x32xf32> -> vector<16x32xf32>
    %c0_62 = arith.constant 0 : index
    %c0_63 = arith.constant 0 : index
    %150 = vector.load %arg17[%c0_62, %c0_63] : memref<1x32xf32, #tpu.memory_space<vmem>>, vector<1x32xf32>
    %151 = vector.broadcast %150 : vector<1x32xf32> to vector<16x32xf32>
    %152 = arith.addf %149, %151 : vector<16x32xf32>
    %c0_64 = arith.constant 0 : index
    %c0_65 = arith.constant 0 : index
    %153 = vector.load %arg18[%c0_64, %c0_65] : memref<32x32xbf16, #tpu.memory_space<vmem>>, vector<32x32xbf16>
    %cst_66 = arith.constant dense<0.000000e+00> : vector<16x32xf32>
    %154 = tpu.matmul %9, %153, %cst_66 {dimension_numbers = #tpu.dot_dimension_numbers<[1], [0], [0], [1], [0, 0, 1, 1], [], []>} : vector<16x32xbf16>, vector<32x32xbf16>, vector<16x32xf32> -> vector<16x32xf32>
    %c0_67 = arith.constant 0 : index
    %c0_68 = arith.constant 0 : index
    %155 = vector.load %arg19[%c0_67, %c0_68] : memref<1x32xf32, #tpu.memory_space<vmem>>, vector<1x32xf32>
    %156 = vector.broadcast %155 : vector<1x32xf32> to vector<16x32xf32>
    %157 = arith.addf %154, %156 : vector<16x32xf32>
    %c0_69 = arith.constant 0 : index
    %c0_70 = arith.constant 0 : index
    %158 = vector.load %arg20[%c0_69, %c0_70] : memref<32x32xbf16, #tpu.memory_space<vmem>>, vector<32x32xbf16>
    %c0_71 = arith.constant 0 : index
    %c0_72 = arith.constant 0 : index
    %159 = vector.load %arg21[%c0_71, %c0_72] : memref<1x32xf32, #tpu.memory_space<vmem>>, vector<1x32xf32>
    %160 = vector.shape_cast %147 : vector<8x32xf32> to vector<1x8x32xf32>
    %161 = vector.shape_cast %152 : vector<16x32xf32> to vector<1x16x32xf32>
    %162 = vector.shape_cast %157 : vector<16x32xf32> to vector<1x16x32xf32>
    %163 = vector.shape_cast %6 : vector<8x16xf32> to vector<1x8x16xf32>
    %164 = vector.extract_strided_slice %160 {offsets = [0, 0, 0], sizes = [1, 8, 8], strides = [1, 1, 1]} : vector<1x8x32xf32> to vector<1x8x8xf32>
    %165 = arith.truncf %164 : vector<1x8x8xf32> to vector<1x8x8xbf16>
    %166 = vector.extract_strided_slice %161 {offsets = [0, 0, 0], sizes = [1, 16, 8], strides = [1, 1, 1]} : vector<1x16x32xf32> to vector<1x16x8xf32>
    %167 = arith.truncf %166 : vector<1x16x8xf32> to vector<1x16x8xbf16>
    %168 = vector.extract_strided_slice %162 {offsets = [0, 0, 0], sizes = [1, 16, 8], strides = [1, 1, 1]} : vector<1x16x32xf32> to vector<1x16x8xf32>
    %169 = arith.truncf %168 : vector<1x16x8xf32> to vector<1x16x8xbf16>
    "tpu.trace_start"() <{level = 10 : i32, message = "bqd,bkd->bqk"}> : () -> ()
    %cst_73 = arith.constant dense<0.000000e+00> : vector<1x8x16xf32>
    %170 = tpu.matmul %165, %167, %cst_73 {dimension_numbers = #tpu.dot_dimension_numbers<[2], [2], [1], [1], [0, 0, 0, 1, 1, 1], [0], [0]>} : vector<1x8x8xbf16>, vector<1x16x8xbf16>, vector<1x8x16xf32> -> vector<1x8x16xf32>
    "tpu.trace_stop"() : () -> ()
    %171 = arith.addf %170, %163 : vector<1x8x16xf32>
    %cst_74 = arith.constant dense<0xFF800000> : vector<1x8xf32>
    %172 = vector.multi_reduction <maximumf>, %171, %cst_74 [2] : vector<1x8x16xf32> to vector<1x8xf32>
    %173 = vector.shape_cast %172 : vector<1x8xf32> to vector<1x8x1xf32>
    %174 = vector.broadcast %173 : vector<1x8x1xf32> to vector<1x8x16xf32>
    %175 = arith.subf %171, %174 : vector<1x8x16xf32>
    %176 = math.exp %175 : vector<1x8x16xf32>
    %cst_75 = arith.constant dense<0.000000e+00> : vector<1x8xf32>
    %177 = vector.multi_reduction <add>, %176, %cst_75 [2] : vector<1x8x16xf32> to vector<1x8xf32>
    %178 = vector.shape_cast %177 : vector<1x8xf32> to vector<1x8x1xf32>
    %179 = tpu.reciprocal %178 {approx = true} : vector<1x8x1xf32> -> vector<1x8x1xf32>
    %180 = vector.broadcast %179 : vector<1x8x1xf32> to vector<1x8x16xf32>
    %181 = arith.mulf %176, %180 : vector<1x8x16xf32>
    %182 = arith.truncf %181 : vector<1x8x16xf32> to vector<1x8x16xbf16>
    "tpu.trace_start"() <{level = 10 : i32, message = "bqk,bkd->bqd"}> : () -> ()
    %cst_76 = arith.constant dense<0.000000e+00> : vector<1x8x8xf32>
    %183 = tpu.matmul %182, %169, %cst_76 {dimension_numbers = #tpu.dot_dimension_numbers<[2], [1], [1], [2], [0, 0, 0, 1, 1, 2], [0], [0]>} : vector<1x8x16xbf16>, vector<1x16x8xbf16>, vector<1x8x8xf32> -> vector<1x8x8xf32>
    "tpu.trace_stop"() : () -> ()
    %184 = vector.extract_strided_slice %160 {offsets = [0, 0, 8], sizes = [1, 8, 8], strides = [1, 1, 1]} : vector<1x8x32xf32> to vector<1x8x8xf32>
    %185 = arith.truncf %184 : vector<1x8x8xf32> to vector<1x8x8xbf16>
    %186 = vector.extract_strided_slice %161 {offsets = [0, 0, 8], sizes = [1, 16, 8], strides = [1, 1, 1]} : vector<1x16x32xf32> to vector<1x16x8xf32>
    %187 = arith.truncf %186 : vector<1x16x8xf32> to vector<1x16x8xbf16>
    %188 = vector.extract_strided_slice %162 {offsets = [0, 0, 8], sizes = [1, 16, 8], strides = [1, 1, 1]} : vector<1x16x32xf32> to vector<1x16x8xf32>
    %189 = arith.truncf %188 : vector<1x16x8xf32> to vector<1x16x8xbf16>
    "tpu.trace_start"() <{level = 10 : i32, message = "bqd,bkd->bqk"}> : () -> ()
    %cst_77 = arith.constant dense<0.000000e+00> : vector<1x8x16xf32>
    %190 = tpu.matmul %185, %187, %cst_77 {dimension_numbers = #tpu.dot_dimension_numbers<[2], [2], [1], [1], [0, 0, 0, 1, 1, 1], [0], [0]>} : vector<1x8x8xbf16>, vector<1x16x8xbf16>, vector<1x8x16xf32> -> vector<1x8x16xf32>
    "tpu.trace_stop"() : () -> ()
    %191 = arith.addf %190, %163 : vector<1x8x16xf32>
    %cst_78 = arith.constant dense<0xFF800000> : vector<1x8xf32>
    %192 = vector.multi_reduction <maximumf>, %191, %cst_78 [2] : vector<1x8x16xf32> to vector<1x8xf32>
    %193 = vector.shape_cast %192 : vector<1x8xf32> to vector<1x8x1xf32>
    %194 = vector.broadcast %193 : vector<1x8x1xf32> to vector<1x8x16xf32>
    %195 = arith.subf %191, %194 : vector<1x8x16xf32>
    %196 = math.exp %195 : vector<1x8x16xf32>
    %cst_79 = arith.constant dense<0.000000e+00> : vector<1x8xf32>
    %197 = vector.multi_reduction <add>, %196, %cst_79 [2] : vector<1x8x16xf32> to vector<1x8xf32>
    %198 = vector.shape_cast %197 : vector<1x8xf32> to vector<1x8x1xf32>
    %199 = tpu.reciprocal %198 {approx = true} : vector<1x8x1xf32> -> vector<1x8x1xf32>
    %200 = vector.broadcast %199 : vector<1x8x1xf32> to vector<1x8x16xf32>
    %201 = arith.mulf %196, %200 : vector<1x8x16xf32>
    %202 = arith.truncf %201 : vector<1x8x16xf32> to vector<1x8x16xbf16>
    "tpu.trace_start"() <{level = 10 : i32, message = "bqk,bkd->bqd"}> : () -> ()
    %cst_80 = arith.constant dense<0.000000e+00> : vector<1x8x8xf32>
    %203 = tpu.matmul %202, %189, %cst_80 {dimension_numbers = #tpu.dot_dimension_numbers<[2], [1], [1], [2], [0, 0, 0, 1, 1, 2], [0], [0]>} : vector<1x8x16xbf16>, vector<1x16x8xbf16>, vector<1x8x8xf32> -> vector<1x8x8xf32>
    "tpu.trace_stop"() : () -> ()
    %204 = vector.extract_strided_slice %160 {offsets = [0, 0, 16], sizes = [1, 8, 8], strides = [1, 1, 1]} : vector<1x8x32xf32> to vector<1x8x8xf32>
    %205 = arith.truncf %204 : vector<1x8x8xf32> to vector<1x8x8xbf16>
    %206 = vector.extract_strided_slice %161 {offsets = [0, 0, 16], sizes = [1, 16, 8], strides = [1, 1, 1]} : vector<1x16x32xf32> to vector<1x16x8xf32>
    %207 = arith.truncf %206 : vector<1x16x8xf32> to vector<1x16x8xbf16>
    %208 = vector.extract_strided_slice %162 {offsets = [0, 0, 16], sizes = [1, 16, 8], strides = [1, 1, 1]} : vector<1x16x32xf32> to vector<1x16x8xf32>
    %209 = arith.truncf %208 : vector<1x16x8xf32> to vector<1x16x8xbf16>
    "tpu.trace_start"() <{level = 10 : i32, message = "bqd,bkd->bqk"}> : () -> ()
    %cst_81 = arith.constant dense<0.000000e+00> : vector<1x8x16xf32>
    %210 = tpu.matmul %205, %207, %cst_81 {dimension_numbers = #tpu.dot_dimension_numbers<[2], [2], [1], [1], [0, 0, 0, 1, 1, 1], [0], [0]>} : vector<1x8x8xbf16>, vector<1x16x8xbf16>, vector<1x8x16xf32> -> vector<1x8x16xf32>
    "tpu.trace_stop"() : () -> ()
    %211 = arith.addf %210, %163 : vector<1x8x16xf32>
    %cst_82 = arith.constant dense<0xFF800000> : vector<1x8xf32>
    %212 = vector.multi_reduction <maximumf>, %211, %cst_82 [2] : vector<1x8x16xf32> to vector<1x8xf32>
    %213 = vector.shape_cast %212 : vector<1x8xf32> to vector<1x8x1xf32>
    %214 = vector.broadcast %213 : vector<1x8x1xf32> to vector<1x8x16xf32>
    %215 = arith.subf %211, %214 : vector<1x8x16xf32>
    %216 = math.exp %215 : vector<1x8x16xf32>
    %cst_83 = arith.constant dense<0.000000e+00> : vector<1x8xf32>
    %217 = vector.multi_reduction <add>, %216, %cst_83 [2] : vector<1x8x16xf32> to vector<1x8xf32>
    %218 = vector.shape_cast %217 : vector<1x8xf32> to vector<1x8x1xf32>
    %219 = tpu.reciprocal %218 {approx = true} : vector<1x8x1xf32> -> vector<1x8x1xf32>
    %220 = vector.broadcast %219 : vector<1x8x1xf32> to vector<1x8x16xf32>
    %221 = arith.mulf %216, %220 : vector<1x8x16xf32>
    %222 = arith.truncf %221 : vector<1x8x16xf32> to vector<1x8x16xbf16>
    "tpu.trace_start"() <{level = 10 : i32, message = "bqk,bkd->bqd"}> : () -> ()
    %cst_84 = arith.constant dense<0.000000e+00> : vector<1x8x8xf32>
    %223 = tpu.matmul %222, %209, %cst_84 {dimension_numbers = #tpu.dot_dimension_numbers<[2], [1], [1], [2], [0, 0, 0, 1, 1, 2], [0], [0]>} : vector<1x8x16xbf16>, vector<1x16x8xbf16>, vector<1x8x8xf32> -> vector<1x8x8xf32>
    "tpu.trace_stop"() : () -> ()
    %224 = vector.extract_strided_slice %160 {offsets = [0, 0, 24], sizes = [1, 8, 8], strides = [1, 1, 1]} : vector<1x8x32xf32> to vector<1x8x8xf32>
    %225 = arith.truncf %224 : vector<1x8x8xf32> to vector<1x8x8xbf16>
    %226 = vector.extract_strided_slice %161 {offsets = [0, 0, 24], sizes = [1, 16, 8], strides = [1, 1, 1]} : vector<1x16x32xf32> to vector<1x16x8xf32>
    %227 = arith.truncf %226 : vector<1x16x8xf32> to vector<1x16x8xbf16>
    %228 = vector.extract_strided_slice %162 {offsets = [0, 0, 24], sizes = [1, 16, 8], strides = [1, 1, 1]} : vector<1x16x32xf32> to vector<1x16x8xf32>
    %229 = arith.truncf %228 : vector<1x16x8xf32> to vector<1x16x8xbf16>
    "tpu.trace_start"() <{level = 10 : i32, message = "bqd,bkd->bqk"}> : () -> ()
    %cst_85 = arith.constant dense<0.000000e+00> : vector<1x8x16xf32>
    %230 = tpu.matmul %225, %227, %cst_85 {dimension_numbers = #tpu.dot_dimension_numbers<[2], [2], [1], [1], [0, 0, 0, 1, 1, 1], [0], [0]>} : vector<1x8x8xbf16>, vector<1x16x8xbf16>, vector<1x8x16xf32> -> vector<1x8x16xf32>
    "tpu.trace_stop"() : () -> ()
    %231 = arith.addf %230, %163 : vector<1x8x16xf32>
    %cst_86 = arith.constant dense<0xFF800000> : vector<1x8xf32>
    %232 = vector.multi_reduction <maximumf>, %231, %cst_86 [2] : vector<1x8x16xf32> to vector<1x8xf32>
    %233 = vector.shape_cast %232 : vector<1x8xf32> to vector<1x8x1xf32>
    %234 = vector.broadcast %233 : vector<1x8x1xf32> to vector<1x8x16xf32>
    %235 = arith.subf %231, %234 : vector<1x8x16xf32>
    %236 = math.exp %235 : vector<1x8x16xf32>
    %cst_87 = arith.constant dense<0.000000e+00> : vector<1x8xf32>
    %237 = vector.multi_reduction <add>, %236, %cst_87 [2] : vector<1x8x16xf32> to vector<1x8xf32>
    %238 = vector.shape_cast %237 : vector<1x8xf32> to vector<1x8x1xf32>
    %239 = tpu.reciprocal %238 {approx = true} : vector<1x8x1xf32> -> vector<1x8x1xf32>
    %240 = vector.broadcast %239 : vector<1x8x1xf32> to vector<1x8x16xf32>
    %241 = arith.mulf %236, %240 : vector<1x8x16xf32>
    %242 = arith.truncf %241 : vector<1x8x16xf32> to vector<1x8x16xbf16>
    "tpu.trace_start"() <{level = 10 : i32, message = "bqk,bkd->bqd"}> : () -> ()
    %cst_88 = arith.constant dense<0.000000e+00> : vector<1x8x8xf32>
    %243 = tpu.matmul %242, %229, %cst_88 {dimension_numbers = #tpu.dot_dimension_numbers<[2], [1], [1], [2], [0, 0, 0, 1, 1, 2], [0], [0]>} : vector<1x8x16xbf16>, vector<1x16x8xbf16>, vector<1x8x8xf32> -> vector<1x8x8xf32>
    "tpu.trace_stop"() : () -> ()
    %244 = tpu.concatenate %183, %203, %223, %243 in 2 : vector<1x8x8xf32>, vector<1x8x8xf32>, vector<1x8x8xf32>, vector<1x8x8xf32> -> vector<1x8x32xf32>
    %245 = vector.shape_cast %244 : vector<1x8x32xf32> to vector<8x32xf32>
    %246 = arith.truncf %245 : vector<8x32xf32> to vector<8x32xbf16>
    %cst_89 = arith.constant dense<0.000000e+00> : vector<8x32xf32>
    %247 = tpu.matmul %246, %158, %cst_89 {dimension_numbers = #tpu.dot_dimension_numbers<[1], [0], [0], [1], [0, 0, 1, 1], [], []>} : vector<8x32xbf16>, vector<32x32xbf16>, vector<8x32xf32> -> vector<8x32xf32>
    %248 = vector.broadcast %159 : vector<1x32xf32> to vector<8x32xf32>
    %249 = arith.addf %247, %248 : vector<8x32xf32>
    %250 = arith.addf %141, %249 : vector<8x32xf32>
    %c0_90 = arith.constant 0 : index
    %c0_91 = arith.constant 0 : index
    %251 = vector.load %arg24[%c0_90, %c0_91] : memref<1x32xf32, #tpu.memory_space<vmem>>, vector<1x32xf32>
    %c0_92 = arith.constant 0 : index
    %c0_93 = arith.constant 0 : index
    %252 = vector.load %arg25[%c0_92, %c0_93] : memref<1x32xf32, #tpu.memory_space<vmem>>, vector<1x32xf32>
    %cst_94 = arith.constant dense<0.000000e+00> : vector<8xf32>
    %253 = vector.multi_reduction <add>, %250, %cst_94 [1] : vector<8x32xf32> to vector<8xf32>
    %254 = vector.shape_cast %253 : vector<8xf32> to vector<8x1xf32>
    %cst_95 = arith.constant 3.200000e+01 : f32
    %255 = vector.broadcast %cst_95 : f32 to vector<8x1xf32>
    %256 = arith.divf %254, %255 : vector<8x1xf32>
    %257 = vector.broadcast %256 : vector<8x1xf32> to vector<8x32xf32>
    %258 = arith.subf %250, %257 : vector<8x32xf32>
    %259 = arith.mulf %258, %258 : vector<8x32xf32>
    %cst_96 = arith.constant dense<0.000000e+00> : vector<8xf32>
    %260 = vector.multi_reduction <add>, %259, %cst_96 [1] : vector<8x32xf32> to vector<8xf32>
    %261 = vector.shape_cast %260 : vector<8xf32> to vector<8x1xf32>
    %cst_97 = arith.constant 3.200000e+01 : f32
    %262 = vector.broadcast %cst_97 : f32 to vector<8x1xf32>
    %263 = arith.divf %261, %262 : vector<8x1xf32>
    %264 = vector.broadcast %256 : vector<8x1xf32> to vector<8x32xf32>
    %265 = arith.subf %250, %264 : vector<8x32xf32>
    %cst_98 = arith.constant 9.99999974E-6 : f32
    %266 = vector.broadcast %cst_98 : f32 to vector<8x1xf32>
    %267 = arith.addf %263, %266 : vector<8x1xf32>
    %268 = math.rsqrt %267 : vector<8x1xf32>
    %269 = vector.broadcast %268 : vector<8x1xf32> to vector<8x32xf32>
    %270 = arith.mulf %265, %269 : vector<8x32xf32>
    %271 = vector.broadcast %251 : vector<1x32xf32> to vector<8x32xf32>
    %272 = arith.mulf %270, %271 : vector<8x32xf32>
    %273 = vector.broadcast %252 : vector<1x32xf32> to vector<8x32xf32>
    %274 = arith.addf %272, %273 : vector<8x32xf32>
    %275 = arith.truncf %274 : vector<8x32xf32> to vector<8x32xbf16>
    %c0_99 = arith.constant 0 : index
    %c0_100 = arith.constant 0 : index
    %276 = vector.load %arg28[%c0_99, %c0_100] : memref<32x128xbf16, #tpu.memory_space<vmem>>, vector<32x128xbf16>
    %cst_101 = arith.constant dense<0.000000e+00> : vector<8x128xf32>
    %277 = tpu.matmul %275, %276, %cst_101 {dimension_numbers = #tpu.dot_dimension_numbers<[1], [0], [0], [1], [0, 0, 1, 1], [], []>} : vector<8x32xbf16>, vector<32x128xbf16>, vector<8x128xf32> -> vector<8x128xf32>
    %c0_102 = arith.constant 0 : index
    %c0_103 = arith.constant 0 : index
    %278 = vector.load %arg29[%c0_102, %c0_103] : memref<1x128xf32, #tpu.memory_space<vmem>>, vector<1x128xf32>
    %279 = vector.broadcast %278 : vector<1x128xf32> to vector<8x128xf32>
    %280 = arith.addf %277, %279 : vector<8x128xf32>
    %cst_104 = arith.constant 0.000000e+00 : f32
    %281 = vector.broadcast %cst_104 : f32 to vector<8x128xf32>
    %282 = arith.maximumf %280, %281 : vector<8x128xf32>
    %283 = arith.truncf %282 : vector<8x128xf32> to vector<8x128xbf16>
    %c0_105 = arith.constant 0 : index
    %c0_106 = arith.constant 0 : index
    %284 = vector.load %arg30[%c0_105, %c0_106] : memref<128x32xbf16, #tpu.memory_space<vmem>>, vector<128x32xbf16>
    %cst_107 = arith.constant dense<0.000000e+00> : vector<8x32xf32>
    %285 = tpu.matmul %283, %284, %cst_107 {dimension_numbers = #tpu.dot_dimension_numbers<[1], [0], [0], [1], [0, 0, 1, 1], [], []>} : vector<8x128xbf16>, vector<128x32xbf16>, vector<8x32xf32> -> vector<8x32xf32>
    %c0_108 = arith.constant 0 : index
    %c0_109 = arith.constant 0 : index
    %286 = vector.load %arg31[%c0_108, %c0_109] : memref<1x32xf32, #tpu.memory_space<vmem>>, vector<1x32xf32>
    %287 = vector.broadcast %286 : vector<1x32xf32> to vector<8x32xf32>
    %288 = arith.addf %285, %287 : vector<8x32xf32>
    %289 = arith.addf %274, %288 : vector<8x32xf32>
    %c0_110 = arith.constant 0 : index
    %c0_111 = arith.constant 0 : index
    %290 = vector.load %arg26[%c0_110, %c0_111] : memref<1x32xf32, #tpu.memory_space<vmem>>, vector<1x32xf32>
    %c0_112 = arith.constant 0 : index
    %c0_113 = arith.constant 0 : index
    %291 = vector.load %arg27[%c0_112, %c0_113] : memref<1x32xf32, #tpu.memory_space<vmem>>, vector<1x32xf32>
    %cst_114 = arith.constant dense<0.000000e+00> : vector<8xf32>
    %292 = vector.multi_reduction <add>, %289, %cst_114 [1] : vector<8x32xf32> to vector<8xf32>
    %293 = vector.shape_cast %292 : vector<8xf32> to vector<8x1xf32>
    %cst_115 = arith.constant 3.200000e+01 : f32
    %294 = vector.broadcast %cst_115 : f32 to vector<8x1xf32>
    %295 = arith.divf %293, %294 : vector<8x1xf32>
    %296 = vector.broadcast %295 : vector<8x1xf32> to vector<8x32xf32>
    %297 = arith.subf %289, %296 : vector<8x32xf32>
    %298 = arith.mulf %297, %297 : vector<8x32xf32>
    %cst_116 = arith.constant dense<0.000000e+00> : vector<8xf32>
    %299 = vector.multi_reduction <add>, %298, %cst_116 [1] : vector<8x32xf32> to vector<8xf32>
    %300 = vector.shape_cast %299 : vector<8xf32> to vector<8x1xf32>
    %cst_117 = arith.constant 3.200000e+01 : f32
    %301 = vector.broadcast %cst_117 : f32 to vector<8x1xf32>
    %302 = arith.divf %300, %301 : vector<8x1xf32>
    %303 = vector.broadcast %295 : vector<8x1xf32> to vector<8x32xf32>
    %304 = arith.subf %289, %303 : vector<8x32xf32>
    %cst_118 = arith.constant 9.99999974E-6 : f32
    %305 = vector.broadcast %cst_118 : f32 to vector<8x1xf32>
    %306 = arith.addf %302, %305 : vector<8x1xf32>
    %307 = math.rsqrt %306 : vector<8x1xf32>
    %308 = vector.broadcast %307 : vector<8x1xf32> to vector<8x32xf32>
    %309 = arith.mulf %304, %308 : vector<8x32xf32>
    %310 = vector.broadcast %290 : vector<1x32xf32> to vector<8x32xf32>
    %311 = arith.mulf %309, %310 : vector<8x32xf32>
    %312 = vector.broadcast %291 : vector<1x32xf32> to vector<8x32xf32>
    %313 = arith.addf %311, %312 : vector<8x32xf32>
    %314 = vector.shape_cast %313 : vector<8x32xf32> to vector<1x8x32xf32>
    %c0_119 = arith.constant 0 : index
    %c0_120 = arith.constant 0 : index
    %c0_121 = arith.constant 0 : index
    %315 = vector.load %arg32[%c0_119, %c0_120, %c0_121] : memref<1x8x32xf32, #tpu.memory_space<vmem>>, vector<1x8x32xf32>
    tpu.vector_store %arg32[%c0_119, %c0_120, %c0_121], %314 {strides = array<i32>} : memref<1x8x32xf32, #tpu.memory_space<vmem>>, vector<1x8x32xf32>,
    return
  }
  func.func @transform_0(%arg0: i32, %arg1: i32) -> (i32, i32, i32) {
    %c0_i32 = arith.constant 0 : i32
    %c0_i32_0 = arith.constant 0 : i32
    return %arg0, %arg1, %c0_i32 : i32, i32, i32
  }
  func.func @transform_1(%arg0: i32, %arg1: i32) -> (i32, i32, i32) {
    %c0_i32 = arith.constant 0 : i32
    %c0_i32_0 = arith.constant 0 : i32
    %c0_i32_1 = arith.constant 0 : i32
    return %arg0, %c0_i32, %c0_i32_0 : i32, i32, i32
  }
  func.func @transform_2(%arg0: i32, %arg1: i32) -> (i32, i32, i32) {
    %c0_i32 = arith.constant 0 : i32
    %c0_i32_0 = arith.constant 0 : i32
    %c0_i32_1 = arith.constant 0 : i32
    return %arg0, %c0_i32, %c0_i32_0 : i32, i32, i32
  }
  func.func @transform_3(%arg0: i32, %arg1: i32) -> (i32, i32) {
    %c0_i32 = arith.constant 0 : i32
    %c0_i32_0 = arith.constant 0 : i32
    return %arg1, %c0_i32 : i32, i32
  }
  func.func @transform_4(%arg0: i32, %arg1: i32) -> (i32, i32) {
    %c0_i32 = arith.constant 0 : i32
    %c0_i32_0 = arith.constant 0 : i32
    %c0_i32_1 = arith.constant 0 : i32
    return %c0_i32, %c0_i32_0 : i32, i32
  }
  func.func @transform_5(%arg0: i32, %arg1: i32) -> (i32, i32) {
    %c0_i32 = arith.constant 0 : i32
    %c0_i32_0 = arith.constant 0 : i32
    %c0_i32_1 = arith.constant 0 : i32
    return %c0_i32, %c0_i32_0 : i32, i32
  }
  func.func @transform_6(%arg0: i32, %arg1: i32) -> (i32, i32) {
    %c0_i32 = arith.constant 0 : i32
    %c0_i32_0 = arith.constant 0 : i32
    %c0_i32_1 = arith.constant 0 : i32
    return %c0_i32, %c0_i32_0 : i32, i32
  }
  func.func @transform_7(%arg0: i32, %arg1: i32) -> (i32, i32) {
    %c0_i32 = arith.constant 0 : i32
    %c0_i32_0 = arith.constant 0 : i32
    %c0_i32_1 = arith.constant 0 : i32
    return %c0_i32, %c0_i32_0 : i32, i32
  }
  func.func @transform_8(%arg0: i32, %arg1: i32) -> (i32, i32) {
    %c0_i32 = arith.constant 0 : i32
    %c0_i32_0 = arith.constant 0 : i32
    %c0_i32_1 = arith.constant 0 : i32
    return %c0_i32, %c0_i32_0 : i32, i32
  }
  func.func @transform_9(%arg0: i32, %arg1: i32) -> (i32, i32) {
    %c0_i32 = arith.constant 0 : i32
    %c0_i32_0 = arith.constant 0 : i32
    %c0_i32_1 = arith.constant 0 : i32
    return %c0_i32, %c0_i32_0 : i32, i32
  }
  func.func @transform_10(%arg0: i32, %arg1: i32) -> (i32, i32) {
    %c0_i32 = arith.constant 0 : i32
    %c0_i32_0 = arith.constant 0 : i32
    %c0_i32_1 = arith.constant 0 : i32
    return %c0_i32, %c0_i32_0 : i32, i32
  }
  func.func @transform_11(%arg0: i32, %arg1: i32) -> (i32, i32) {
    %c0_i32 = arith.constant 0 : i32
    %c0_i32_0 = arith.constant 0 : i32
    %c0_i32_1 = arith.constant 0 : i32
    return %c0_i32, %c0_i32_0 : i32, i32
  }
  func.func @transform_12(%arg0: i32, %arg1: i32) -> (i32, i32) {
    %c0_i32 = arith.constant 0 : i32
    %c0_i32_0 = arith.constant 0 : i32
    %c0_i32_1 = arith.constant 0 : i32
    return %c0_i32, %c0_i32_0 : i32, i32
  }
  func.func @transform_13(%arg0: i32, %arg1: i32) -> (i32, i32) {
    %c0_i32 = arith.constant 0 : i32
    %c0_i32_0 = arith.constant 0 : i32
    %c0_i32_1 = arith.constant 0 : i32
    return %c0_i32, %c0_i32_0 : i32, i32
  }
  func.func @transform_14(%arg0: i32, %arg1: i32) -> (i32, i32) {
    %c0_i32 = arith.constant 0 : i32
    %c0_i32_0 = arith.constant 0 : i32
    %c0_i32_1 = arith.constant 0 : i32
    return %c0_i32, %c0_i32_0 : i32, i32
  }
  func.func @transform_15(%arg0: i32, %arg1: i32) -> (i32, i32) {
    %c0_i32 = arith.constant 0 : i32
    %c0_i32_0 = arith.constant 0 : i32
    %c0_i32_1 = arith.constant 0 : i32
    return %c0_i32, %c0_i32_0 : i32, i32
  }
  func.func @transform_16(%arg0: i32, %arg1: i32) -> (i32, i32) {
    %c0_i32 = arith.constant 0 : i32
    %c0_i32_0 = arith.constant 0 : i32
    %c0_i32_1 = arith.constant 0 : i32
    return %c0_i32, %c0_i32_0 : i32, i32
  }
  func.func @transform_17(%arg0: i32, %arg1: i32) -> (i32, i32) {
    %c0_i32 = arith.constant 0 : i32
    %c0_i32_0 = arith.constant 0 : i32
    %c0_i32_1 = arith.constant 0 : i32
    return %c0_i32, %c0_i32_0 : i32, i32
  }
  func.func @transform_18(%arg0: i32, %arg1: i32) -> (i32, i32) {
    %c0_i32 = arith.constant 0 : i32
    %c0_i32_0 = arith.constant 0 : i32
    %c0_i32_1 = arith.constant 0 : i32
    return %c0_i32, %c0_i32_0 : i32, i32
  }
  func.func @transform_19(%arg0: i32, %arg1: i32) -> (i32, i32) {
    %c0_i32 = arith.constant 0 : i32
    %c0_i32_0 = arith.constant 0 : i32
    %c0_i32_1 = arith.constant 0 : i32
    return %c0_i32, %c0_i32_0 : i32, i32
  }
  func.func @transform_20(%arg0: i32, %arg1: i32) -> (i32, i32) {
    %c0_i32 = arith.constant 0 : i32
    %c0_i32_0 = arith.constant 0 : i32
    %c0_i32_1 = arith.constant 0 : i32
    return %c0_i32, %c0_i32_0 : i32, i32
  }
  func.func @transform_21(%arg0: i32, %arg1: i32) -> (i32, i32) {
    %c0_i32 = arith.constant 0 : i32
    %c0_i32_0 = arith.constant 0 : i32
    %c0_i32_1 = arith.constant 0 : i32
    return %c0_i32, %c0_i32_0 : i32, i32
  }
  func.func @transform_22(%arg0: i32, %arg1: i32) -> (i32, i32) {
    %c0_i32 = arith.constant 0 : i32
    %c0_i32_0 = arith.constant 0 : i32
    %c0_i32_1 = arith.constant 0 : i32
    return %c0_i32, %c0_i32_0 : i32, i32
  }
  func.func @transform_23(%arg0: i32, %arg1: i32) -> (i32, i32) {
    %c0_i32 = arith.constant 0 : i32
    %c0_i32_0 = arith.constant 0 : i32
    %c0_i32_1 = arith.constant 0 : i32
    return %c0_i32, %c0_i32_0 : i32, i32
  }
  func.func @transform_24(%arg0: i32, %arg1: i32) -> (i32, i32) {
    %c0_i32 = arith.constant 0 : i32
    %c0_i32_0 = arith.constant 0 : i32
    %c0_i32_1 = arith.constant 0 : i32
    return %c0_i32, %c0_i32_0 : i32, i32
  }
  func.func @transform_25(%arg0: i32, %arg1: i32) -> (i32, i32) {
    %c0_i32 = arith.constant 0 : i32
    %c0_i32_0 = arith.constant 0 : i32
    %c0_i32_1 = arith.constant 0 : i32
    return %c0_i32, %c0_i32_0 : i32, i32
  }
  func.func @transform_26(%arg0: i32, %arg1: i32) -> (i32, i32) {
    %c0_i32 = arith.constant 0 : i32
    %c0_i32_0 = arith.constant 0 : i32
    %c0_i32_1 = arith.constant 0 : i32
    return %c0_i32, %c0_i32_0 : i32, i32
  }
  func.func @transform_27(%arg0: i32, %arg1: i32) -> (i32, i32) {
    %c0_i32 = arith.constant 0 : i32
    %c0_i32_0 = arith.constant 0 : i32
    %c0_i32_1 = arith.constant 0 : i32
    return %c0_i32, %c0_i32_0 : i32, i32
  }
  func.func @transform_28(%arg0: i32, %arg1: i32) -> (i32, i32) {
    %c0_i32 = arith.constant 0 : i32
    %c0_i32_0 = arith.constant 0 : i32
    %c0_i32_1 = arith.constant 0 : i32
    return %c0_i32, %c0_i32_0 : i32, i32
  }
  func.func @transform_29(%arg0: i32, %arg1: i32) -> (i32, i32) {
    %c0_i32 = arith.constant 0 : i32
    %c0_i32_0 = arith.constant 0 : i32
    %c0_i32_1 = arith.constant 0 : i32
    return %c0_i32, %c0_i32_0 : i32, i32
  }
  func.func @transform_30(%arg0: i32, %arg1: i32) -> (i32, i32, i32) {
    %c0_i32 = arith.constant 0 : i32
    %c0_i32_0 = arith.constant 0 : i32
    return %arg0, %arg1, %c0_i32 : i32, i32, i32
  }
}

</mosaic_0001>

<llo_original>
// kernel: tpu_custom_call.1
$region0: #{tpu_custom_call.1}
  #allocation0 [shape = 'u32[]', space=smem, size = 0x4, offset = 0x4, fixed_abs, tag = 'smem constant byte address 0x4 - core index']
  #allocation1 [shape = 'u32[144,128]{1,0:T(1,128)}', space=vmem, size = 0x12000, scoped, tag = 'internal scratch']
  %s0 = inlined_call_operand.smem [shape: u32[31], index: -1, kind: input, shape index: {}]
  %s1 = sld [smem:[%s0]]
  %s2 = scalar_lea.smem %s0, 1
  %s3 = sld [smem:[%s2]]
  %s4 = scalar_lea.smem %s0, 2
  %s5 = sld [smem:[%s4]]
  %s6 = scalar_lea.smem %s0, 3
  %s7 = sld [smem:[%s6]]
  %s8 = scalar_lea.smem %s0, 4
  %s9 = sld [smem:[%s8]]
  %s10 = scalar_lea.smem %s0, 5
  %s11 = sld [smem:[%s10]]
  %s12 = scalar_lea.smem %s0, 6
  %s13 = sld [smem:[%s12]]
  %s14 = scalar_lea.smem %s0, 7
  %s15 = sld [smem:[%s14]]
  %s16 = scalar_lea.smem %s0, 8
  %s17 = sld [smem:[%s16]]
  %s18 = scalar_lea.smem %s0, 9
  %s19 = sld [smem:[%s18]]
  %s20 = scalar_lea.smem %s0, 10
  %s21 = sld [smem:[%s20]]
  %s22 = scalar_lea.smem %s0, 11
  %s23 = sld [smem:[%s22]]
  %s24 = scalar_lea.smem %s0, 12
  %s25 = sld [smem:[%s24]]
  %s26 = scalar_lea.smem %s0, 13
  %s27 = sld [smem:[%s26]]
  %s28 = scalar_lea.smem %s0, 14
  %s29 = sld [smem:[%s28]]
  %s30 = scalar_lea.smem %s0, 15
  %s31 = sld [smem:[%s30]]
  %s32 = scalar_lea.smem %s0, 16
  %s33 = sld [smem:[%s32]]
  %s34 = scalar_lea.smem %s0, 17
  %s35 = sld [smem:[%s34]]
  %s36 = scalar_lea.smem %s0, 18
  %s37 = sld [smem:[%s36]]
  %s38 = scalar_lea.smem %s0, 19
  %s39 = sld [smem:[%s38]]
  %s40 = scalar_lea.smem %s0, 20
  %s41 = sld [smem:[%s40]]
  %s42 = scalar_lea.smem %s0, 21
  %s43 = sld [smem:[%s42]]
  %s44 = scalar_lea.smem %s0, 22
  %s45 = sld [smem:[%s44]]
  %s46 = scalar_lea.smem %s0, 23
  %s47 = sld [smem:[%s46]]
  %s48 = scalar_lea.smem %s0, 24
  %s49 = sld [smem:[%s48]]
  %s50 = scalar_lea.smem %s0, 25
  %s51 = sld [smem:[%s50]]
  %s52 = scalar_lea.smem %s0, 26
  %s53 = sld [smem:[%s52]]
  %s54 = scalar_lea.smem %s0, 27
  %s55 = sld [smem:[%s54]]
  %s56 = scalar_lea.smem %s0, 28
  %s57 = sld [smem:[%s56]]
  %s58 = scalar_lea.smem %s0, 29
  %s59 = sld [smem:[%s58]]
  %s60 = scalar_lea.smem %s0, 30
  %s61 = sld [smem:[%s60]]
  %s62 = sld [smem:[#allocation0]]
  $region217: #{tpu_custom_call.1} parent=0
    _
  %s64 = ssub.s32 1, %s62
  %s65 = scalar_select 0, %s64, %s62
  $region1: #{tpu_custom_call.1} parent=0
    #allocation2 [shape = 'u8[16384]{0}', space=vmem, size = 0x4000, scoped, tag = 'input window, operand 2']
    #allocation3 [shape = 's32[2]{0}', space=sflag, size = 0x8, scoped, tag = 'scoped memory for tpu_custom_call.1']
    #allocation4 [shape = 's32[2]{0}', space=sflag, size = 0x8, scoped, tag = 'scoped memory for tpu_custom_call.1']
    #allocation5 [shape = 'u8[8192]{0}', space=vmem, size = 0x2000, scoped, tag = 'input window, operand 4, single buffered']
    #allocation6 [shape = 's32[1]{0}', space=sflag, size = 0x4, scoped, tag = 'scoped memory for tpu_custom_call.1']
    #allocation7 [shape = 'u8[512]{0}', space=vmem, size = 0x400, scoped, tag = 'input window, operand 5, single buffered']
    #allocation8 [shape = 'u8[8192]{0}', space=vmem, size = 0x2000, scoped, tag = 'input window, operand 6, single buffered']
    #allocation9 [shape = 's32[1]{0}', space=sflag, size = 0x4, scoped, tag = 'scoped memory for tpu_custom_call.1']
    #allocation10 [shape = 'u8[512]{0}', space=vmem, size = 0x400, scoped, tag = 'input window, operand 7, single buffered']
    #allocation11 [shape = 'u8[8192]{0}', space=vmem, size = 0x2000, scoped, tag = 'input window, operand 8, single buffered']
    #allocation12 [shape = 's32[1]{0}', space=sflag, size = 0x4, scoped, tag = 'scoped memory for tpu_custom_call.1']
    #allocation13 [shape = 'u8[512]{0}', space=vmem, size = 0x400, scoped, tag = 'input window, operand 9, single buffered']
    #allocation14 [shape = 'u8[512]{0}', space=vmem, size = 0x400, scoped, tag = 'input window, operand 11, single buffered']
    #allocation15 [shape = 's32[1]{0}', space=sflag, size = 0x4, scoped, tag = 'scoped memory for tpu_custom_call.1']
    #allocation16 [shape = 'u8[8192]{0}', space=vmem, size = 0x2000, scoped, tag = 'input window, operand 12, single buffered']
    #allocation17 [shape = 'u8[512]{0}', space=vmem, size = 0x400, scoped, tag = 'input window, operand 13, single buffered']
    #allocation18 [shape = 's32[1]{0}', space=sflag, size = 0x4, scoped, tag = 'scoped memory for tpu_custom_call.1']
    #allocation19 [shape = 'u8[8192]{0}', space=vmem, size = 0x2000, scoped, tag = 'input window, operand 14, single buffered']
    #allocation20 [shape = 'u8[512]{0}', space=vmem, size = 0x400, scoped, tag = 'input window, operand 15, single buffered']
    #allocation21 [shape = 's32[1]{0}', space=sflag, size = 0x4, scoped, tag = 'scoped memory for tpu_custom_call.1']
    #allocation22 [shape = 'u8[8192]{0}', space=vmem, size = 0x2000, scoped, tag = 'input window, operand 16, single buffered']
    #allocation23 [shape = 'u8[512]{0}', space=vmem, size = 0x400, scoped, tag = 'input window, operand 17, single buffered']
    #allocation24 [shape = 's32[1]{0}', space=sflag, size = 0x4, scoped, tag = 'scoped memory for tpu_custom_call.1']
    #allocation25 [shape = 'u8[8192]{0}', space=vmem, size = 0x2000, scoped, tag = 'input window, operand 18, single buffered']
    #allocation26 [shape = 'u8[8192]{0}', space=vmem, size = 0x2000, scoped, tag = 'input window, operand 26, single buffered']
    #allocation27 [shape = 's32[1]{0}', space=sflag, size = 0x4, scoped, tag = 'scoped memory for tpu_custom_call.1']
    #allocation28 [shape = 'u8[8192]{0}', space=vmem, size = 0x2000, scoped, tag = 'output window, operand 0']
    %66 = vsyncpa [#allocation3], 0
    %s67 = scalar_lea.sflag [#allocation3], 1
    %68 = vsyncpa %s67, 0
    %69 = vsyncpa [#allocation6], 0
    %70 = vsyncpa [#allocation9], 0
    %71 = vsyncpa [#allocation12], 0
    %72 = vsyncpa [#allocation15], 0
    %73 = vsyncpa [#allocation18], 0
    %74 = vsyncpa [#allocation21], 0
    %75 = vsyncpa [#allocation24], 0
    %76 = vsyncpa [#allocation27], 0
    %77 = vsyncpa [#allocation4], 0
    %s78 = scalar_lea.sflag [#allocation4], 1
    %79 = vsyncpa %s78, 0
    loop: start=0, step=1, limit=6
    $region2: #{tpu_custom_call.1} parent=1 // loop_pre_header
      _
    $region3: #{tpu_custom_call.1} parent=1 // loop_header
      %s81 = sphi 0, %s85
      %p82 = scmp.ge.s32.totalorder %s81, 6
      %s88 = sphi 0, %s100
      %s89 = sphi 0, %s96
      %s90 = sphi 0, %s88
      %s91 = sphi 0, %s89
      %s92 = sphi 0, %s90
      %s93 = sphi 0, %s91
      %s105 = sphi 0, %s107
      %s108 = sphi 0, %s105
      %s109 = sphi 0, %s108
      %s125 = sphi 0, %s109
      %s131 = sphi 0, %s133
      %s134 = sphi 0, %s131
      %s135 = sphi 0, %s134
      %s151 = sphi 0, %s135
      %s157 = sphi 0, %s159
      %s160 = sphi 0, %s157
      %s161 = sphi 0, %s160
      %s177 = sphi 0, %s161
      %s183 = sphi 0, %s185
      %s186 = sphi 0, %s183
      %s187 = sphi 0, %s186
      %s203 = sphi 0, %s187
      %s207 = sphi 0, %s207
      %s209 = sphi 0, %s207
      %s210 = sphi 0, %s209
      %s224 = sphi 0, %s210
      %s228 = sphi 0, %s228
      %s230 = sphi 0, %s228
      %s231 = sphi 0, %s230
      %s245 = sphi 0, %s231
      %s249 = sphi 0, %s249
      %s251 = sphi 0, %s249
      %s252 = sphi 0, %s251
      %s266 = sphi 0, %s252
      %s270 = sphi 0, %s270
      %s272 = sphi 0, %s270
      %s273 = sphi 0, %s272
      %s287 = sphi 0, %s273
      %s291 = sphi 0, %s291
      %s293 = sphi 0, %s291
      %s294 = sphi 0, %s293
      %s308 = sphi 0, %s294
      %s312 = sphi 0, %s312
      %s314 = sphi 0, %s312
      %s315 = sphi 0, %s314
      %s329 = sphi 0, %s315
      %s333 = sphi 0, %s333
      %s335 = sphi 0, %s333
      %s336 = sphi 0, %s335
      %s350 = sphi 0, %s336
      %s354 = sphi 0, %s354
      %s356 = sphi 0, %s354
      %s357 = sphi 0, %s356
      %s371 = sphi 0, %s357
      %s375 = sphi 0, %s375
      %s377 = sphi 0, %s375
      %s378 = sphi 0, %s377
      %s392 = sphi 0, %s378
      %s396 = sphi 0, %s396
      %s398 = sphi 0, %s396
      %s399 = sphi 0, %s398
      %s413 = sphi 0, %s399
      %s417 = sphi 0, %s417
      %s419 = sphi 0, %s417
      %s420 = sphi 0, %s419
      %s434 = sphi 0, %s420
      %s438 = sphi 0, %s438
      %s440 = sphi 0, %s438
      %s441 = sphi 0, %s440
      %s455 = sphi 0, %s441
      %s459 = sphi 0, %s459
      %s461 = sphi 0, %s459
      %s462 = sphi 0, %s461
      %s476 = sphi 0, %s462
      %s480 = sphi 0, %s480
      %s482 = sphi 0, %s480
      %s483 = sphi 0, %s482
      %s497 = sphi 0, %s483
      %s501 = sphi 0, %s501
      %s503 = sphi 0, %s501
      %s504 = sphi 0, %s503
      %s518 = sphi 0, %s504
      %s522 = sphi 0, %s522
      %s524 = sphi 0, %s522
      %s525 = sphi 0, %s524
      %s539 = sphi 0, %s525
      %s543 = sphi 0, %s543
      %s545 = sphi 0, %s543
      %s546 = sphi 0, %s545
      %s560 = sphi 0, %s546
      %s564 = sphi 0, %s564
      %s566 = sphi 0, %s564
      %s567 = sphi 0, %s566
      %s581 = sphi 0, %s567
      %s585 = sphi 0, %s585
      %s587 = sphi 0, %s585
      %s588 = sphi 0, %s587
      %s602 = sphi 0, %s588
      %s606 = sphi 0, %s606
      %s608 = sphi 0, %s606
      %s609 = sphi 0, %s608
      %s623 = sphi 0, %s609
      %s627 = sphi 0, %s627
      %s629 = sphi 0, %s627
      %s630 = sphi 0, %s629
      %s644 = sphi 0, %s630
      %s648 = sphi 0, %s648
      %s650 = sphi 0, %s648
      %s651 = sphi 0, %s650
      %s665 = sphi 0, %s651
      %s669 = sphi 0, %s669
      %s671 = sphi 0, %s669
      %s672 = sphi 0, %s671
      %s686 = sphi 0, %s672
      %s690 = sphi 0, %s690
      %s692 = sphi 0, %s690
      %s693 = sphi 0, %s692
      %s707 = sphi 0, %s693
      %s711 = sphi 0, %s711
      %s713 = sphi 0, %s711
      %s714 = sphi 0, %s713
      %s728 = sphi 0, %s714
      %s732 = sphi 0, %s732
      %s734 = sphi 0, %s732
      %s735 = sphi 0, %s734
      %s749 = sphi 0, %s735
      %s757 = sphi 0, %s759
      %s760 = sphi 0, %s757
      %s761 = sphi 0, %s760
      %s777 = sphi 0, %s761
    $region4: #{tpu_custom_call.1} parent=1 // loop_header_branch
      %84 = sbr.rel (%p82) target = $region8
    $region5: #{tpu_custom_call.1} parent=1 // loop_body
      %s86 = ssub.s32 %s81, 1
      %s87 = ssub.s32 %s81, 2
      %s94 = sadd.s32 1, %s89
      %p95 = scmp.ge.s32.totalorder %s94, 2
      %s96 = scalar_select %p95, 0, %s94
      %s97 = sadd.s32 1, %s88
      %s98 = scalar_select %p95, %s97, %s88
      %p99 = scmp.ge.s32.totalorder %s98, 2
      %s100 = scalar_select %p99, 0, %s98
      %s101 = ssub.s32 %s88, %s100
      %s102 = ssub.s32 %s89, %s96
      %s103 = sor.u32 %s101, %s102
      %p104 = scmp.eq.s32.totalorder %s103, 0
      %s106 = sadd.s32 %s105, 1
      %s107 = scalar_select %p104, %s105, %s106
      %p110 = pneg %p104
      %p111 = scmp.eq.s32.totalorder %s81, 3
      %p112 = por %p110, %p111
      %p113 = scmp.ne.s32.totalorder %s105, %s108
      %p114 = scmp.eq.s32.totalorder %s81, 0
      %p115 = por %p113, %p114
      %p116 = scmp.ne.s32.totalorder %s105, %s108
      %p117 = scmp.eq.s32.totalorder %s86, 3
      %p118 = por %p116, %p117
      %p119 = scmp.ne.s32.totalorder %s108, %s109
      %p120 = scmp.eq.s32.totalorder %s86, 0
      %p121 = por %p119, %p120
      %p122 = scmp.ne.s32.totalorder %s108, %s109
      %p123 = scmp.eq.s32.totalorder %s87, 3
      %p124 = por %p122, %p123
      %p126 = scmp.ne.s32.totalorder %s109, %s125
      %p127 = scmp.eq.s32.totalorder %s87, 0
      %p128 = por %p126, %p127
      %s129 = ssub.s32 %s88, %s100
      %p130 = scmp.eq.s32.totalorder %s129, 0
      %s132 = sadd.s32 %s131, 1
      %s133 = scalar_select %p130, %s131, %s132
      %p136 = pneg %p130
      %p137 = scmp.eq.s32.totalorder %s81, 3
      %p138 = por %p136, %p137
      %p139 = scmp.ne.s32.totalorder %s131, %s134
      %p140 = scmp.eq.s32.totalorder %s81, 0
      %p141 = por %p139, %p140
      %p142 = scmp.ne.s32.totalorder %s131, %s134
      %p143 = scmp.eq.s32.totalorder %s86, 3
      %p144 = por %p142, %p143
      %p145 = scmp.ne.s32.totalorder %s134, %s135
      %p146 = scmp.eq.s32.totalorder %s86, 0
      %p147 = por %p145, %p146
      %p148 = scmp.ne.s32.totalorder %s134, %s135
      %p149 = scmp.eq.s32.totalorder %s87, 3
      %p150 = por %p148, %p149
      %p152 = scmp.ne.s32.totalorder %s135, %s151
      %p153 = scmp.eq.s32.totalorder %s87, 0
      %p154 = por %p152, %p153
      %s155 = ssub.s32 %s88, %s100
      %p156 = scmp.eq.s32.totalorder %s155, 0
      %s158 = sadd.s32 %s157, 1
      %s159 = scalar_select %p156, %s157, %s158
      %p162 = pneg %p156
      %p163 = scmp.eq.s32.totalorder %s81, 3
      %p164 = por %p162, %p163
      %p165 = scmp.ne.s32.totalorder %s157, %s160
      %p166 = scmp.eq.s32.totalorder %s81, 0
      %p167 = por %p165, %p166
      %p168 = scmp.ne.s32.totalorder %s157, %s160
      %p169 = scmp.eq.s32.totalorder %s86, 3
      %p170 = por %p168, %p169
      %p171 = scmp.ne.s32.totalorder %s160, %s161
      %p172 = scmp.eq.s32.totalorder %s86, 0
      %p173 = por %p171, %p172
      %p174 = scmp.ne.s32.totalorder %s160, %s161
      %p175 = scmp.eq.s32.totalorder %s87, 3
      %p176 = por %p174, %p175
      %p178 = scmp.ne.s32.totalorder %s161, %s177
      %p179 = scmp.eq.s32.totalorder %s87, 0
      %p180 = por %p178, %p179
      %s181 = ssub.s32 %s89, %s96
      %p182 = scmp.eq.s32.totalorder %s181, 0
      %s184 = sadd.s32 %s183, 1
      %s185 = scalar_select %p182, %s183, %s184
      %p188 = pneg %p182
      %p189 = scmp.eq.s32.totalorder %s81, 3
      %p190 = por %p188, %p189
      %p191 = scmp.ne.s32.totalorder %s183, %s186
      %p192 = scmp.eq.s32.totalorder %s81, 0
      %p193 = por %p191, %p192
      %p194 = scmp.ne.s32.totalorder %s183, %s186
      %p195 = scmp.eq.s32.totalorder %s86, 3
      %p196 = por %p194, %p195
      %p197 = scmp.ne.s32.totalorder %s186, %s187
      %p198 = scmp.eq.s32.totalorder %s86, 0
      %p199 = por %p197, %p198
      %p200 = scmp.ne.s32.totalorder %s186, %s187
      %p201 = scmp.eq.s32.totalorder %s87, 3
      %p202 = por %p200, %p201
      %p204 = scmp.ne.s32.totalorder %s187, %s203
      %p205 = scmp.eq.s32.totalorder %s87, 0
      %p206 = por %p204, %p205
      %s208 = sadd.s32 %s207, 1
      %p211 = scmp.eq.s32.totalorder %s81, 3
      %p212 = scmp.ne.s32.totalorder %s207, %s209
      %p213 = scmp.eq.s32.totalorder %s81, 0
      %p214 = por %p212, %p213
      %p215 = scmp.ne.s32.totalorder %s207, %s209
      %p216 = scmp.eq.s32.totalorder %s86, 3
      %p217 = por %p215, %p216
      %p218 = scmp.ne.s32.totalorder %s209, %s210
      %p219 = scmp.eq.s32.totalorder %s86, 0
      %p220 = por %p218, %p219
      %p221 = scmp.ne.s32.totalorder %s209, %s210
      %p222 = scmp.eq.s32.totalorder %s87, 3
      %p223 = por %p221, %p222
      %p225 = scmp.ne.s32.totalorder %s210, %s224
      %p226 = scmp.eq.s32.totalorder %s87, 0
      %p227 = por %p225, %p226
      %s229 = sadd.s32 %s228, 1
      %p232 = scmp.eq.s32.totalorder %s81, 3
      %p233 = scmp.ne.s32.totalorder %s228, %s230
      %p234 = scmp.eq.s32.totalorder %s81, 0
      %p235 = por %p233, %p234
      %p236 = scmp.ne.s32.totalorder %s228, %s230
      %p237 = scmp.eq.s32.totalorder %s86, 3
      %p238 = por %p236, %p237
      %p239 = scmp.ne.s32.totalorder %s230, %s231
      %p240 = scmp.eq.s32.totalorder %s86, 0
      %p241 = por %p239, %p240
      %p242 = scmp.ne.s32.totalorder %s230, %s231
      %p243 = scmp.eq.s32.totalorder %s87, 3
      %p244 = por %p242, %p243
      %p246 = scmp.ne.s32.totalorder %s231, %s245
      %p247 = scmp.eq.s32.totalorder %s87, 0
      %p248 = por %p246, %p247
      %s250 = sadd.s32 %s249, 1
      %p253 = scmp.eq.s32.totalorder %s81, 3
      %p254 = scmp.ne.s32.totalorder %s249, %s251
      %p255 = scmp.eq.s32.totalorder %s81, 0
      %p256 = por %p254, %p255
      %p257 = scmp.ne.s32.totalorder %s249, %s251
      %p258 = scmp.eq.s32.totalorder %s86, 3
      %p259 = por %p257, %p258
      %p260 = scmp.ne.s32.totalorder %s251, %s252
      %p261 = scmp.eq.s32.totalorder %s86, 0
      %p262 = por %p260, %p261
      %p263 = scmp.ne.s32.totalorder %s251, %s252
      %p264 = scmp.eq.s32.totalorder %s87, 3
      %p265 = por %p263, %p264
      %p267 = scmp.ne.s32.totalorder %s252, %s266
      %p268 = scmp.eq.s32.totalorder %s87, 0
      %p269 = por %p267, %p268
      %s271 = sadd.s32 %s270, 1
      %p274 = scmp.eq.s32.totalorder %s81, 3
      %p275 = scmp.ne.s32.totalorder %s270, %s272
      %p276 = scmp.eq.s32.totalorder %s81, 0
      %p277 = por %p275, %p276
      %p278 = scmp.ne.s32.totalorder %s270, %s272
      %p279 = scmp.eq.s32.totalorder %s86, 3
      %p280 = por %p278, %p279
      %p281 = scmp.ne.s32.totalorder %s272, %s273
      %p282 = scmp.eq.s32.totalorder %s86, 0
      %p283 = por %p281, %p282
      %p284 = scmp.ne.s32.totalorder %s272, %s273
      %p285 = scmp.eq.s32.totalorder %s87, 3
      %p286 = por %p284, %p285
      %p288 = scmp.ne.s32.totalorder %s273, %s287
      %p289 = scmp.eq.s32.totalorder %s87, 0
      %p290 = por %p288, %p289
      %s292 = sadd.s32 %s291, 1
      %p295 = scmp.eq.s32.totalorder %s81, 3
      %p296 = scmp.ne.s32.totalorder %s291, %s293
      %p297 = scmp.eq.s32.totalorder %s81, 0
      %p298 = por %p296, %p297
      %p299 = scmp.ne.s32.totalorder %s291, %s293
      %p300 = scmp.eq.s32.totalorder %s86, 3
      %p301 = por %p299, %p300
      %p302 = scmp.ne.s32.totalorder %s293, %s294
      %p303 = scmp.eq.s32.totalorder %s86, 0
      %p304 = por %p302, %p303
      %p305 = scmp.ne.s32.totalorder %s293, %s294
      %p306 = scmp.eq.s32.totalorder %s87, 3
      %p307 = por %p305, %p306
      %p309 = scmp.ne.s32.totalorder %s294, %s308
      %p310 = scmp.eq.s32.totalorder %s87, 0
      %p311 = por %p309, %p310
      %s313 = sadd.s32 %s312, 1
      %p316 = scmp.eq.s32.totalorder %s81, 3
      %p317 = scmp.ne.s32.totalorder %s312, %s314
      %p318 = scmp.eq.s32.totalorder %s81, 0
      %p319 = por %p317, %p318
      %p320 = scmp.ne.s32.totalorder %s312, %s314
      %p321 = scmp.eq.s32.totalorder %s86, 3
      %p322 = por %p320, %p321
      %p323 = scmp.ne.s32.totalorder %s314, %s315
      %p324 = scmp.eq.s32.totalorder %s86, 0
      %p325 = por %p323, %p324
      %p326 = scmp.ne.s32.totalorder %s314, %s315
      %p327 = scmp.eq.s32.totalorder %s87, 3
      %p328 = por %p326, %p327
      %p330 = scmp.ne.s32.totalorder %s315, %s329
      %p331 = scmp.eq.s32.totalorder %s87, 0
      %p332 = por %p330, %p331
      %s334 = sadd.s32 %s333, 1
      %p337 = scmp.eq.s32.totalorder %s81, 3
      %p338 = scmp.ne.s32.totalorder %s333, %s335
      %p339 = scmp.eq.s32.totalorder %s81, 0
      %p340 = por %p338, %p339
      %p341 = scmp.ne.s32.totalorder %s333, %s335
      %p342 = scmp.eq.s32.totalorder %s86, 3
      %p343 = por %p341, %p342
      %p344 = scmp.ne.s32.totalorder %s335, %s336
      %p345 = scmp.eq.s32.totalorder %s86, 0
      %p346 = por %p344, %p345
      %p347 = scmp.ne.s32.totalorder %s335, %s336
      %p348 = scmp.eq.s32.totalorder %s87, 3
      %p349 = por %p347, %p348
      %p351 = scmp.ne.s32.totalorder %s336, %s350
      %p352 = scmp.eq.s32.totalorder %s87, 0
      %p353 = por %p351, %p352
      %s355 = sadd.s32 %s354, 1
      %p358 = scmp.eq.s32.totalorder %s81, 3
      %p359 = scmp.ne.s32.totalorder %s354, %s356
      %p360 = scmp.eq.s32.totalorder %s81, 0
      %p361 = por %p359, %p360
      %p362 = scmp.ne.s32.totalorder %s354, %s356
      %p363 = scmp.eq.s32.totalorder %s86, 3
      %p364 = por %p362, %p363
      %p365 = scmp.ne.s32.totalorder %s356, %s357
      %p366 = scmp.eq.s32.totalorder %s86, 0
      %p367 = por %p365, %p366
      %p368 = scmp.ne.s32.totalorder %s356, %s357
      %p369 = scmp.eq.s32.totalorder %s87, 3
      %p370 = por %p368, %p369
      %p372 = scmp.ne.s32.totalorder %s357, %s371
      %p373 = scmp.eq.s32.totalorder %s87, 0
      %p374 = por %p372, %p373
      %s376 = sadd.s32 %s375, 1
      %p379 = scmp.eq.s32.totalorder %s81, 3
      %p380 = scmp.ne.s32.totalorder %s375, %s377
      %p381 = scmp.eq.s32.totalorder %s81, 0
      %p382 = por %p380, %p381
      %p383 = scmp.ne.s32.totalorder %s375, %s377
      %p384 = scmp.eq.s32.totalorder %s86, 3
      %p385 = por %p383, %p384
      %p386 = scmp.ne.s32.totalorder %s377, %s378
      %p387 = scmp.eq.s32.totalorder %s86, 0
      %p388 = por %p386, %p387
      %p389 = scmp.ne.s32.totalorder %s377, %s378
      %p390 = scmp.eq.s32.totalorder %s87, 3
      %p391 = por %p389, %p390
      %p393 = scmp.ne.s32.totalorder %s378, %s392
      %p394 = scmp.eq.s32.totalorder %s87, 0
      %p395 = por %p393, %p394
      %s397 = sadd.s32 %s396, 1
      %p400 = scmp.eq.s32.totalorder %s81, 3
      %p401 = scmp.ne.s32.totalorder %s396, %s398
      %p402 = scmp.eq.s32.totalorder %s81, 0
      %p403 = por %p401, %p402
      %p404 = scmp.ne.s32.totalorder %s396, %s398
      %p405 = scmp.eq.s32.totalorder %s86, 3
      %p406 = por %p404, %p405
      %p407 = scmp.ne.s32.totalorder %s398, %s399
      %p408 = scmp.eq.s32.totalorder %s86, 0
      %p409 = por %p407, %p408
      %p410 = scmp.ne.s32.totalorder %s398, %s399
      %p411 = scmp.eq.s32.totalorder %s87, 3
      %p412 = por %p410, %p411
      %p414 = scmp.ne.s32.totalorder %s399, %s413
      %p415 = scmp.eq.s32.totalorder %s87, 0
      %p416 = por %p414, %p415
      %s418 = sadd.s32 %s417, 1
      %p421 = scmp.eq.s32.totalorder %s81, 3
      %p422 = scmp.ne.s32.totalorder %s417, %s419
      %p423 = scmp.eq.s32.totalorder %s81, 0
      %p424 = por %p422, %p423
      %p425 = scmp.ne.s32.totalorder %s417, %s419
      %p426 = scmp.eq.s32.totalorder %s86, 3
      %p427 = por %p425, %p426
      %p428 = scmp.ne.s32.totalorder %s419, %s420
      %p429 = scmp.eq.s32.totalorder %s86, 0
      %p430 = por %p428, %p429
      %p431 = scmp.ne.s32.totalorder %s419, %s420
      %p432 = scmp.eq.s32.totalorder %s87, 3
      %p433 = por %p431, %p432
      %p435 = scmp.ne.s32.totalorder %s420, %s434
      %p436 = scmp.eq.s32.totalorder %s87, 0
      %p437 = por %p435, %p436
      %s439 = sadd.s32 %s438, 1
      %p442 = scmp.eq.s32.totalorder %s81, 3
      %p443 = scmp.ne.s32.totalorder %s438, %s440
      %p444 = scmp.eq.s32.totalorder %s81, 0
      %p445 = por %p443, %p444
      %p446 = scmp.ne.s32.totalorder %s438, %s440
      %p447 = scmp.eq.s32.totalorder %s86, 3
      %p448 = por %p446, %p447
      %p449 = scmp.ne.s32.totalorder %s440, %s441
      %p450 = scmp.eq.s32.totalorder %s86, 0
      %p451 = por %p449, %p450
      %p452 = scmp.ne.s32.totalorder %s440, %s441
      %p453 = scmp.eq.s32.totalorder %s87, 3
      %p454 = por %p452, %p453
      %p456 = scmp.ne.s32.totalorder %s441, %s455
      %p457 = scmp.eq.s32.totalorder %s87, 0
      %p458 = por %p456, %p457
      %s460 = sadd.s32 %s459, 1
      %p463 = scmp.eq.s32.totalorder %s81, 3
      %p464 = scmp.ne.s32.totalorder %s459, %s461
      %p465 = scmp.eq.s32.totalorder %s81, 0
      %p466 = por %p464, %p465
      %p467 = scmp.ne.s32.totalorder %s459, %s461
      %p468 = scmp.eq.s32.totalorder %s86, 3
      %p469 = por %p467, %p468
      %p470 = scmp.ne.s32.totalorder %s461, %s462
      %p471 = scmp.eq.s32.totalorder %s86, 0
      %p472 = por %p470, %p471
      %p473 = scmp.ne.s32.totalorder %s461, %s462
      %p474 = scmp.eq.s32.totalorder %s87, 3
      %p475 = por %p473, %p474
      %p477 = scmp.ne.s32.totalorder %s462, %s476
      %p478 = scmp.eq.s32.totalorder %s87, 0
      %p479 = por %p477, %p478
      %s481 = sadd.s32 %s480, 1
      %p484 = scmp.eq.s32.totalorder %s81, 3
      %p485 = scmp.ne.s32.totalorder %s480, %s482
      %p486 = scmp.eq.s32.totalorder %s81, 0
      %p487 = por %p485, %p486
      %p488 = scmp.ne.s32.totalorder %s480, %s482
      %p489 = scmp.eq.s32.totalorder %s86, 3
      %p490 = por %p488, %p489
      %p491 = scmp.ne.s32.totalorder %s482, %s483
      %p492 = scmp.eq.s32.totalorder %s86, 0
      %p493 = por %p491, %p492
      %p494 = scmp.ne.s32.totalorder %s482, %s483
      %p495 = scmp.eq.s32.totalorder %s87, 3
      %p496 = por %p494, %p495
      %p498 = scmp.ne.s32.totalorder %s483, %s497
      %p499 = scmp.eq.s32.totalorder %s87, 0
      %p500 = por %p498, %p499
      %s502 = sadd.s32 %s501, 1
      %p505 = scmp.eq.s32.totalorder %s81, 3
      %p506 = scmp.ne.s32.totalorder %s501, %s503
      %p507 = scmp.eq.s32.totalorder %s81, 0
      %p508 = por %p506, %p507
      %p509 = scmp.ne.s32.totalorder %s501, %s503
      %p510 = scmp.eq.s32.totalorder %s86, 3
      %p511 = por %p509, %p510
      %p512 = scmp.ne.s32.totalorder %s503, %s504
      %p513 = scmp.eq.s32.totalorder %s86, 0
      %p514 = por %p512, %p513
      %p515 = scmp.ne.s32.totalorder %s503, %s504
      %p516 = scmp.eq.s32.totalorder %s87, 3
      %p517 = por %p515, %p516
      %p519 = scmp.ne.s32.totalorder %s504, %s518
      %p520 = scmp.eq.s32.totalorder %s87, 0
      %p521 = por %p519, %p520
      %s523 = sadd.s32 %s522, 1
      %p526 = scmp.eq.s32.totalorder %s81, 3
      %p527 = scmp.ne.s32.totalorder %s522, %s524
      %p528 = scmp.eq.s32.totalorder %s81, 0
      %p529 = por %p527, %p528
      %p530 = scmp.ne.s32.totalorder %s522, %s524
      %p531 = scmp.eq.s32.totalorder %s86, 3
      %p532 = por %p530, %p531
      %p533 = scmp.ne.s32.totalorder %s524, %s525
      %p534 = scmp.eq.s32.totalorder %s86, 0
      %p535 = por %p533, %p534
      %p536 = scmp.ne.s32.totalorder %s524, %s525
      %p537 = scmp.eq.s32.totalorder %s87, 3
      %p538 = por %p536, %p537
      %p540 = scmp.ne.s32.totalorder %s525, %s539
      %p541 = scmp.eq.s32.totalorder %s87, 0
      %p542 = por %p540, %p541
      %s544 = sadd.s32 %s543, 1
      %p547 = scmp.eq.s32.totalorder %s81, 3
      %p548 = scmp.ne.s32.totalorder %s543, %s545
      %p549 = scmp.eq.s32.totalorder %s81, 0
      %p550 = por %p548, %p549
      %p551 = scmp.ne.s32.totalorder %s543, %s545
      %p552 = scmp.eq.s32.totalorder %s86, 3
      %p553 = por %p551, %p552
      %p554 = scmp.ne.s32.totalorder %s545, %s546
      %p555 = scmp.eq.s32.totalorder %s86, 0
      %p556 = por %p554, %p555
      %p557 = scmp.ne.s32.totalorder %s545, %s546
      %p558 = scmp.eq.s32.totalorder %s87, 3
      %p559 = por %p557, %p558
      %p561 = scmp.ne.s32.totalorder %s546, %s560
      %p562 = scmp.eq.s32.totalorder %s87, 0
      %p563 = por %p561, %p562
      %s565 = sadd.s32 %s564, 1
      %p568 = scmp.eq.s32.totalorder %s81, 3
      %p569 = scmp.ne.s32.totalorder %s564, %s566
      %p570 = scmp.eq.s32.totalorder %s81, 0
      %p571 = por %p569, %p570
      %p572 = scmp.ne.s32.totalorder %s564, %s566
      %p573 = scmp.eq.s32.totalorder %s86, 3
      %p574 = por %p572, %p573
      %p575 = scmp.ne.s32.totalorder %s566, %s567
      %p576 = scmp.eq.s32.totalorder %s86, 0
      %p577 = por %p575, %p576
      %p578 = scmp.ne.s32.totalorder %s566, %s567
      %p579 = scmp.eq.s32.totalorder %s87, 3
      %p580 = por %p578, %p579
      %p582 = scmp.ne.s32.totalorder %s567, %s581
      %p583 = scmp.eq.s32.totalorder %s87, 0
      %p584 = por %p582, %p583
      %s586 = sadd.s32 %s585, 1
      %p589 = scmp.eq.s32.totalorder %s81, 3
      %p590 = scmp.ne.s32.totalorder %s585, %s587
      %p591 = scmp.eq.s32.totalorder %s81, 0
      %p592 = por %p590, %p591
      %p593 = scmp.ne.s32.totalorder %s585, %s587
      %p594 = scmp.eq.s32.totalorder %s86, 3
      %p595 = por %p593, %p594
      %p596 = scmp.ne.s32.totalorder %s587, %s588
      %p597 = scmp.eq.s32.totalorder %s86, 0
      %p598 = por %p596, %p597
      %p599 = scmp.ne.s32.totalorder %s587, %s588
      %p600 = scmp.eq.s32.totalorder %s87, 3
      %p601 = por %p599, %p600
      %p603 = scmp.ne.s32.totalorder %s588, %s602
      %p604 = scmp.eq.s32.totalorder %s87, 0
      %p605 = por %p603, %p604
      %s607 = sadd.s32 %s606, 1
      %p610 = scmp.eq.s32.totalorder %s81, 3
      %p611 = scmp.ne.s32.totalorder %s606, %s608
      %p612 = scmp.eq.s32.totalorder %s81, 0
      %p613 = por %p611, %p612
      %p614 = scmp.ne.s32.totalorder %s606, %s608
      %p615 = scmp.eq.s32.totalorder %s86, 3
      %p616 = por %p614, %p615
      %p617 = scmp.ne.s32.totalorder %s608, %s609
      %p618 = scmp.eq.s32.totalorder %s86, 0
      %p619 = por %p617, %p618
      %p620 = scmp.ne.s32.totalorder %s608, %s609
      %p621 = scmp.eq.s32.totalorder %s87, 3
      %p622 = por %p620, %p621
      %p624 = scmp.ne.s32.totalorder %s609, %s623
      %p625 = scmp.eq.s32.totalorder %s87, 0
      %p626 = por %p624, %p625
      %s628 = sadd.s32 %s627, 1
      %p631 = scmp.eq.s32.totalorder %s81, 3
      %p632 = scmp.ne.s32.totalorder %s627, %s629
      %p633 = scmp.eq.s32.totalorder %s81, 0
      %p634 = por %p632, %p633
      %p635 = scmp.ne.s32.totalorder %s627, %s629
      %p636 = scmp.eq.s32.totalorder %s86, 3
      %p637 = por %p635, %p636
      %p638 = scmp.ne.s32.totalorder %s629, %s630
      %p639 = scmp.eq.s32.totalorder %s86, 0
      %p640 = por %p638, %p639
      %p641 = scmp.ne.s32.totalorder %s629, %s630
      %p642 = scmp.eq.s32.totalorder %s87, 3
      %p643 = por %p641, %p642
      %p645 = scmp.ne.s32.totalorder %s630, %s644
      %p646 = scmp.eq.s32.totalorder %s87, 0
      %p647 = por %p645, %p646
      %s649 = sadd.s32 %s648, 1
      %p652 = scmp.eq.s32.totalorder %s81, 3
      %p653 = scmp.ne.s32.totalorder %s648, %s650
      %p654 = scmp.eq.s32.totalorder %s81, 0
      %p655 = por %p653, %p654
      %p656 = scmp.ne.s32.totalorder %s648, %s650
      %p657 = scmp.eq.s32.totalorder %s86, 3
      %p658 = por %p656, %p657
      %p659 = scmp.ne.s32.totalorder %s650, %s651
      %p660 = scmp.eq.s32.totalorder %s86, 0
      %p661 = por %p659, %p660
      %p662 = scmp.ne.s32.totalorder %s650, %s651
      %p663 = scmp.eq.s32.totalorder %s87, 3
      %p664 = por %p662, %p663
      %p666 = scmp.ne.s32.totalorder %s651, %s665
      %p667 = scmp.eq.s32.totalorder %s87, 0
      %p668 = por %p666, %p667
      %s670 = sadd.s32 %s669, 1
      %p673 = scmp.eq.s32.totalorder %s81, 3
      %p674 = scmp.ne.s32.totalorder %s669, %s671
      %p675 = scmp.eq.s32.totalorder %s81, 0
      %p676 = por %p674, %p675
      %p677 = scmp.ne.s32.totalorder %s669, %s671
      %p678 = scmp.eq.s32.totalorder %s86, 3
      %p679 = por %p677, %p678
      %p680 = scmp.ne.s32.totalorder %s671, %s672
      %p681 = scmp.eq.s32.totalorder %s86, 0
      %p682 = por %p680, %p681
      %p683 = scmp.ne.s32.totalorder %s671, %s672
      %p684 = scmp.eq.s32.totalorder %s87, 3
      %p685 = por %p683, %p684
      %p687 = scmp.ne.s32.totalorder %s672, %s686
      %p688 = scmp.eq.s32.totalorder %s87, 0
      %p689 = por %p687, %p688
      %s691 = sadd.s32 %s690, 1
      %p694 = scmp.eq.s32.totalorder %s81, 3
      %p695 = scmp.ne.s32.totalorder %s690, %s692
      %p696 = scmp.eq.s32.totalorder %s81, 0
      %p697 = por %p695, %p696
      %p698 = scmp.ne.s32.totalorder %s690, %s692
      %p699 = scmp.eq.s32.totalorder %s86, 3
      %p700 = por %p698, %p699
      %p701 = scmp.ne.s32.totalorder %s692, %s693
      %p702 = scmp.eq.s32.totalorder %s86, 0
      %p703 = por %p701, %p702
      %p704 = scmp.ne.s32.totalorder %s692, %s693
      %p705 = scmp.eq.s32.totalorder %s87, 3
      %p706 = por %p704, %p705
      %p708 = scmp.ne.s32.totalorder %s693, %s707
      %p709 = scmp.eq.s32.totalorder %s87, 0
      %p710 = por %p708, %p709
      %s712 = sadd.s32 %s711, 1
      %p715 = scmp.eq.s32.totalorder %s81, 3
      %p716 = scmp.ne.s32.totalorder %s711, %s713
      %p717 = scmp.eq.s32.totalorder %s81, 0
      %p718 = por %p716, %p717
      %p719 = scmp.ne.s32.totalorder %s711, %s713
      %p720 = scmp.eq.s32.totalorder %s86, 3
      %p721 = por %p719, %p720
      %p722 = scmp.ne.s32.totalorder %s713, %s714
      %p723 = scmp.eq.s32.totalorder %s86, 0
      %p724 = por %p722, %p723
      %p725 = scmp.ne.s32.totalorder %s713, %s714
      %p726 = scmp.eq.s32.totalorder %s87, 3
      %p727 = por %p725, %p726
      %p729 = scmp.ne.s32.totalorder %s714, %s728
      %p730 = scmp.eq.s32.totalorder %s87, 0
      %p731 = por %p729, %p730
      %s733 = sadd.s32 %s732, 1
      %p736 = scmp.eq.s32.totalorder %s81, 3
      %p737 = scmp.ne.s32.totalorder %s732, %s734
      %p738 = scmp.eq.s32.totalorder %s81, 0
      %p739 = por %p737, %p738
      %p740 = scmp.ne.s32.totalorder %s732, %s734
      %p741 = scmp.eq.s32.totalorder %s86, 3
      %p742 = por %p740, %p741
      %p743 = scmp.ne.s32.totalorder %s734, %s735
      %p744 = scmp.eq.s32.totalorder %s86, 0
      %p745 = por %p743, %p744
      %p746 = scmp.ne.s32.totalorder %s734, %s735
      %p747 = scmp.eq.s32.totalorder %s87, 3
      %p748 = por %p746, %p747
      %p750 = scmp.ne.s32.totalorder %s735, %s749
      %p751 = scmp.eq.s32.totalorder %s87, 0
      %p752 = por %p750, %p751
      %s753 = ssub.s32 %s88, %s100
      %s754 = ssub.s32 %s89, %s96
      %s755 = sor.u32 %s753, %s754
      %p756 = scmp.eq.s32.totalorder %s755, 0
      %s758 = sadd.s32 %s757, 1
      %s759 = scalar_select %p756, %s757, %s758
      %p762 = pneg %p756
      %p763 = scmp.eq.s32.totalorder %s81, 3
      %p764 = por %p762, %p763
      %p765 = scmp.ne.s32.totalorder %s757, %s760
      %p766 = scmp.eq.s32.totalorder %s81, 0
      %p767 = por %p765, %p766
      %p768 = scmp.ne.s32.totalorder %s757, %s760
      %p769 = scmp.eq.s32.totalorder %s86, 3
      %p770 = por %p768, %p769
      %p771 = scmp.ne.s32.totalorder %s760, %s761
      %p772 = scmp.eq.s32.totalorder %s86, 0
      %p773 = por %p771, %p772
      %p774 = scmp.ne.s32.totalorder %s760, %s761
      %p775 = scmp.eq.s32.totalorder %s87, 3
      %p776 = por %p774, %p775
      %p778 = scmp.ne.s32.totalorder %s761, %s777
      %p779 = scmp.eq.s32.totalorder %s87, 0
      %p780 = por %p778, %p779
      %p781 = scmp.le.s32.totalorder 1, %s81
      %p782 = scmp.lt.s32.totalorder %s81, 5
      %p783 = pnand %p781, %p782
      %p784 = pneg %p783
      // Predicated region
      $region9: #{tpu_custom_call.1} parent=5 // pred_check
        _
      $region10: #{tpu_custom_call.1} parent=5 // pred_check_branch
        %786 = sbr.rel (%p783) target = $region12
      $region11: #{tpu_custom_call.1} parent=5 // pred_region
        %s787 = ssub.s32 %s81, 1
        // Predicated region
        $region13: #{tpu_custom_call.1} parent=11 // pred_check
          %p788 = pneg %p220
        $region14: #{tpu_custom_call.1} parent=11 // pred_check_branch
          %790 = sbr.rel (%p788) target = $region16
        $region15: #{tpu_custom_call.1} parent=11 // pred_region
          %s792 = ssub.s32 256, 256
          %793 = vsyncadd [#allocation6], %s792
          %s794 = sshll.u32 [#allocation5], 4
          %s795 = int_to_ptr.vmem [resolvable:$true] %s794
          %800 = dma.hbm_to_vmem [thread:$0]  %s9, 256, %s795, [#allocation6], 64, 64, 4
        $region16: #{tpu_custom_call.1} parent=11 // pred_fallthru
          _
        // Predicated region
        $region17: #{tpu_custom_call.1} parent=11 // pred_check
          %p801 = pneg %p241
        $region18: #{tpu_custom_call.1} parent=11 // pred_check_branch
          %803 = sbr.rel (%p801) target = $region20
        $region19: #{tpu_custom_call.1} parent=11 // pred_region
          %s805 = ssub.s32 16, 16
          %806 = vsyncadd [#allocation6], %s805
          %s808 = sshll.u32 [#allocation7], 4
          %s809 = int_to_ptr.vmem [resolvable:$true] %s808
          %811 = dma.hbm_to_vmem [thread:$0]  %s11, 16, %s809, [#allocation6]
        $region20: #{tpu_custom_call.1} parent=11 // pred_fallthru
          _
        // Predicated region
        $region21: #{tpu_custom_call.1} parent=11 // pred_check
          %p812 = pneg %p262
        $region22: #{tpu_custom_call.1} parent=11 // pred_check_branch
          %814 = sbr.rel (%p812) target = $region24
        $region23: #{tpu_custom_call.1} parent=11 // pred_region
          %s816 = ssub.s32 256, 256
          %817 = vsyncadd [#allocation9], %s816
          %s818 = sshll.u32 [#allocation8], 4
          %s819 = int_to_ptr.vmem [resolvable:$true] %s818
          %824 = dma.hbm_to_vmem [thread:$0]  %s13, 256, %s819, [#allocation9], 64, 64, 4
        $region24: #{tpu_custom_call.1} parent=11 // pred_fallthru
          _
        // Predicated region
        $region25: #{tpu_custom_call.1} parent=11 // pred_check
          %p825 = pneg %p283
        $region26: #{tpu_custom_call.1} parent=11 // pred_check_branch
          %827 = sbr.rel (%p825) target = $region28
        $region27: #{tpu_custom_call.1} parent=11 // pred_region
          %s829 = ssub.s32 16, 16
          %830 = vsyncadd [#allocation9], %s829
          %s832 = sshll.u32 [#allocation10], 4
          %s833 = int_to_ptr.vmem [resolvable:$true] %s832
          %835 = dma.hbm_to_vmem [thread:$0]  %s15, 16, %s833, [#allocation9]
        $region28: #{tpu_custom_call.1} parent=11 // pred_fallthru
          _
        // Predicated region
        $region29: #{tpu_custom_call.1} parent=11 // pred_check
          %p836 = pneg %p304
        $region30: #{tpu_custom_call.1} parent=11 // pred_check_branch
          %838 = sbr.rel (%p836) target = $region32
        $region31: #{tpu_custom_call.1} parent=11 // pred_region
          %s840 = ssub.s32 256, 256
          %841 = vsyncadd [#allocation12], %s840
          %s842 = sshll.u32 [#allocation11], 4
          %s843 = int_to_ptr.vmem [resolvable:$true] %s842
          %848 = dma.hbm_to_vmem [thread:$0]  %s17, 256, %s843, [#allocation12], 64, 64, 4
        $region32: #{tpu_custom_call.1} parent=11 // pred_fallthru
          _
        // Predicated region
        $region33: #{tpu_custom_call.1} parent=11 // pred_check
          %p849 = pneg %p325
        $region34: #{tpu_custom_call.1} parent=11 // pred_check_branch
          %851 = sbr.rel (%p849) target = $region36
        $region35: #{tpu_custom_call.1} parent=11 // pred_region
          %s853 = ssub.s32 16, 16
          %854 = vsyncadd [#allocation12], %s853
          %s856 = sshll.u32 [#allocation13], 4
          %s857 = int_to_ptr.vmem [resolvable:$true] %s856
          %859 = dma.hbm_to_vmem [thread:$0]  %s19, 16, %s857, [#allocation12]
        $region36: #{tpu_custom_call.1} parent=11 // pred_fallthru
          _
        // Predicated region
        $region37: #{tpu_custom_call.1} parent=11 // pred_check
          %p860 = pneg %p346
        $region38: #{tpu_custom_call.1} parent=11 // pred_check_branch
          %862 = sbr.rel (%p860) target = $region40
        $region39: #{tpu_custom_call.1} parent=11 // pred_region
          _
        $region40: #{tpu_custom_call.1} parent=11 // pred_fallthru
          _
        // Predicated region
        $region41: #{tpu_custom_call.1} parent=11 // pred_check
          %p863 = pneg %p367
        $region42: #{tpu_custom_call.1} parent=11 // pred_check_branch
          %865 = sbr.rel (%p863) target = $region44
        $region43: #{tpu_custom_call.1} parent=11 // pred_region
          %s867 = ssub.s32 16, 16
          %868 = vsyncadd [#allocation15], %s867
          %s870 = sshll.u32 [#allocation14], 4
          %s871 = int_to_ptr.vmem [resolvable:$true] %s870
          %873 = dma.hbm_to_vmem [thread:$0]  %s23, 16, %s871, [#allocation15]
        $region44: #{tpu_custom_call.1} parent=11 // pred_fallthru
          _
        // Predicated region
        $region45: #{tpu_custom_call.1} parent=11 // pred_check
          %p874 = pneg %p388
        $region46: #{tpu_custom_call.1} parent=11 // pred_check_branch
          %876 = sbr.rel (%p874) target = $region48
        $region47: #{tpu_custom_call.1} parent=11 // pred_region
          %s878 = ssub.s32 256, 256
          %879 = vsyncadd [#allocation15], %s878
          %s880 = sshll.u32 [#allocation16], 4
          %s881 = int_to_ptr.vmem [resolvable:$true] %s880
          %886 = dma.hbm_to_vmem [thread:$0]  %s25, 256, %s881, [#allocation15], 64, 64, 4
        $region48: #{tpu_custom_call.1} parent=11 // pred_fallthru
          _
        // Predicated region
        $region49: #{tpu_custom_call.1} parent=11 // pred_check
          %p887 = pneg %p409
        $region50: #{tpu_custom_call.1} parent=11 // pred_check_branch
          %889 = sbr.rel (%p887) target = $region52
        $region51: #{tpu_custom_call.1} parent=11 // pred_region
          %s891 = ssub.s32 16, 16
          %892 = vsyncadd [#allocation18], %s891
          %s894 = sshll.u32 [#allocation17], 4
          %s895 = int_to_ptr.vmem [resolvable:$true] %s894
          %897 = dma.hbm_to_vmem [thread:$0]  %s27, 16, %s895, [#allocation18]
        $region52: #{tpu_custom_call.1} parent=11 // pred_fallthru
          _
        // Predicated region
        $region53: #{tpu_custom_call.1} parent=11 // pred_check
          %p898 = pneg %p430
        $region54: #{tpu_custom_call.1} parent=11 // pred_check_branch
          %900 = sbr.rel (%p898) target = $region56
        $region55: #{tpu_custom_call.1} parent=11 // pred_region
          %s902 = ssub.s32 256, 256
          %903 = vsyncadd [#allocation18], %s902
          %s904 = sshll.u32 [#allocation19], 4
          %s905 = int_to_ptr.vmem [resolvable:$true] %s904
          %910 = dma.hbm_to_vmem [thread:$0]  %s29, 256, %s905, [#allocation18], 64, 64, 4
        $region56: #{tpu_custom_call.1} parent=11 // pred_fallthru
          _
        // Predicated region
        $region57: #{tpu_custom_call.1} parent=11 // pred_check
          %p911 = pneg %p451
        $region58: #{tpu_custom_call.1} parent=11 // pred_check_branch
          %913 = sbr.rel (%p911) target = $region60
        $region59: #{tpu_custom_call.1} parent=11 // pred_region
          %s915 = ssub.s32 16, 16
          %916 = vsyncadd [#allocation21], %s915
          %s918 = sshll.u32 [#allocation20], 4
          %s919 = int_to_ptr.vmem [resolvable:$true] %s918
          %921 = dma.hbm_to_vmem [thread:$0]  %s31, 16, %s919, [#allocation21]
        $region60: #{tpu_custom_call.1} parent=11 // pred_fallthru
          _
        // Predicated region
        $region61: #{tpu_custom_call.1} parent=11 // pred_check
          %p922 = pneg %p472
        $region62: #{tpu_custom_call.1} parent=11 // pred_check_branch
          %924 = sbr.rel (%p922) target = $region64
        $region63: #{tpu_custom_call.1} parent=11 // pred_region
          %s926 = ssub.s32 256, 256
          %927 = vsyncadd [#allocation21], %s926
          %s928 = sshll.u32 [#allocation22], 4
          %s929 = int_to_ptr.vmem [resolvable:$true] %s928
          %934 = dma.hbm_to_vmem [thread:$0]  %s33, 256, %s929, [#allocation21], 64, 64, 4
        $region64: #{tpu_custom_call.1} parent=11 // pred_fallthru
          _
        // Predicated region
        $region65: #{tpu_custom_call.1} parent=11 // pred_check
          %p935 = pneg %p493
        $region66: #{tpu_custom_call.1} parent=11 // pred_check_branch
          %937 = sbr.rel (%p935) target = $region68
        $region67: #{tpu_custom_call.1} parent=11 // pred_region
          %s939 = ssub.s32 16, 16
          %940 = vsyncadd [#allocation24], %s939
          %s942 = sshll.u32 [#allocation23], 4
          %s943 = int_to_ptr.vmem [resolvable:$true] %s942
          %945 = dma.hbm_to_vmem [thread:$0]  %s35, 16, %s943, [#allocation24]
        $region68: #{tpu_custom_call.1} parent=11 // pred_fallthru
          _
        // Predicated region
        $region69: #{tpu_custom_call.1} parent=11 // pred_check
          %p946 = pneg %p514
        $region70: #{tpu_custom_call.1} parent=11 // pred_check_branch
          %948 = sbr.rel (%p946) target = $region72
        $region71: #{tpu_custom_call.1} parent=11 // pred_region
          %s950 = ssub.s32 256, 256
          %951 = vsyncadd [#allocation24], %s950
          %s952 = sshll.u32 [#allocation25], 4
          %s953 = int_to_ptr.vmem [resolvable:$true] %s952
          %958 = dma.hbm_to_vmem [thread:$0]  %s37, 256, %s953, [#allocation24], 64, 64, 4
        $region72: #{tpu_custom_call.1} parent=11 // pred_fallthru
          _
        // Predicated region
        $region73: #{tpu_custom_call.1} parent=11 // pred_check
          %p959 = pneg %p535
        $region74: #{tpu_custom_call.1} parent=11 // pred_check_branch
          %961 = sbr.rel (%p959) target = $region76
        $region75: #{tpu_custom_call.1} parent=11 // pred_region
          _
        $region76: #{tpu_custom_call.1} parent=11 // pred_fallthru
          _
        // Predicated region
        $region77: #{tpu_custom_call.1} parent=11 // pred_check
          %p962 = pneg %p556
        $region78: #{tpu_custom_call.1} parent=11 // pred_check_branch
          %964 = sbr.rel (%p962) target = $region80
        $region79: #{tpu_custom_call.1} parent=11 // pred_region
          _
        $region80: #{tpu_custom_call.1} parent=11 // pred_fallthru
          _
        // Predicated region
        $region81: #{tpu_custom_call.1} parent=11 // pred_check
          %p965 = pneg %p577
        $region82: #{tpu_custom_call.1} parent=11 // pred_check_branch
          %967 = sbr.rel (%p965) target = $region84
        $region83: #{tpu_custom_call.1} parent=11 // pred_region
          _
        $region84: #{tpu_custom_call.1} parent=11 // pred_fallthru
          _
        // Predicated region
        $region85: #{tpu_custom_call.1} parent=11 // pred_check
          %p968 = pneg %p598
        $region86: #{tpu_custom_call.1} parent=11 // pred_check_branch
          %970 = sbr.rel (%p968) target = $region88
        $region87: #{tpu_custom_call.1} parent=11 // pred_region
          _
        $region88: #{tpu_custom_call.1} parent=11 // pred_fallthru
          _
        // Predicated region
        $region89: #{tpu_custom_call.1} parent=11 // pred_check
          %p971 = pneg %p619
        $region90: #{tpu_custom_call.1} parent=11 // pred_check_branch
          %973 = sbr.rel (%p971) target = $region92
        $region91: #{tpu_custom_call.1} parent=11 // pred_region
          _
        $region92: #{tpu_custom_call.1} parent=11 // pred_fallthru
          _
        // Predicated region
        $region93: #{tpu_custom_call.1} parent=11 // pred_check
          %p974 = pneg %p640
        $region94: #{tpu_custom_call.1} parent=11 // pred_check_branch
          %976 = sbr.rel (%p974) target = $region96
        $region95: #{tpu_custom_call.1} parent=11 // pred_region
          _
        $region96: #{tpu_custom_call.1} parent=11 // pred_fallthru
          _
        // Predicated region
        $region97: #{tpu_custom_call.1} parent=11 // pred_check
          %p977 = pneg %p661
        $region98: #{tpu_custom_call.1} parent=11 // pred_check_branch
          %979 = sbr.rel (%p977) target = $region100
        $region99: #{tpu_custom_call.1} parent=11 // pred_region
          _
        $region100: #{tpu_custom_call.1} parent=11 // pred_fallthru
          _
        // Predicated region
        $region101: #{tpu_custom_call.1} parent=11 // pred_check
          %p980 = pneg %p682
        $region102: #{tpu_custom_call.1} parent=11 // pred_check_branch
          %982 = sbr.rel (%p980) target = $region104
        $region103: #{tpu_custom_call.1} parent=11 // pred_region
          %s984 = ssub.s32 256, 256
          %985 = vsyncadd [#allocation27], %s984
          %s986 = sshll.u32 [#allocation26], 4
          %s987 = int_to_ptr.vmem [resolvable:$true] %s986
          %992 = dma.hbm_to_vmem [thread:$0]  %s53, 256, %s987, [#allocation27], 64, 64, 4
        $region104: #{tpu_custom_call.1} parent=11 // pred_fallthru
          _
        // Predicated region
        $region105: #{tpu_custom_call.1} parent=11 // pred_check
          %p993 = pneg %p703
        $region106: #{tpu_custom_call.1} parent=11 // pred_check_branch
          %995 = sbr.rel (%p993) target = $region108
        $region107: #{tpu_custom_call.1} parent=11 // pred_region
          _
        $region108: #{tpu_custom_call.1} parent=11 // pred_fallthru
          _
        // Predicated region
        $region109: #{tpu_custom_call.1} parent=11 // pred_check
          %p996 = pneg %p724
        $region110: #{tpu_custom_call.1} parent=11 // pred_check_branch
          %998 = sbr.rel (%p996) target = $region112
        $region111: #{tpu_custom_call.1} parent=11 // pred_region
          _
        $region112: #{tpu_custom_call.1} parent=11 // pred_fallthru
          _
        // Predicated region
        $region113: #{tpu_custom_call.1} parent=11 // pred_check
          %p999 = pneg %p745
        $region114: #{tpu_custom_call.1} parent=11 // pred_check_branch
          %1001 = sbr.rel (%p999) target = $region116
        $region115: #{tpu_custom_call.1} parent=11 // pred_region
          _
        $region116: #{tpu_custom_call.1} parent=11 // pred_fallthru
          _
      $region12: #{tpu_custom_call.1} parent=5 // pred_fallthru
        _
      %p1002 = scmp.lt.s32.totalorder %s81, 4
      // Predicated region
      $region117: #{tpu_custom_call.1} parent=5 // pred_check
        %p1003 = pneg %p1002
      $region118: #{tpu_custom_call.1} parent=5 // pred_check_branch
        %1005 = sbr.rel (%p1003) target = $region120
      $region119: #{tpu_custom_call.1} parent=5 // pred_region
        // Predicated region
        $region121: #{tpu_custom_call.1} parent=119 // pred_check
          %p1006 = pneg %p115
        $region122: #{tpu_custom_call.1} parent=119 // pred_check_branch
          %1008 = sbr.rel (%p1006) target = $region124
        $region123: #{tpu_custom_call.1} parent=119 // pred_region
          %p1009 = scmp.lt.s32.totalorder %s88, 1
          %s1010 = scalar_select %p1009, %s88, 1
          %p1011 = scmp.lt.s32.totalorder %s89, 1
          %s1012 = scalar_select %p1011, %s89, 1
          %s1013 = smul.addr %s1010, 2
          %s1014 = sadd.s32 %s1012, %s1013
          %s1015 = smul.addr %s1014, 8
          %s1016 = scalar_lea.vmem %s1, %s1015
        $region124: #{tpu_custom_call.1} parent=119 // pred_fallthru
          _
        // Predicated region
        $region125: #{tpu_custom_call.1} parent=119 // pred_check
          %p1017 = pneg %p141
        $region126: #{tpu_custom_call.1} parent=119 // pred_check_branch
          %1019 = sbr.rel (%p1017) target = $region128
        $region127: #{tpu_custom_call.1} parent=119 // pred_region
          %p1020 = scmp.lt.s32.totalorder %s88, 1
          %s1021 = scalar_select %p1020, %s88, 1
          %s1022 = smul.addr %s1021, 2
          %s1023 = smul.addr %s1022, 8
          %s1024 = scalar_lea.vmem %s3, %s1023
        $region128: #{tpu_custom_call.1} parent=119 // pred_fallthru
          _
        // Predicated region
        $region129: #{tpu_custom_call.1} parent=119 // pred_check
          %p1025 = pneg %p167
        $region130: #{tpu_custom_call.1} parent=119 // pred_check_branch
          %1027 = sbr.rel (%p1025) target = $region132
        $region131: #{tpu_custom_call.1} parent=119 // pred_region
          %s1028 = sand.u32 %s157, 1
          %s1029 = scalar_lea.sflag [#allocation3], %s1028
          %s1030 = sand.u32 %s157, 1
          %s1031 = smul.addr %s1030, 16
          %s1032 = scalar_lea.vmem [#allocation2], %s1031
          %s1034 = ssub.s32 256, 256
          %1035 = vsyncadd %s1029, %s1034
          %s1036 = smul.addr %s88, 2
          %s1037 = smul.addr %s1036, 128
          %s1038 = scalar_lea.hbm %s5, %s1037
          %s1039 = sshll.u32 %s1032, 4
          %s1040 = int_to_ptr.vmem [resolvable:$true] %s1039
          %1045 = dma.hbm_to_vmem [thread:$0]  %s1038, 256, %s1040, %s1029, 128, 128, 8
        $region132: #{tpu_custom_call.1} parent=119 // pred_fallthru
          _
        // Predicated region
        $region133: #{tpu_custom_call.1} parent=119 // pred_check
          %p1046 = pneg %p193
        $region134: #{tpu_custom_call.1} parent=119 // pred_check_branch
          %1048 = sbr.rel (%p1046) target = $region136
        $region135: #{tpu_custom_call.1} parent=119 // pred_region
          %p1049 = scmp.lt.s32.totalorder %s89, 1
          %s1050 = scalar_select %p1049, %s89, 1
          %s1051 = smul.addr %s1050, 8
          %s1052 = scalar_lea.vmem %s7, %s1051
        $region136: #{tpu_custom_call.1} parent=119 // pred_fallthru
          _
      $region120: #{tpu_custom_call.1} parent=5 // pred_fallthru
        _
      %p1053 = scmp.le.s32.totalorder 1, %s81
      %p1054 = scmp.lt.s32.totalorder %s81, 5
      %p1055 = pnand %p1053, %p1054
      %p1056 = pneg %p1055
      // Predicated region
      $region137: #{tpu_custom_call.1} parent=5 // pred_check
        _
      $region138: #{tpu_custom_call.1} parent=5 // pred_check_branch
        %1058 = sbr.rel (%p1055) target = $region140
      $region139: #{tpu_custom_call.1} parent=5 // pred_region
        %s1059 = ssub.s32 %s81, 1
        %s1060 = sand.u32 %s160, 1
        %s1061 = scalar_lea.sflag [#allocation3], %s1060
        %s1062 = sand.u32 %s160, 1
        %s1063 = smul.addr %s1062, 16
        %s1064 = scalar_lea.vmem [#allocation2], %s1063
        // Predicated region
        $region141: #{tpu_custom_call.1} parent=139 // pred_check
          %p1065 = pneg %p173
        $region142: #{tpu_custom_call.1} parent=139 // pred_check_branch
          %1067 = sbr.rel (%p1065) target = $region144
        $region143: #{tpu_custom_call.1} parent=139 // pred_region
          %1068 = dma.done %s1061, 256
        $region144: #{tpu_custom_call.1} parent=139 // pred_fallthru
          _
        // Predicated region
        $region145: #{tpu_custom_call.1} parent=139 // pred_check
          %p1069 = pneg %p220
        $region146: #{tpu_custom_call.1} parent=139 // pred_check_branch
          %1071 = sbr.rel (%p1069) target = $region148
        $region147: #{tpu_custom_call.1} parent=139 // pred_region
          %1072 = dma.done [#allocation6], 256
        $region148: #{tpu_custom_call.1} parent=139 // pred_fallthru
          _
        // Predicated region
        $region149: #{tpu_custom_call.1} parent=139 // pred_check
          %p1073 = pneg %p241
        $region150: #{tpu_custom_call.1} parent=139 // pred_check_branch
          %1075 = sbr.rel (%p1073) target = $region152
        $region151: #{tpu_custom_call.1} parent=139 // pred_region
          %1076 = dma.done [#allocation6], 16
        $region152: #{tpu_custom_call.1} parent=139 // pred_fallthru
          _
        // Predicated region
        $region153: #{tpu_custom_call.1} parent=139 // pred_check
          %p1077 = pneg %p262
        $region154: #{tpu_custom_call.1} parent=139 // pred_check_branch
          %1079 = sbr.rel (%p1077) target = $region156
        $region155: #{tpu_custom_call.1} parent=139 // pred_region
          %1080 = dma.done [#allocation9], 256
        $region156: #{tpu_custom_call.1} parent=139 // pred_fallthru
          _
        // Predicated region
        $region157: #{tpu_custom_call.1} parent=139 // pred_check
          %p1081 = pneg %p283
        $region158: #{tpu_custom_call.1} parent=139 // pred_check_branch
          %1083 = sbr.rel (%p1081) target = $region160
        $region159: #{tpu_custom_call.1} parent=139 // pred_region
          %1084 = dma.done [#allocation9], 16
        $region160: #{tpu_custom_call.1} parent=139 // pred_fallthru
          _
        // Predicated region
        $region161: #{tpu_custom_call.1} parent=139 // pred_check
          %p1085 = pneg %p304
        $region162: #{tpu_custom_call.1} parent=139 // pred_check_branch
          %1087 = sbr.rel (%p1085) target = $region164
        $region163: #{tpu_custom_call.1} parent=139 // pred_region
          %1088 = dma.done [#allocation12], 256
        $region164: #{tpu_custom_call.1} parent=139 // pred_fallthru
          _
        // Predicated region
        $region165: #{tpu_custom_call.1} parent=139 // pred_check
          %p1089 = pneg %p325
        $region166: #{tpu_custom_call.1} parent=139 // pred_check_branch
          %1091 = sbr.rel (%p1089) target = $region168
        $region167: #{tpu_custom_call.1} parent=139 // pred_region
          %1092 = dma.done [#allocation12], 16
        $region168: #{tpu_custom_call.1} parent=139 // pred_fallthru
          _
        // Predicated region
        $region169: #{tpu_custom_call.1} parent=139 // pred_check
          %p1093 = pneg %p367
        $region170: #{tpu_custom_call.1} parent=139 // pred_check_branch
          %1095 = sbr.rel (%p1093) target = $region172
        $region171: #{tpu_custom_call.1} parent=139 // pred_region
          %1096 = dma.done [#allocation15], 16
        $region172: #{tpu_custom_call.1} parent=139 // pred_fallthru
          _
        // Predicated region
        $region173: #{tpu_custom_call.1} parent=139 // pred_check
          %p1097 = pneg %p388
        $region174: #{tpu_custom_call.1} parent=139 // pred_check_branch
          %1099 = sbr.rel (%p1097) target = $region176
        $region175: #{tpu_custom_call.1} parent=139 // pred_region
          %1100 = dma.done [#allocation15], 256
        $region176: #{tpu_custom_call.1} parent=139 // pred_fallthru
          _
        // Predicated region
        $region177: #{tpu_custom_call.1} parent=139 // pred_check
          %p1101 = pneg %p409
        $region178: #{tpu_custom_call.1} parent=139 // pred_check_branch
          %1103 = sbr.rel (%p1101) target = $region180
        $region179: #{tpu_custom_call.1} parent=139 // pred_region
          %1104 = dma.done [#allocation18], 16
        $region180: #{tpu_custom_call.1} parent=139 // pred_fallthru
          _
        // Predicated region
        $region181: #{tpu_custom_call.1} parent=139 // pred_check
          %p1105 = pneg %p430
        $region182: #{tpu_custom_call.1} parent=139 // pred_check_branch
          %1107 = sbr.rel (%p1105) target = $region184
        $region183: #{tpu_custom_call.1} parent=139 // pred_region
          %1108 = dma.done [#allocation18], 256
        $region184: #{tpu_custom_call.1} parent=139 // pred_fallthru
          _
        // Predicated region
        $region185: #{tpu_custom_call.1} parent=139 // pred_check
          %p1109 = pneg %p451
        $region186: #{tpu_custom_call.1} parent=139 // pred_check_branch
          %1111 = sbr.rel (%p1109) target = $region188
        $region187: #{tpu_custom_call.1} parent=139 // pred_region
          %1112 = dma.done [#allocation21], 16
        $region188: #{tpu_custom_call.1} parent=139 // pred_fallthru
          _
        // Predicated region
        $region189: #{tpu_custom_call.1} parent=139 // pred_check
          %p1113 = pneg %p472
        $region190: #{tpu_custom_call.1} parent=139 // pred_check_branch
          %1115 = sbr.rel (%p1113) target = $region192
        $region191: #{tpu_custom_call.1} parent=139 // pred_region
          %1116 = dma.done [#allocation21], 256
        $region192: #{tpu_custom_call.1} parent=139 // pred_fallthru
          _
        // Predicated region
        $region193: #{tpu_custom_call.1} parent=139 // pred_check
          %p1117 = pneg %p493
        $region194: #{tpu_custom_call.1} parent=139 // pred_check_branch
          %1119 = sbr.rel (%p1117) target = $region196
        $region195: #{tpu_custom_call.1} parent=139 // pred_region
          %1120 = dma.done [#allocation24], 16
        $region196: #{tpu_custom_call.1} parent=139 // pred_fallthru
          _
        // Predicated region
        $region197: #{tpu_custom_call.1} parent=139 // pred_check
          %p1121 = pneg %p514
        $region198: #{tpu_custom_call.1} parent=139 // pred_check_branch
          %1123 = sbr.rel (%p1121) target = $region200
        $region199: #{tpu_custom_call.1} parent=139 // pred_region
          %1124 = dma.done [#allocation24], 256
        $region200: #{tpu_custom_call.1} parent=139 // pred_fallthru
          _
        // Predicated region
        $region201: #{tpu_custom_call.1} parent=139 // pred_check
          %p1125 = pneg %p682
        $region202: #{tpu_custom_call.1} parent=139 // pred_check_branch
          %1127 = sbr.rel (%p1125) target = $region204
        $region203: #{tpu_custom_call.1} parent=139 // pred_region
          %1128 = dma.done [#allocation27], 256
        $region204: #{tpu_custom_call.1} parent=139 // pred_fallthru
          _
        %p1129 = scmp.lt.s32.totalorder %s90, 1
        %s1130 = scalar_select %p1129, %s90, 1
        %p1131 = scmp.lt.s32.totalorder %s91, 1
        %s1132 = scalar_select %p1131, %s91, 1
        %s1133 = smul.addr %s1130, 2
        %s1134 = sadd.s32 %s1132, %s1133
        %s1135 = smul.addr %s1134, 8
        %s1136 = scalar_lea.vmem %s1, %s1135
        %p1137 = pneg %p121
        %p1138 = pneg %p118
        %p1139 = scmp.lt.s32.totalorder %s90, 1
        %s1140 = scalar_select %p1139, %s90, 1
        %s1141 = smul.addr %s1140, 2
        %s1142 = smul.addr %s1141, 8
        %s1143 = scalar_lea.vmem %s3, %s1142
        %p1144 = pneg %p147
        %p1145 = pneg %p144
        %s1146 = sand.u32 %s160, 1
        %s1147 = scalar_lea.sflag [#allocation3], %s1146
        %s1148 = sand.u32 %s160, 1
        %s1149 = smul.addr %s1148, 16
        %s1150 = scalar_lea.vmem [#allocation2], %s1149
        %p1151 = pneg %p173
        %p1152 = pneg %p170
        %p1153 = scmp.lt.s32.totalorder %s91, 1
        %s1154 = scalar_select %p1153, %s91, 1
        %s1155 = smul.addr %s1154, 8
        %s1156 = scalar_lea.vmem %s7, %s1155
        %p1157 = pneg %p199
        %p1158 = pneg %p196
        %p1159 = pneg %p220
        %p1160 = pneg %p217
        %p1161 = pneg %p241
        %p1162 = pneg %p238
        %p1163 = pneg %p262
        %p1164 = pneg %p259
        %p1165 = pneg %p283
        %p1166 = pneg %p280
        %p1167 = pneg %p304
        %p1168 = pneg %p301
        %p1169 = pneg %p325
        %p1170 = pneg %p322
        %p1171 = pneg %p346
        %p1172 = pneg %p343
        %p1173 = pneg %p367
        %p1174 = pneg %p364
        %p1175 = pneg %p388
        %p1176 = pneg %p385
        %p1177 = pneg %p409
        %p1178 = pneg %p406
        %p1179 = pneg %p430
        %p1180 = pneg %p427
        %p1181 = pneg %p451
        %p1182 = pneg %p448
        %p1183 = pneg %p472
        %p1184 = pneg %p469
        %p1185 = pneg %p493
        %p1186 = pneg %p490
        %p1187 = pneg %p514
        %p1188 = pneg %p511
        %p1189 = pneg %p535
        %p1190 = pneg %p532
        %p1191 = pneg %p556
        %p1192 = pneg %p553
        %p1193 = pneg %p577
        %p1194 = pneg %p574
        %p1195 = pneg %p598
        %p1196 = pneg %p595
        %p1197 = pneg %p619
        %p1198 = pneg %p616
        %p1199 = pneg %p640
        %p1200 = pneg %p637
        %p1201 = pneg %p661
        %p1202 = pneg %p658
        %p1203 = pneg %p682
        %p1204 = pneg %p679
        %p1205 = pneg %p703
        %p1206 = pneg %p700
        %p1207 = pneg %p724
        %p1208 = pneg %p721
        %p1209 = pneg %p745
        %p1210 = pneg %p742
        %p1211 = pneg %p773
        %p1212 = pneg %p770
        %s1213 = sand.u32 %s760, 1
        %s1214 = scalar_lea.sflag [#allocation4], %s1213
        %s1215 = sand.u32 %s760, 1
        %s1216 = smul.addr %s1215, 8
        %s1217 = scalar_lea.vmem [#allocation28], %s1216
        %p1218 = scmp.lt.s32.totalorder %s90, 1
        %s1219 = scalar_select %p1218, %s90, 1
        %p1220 = scmp.lt.s32.totalorder %s91, 1
        %s1221 = scalar_select %p1220, %s91, 1
        %s1222 = smul.addr %s1219, 2
        %s1223 = sadd.s32 %s1221, %s1222
        %s1224 = smul.addr %s1223, 8
        %s1225 = scalar_lea.vmem %s1, %s1224
        %p1226 = scmp.lt.s32.totalorder %s90, 1
        %s1227 = scalar_select %p1226, %s90, 1
        %s1228 = smul.addr %s1227, 2
        %s1229 = smul.addr %s1228, 8
        %s1230 = scalar_lea.vmem %s3, %s1229
        %p1231 = scmp.lt.s32.totalorder %s91, 1
        %s1232 = scalar_select %p1231, %s91, 1
        %s1233 = smul.addr %s1232, 8
        %s1234 = scalar_lea.vmem %s7, %s1233
        %v1236 = vld [vmem:[%s1225] sm:$0xff]
        %v1237 = vld [vmem:[%s1230] sm:$0xff]
        %v1238 = vld [vmem:[%s1230 + $0x8] sm:$0xff]
        %v1239 = vld [vmem:[%s1064] sm:$0xff]
        %v1240 = vld [vmem:[%s1064 + $0x8] sm:$0xff]
        %v1241 = vld [vmem:[%s1234] sm:$0xff]
        %v1242 = vpack.c.bf16 %v1236, %v1236
        %v1243 = vpack.c.bf16 %v1238, %v1237
        %v1244 = vpack.c.bf16 %v1240, %v1239
        %v1245 = vld [vmem:[#allocation5] sm:$0xf]
        %v1246 = vld [vmem:[#allocation5 + $0x4] sm:$0xf]
        %v1247 = vld [vmem:[#allocation5 + $0x8] sm:$0xf]
        %v1248 = vld [vmem:[#allocation5 + $0xc] sm:$0xf]
        %v1249 = vld [vmem:[#allocation7] sm:$0x1]
        %v1251 = vlaneseq
        %v1252 = vshrl.u32 %v1251, 7
        %v1253 = vsub.s32 0, %v1252
        %v1254 = vrot.slane %v1249, %v1253
        %v1260 = vunpack.c.l.b16 %v1245
        %v1261 = vunpack.c.l.b16 %v1246
        %v1262 = vunpack.c.l.b16 %v1247
        %v1263 = vunpack.c.l.b16 %v1248
        %v1264 = vpack.c.b16 %v1261, %v1260
        %v1265 = vpack.c.b16 %v1263, %v1262
        %vm1268 = vcmask 261120
        %v1270 = vsel %vm1268, %v1242, 0
        %1272 = vmatprep.subr.bf16.mxu0 0
        %1273 = vmatpush1.bf16.msra.mxu0 0
        %1274 = vmatprep.subr.bf16.mxu0 0
        %1275 = vmatpush1.bf16.msra.mxu0 0
        %1276 = vmatprep.subr.bf16.mxu0 0
        %1277 = vmatpush1.bf16.msra.mxu0 0
        %1278 = vmatprep.subr.bf16.mxu0 0
        %1279 = vmatpush1.bf16.msra.mxu0 0
        %1280 = vmatprep.subr.bf16.mxu0 0
        %1281 = vmatpush1.bf16.msra.mxu0 0
        %1282 = vmatprep.subr.bf16.mxu0 0
        %1283 = vmatpush1.bf16.msra.mxu0 0
        %1284 = vmatprep.subr.bf16.mxu0 0
        %1285 = vmatpush1.bf16.msra.mxu0 %v1265
        %1286 = vmatprep.subr.bf16.mxu0 0
        %1287 = vmatpush1.bf16.msra.mxu0 %v1264
        %1288 = vmatprep.subr.bf16.mxu0 0
        %1289 = vmatpush2.bf16.msra.mxu0 0
        %1290 = vmatprep.subr.bf16.mxu0 0
        %1291 = vmatpush2.bf16.msra.mxu0 0
        %1292 = vmatprep.subr.bf16.mxu0 0
        %1293 = vmatpush2.bf16.msra.mxu0 0
        %1294 = vmatprep.subr.bf16.mxu0 0
        %1295 = vmatpush2.bf16.msra.mxu0 0
        %1296 = vmatprep.subr.bf16.mxu0 0
        %1297 = vmatpush2.bf16.msra.mxu0 0
        %1298 = vmatprep.subr.bf16.mxu0 0
        %1299 = vmatpush2.bf16.msra.mxu0 0
        %1300 = vmatprep.subr.bf16.mxu0 0
        %1301 = vmatpush2.bf16.msra.mxu0 0
        %1302 = vmatprep.subr.bf16.mxu0 0
        %1303 = vmatpush2.bf16.msra.mxu0 0
        %1304 = vmatprep.mubr.bf16.mxu0 0
        %1305 = vmatmul.mubr.bf16.gmra.mxu0 %v1270
        %v1306 = vpop.f32.mrf.mxu0
        %v1307 = vadd.f32 %v1254, %v1306
        %v1308 = vpop.f32.mrf.mxu0
        %v1309 = vpop.f32.mrf.mxu0
        %v1310 = vpop.f32.mrf.mxu0
        %1311 = vdwg.mxu0
        %v1312 = vld [vmem:[#allocation8] sm:$0xf]
        %v1313 = vld [vmem:[#allocation8 + $0x4] sm:$0xf]
        %v1314 = vld [vmem:[#allocation8 + $0x8] sm:$0xf]
        %v1315 = vld [vmem:[#allocation8 + $0xc] sm:$0xf]
        %v1316 = vld [vmem:[#allocation10] sm:$0x1]
        %v1318 = vlaneseq
        %v1319 = vshrl.u32 %v1318, 7
        %v1320 = vsub.s32 0, %v1319
        %v1321 = vrot.slane %v1316, %v1320
        %v1327 = vunpack.c.l.b16 %v1312
        %v1328 = vunpack.c.l.b16 %v1313
        %v1329 = vunpack.c.l.b16 %v1314
        %v1330 = vunpack.c.l.b16 %v1315
        %v1331 = vpack.c.b16 %v1328, %v1327
        %v1332 = vpack.c.b16 %v1330, %v1329
        %v1336 = vsel %vm1268, %v1243, 0
        %1338 = vmatprep.subr.bf16.mxu0 0
        %1339 = vmatpush1.bf16.msra.mxu0 0
        %1340 = vmatprep.subr.bf16.mxu0 0
        %1341 = vmatpush1.bf16.msra.mxu0 0
        %1342 = vmatprep.subr.bf16.mxu0 0
        %1343 = vmatpush1.bf16.msra.mxu0 0
        %1344 = vmatprep.subr.bf16.mxu0 0
        %1345 = vmatpush1.bf16.msra.mxu0 0
        %1346 = vmatprep.subr.bf16.mxu0 0
        %1347 = vmatpush1.bf16.msra.mxu0 0
        %1348 = vmatprep.subr.bf16.mxu0 0
        %1349 = vmatpush1.bf16.msra.mxu0 0
        %1350 = vmatprep.subr.bf16.mxu0 0
        %1351 = vmatpush1.bf16.msra.mxu0 %v1332
        %1352 = vmatprep.subr.bf16.mxu0 0
        %1353 = vmatpush1.bf16.msra.mxu0 %v1331
        %1354 = vmatprep.subr.bf16.mxu0 0
        %1355 = vmatpush2.bf16.msra.mxu0 0
        %1356 = vmatprep.subr.bf16.mxu0 0
        %1357 = vmatpush2.bf16.msra.mxu0 0
        %1358 = vmatprep.subr.bf16.mxu0 0
        %1359 = vmatpush2.bf16.msra.mxu0 0
        %1360 = vmatprep.subr.bf16.mxu0 0
        %1361 = vmatpush2.bf16.msra.mxu0 0
        %1362 = vmatprep.subr.bf16.mxu0 0
        %1363 = vmatpush2.bf16.msra.mxu0 0
        %1364 = vmatprep.subr.bf16.mxu0 0
        %1365 = vmatpush2.bf16.msra.mxu0 0
        %1366 = vmatprep.subr.bf16.mxu0 0
        %1367 = vmatpush2.bf16.msra.mxu0 0
        %1368 = vmatprep.subr.bf16.mxu0 0
        %1369 = vmatpush2.bf16.msra.mxu0 0
        %1370 = vmatprep.mubr.bf16.mxu0 0
        %1371 = vmatmul.mubr.bf16.gmra.mxu0 %v1336
        %v1372 = vpop.f32.mrf.mxu0
        %v1373 = vadd.f32 %v1321, %v1372
        %v1374 = vpop.f32.mrf.mxu0
        %v1375 = vpop.f32.mrf.mxu0
        %v1376 = vadd.f32 %v1321, %v1375
        %v1377 = vpop.f32.mrf.mxu0
        %1378 = vdwg.mxu0
        %v1379 = vld [vmem:[#allocation11] sm:$0xf]
        %v1380 = vld [vmem:[#allocation11 + $0x4] sm:$0xf]
        %v1381 = vld [vmem:[#allocation11 + $0x8] sm:$0xf]
        %v1382 = vld [vmem:[#allocation11 + $0xc] sm:$0xf]
        %v1383 = vld [vmem:[#allocation13] sm:$0x1]
        %v1385 = vlaneseq
        %v1386 = vshrl.u32 %v1385, 7
        %v1387 = vsub.s32 0, %v1386
        %v1388 = vrot.slane %v1383, %v1387
        %v1394 = vunpack.c.l.b16 %v1379
        %v1395 = vunpack.c.l.b16 %v1380
        %v1396 = vunpack.c.l.b16 %v1381
        %v1397 = vunpack.c.l.b16 %v1382
        %v1398 = vpack.c.b16 %v1395, %v1394
        %v1399 = vpack.c.b16 %v1397, %v1396
        %1402 = vmatprep.subr.bf16.mxu0 0
        %1403 = vmatpush1.bf16.msra.mxu0 0
        %1404 = vmatprep.subr.bf16.mxu0 0
        %1405 = vmatpush1.bf16.msra.mxu0 0
        %1406 = vmatprep.subr.bf16.mxu0 0
        %1407 = vmatpush1.bf16.msra.mxu0 0
        %1408 = vmatprep.subr.bf16.mxu0 0
        %1409 = vmatpush1.bf16.msra.mxu0 0
        %1410 = vmatprep.subr.bf16.mxu0 0
        %1411 = vmatpush1.bf16.msra.mxu0 0
        %1412 = vmatprep.subr.bf16.mxu0 0
        %1413 = vmatpush1.bf16.msra.mxu0 0
        %1414 = vmatprep.subr.bf16.mxu0 0
        %1415 = vmatpush1.bf16.msra.mxu0 %v1399
        %1416 = vmatprep.subr.bf16.mxu0 0
        %1417 = vmatpush1.bf16.msra.mxu0 %v1398
        %1418 = vmatprep.subr.bf16.mxu0 0
        %1419 = vmatpush2.bf16.msra.mxu0 0
        %1420 = vmatprep.subr.bf16.mxu0 0
        %1421 = vmatpush2.bf16.msra.mxu0 0
        %1422 = vmatprep.subr.bf16.mxu0 0
        %1423 = vmatpush2.bf16.msra.mxu0 0
        %1424 = vmatprep.subr.bf16.mxu0 0
        %1425 = vmatpush2.bf16.msra.mxu0 0
        %1426 = vmatprep.subr.bf16.mxu0 0
        %1427 = vmatpush2.bf16.msra.mxu0 0
        %1428 = vmatprep.subr.bf16.mxu0 0
        %1429 = vmatpush2.bf16.msra.mxu0 0
        %1430 = vmatprep.subr.bf16.mxu0 0
        %1431 = vmatpush2.bf16.msra.mxu0 0
        %1432 = vmatprep.subr.bf16.mxu0 0
        %1433 = vmatpush2.bf16.msra.mxu0 0
        %1434 = vmatprep.mubr.bf16.mxu0 0
        %1435 = vmatmul.mubr.bf16.gmra.mxu0 %v1336
        %v1436 = vpop.f32.mrf.mxu0
        %v1437 = vadd.f32 %v1388, %v1436
        %v1438 = vpop.f32.mrf.mxu0
        %v1439 = vpop.f32.mrf.mxu0
        %v1440 = vadd.f32 %v1388, %v1439
        %v1441 = vpop.f32.mrf.mxu0
        %1442 = vdwg.mxu0
        %v1443 = vld [vmem:[%s21] sm:$0xf]
        %v1444 = vld [vmem:[%s21 + $0x4] sm:$0xf]
        %v1445 = vld [vmem:[%s21 + $0x8] sm:$0xf]
        %v1446 = vld [vmem:[%s21 + $0xc] sm:$0xf]
        %v1447 = vld [vmem:[#allocation14] sm:$0x1]
        %v1448 = vpack.c.bf16 %v1307, %v1307
        %v1449 = vpack.c.bf16 %v1376, %v1373
        %v1450 = vpack.c.bf16 %v1440, %v1437
        %vm1451 = vcmask 64512
        %v1453 = vsel %vm1451, %v1448, 0
        %v1456 = vsel %vm1451, %v1449, 0
        %1458 = vmatprep.subr.bf16.mxu0 0
        %1459 = vmatpush1.bf16.xpose.msra.mxu0 0
        %1460 = vmatprep.subr.bf16.mxu0 0
        %1461 = vmatpush1.bf16.xpose.msra.mxu0 0
        %1462 = vmatprep.subr.bf16.mxu0 0
        %1463 = vmatpush1.bf16.xpose.msra.mxu0 0
        %1464 = vmatprep.subr.bf16.mxu0 0
        %1465 = vmatpush1.bf16.xpose.msra.mxu0 0
        %1466 = vmatprep.subr.bf16.mxu0 0
        %1467 = vmatpush1.bf16.xpose.msra.mxu0 0
        %1468 = vmatprep.subr.bf16.mxu0 0
        %1469 = vmatpush1.bf16.xpose.msra.mxu0 0
        %1470 = vmatprep.subr.bf16.mxu0 0
        %1471 = vmatpush1.bf16.xpose.msra.mxu0 0
        %1472 = vmatprep.subr.bf16.mxu0 0
        %1473 = vmatpush1.bf16.xpose.msra.mxu0 %v1456
        %1474 = vmatprep.subr.bf16.mxu0 0
        %1475 = vmatpush2.bf16.xpose.msra.mxu0 0
        %1476 = vmatprep.subr.bf16.mxu0 0
        %1477 = vmatpush2.bf16.xpose.msra.mxu0 0
        %1478 = vmatprep.subr.bf16.mxu0 0
        %1479 = vmatpush2.bf16.xpose.msra.mxu0 0
        %1480 = vmatprep.subr.bf16.mxu0 0
        %1481 = vmatpush2.bf16.xpose.msra.mxu0 0
        %1482 = vmatprep.subr.bf16.mxu0 0
        %1483 = vmatpush2.bf16.xpose.msra.mxu0 0
        %1484 = vmatprep.subr.bf16.mxu0 0
        %1485 = vmatpush2.bf16.xpose.msra.mxu0 0
        %1486 = vmatprep.subr.bf16.mxu0 0
        %1487 = vmatpush2.bf16.xpose.msra.mxu0 0
        %1488 = vmatprep.subr.bf16.mxu0 0
        %1489 = vmatpush2.bf16.xpose.msra.mxu0 0
        %1490 = vmatprep.mubr.bf16.mxu0 0
        %1491 = vmatmul.mubr.bf16.gmra.mxu0 %v1453
        %v1492 = vpop.f32.mrf.mxu0
        %v1493 = vadd.f32 %v1241, %v1492
        %v1494 = vpop.f32.mrf.mxu0
        %v1495 = vpop.f32.mrf.mxu0
        %v1496 = vpop.f32.mrf.mxu0
        %1497 = vdwg.mxu0
        %vm1498 = vcmask 130048
        %v1499 = vsel %vm1498, %v1493, -inf
        %1500 = vmax.xlane.f32.xlu0 %v1499
        %v1501 = vpop.xlane.xlu0 %1500
        %v1502 = vsub.f32 %v1493, %v1501
        %v1503 = vmul.f32 %v1502, 1.442695
        %v1504 = vpow.pop %v1503
        %v1505 = vsel %vm1498, %v1504, 0.0
        %1506 = vadd.xlane.f32.xlu0 %v1505
        %v1507 = vpop.xlane.xlu0 %1506
        %v1508 = vrcp.pop %v1507
        %v1509 = vmul.f32 %v1504, %v1508
        %v1510 = vpack.c.bf16 %v1509, %v1509
        %v1512 = vsel %vm1498, %v1510, 0
        %1514 = vmatprep.subr.bf16.mxu0 0
        %1515 = vmatpush1.bf16.msra.mxu0 0
        %1516 = vmatprep.subr.bf16.mxu0 0
        %1517 = vmatpush1.bf16.msra.mxu0 0
        %1518 = vmatprep.subr.bf16.mxu0 0
        %1519 = vmatpush1.bf16.msra.mxu0 0
        %1520 = vmatprep.subr.bf16.mxu0 0
        %1521 = vmatpush1.bf16.msra.mxu0 0
        %1522 = vmatprep.subr.bf16.mxu0 0
        %1523 = vmatpush1.bf16.msra.mxu0 0
        %1524 = vmatprep.subr.bf16.mxu0 0
        %1525 = vmatpush1.bf16.msra.mxu0 0
        %1526 = vmatprep.subr.bf16.mxu0 0
        %1527 = vmatpush1.bf16.msra.mxu0 0
        %1528 = vmatprep.subr.bf16.mxu0 0
        %1529 = vmatpush1.bf16.msra.mxu0 %v1450
        %1530 = vmatprep.subr.bf16.mxu0 0
        %1531 = vmatpush2.bf16.msra.mxu0 0
        %1532 = vmatprep.subr.bf16.mxu0 0
        %1533 = vmatpush2.bf16.msra.mxu0 0
        %1534 = vmatprep.subr.bf16.mxu0 0
        %1535 = vmatpush2.bf16.msra.mxu0 0
        %1536 = vmatprep.subr.bf16.mxu0 0
        %1537 = vmatpush2.bf16.msra.mxu0 0
        %1538 = vmatprep.subr.bf16.mxu0 0
        %1539 = vmatpush2.bf16.msra.mxu0 0
        %1540 = vmatprep.subr.bf16.mxu0 0
        %1541 = vmatpush2.bf16.msra.mxu0 0
        %1542 = vmatprep.subr.bf16.mxu0 0
        %1543 = vmatpush2.bf16.msra.mxu0 0
        %1544 = vmatprep.subr.bf16.mxu0 0
        %1545 = vmatpush2.bf16.msra.mxu0 0
        %1546 = vmatprep.mubr.bf16.mxu0 0
        %1547 = vmatmul.mubr.bf16.gmra.mxu0 %v1512
        %v1548 = vpop.f32.mrf.mxu0
        %v1549 = vadd.f32 0.0, %v1548
        %v1550 = vpop.f32.mrf.mxu0
        %v1551 = vpop.f32.mrf.mxu0
        %v1552 = vpop.f32.mrf.mxu0
        %1553 = vdwg.mxu0
        %1555 = vrot.lane.b32.xlu0 %v1448, 120
        %v1556 = vpop.permute.xlu0 %1555
        %1558 = vrot.lane.b32.xlu0 %v1449, 120
        %v1559 = vpop.permute.xlu0 %1558
        %v1561 = vsel %vm1451, %v1556, 0
        %v1564 = vsel %vm1451, %v1559, 0
        %1566 = vmatprep.subr.bf16.mxu0 0
        %1567 = vmatpush1.bf16.xpose.msra.mxu0 0
        %1568 = vmatprep.subr.bf16.mxu0 0
        %1569 = vmatpush1.bf16.xpose.msra.mxu0 0
        %1570 = vmatprep.subr.bf16.mxu0 0
        %1571 = vmatpush1.bf16.xpose.msra.mxu0 0
        %1572 = vmatprep.subr.bf16.mxu0 0
        %1573 = vmatpush1.bf16.xpose.msra.mxu0 0
        %1574 = vmatprep.subr.bf16.mxu0 0
        %1575 = vmatpush1.bf16.xpose.msra.mxu0 0
        %1576 = vmatprep.subr.bf16.mxu0 0
        %1577 = vmatpush1.bf16.xpose.msra.mxu0 0
        %1578 = vmatprep.subr.bf16.mxu0 0
        %1579 = vmatpush1.bf16.xpose.msra.mxu0 0
        %1580 = vmatprep.subr.bf16.mxu0 0
        %1581 = vmatpush1.bf16.xpose.msra.mxu0 %v1564
        %1582 = vmatprep.subr.bf16.mxu0 0
        %1583 = vmatpush2.bf16.xpose.msra.mxu0 0
        %1584 = vmatprep.subr.bf16.mxu0 0
        %1585 = vmatpush2.bf16.xpose.msra.mxu0 0
        %1586 = vmatprep.subr.bf16.mxu0 0
        %1587 = vmatpush2.bf16.xpose.msra.mxu0 0
        %1588 = vmatprep.subr.bf16.mxu0 0
        %1589 = vmatpush2.bf16.xpose.msra.mxu0 0
        %1590 = vmatprep.subr.bf16.mxu0 0
        %1591 = vmatpush2.bf16.xpose.msra.mxu0 0
        %1592 = vmatprep.subr.bf16.mxu0 0
        %1593 = vmatpush2.bf16.xpose.msra.mxu0 0
        %1594 = vmatprep.subr.bf16.mxu0 0
        %1595 = vmatpush2.bf16.xpose.msra.mxu0 0
        %1596 = vmatprep.subr.bf16.mxu0 0
        %1597 = vmatpush2.bf16.xpose.msra.mxu0 0
        %1598 = vmatprep.mubr.bf16.mxu0 0
        %1599 = vmatmul.mubr.bf16.gmra.mxu0 %v1561
        %v1600 = vpop.f32.mrf.mxu0
        %v1601 = vadd.f32 %v1241, %v1600
        %v1602 = vpop.f32.mrf.mxu0
        %v1603 = vpop.f32.mrf.mxu0
        %v1604 = vpop.f32.mrf.mxu0
        %1605 = vdwg.mxu0
        %v1606 = vsel %vm1498, %v1601, -inf
        %1607 = vmax.xlane.f32.xlu0 %v1606
        %v1608 = vpop.xlane.xlu0 %1607
        %v1609 = vsub.f32 %v1601, %v1608
        %v1610 = vmul.f32 %v1609, 1.442695
        %v1611 = vpow.pop %v1610
        %v1612 = vsel %vm1498, %v1611, 0.0
        %1613 = vadd.xlane.f32.xlu0 %v1612
        %v1614 = vpop.xlane.xlu0 %1613
        %v1615 = vrcp.pop %v1614
        %v1616 = vmul.f32 %v1611, %v1615
        %v1617 = vpack.c.bf16 %v1616, %v1616
        %1619 = vrot.lane.b32.xlu0 %v1450, 120
        %v1620 = vpop.permute.xlu0 %1619
        %v1623 = vsel %vm1498, %v1617, 0
        %1625 = vmatprep.subr.bf16.mxu0 0
        %1626 = vmatpush1.bf16.msra.mxu0 0
        %1627 = vmatprep.subr.bf16.mxu0 0
        %1628 = vmatpush1.bf16.msra.mxu0 0
        %1629 = vmatprep.subr.bf16.mxu0 0
        %1630 = vmatpush1.bf16.msra.mxu0 0
        %1631 = vmatprep.subr.bf16.mxu0 0
        %1632 = vmatpush1.bf16.msra.mxu0 0
        %1633 = vmatprep.subr.bf16.mxu0 0
        %1634 = vmatpush1.bf16.msra.mxu0 0
        %1635 = vmatprep.subr.bf16.mxu0 0
        %1636 = vmatpush1.bf16.msra.mxu0 0
        %1637 = vmatprep.subr.bf16.mxu0 0
        %1638 = vmatpush1.bf16.msra.mxu0 0
        %1639 = vmatprep.subr.bf16.mxu0 0
        %1640 = vmatpush1.bf16.msra.mxu0 %v1620
        %1641 = vmatprep.subr.bf16.mxu0 0
        %1642 = vmatpush2.bf16.msra.mxu0 0
        %1643 = vmatprep.subr.bf16.mxu0 0
        %1644 = vmatpush2.bf16.msra.mxu0 0
        %1645 = vmatprep.subr.bf16.mxu0 0
        %1646 = vmatpush2.bf16.msra.mxu0 0
        %1647 = vmatprep.subr.bf16.mxu0 0
        %1648 = vmatpush2.bf16.msra.mxu0 0
        %1649 = vmatprep.subr.bf16.mxu0 0
        %1650 = vmatpush2.bf16.msra.mxu0 0
        %1651 = vmatprep.subr.bf16.mxu0 0
        %1652 = vmatpush2.bf16.msra.mxu0 0
        %1653 = vmatprep.subr.bf16.mxu0 0
        %1654 = vmatpush2.bf16.msra.mxu0 0
        %1655 = vmatprep.subr.bf16.mxu0 0
        %1656 = vmatpush2.bf16.msra.mxu0 0
        %1657 = vmatprep.mubr.bf16.mxu0 0
        %1658 = vmatmul.mubr.bf16.gmra.mxu0 %v1623
        %v1659 = vpop.f32.mrf.mxu0
        %v1660 = vadd.f32 0.0, %v1659
        %v1661 = vpop.f32.mrf.mxu0
        %v1662 = vpop.f32.mrf.mxu0
        %v1663 = vpop.f32.mrf.mxu0
        %1664 = vdwg.mxu0
        %1665 = vrot.lane.b32.xlu0 %v1448, 112
        %v1666 = vpop.permute.xlu0 %1665
        %1667 = vrot.lane.b32.xlu0 %v1449, 112
        %v1668 = vpop.permute.xlu0 %1667
        %v1670 = vsel %vm1451, %v1666, 0
        %v1673 = vsel %vm1451, %v1668, 0
        %1675 = vmatprep.subr.bf16.mxu0 0
        %1676 = vmatpush1.bf16.xpose.msra.mxu0 0
        %1677 = vmatprep.subr.bf16.mxu0 0
        %1678 = vmatpush1.bf16.xpose.msra.mxu0 0
        %1679 = vmatprep.subr.bf16.mxu0 0
        %1680 = vmatpush1.bf16.xpose.msra.mxu0 0
        %1681 = vmatprep.subr.bf16.mxu0 0
        %1682 = vmatpush1.bf16.xpose.msra.mxu0 0
        %1683 = vmatprep.subr.bf16.mxu0 0
        %1684 = vmatpush1.bf16.xpose.msra.mxu0 0
        %1685 = vmatprep.subr.bf16.mxu0 0
        %1686 = vmatpush1.bf16.xpose.msra.mxu0 0
        %1687 = vmatprep.subr.bf16.mxu0 0
        %1688 = vmatpush1.bf16.xpose.msra.mxu0 0
        %1689 = vmatprep.subr.bf16.mxu0 0
        %1690 = vmatpush1.bf16.xpose.msra.mxu0 %v1673
        %1691 = vmatprep.subr.bf16.mxu0 0
        %1692 = vmatpush2.bf16.xpose.msra.mxu0 0
        %1693 = vmatprep.subr.bf16.mxu0 0
        %1694 = vmatpush2.bf16.xpose.msra.mxu0 0
        %1695 = vmatprep.subr.bf16.mxu0 0
        %1696 = vmatpush2.bf16.xpose.msra.mxu0 0
        %1697 = vmatprep.subr.bf16.mxu0 0
        %1698 = vmatpush2.bf16.xpose.msra.mxu0 0
        %1699 = vmatprep.subr.bf16.mxu0 0
        %1700 = vmatpush2.bf16.xpose.msra.mxu0 0
        %1701 = vmatprep.subr.bf16.mxu0 0
        %1702 = vmatpush2.bf16.xpose.msra.mxu0 0
        %1703 = vmatprep.subr.bf16.mxu0 0
        %1704 = vmatpush2.bf16.xpose.msra.mxu0 0
        %1705 = vmatprep.subr.bf16.mxu0 0
        %1706 = vmatpush2.bf16.xpose.msra.mxu0 0
        %1707 = vmatprep.mubr.bf16.mxu0 0
        %1708 = vmatmul.mubr.bf16.gmra.mxu0 %v1670
        %v1709 = vpop.f32.mrf.mxu0
        %v1710 = vadd.f32 %v1241, %v1709
        %v1711 = vpop.f32.mrf.mxu0
        %v1712 = vpop.f32.mrf.mxu0
        %v1713 = vpop.f32.mrf.mxu0
        %1714 = vdwg.mxu0
        %v1715 = vsel %vm1498, %v1710, -inf
        %1716 = vmax.xlane.f32.xlu0 %v1715
        %v1717 = vpop.xlane.xlu0 %1716
        %v1718 = vsub.f32 %v1710, %v1717
        %v1719 = vmul.f32 %v1718, 1.442695
        %v1720 = vpow.pop %v1719
        %v1721 = vsel %vm1498, %v1720, 0.0
        %1722 = vadd.xlane.f32.xlu0 %v1721
        %v1723 = vpop.xlane.xlu0 %1722
        %v1724 = vrcp.pop %v1723
        %v1725 = vmul.f32 %v1720, %v1724
        %v1726 = vpack.c.bf16 %v1725, %v1725
        %1727 = vrot.lane.b32.xlu0 %v1450, 112
        %v1728 = vpop.permute.xlu0 %1727
        %v1731 = vsel %vm1498, %v1726, 0
        %1733 = vmatprep.subr.bf16.mxu0 0
        %1734 = vmatpush1.bf16.msra.mxu0 0
        %1735 = vmatprep.subr.bf16.mxu0 0
        %1736 = vmatpush1.bf16.msra.mxu0 0
        %1737 = vmatprep.subr.bf16.mxu0 0
        %1738 = vmatpush1.bf16.msra.mxu0 0
        %1739 = vmatprep.subr.bf16.mxu0 0
        %1740 = vmatpush1.bf16.msra.mxu0 0
        %1741 = vmatprep.subr.bf16.mxu0 0
        %1742 = vmatpush1.bf16.msra.mxu0 0
        %1743 = vmatprep.subr.bf16.mxu0 0
        %1744 = vmatpush1.bf16.msra.mxu0 0
        %1745 = vmatprep.subr.bf16.mxu0 0
        %1746 = vmatpush1.bf16.msra.mxu0 0
        %1747 = vmatprep.subr.bf16.mxu0 0
        %1748 = vmatpush1.bf16.msra.mxu0 %v1728
        %1749 = vmatprep.subr.bf16.mxu0 0
        %1750 = vmatpush2.bf16.msra.mxu0 0
        %1751 = vmatprep.subr.bf16.mxu0 0
        %1752 = vmatpush2.bf16.msra.mxu0 0
        %1753 = vmatprep.subr.bf16.mxu0 0
        %1754 = vmatpush2.bf16.msra.mxu0 0
        %1755 = vmatprep.subr.bf16.mxu0 0
        %1756 = vmatpush2.bf16.msra.mxu0 0
        %1757 = vmatprep.subr.bf16.mxu0 0
        %1758 = vmatpush2.bf16.msra.mxu0 0
        %1759 = vmatprep.subr.bf16.mxu0 0
        %1760 = vmatpush2.bf16.msra.mxu0 0
        %1761 = vmatprep.subr.bf16.mxu0 0
        %1762 = vmatpush2.bf16.msra.mxu0 0
        %1763 = vmatprep.subr.bf16.mxu0 0
        %1764 = vmatpush2.bf16.msra.mxu0 0
        %1765 = vmatprep.mubr.bf16.mxu0 0
        %1766 = vmatmul.mubr.bf16.gmra.mxu0 %v1731
        %v1767 = vpop.f32.mrf.mxu0
        %v1768 = vadd.f32 0.0, %v1767
        %v1769 = vpop.f32.mrf.mxu0
        %v1770 = vpop.f32.mrf.mxu0
        %v1771 = vpop.f32.mrf.mxu0
        %1772 = vdwg.mxu0
        %1773 = vrot.lane.b32.xlu0 %v1448, 104
        %v1774 = vpop.permute.xlu0 %1773
        %1775 = vrot.lane.b32.xlu0 %v1449, 104
        %v1776 = vpop.permute.xlu0 %1775
        %v1778 = vsel %vm1451, %v1774, 0
        %v1781 = vsel %vm1451, %v1776, 0
        %1783 = vmatprep.subr.bf16.mxu0 0
        %1784 = vmatpush1.bf16.xpose.msra.mxu0 0
        %1785 = vmatprep.subr.bf16.mxu0 0
        %1786 = vmatpush1.bf16.xpose.msra.mxu0 0
        %1787 = vmatprep.subr.bf16.mxu0 0
        %1788 = vmatpush1.bf16.xpose.msra.mxu0 0
        %1789 = vmatprep.subr.bf16.mxu0 0
        %1790 = vmatpush1.bf16.xpose.msra.mxu0 0
        %1791 = vmatprep.subr.bf16.mxu0 0
        %1792 = vmatpush1.bf16.xpose.msra.mxu0 0
        %1793 = vmatprep.subr.bf16.mxu0 0
        %1794 = vmatpush1.bf16.xpose.msra.mxu0 0
        %1795 = vmatprep.subr.bf16.mxu0 0
        %1796 = vmatpush1.bf16.xpose.msra.mxu0 0
        %1797 = vmatprep.subr.bf16.mxu0 0
        %1798 = vmatpush1.bf16.xpose.msra.mxu0 %v1781
        %1799 = vmatprep.subr.bf16.mxu0 0
        %1800 = vmatpush2.bf16.xpose.msra.mxu0 0
        %1801 = vmatprep.subr.bf16.mxu0 0
        %1802 = vmatpush2.bf16.xpose.msra.mxu0 0
        %1803 = vmatprep.subr.bf16.mxu0 0
        %1804 = vmatpush2.bf16.xpose.msra.mxu0 0
        %1805 = vmatprep.subr.bf16.mxu0 0
        %1806 = vmatpush2.bf16.xpose.msra.mxu0 0
        %1807 = vmatprep.subr.bf16.mxu0 0
        %1808 = vmatpush2.bf16.xpose.msra.mxu0 0
        %1809 = vmatprep.subr.bf16.mxu0 0
        %1810 = vmatpush2.bf16.xpose.msra.mxu0 0
        %1811 = vmatprep.subr.bf16.mxu0 0
        %1812 = vmatpush2.bf16.xpose.msra.mxu0 0
        %1813 = vmatprep.subr.bf16.mxu0 0
        %1814 = vmatpush2.bf16.xpose.msra.mxu0 0
        %1815 = vmatprep.mubr.bf16.mxu0 0
        %1816 = vmatmul.mubr.bf16.gmra.mxu0 %v1778
        %v1817 = vpop.f32.mrf.mxu0
        %v1818 = vadd.f32 %v1241, %v1817
        %v1819 = vpop.f32.mrf.mxu0
        %v1820 = vpop.f32.mrf.mxu0
        %v1821 = vpop.f32.mrf.mxu0
        %1822 = vdwg.mxu0
        %v1823 = vsel %vm1498, %v1818, -inf
        %1824 = vmax.xlane.f32.xlu0 %v1823
        %v1825 = vpop.xlane.xlu0 %1824
        %v1826 = vsub.f32 %v1818, %v1825
        %v1827 = vmul.f32 %v1826, 1.442695
        %v1828 = vpow.pop %v1827
        %v1829 = vsel %vm1498, %v1828, 0.0
        %1830 = vadd.xlane.f32.xlu0 %v1829
        %v1831 = vpop.xlane.xlu0 %1830
        %v1832 = vrcp.pop %v1831
        %v1833 = vmul.f32 %v1828, %v1832
        %v1834 = vpack.c.bf16 %v1833, %v1833
        %1835 = vrot.lane.b32.xlu0 %v1450, 104
        %v1836 = vpop.permute.xlu0 %1835
        %v1839 = vsel %vm1498, %v1834, 0
        %1841 = vmatprep.subr.bf16.mxu0 0
        %1842 = vmatpush1.bf16.msra.mxu0 0
        %1843 = vmatprep.subr.bf16.mxu0 0
        %1844 = vmatpush1.bf16.msra.mxu0 0
        %1845 = vmatprep.subr.bf16.mxu0 0
        %1846 = vmatpush1.bf16.msra.mxu0 0
        %1847 = vmatprep.subr.bf16.mxu0 0
        %1848 = vmatpush1.bf16.msra.mxu0 0
        %1849 = vmatprep.subr.bf16.mxu0 0
        %1850 = vmatpush1.bf16.msra.mxu0 0
        %1851 = vmatprep.subr.bf16.mxu0 0
        %1852 = vmatpush1.bf16.msra.mxu0 0
        %1853 = vmatprep.subr.bf16.mxu0 0
        %1854 = vmatpush1.bf16.msra.mxu0 0
        %1855 = vmatprep.subr.bf16.mxu0 0
        %1856 = vmatpush1.bf16.msra.mxu0 %v1836
        %1857 = vmatprep.subr.bf16.mxu0 0
        %1858 = vmatpush2.bf16.msra.mxu0 0
        %1859 = vmatprep.subr.bf16.mxu0 0
        %1860 = vmatpush2.bf16.msra.mxu0 0
        %1861 = vmatprep.subr.bf16.mxu0 0
        %1862 = vmatpush2.bf16.msra.mxu0 0
        %1863 = vmatprep.subr.bf16.mxu0 0
        %1864 = vmatpush2.bf16.msra.mxu0 0
        %1865 = vmatprep.subr.bf16.mxu0 0
        %1866 = vmatpush2.bf16.msra.mxu0 0
        %1867 = vmatprep.subr.bf16.mxu0 0
        %1868 = vmatpush2.bf16.msra.mxu0 0
        %1869 = vmatprep.subr.bf16.mxu0 0
        %1870 = vmatpush2.bf16.msra.mxu0 0
        %1871 = vmatprep.subr.bf16.mxu0 0
        %1872 = vmatpush2.bf16.msra.mxu0 0
        %1873 = vmatprep.mubr.bf16.mxu0 0
        %1874 = vmatmul.mubr.bf16.gmra.mxu0 %v1839
        %v1875 = vpop.f32.mrf.mxu0
        %v1876 = vadd.f32 0.0, %v1875
        %v1877 = vpop.f32.mrf.mxu0
        %v1878 = vpop.f32.mrf.mxu0
        %v1879 = vpop.f32.mrf.mxu0
        %1880 = vdwg.mxu0
        %1882 = vrot.lane.b32.xlu0 %v1660, 8
        %v1883 = vpop.permute.xlu0 %1882
        %1886 = vrot.lane.b32.xlu0 %v1768, 16
        %v1887 = vpop.permute.xlu0 %1886
        %1890 = vrot.lane.b32.xlu0 %v1876, 24
        %v1891 = vpop.permute.xlu0 %1890
        %v1893 = vsel %vm1451, %v1549, %v1883
        %v1894 = vsel %vm1498, %v1893, %v1887
        %vm1895 = vcmask 195584
        %v1896 = vsel %vm1895, %v1894, %v1891
        %v1897 = vpack.c.bf16 %v1896, %v1896
        %v1899 = vlaneseq
        %v1900 = vshrl.u32 %v1899, 7
        %v1901 = vsub.s32 0, %v1900
        %v1902 = vrot.slane %v1447, %v1901
        %v1908 = vunpack.c.l.b16 %v1443
        %v1909 = vunpack.c.l.b16 %v1444
        %v1910 = vunpack.c.l.b16 %v1445
        %v1911 = vunpack.c.l.b16 %v1446
        %v1912 = vpack.c.b16 %v1909, %v1908
        %v1913 = vpack.c.b16 %v1911, %v1910
        %v1917 = vsel %vm1268, %v1897, 0
        %1919 = vmatprep.subr.bf16.mxu0 0
        %1920 = vmatpush1.bf16.msra.mxu0 0
        %1921 = vmatprep.subr.bf16.mxu0 0
        %1922 = vmatpush1.bf16.msra.mxu0 0
        %1923 = vmatprep.subr.bf16.mxu0 0
        %1924 = vmatpush1.bf16.msra.mxu0 0
        %1925 = vmatprep.subr.bf16.mxu0 0
        %1926 = vmatpush1.bf16.msra.mxu0 0
        %1927 = vmatprep.subr.bf16.mxu0 0
        %1928 = vmatpush1.bf16.msra.mxu0 0
        %1929 = vmatprep.subr.bf16.mxu0 0
        %1930 = vmatpush1.bf16.msra.mxu0 0
        %1931 = vmatprep.subr.bf16.mxu0 0
        %1932 = vmatpush1.bf16.msra.mxu0 %v1913
        %1933 = vmatprep.subr.bf16.mxu0 0
        %1934 = vmatpush1.bf16.msra.mxu0 %v1912
        %1935 = vmatprep.subr.bf16.mxu0 0
        %1936 = vmatpush2.bf16.msra.mxu0 0
        %1937 = vmatprep.subr.bf16.mxu0 0
        %1938 = vmatpush2.bf16.msra.mxu0 0
        %1939 = vmatprep.subr.bf16.mxu0 0
        %1940 = vmatpush2.bf16.msra.mxu0 0
        %1941 = vmatprep.subr.bf16.mxu0 0
        %1942 = vmatpush2.bf16.msra.mxu0 0
        %1943 = vmatprep.subr.bf16.mxu0 0
        %1944 = vmatpush2.bf16.msra.mxu0 0
        %1945 = vmatprep.subr.bf16.mxu0 0
        %1946 = vmatpush2.bf16.msra.mxu0 0
        %1947 = vmatprep.subr.bf16.mxu0 0
        %1948 = vmatpush2.bf16.msra.mxu0 0
        %1949 = vmatprep.subr.bf16.mxu0 0
        %1950 = vmatpush2.bf16.msra.mxu0 0
        %1951 = vmatprep.mubr.bf16.mxu0 0
        %1952 = vmatmul.mubr.bf16.gmra.mxu0 %v1917
        %v1953 = vpop.f32.mrf.mxu0
        %v1954 = vadd.f32 %v1902, %v1953
        %v1955 = vpop.f32.mrf.mxu0
        %v1956 = vpop.f32.mrf.mxu0
        %v1957 = vpop.f32.mrf.mxu0
        %1958 = vdwg.mxu0
        %v1959 = vadd.f32 %v1236, %v1954
        %v1960 = vld [vmem:[%s41] sm:$0x1]
        %v1961 = vld [vmem:[%s43] sm:$0x1]
        %v1962 = vsel %vm1268, %v1959, 0.0
        %1963 = vadd.xlane.f32.xlu0 %v1962
        %v1964 = vpop.xlane.xlu0 %1963
        %v1965 = vrcp.pop 32.0
        %v1966 = vmul.f32 %v1964, %v1965
        %v1967 = vsub.f32 %v1959, %v1966
        %v1968 = vmul.f32 %v1967, %v1967
        %v1969 = vsel %vm1268, %v1968, 0.0
        %1970 = vadd.xlane.f32.xlu0 %v1969
        %v1971 = vpop.xlane.xlu0 %1970
        %v1972 = vmul.f32 %v1971, %v1965
        %v1973 = vadd.f32 %v1972, 1e-05
        %v1974 = vrsqrt.pop %v1973
        %v1975 = vmul.f32 %v1967, %v1974
        %v1977 = vlaneseq
        %v1978 = vshrl.u32 %v1977, 7
        %v1979 = vsub.s32 0, %v1978
        %v1980 = vrot.slane %v1960, %v1979
        %v1982 = vmul.f32 %v1975, %v1980
        %v1984 = vlaneseq
        %v1985 = vshrl.u32 %v1984, 7
        %v1986 = vsub.s32 0, %v1985
        %v1987 = vrot.slane %v1961, %v1986
        %v1989 = vadd.f32 %v1982, %v1987
        %v1990 = vpack.c.bf16 %v1989, %v1989
        %v1991 = vld [vmem:[#allocation16] sm:$0xf]
        %v1992 = vld [vmem:[#allocation16 + $0x4] sm:$0xf]
        %v1993 = vld [vmem:[#allocation16 + $0x8] sm:$0xf]
        %v1994 = vld [vmem:[#allocation16 + $0xc] sm:$0xf]
        %v1995 = vld [vmem:[#allocation17] sm:$0x1]
        %v1997 = vlaneseq
        %v1998 = vshrl.u32 %v1997, 7
        %v1999 = vsub.s32 0, %v1998
        %v2000 = vrot.slane %v1995, %v1999
        %v2006 = vunpack.c.l.b16 %v1991
        %v2007 = vunpack.c.l.b16 %v1992
        %v2008 = vunpack.c.l.b16 %v1993
        %v2009 = vunpack.c.l.b16 %v1994
        %v2010 = vpack.c.b16 %v2007, %v2006
        %v2011 = vpack.c.b16 %v2009, %v2008
        %v2015 = vsel %vm1268, %v1990, 0
        %2017 = vmatprep.subr.bf16.mxu0 0
        %2018 = vmatpush1.bf16.msra.mxu0 0
        %2019 = vmatprep.subr.bf16.mxu0 0
        %2020 = vmatpush1.bf16.msra.mxu0 0
        %2021 = vmatprep.subr.bf16.mxu0 0
        %2022 = vmatpush1.bf16.msra.mxu0 0
        %2023 = vmatprep.subr.bf16.mxu0 0
        %2024 = vmatpush1.bf16.msra.mxu0 0
        %2025 = vmatprep.subr.bf16.mxu0 0
        %2026 = vmatpush1.bf16.msra.mxu0 0
        %2027 = vmatprep.subr.bf16.mxu0 0
        %2028 = vmatpush1.bf16.msra.mxu0 0
        %2029 = vmatprep.subr.bf16.mxu0 0
        %2030 = vmatpush1.bf16.msra.mxu0 %v2011
        %2031 = vmatprep.subr.bf16.mxu0 0
        %2032 = vmatpush1.bf16.msra.mxu0 %v2010
        %2033 = vmatprep.subr.bf16.mxu0 0
        %2034 = vmatpush2.bf16.msra.mxu0 0
        %2035 = vmatprep.subr.bf16.mxu0 0
        %2036 = vmatpush2.bf16.msra.mxu0 0
        %2037 = vmatprep.subr.bf16.mxu0 0
        %2038 = vmatpush2.bf16.msra.mxu0 0
        %2039 = vmatprep.subr.bf16.mxu0 0
        %2040 = vmatpush2.bf16.msra.mxu0 0
        %2041 = vmatprep.subr.bf16.mxu0 0
        %2042 = vmatpush2.bf16.msra.mxu0 0
        %2043 = vmatprep.subr.bf16.mxu0 0
        %2044 = vmatpush2.bf16.msra.mxu0 0
        %2045 = vmatprep.subr.bf16.mxu0 0
        %2046 = vmatpush2.bf16.msra.mxu0 0
        %2047 = vmatprep.subr.bf16.mxu0 0
        %2048 = vmatpush2.bf16.msra.mxu0 0
        %2049 = vmatprep.mubr.bf16.mxu0 0
        %2050 = vmatmul.mubr.bf16.gmra.mxu0 %v2015
        %v2051 = vpop.f32.mrf.mxu0
        %v2052 = vadd.f32 %v2000, %v2051
        %v2053 = vpop.f32.mrf.mxu0
        %v2054 = vpop.f32.mrf.mxu0
        %v2055 = vpop.f32.mrf.mxu0
        %2056 = vdwg.mxu0
        %v2057 = vld [vmem:[#allocation19] sm:$0xf]
        %v2058 = vld [vmem:[#allocation19 + $0x4] sm:$0xf]
        %v2059 = vld [vmem:[#allocation19 + $0x8] sm:$0xf]
        %v2060 = vld [vmem:[#allocation19 + $0xc] sm:$0xf]
        %v2061 = vld [vmem:[#allocation20] sm:$0x1]
        %v2063 = vlaneseq
        %v2064 = vshrl.u32 %v2063, 7
        %v2065 = vsub.s32 0, %v2064
        %v2066 = vrot.slane %v2061, %v2065
        %v2072 = vunpack.c.l.b16 %v2057
        %v2073 = vunpack.c.l.b16 %v2058
        %v2074 = vunpack.c.l.b16 %v2059
        %v2075 = vunpack.c.l.b16 %v2060
        %v2076 = vpack.c.b16 %v2073, %v2072
        %v2077 = vpack.c.b16 %v2075, %v2074
        %v2081 = vsel %vm1268, %v1244, 0
        %2083 = vmatprep.subr.bf16.mxu0 0
        %2084 = vmatpush1.bf16.msra.mxu0 0
        %2085 = vmatprep.subr.bf16.mxu0 0
        %2086 = vmatpush1.bf16.msra.mxu0 0
        %2087 = vmatprep.subr.bf16.mxu0 0
        %2088 = vmatpush1.bf16.msra.mxu0 0
        %2089 = vmatprep.subr.bf16.mxu0 0
        %2090 = vmatpush1.bf16.msra.mxu0 0
        %2091 = vmatprep.subr.bf16.mxu0 0
        %2092 = vmatpush1.bf16.msra.mxu0 0
        %2093 = vmatprep.subr.bf16.mxu0 0
        %2094 = vmatpush1.bf16.msra.mxu0 0
        %2095 = vmatprep.subr.bf16.mxu0 0
        %2096 = vmatpush1.bf16.msra.mxu0 %v2077
        %2097 = vmatprep.subr.bf16.mxu0 0
        %2098 = vmatpush1.bf16.msra.mxu0 %v2076
        %2099 = vmatprep.subr.bf16.mxu0 0
        %2100 = vmatpush2.bf16.msra.mxu0 0
        %2101 = vmatprep.subr.bf16.mxu0 0
        %2102 = vmatpush2.bf16.msra.mxu0 0
        %2103 = vmatprep.subr.bf16.mxu0 0
        %2104 = vmatpush2.bf16.msra.mxu0 0
        %2105 = vmatprep.subr.bf16.mxu0 0
        %2106 = vmatpush2.bf16.msra.mxu0 0
        %2107 = vmatprep.subr.bf16.mxu0 0
        %2108 = vmatpush2.bf16.msra.mxu0 0
        %2109 = vmatprep.subr.bf16.mxu0 0
        %2110 = vmatpush2.bf16.msra.mxu0 0
        %2111 = vmatprep.subr.bf16.mxu0 0
        %2112 = vmatpush2.bf16.msra.mxu0 0
        %2113 = vmatprep.subr.bf16.mxu0 0
        %2114 = vmatpush2.bf16.msra.mxu0 0
        %2115 = vmatprep.mubr.bf16.mxu0 0
        %2116 = vmatmul.mubr.bf16.gmra.mxu0 %v2081
        %v2117 = vpop.f32.mrf.mxu0
        %v2118 = vadd.f32 %v2066, %v2117
        %v2119 = vpop.f32.mrf.mxu0
        %v2120 = vpop.f32.mrf.mxu0
        %v2121 = vadd.f32 %v2066, %v2120
        %v2122 = vpop.f32.mrf.mxu0
        %2123 = vdwg.mxu0
        %v2124 = vld [vmem:[#allocation22] sm:$0xf]
        %v2125 = vld [vmem:[#allocation22 + $0x4] sm:$0xf]
        %v2126 = vld [vmem:[#allocation22 + $0x8] sm:$0xf]
        %v2127 = vld [vmem:[#allocation22 + $0xc] sm:$0xf]
        %v2128 = vld [vmem:[#allocation23] sm:$0x1]
        %v2130 = vlaneseq
        %v2131 = vshrl.u32 %v2130, 7
        %v2132 = vsub.s32 0, %v2131
        %v2133 = vrot.slane %v2128, %v2132
        %v2139 = vunpack.c.l.b16 %v2124
        %v2140 = vunpack.c.l.b16 %v2125
        %v2141 = vunpack.c.l.b16 %v2126
        %v2142 = vunpack.c.l.b16 %v2127
        %v2143 = vpack.c.b16 %v2140, %v2139
        %v2144 = vpack.c.b16 %v2142, %v2141
        %2147 = vmatprep.subr.bf16.mxu0 0
        %2148 = vmatpush1.bf16.msra.mxu0 0
        %2149 = vmatprep.subr.bf16.mxu0 0
        %2150 = vmatpush1.bf16.msra.mxu0 0
        %2151 = vmatprep.subr.bf16.mxu0 0
        %2152 = vmatpush1.bf16.msra.mxu0 0
        %2153 = vmatprep.subr.bf16.mxu0 0
        %2154 = vmatpush1.bf16.msra.mxu0 0
        %2155 = vmatprep.subr.bf16.mxu0 0
        %2156 = vmatpush1.bf16.msra.mxu0 0
        %2157 = vmatprep.subr.bf16.mxu0 0
        %2158 = vmatpush1.bf16.msra.mxu0 0
        %2159 = vmatprep.subr.bf16.mxu0 0
        %2160 = vmatpush1.bf16.msra.mxu0 %v2144
        %2161 = vmatprep.subr.bf16.mxu0 0
        %2162 = vmatpush1.bf16.msra.mxu0 %v2143
        %2163 = vmatprep.subr.bf16.mxu0 0
        %2164 = vmatpush2.bf16.msra.mxu0 0
        %2165 = vmatprep.subr.bf16.mxu0 0
        %2166 = vmatpush2.bf16.msra.mxu0 0
        %2167 = vmatprep.subr.bf16.mxu0 0
        %2168 = vmatpush2.bf16.msra.mxu0 0
        %2169 = vmatprep.subr.bf16.mxu0 0
        %2170 = vmatpush2.bf16.msra.mxu0 0
        %2171 = vmatprep.subr.bf16.mxu0 0
        %2172 = vmatpush2.bf16.msra.mxu0 0
        %2173 = vmatprep.subr.bf16.mxu0 0
        %2174 = vmatpush2.bf16.msra.mxu0 0
        %2175 = vmatprep.subr.bf16.mxu0 0
        %2176 = vmatpush2.bf16.msra.mxu0 0
        %2177 = vmatprep.subr.bf16.mxu0 0
        %2178 = vmatpush2.bf16.msra.mxu0 0
        %2179 = vmatprep.mubr.bf16.mxu0 0
        %2180 = vmatmul.mubr.bf16.gmra.mxu0 %v2081
        %v2181 = vpop.f32.mrf.mxu0
        %v2182 = vadd.f32 %v2133, %v2181
        %v2183 = vpop.f32.mrf.mxu0
        %v2184 = vpop.f32.mrf.mxu0
        %v2185 = vadd.f32 %v2133, %v2184
        %v2186 = vpop.f32.mrf.mxu0
        %2187 = vdwg.mxu0
        %v2188 = vld [vmem:[#allocation25] sm:$0xf]
        %v2189 = vld [vmem:[#allocation25 + $0x4] sm:$0xf]
        %v2190 = vld [vmem:[#allocation25 + $0x8] sm:$0xf]
        %v2191 = vld [vmem:[#allocation25 + $0xc] sm:$0xf]
        %v2192 = vld [vmem:[%s39] sm:$0x1]
        %v2193 = vpack.c.bf16 %v2052, %v2052
        %v2194 = vpack.c.bf16 %v2121, %v2118
        %v2195 = vpack.c.bf16 %v2185, %v2182
        %v2197 = vsel %vm1451, %v2193, 0
        %v2200 = vsel %vm1451, %v2194, 0
        %2202 = vmatprep.subr.bf16.mxu0 0
        %2203 = vmatpush1.bf16.xpose.msra.mxu0 0
        %2204 = vmatprep.subr.bf16.mxu0 0
        %2205 = vmatpush1.bf16.xpose.msra.mxu0 0
        %2206 = vmatprep.subr.bf16.mxu0 0
        %2207 = vmatpush1.bf16.xpose.msra.mxu0 0
        %2208 = vmatprep.subr.bf16.mxu0 0
        %2209 = vmatpush1.bf16.xpose.msra.mxu0 0
        %2210 = vmatprep.subr.bf16.mxu0 0
        %2211 = vmatpush1.bf16.xpose.msra.mxu0 0
        %2212 = vmatprep.subr.bf16.mxu0 0
        %2213 = vmatpush1.bf16.xpose.msra.mxu0 0
        %2214 = vmatprep.subr.bf16.mxu0 0
        %2215 = vmatpush1.bf16.xpose.msra.mxu0 0
        %2216 = vmatprep.subr.bf16.mxu0 0
        %2217 = vmatpush1.bf16.xpose.msra.mxu0 %v2200
        %2218 = vmatprep.subr.bf16.mxu0 0
        %2219 = vmatpush2.bf16.xpose.msra.mxu0 0
        %2220 = vmatprep.subr.bf16.mxu0 0
        %2221 = vmatpush2.bf16.xpose.msra.mxu0 0
        %2222 = vmatprep.subr.bf16.mxu0 0
        %2223 = vmatpush2.bf16.xpose.msra.mxu0 0
        %2224 = vmatprep.subr.bf16.mxu0 0
        %2225 = vmatpush2.bf16.xpose.msra.mxu0 0
        %2226 = vmatprep.subr.bf16.mxu0 0
        %2227 = vmatpush2.bf16.xpose.msra.mxu0 0
        %2228 = vmatprep.subr.bf16.mxu0 0
        %2229 = vmatpush2.bf16.xpose.msra.mxu0 0
        %2230 = vmatprep.subr.bf16.mxu0 0
        %2231 = vmatpush2.bf16.xpose.msra.mxu0 0
        %2232 = vmatprep.subr.bf16.mxu0 0
        %2233 = vmatpush2.bf16.xpose.msra.mxu0 0
        %2234 = vmatprep.mubr.bf16.mxu0 0
        %2235 = vmatmul.mubr.bf16.gmra.mxu0 %v2197
        %v2236 = vpop.f32.mrf.mxu0
        %v2237 = vadd.f32 %v1241, %v2236
        %v2238 = vpop.f32.mrf.mxu0
        %v2239 = vpop.f32.mrf.mxu0
        %v2240 = vpop.f32.mrf.mxu0
        %2241 = vdwg.mxu0
        %v2242 = vsel %vm1498, %v2237, -inf
        %2243 = vmax.xlane.f32.xlu0 %v2242
        %v2244 = vpop.xlane.xlu0 %2243
        %v2245 = vsub.f32 %v2237, %v2244
        %v2246 = vmul.f32 %v2245, 1.442695
        %v2247 = vpow.pop %v2246
        %v2248 = vsel %vm1498, %v2247, 0.0
        %2249 = vadd.xlane.f32.xlu0 %v2248
        %v2250 = vpop.xlane.xlu0 %2249
        %v2251 = vrcp.pop %v2250
        %v2252 = vmul.f32 %v2247, %v2251
        %v2253 = vpack.c.bf16 %v2252, %v2252
        %v2255 = vsel %vm1498, %v2253, 0
        %2257 = vmatprep.subr.bf16.mxu0 0
        %2258 = vmatpush1.bf16.msra.mxu0 0
        %2259 = vmatprep.subr.bf16.mxu0 0
        %2260 = vmatpush1.bf16.msra.mxu0 0
        %2261 = vmatprep.subr.bf16.mxu0 0
        %2262 = vmatpush1.bf16.msra.mxu0 0
        %2263 = vmatprep.subr.bf16.mxu0 0
        %2264 = vmatpush1.bf16.msra.mxu0 0
        %2265 = vmatprep.subr.bf16.mxu0 0
        %2266 = vmatpush1.bf16.msra.mxu0 0
        %2267 = vmatprep.subr.bf16.mxu0 0
        %2268 = vmatpush1.bf16.msra.mxu0 0
        %2269 = vmatprep.subr.bf16.mxu0 0
        %2270 = vmatpush1.bf16.msra.mxu0 0
        %2271 = vmatprep.subr.bf16.mxu0 0
        %2272 = vmatpush1.bf16.msra.mxu0 %v2195
        %2273 = vmatprep.subr.bf16.mxu0 0
        %2274 = vmatpush2.bf16.msra.mxu0 0
        %2275 = vmatprep.subr.bf16.mxu0 0
        %2276 = vmatpush2.bf16.msra.mxu0 0
        %2277 = vmatprep.subr.bf16.mxu0 0
        %2278 = vmatpush2.bf16.msra.mxu0 0
        %2279 = vmatprep.subr.bf16.mxu0 0
        %2280 = vmatpush2.bf16.msra.mxu0 0
        %2281 = vmatprep.subr.bf16.mxu0 0
        %2282 = vmatpush2.bf16.msra.mxu0 0
        %2283 = vmatprep.subr.bf16.mxu0 0
        %2284 = vmatpush2.bf16.msra.mxu0 0
        %2285 = vmatprep.subr.bf16.mxu0 0
        %2286 = vmatpush2.bf16.msra.mxu0 0
        %2287 = vmatprep.subr.bf16.mxu0 0
        %2288 = vmatpush2.bf16.msra.mxu0 0
        %2289 = vmatprep.mubr.bf16.mxu0 0
        %2290 = vmatmul.mubr.bf16.gmra.mxu0 %v2255
        %v2291 = vpop.f32.mrf.mxu0
        %v2292 = vadd.f32 0.0, %v2291
        %v2293 = vpop.f32.mrf.mxu0
        %v2294 = vpop.f32.mrf.mxu0
        %v2295 = vpop.f32.mrf.mxu0
        %2296 = vdwg.mxu0
        %2298 = vrot.lane.b32.xlu0 %v2193, 120
        %v2299 = vpop.permute.xlu0 %2298
        %2301 = vrot.lane.b32.xlu0 %v2194, 120
        %v2302 = vpop.permute.xlu0 %2301
        %v2304 = vsel %vm1451, %v2299, 0
        %v2307 = vsel %vm1451, %v2302, 0
        %2309 = vmatprep.subr.bf16.mxu0 0
        %2310 = vmatpush1.bf16.xpose.msra.mxu0 0
        %2311 = vmatprep.subr.bf16.mxu0 0
        %2312 = vmatpush1.bf16.xpose.msra.mxu0 0
        %2313 = vmatprep.subr.bf16.mxu0 0
        %2314 = vmatpush1.bf16.xpose.msra.mxu0 0
        %2315 = vmatprep.subr.bf16.mxu0 0
        %2316 = vmatpush1.bf16.xpose.msra.mxu0 0
        %2317 = vmatprep.subr.bf16.mxu0 0
        %2318 = vmatpush1.bf16.xpose.msra.mxu0 0
        %2319 = vmatprep.subr.bf16.mxu0 0
        %2320 = vmatpush1.bf16.xpose.msra.mxu0 0
        %2321 = vmatprep.subr.bf16.mxu0 0
        %2322 = vmatpush1.bf16.xpose.msra.mxu0 0
        %2323 = vmatprep.subr.bf16.mxu0 0
        %2324 = vmatpush1.bf16.xpose.msra.mxu0 %v2307
        %2325 = vmatprep.subr.bf16.mxu0 0
        %2326 = vmatpush2.bf16.xpose.msra.mxu0 0
        %2327 = vmatprep.subr.bf16.mxu0 0
        %2328 = vmatpush2.bf16.xpose.msra.mxu0 0
        %2329 = vmatprep.subr.bf16.mxu0 0
        %2330 = vmatpush2.bf16.xpose.msra.mxu0 0
        %2331 = vmatprep.subr.bf16.mxu0 0
        %2332 = vmatpush2.bf16.xpose.msra.mxu0 0
        %2333 = vmatprep.subr.bf16.mxu0 0
        %2334 = vmatpush2.bf16.xpose.msra.mxu0 0
        %2335 = vmatprep.subr.bf16.mxu0 0
        %2336 = vmatpush2.bf16.xpose.msra.mxu0 0
        %2337 = vmatprep.subr.bf16.mxu0 0
        %2338 = vmatpush2.bf16.xpose.msra.mxu0 0
        %2339 = vmatprep.subr.bf16.mxu0 0
        %2340 = vmatpush2.bf16.xpose.msra.mxu0 0
        %2341 = vmatprep.mubr.bf16.mxu0 0
        %2342 = vmatmul.mubr.bf16.gmra.mxu0 %v2304
        %v2343 = vpop.f32.mrf.mxu0
        %v2344 = vadd.f32 %v1241, %v2343
        %v2345 = vpop.f32.mrf.mxu0
        %v2346 = vpop.f32.mrf.mxu0
        %v2347 = vpop.f32.mrf.mxu0
        %2348 = vdwg.mxu0
        %v2349 = vsel %vm1498, %v2344, -inf
        %2350 = vmax.xlane.f32.xlu0 %v2349
        %v2351 = vpop.xlane.xlu0 %2350
        %v2352 = vsub.f32 %v2344, %v2351
        %v2353 = vmul.f32 %v2352, 1.442695
        %v2354 = vpow.pop %v2353
        %v2355 = vsel %vm1498, %v2354, 0.0
        %2356 = vadd.xlane.f32.xlu0 %v2355
        %v2357 = vpop.xlane.xlu0 %2356
        %v2358 = vrcp.pop %v2357
        %v2359 = vmul.f32 %v2354, %v2358
        %v2360 = vpack.c.bf16 %v2359, %v2359
        %2362 = vrot.lane.b32.xlu0 %v2195, 120
        %v2363 = vpop.permute.xlu0 %2362
        %v2366 = vsel %vm1498, %v2360, 0
        %2368 = vmatprep.subr.bf16.mxu0 0
        %2369 = vmatpush1.bf16.msra.mxu0 0
        %2370 = vmatprep.subr.bf16.mxu0 0
        %2371 = vmatpush1.bf16.msra.mxu0 0
        %2372 = vmatprep.subr.bf16.mxu0 0
        %2373 = vmatpush1.bf16.msra.mxu0 0
        %2374 = vmatprep.subr.bf16.mxu0 0
        %2375 = vmatpush1.bf16.msra.mxu0 0
        %2376 = vmatprep.subr.bf16.mxu0 0
        %2377 = vmatpush1.bf16.msra.mxu0 0
        %2378 = vmatprep.subr.bf16.mxu0 0
        %2379 = vmatpush1.bf16.msra.mxu0 0
        %2380 = vmatprep.subr.bf16.mxu0 0
        %2381 = vmatpush1.bf16.msra.mxu0 0
        %2382 = vmatprep.subr.bf16.mxu0 0
        %2383 = vmatpush1.bf16.msra.mxu0 %v2363
        %2384 = vmatprep.subr.bf16.mxu0 0
        %2385 = vmatpush2.bf16.msra.mxu0 0
        %2386 = vmatprep.subr.bf16.mxu0 0
        %2387 = vmatpush2.bf16.msra.mxu0 0
        %2388 = vmatprep.subr.bf16.mxu0 0
        %2389 = vmatpush2.bf16.msra.mxu0 0
        %2390 = vmatprep.subr.bf16.mxu0 0
        %2391 = vmatpush2.bf16.msra.mxu0 0
        %2392 = vmatprep.subr.bf16.mxu0 0
        %2393 = vmatpush2.bf16.msra.mxu0 0
        %2394 = vmatprep.subr.bf16.mxu0 0
        %2395 = vmatpush2.bf16.msra.mxu0 0
        %2396 = vmatprep.subr.bf16.mxu0 0
        %2397 = vmatpush2.bf16.msra.mxu0 0
        %2398 = vmatprep.subr.bf16.mxu0 0
        %2399 = vmatpush2.bf16.msra.mxu0 0
        %2400 = vmatprep.mubr.bf16.mxu0 0
        %2401 = vmatmul.mubr.bf16.gmra.mxu0 %v2366
        %v2402 = vpop.f32.mrf.mxu0
        %v2403 = vadd.f32 0.0, %v2402
        %v2404 = vpop.f32.mrf.mxu0
        %v2405 = vpop.f32.mrf.mxu0
        %v2406 = vpop.f32.mrf.mxu0
        %2407 = vdwg.mxu0
        %2408 = vrot.lane.b32.xlu0 %v2193, 112
        %v2409 = vpop.permute.xlu0 %2408
        %2410 = vrot.lane.b32.xlu0 %v2194, 112
        %v2411 = vpop.permute.xlu0 %2410
        %v2413 = vsel %vm1451, %v2409, 0
        %v2416 = vsel %vm1451, %v2411, 0
        %2418 = vmatprep.subr.bf16.mxu0 0
        %2419 = vmatpush1.bf16.xpose.msra.mxu0 0
        %2420 = vmatprep.subr.bf16.mxu0 0
        %2421 = vmatpush1.bf16.xpose.msra.mxu0 0
        %2422 = vmatprep.subr.bf16.mxu0 0
        %2423 = vmatpush1.bf16.xpose.msra.mxu0 0
        %2424 = vmatprep.subr.bf16.mxu0 0
        %2425 = vmatpush1.bf16.xpose.msra.mxu0 0
        %2426 = vmatprep.subr.bf16.mxu0 0
        %2427 = vmatpush1.bf16.xpose.msra.mxu0 0
        %2428 = vmatprep.subr.bf16.mxu0 0
        %2429 = vmatpush1.bf16.xpose.msra.mxu0 0
        %2430 = vmatprep.subr.bf16.mxu0 0
        %2431 = vmatpush1.bf16.xpose.msra.mxu0 0
        %2432 = vmatprep.subr.bf16.mxu0 0
        %2433 = vmatpush1.bf16.xpose.msra.mxu0 %v2416
        %2434 = vmatprep.subr.bf16.mxu0 0
        %2435 = vmatpush2.bf16.xpose.msra.mxu0 0
        %2436 = vmatprep.subr.bf16.mxu0 0
        %2437 = vmatpush2.bf16.xpose.msra.mxu0 0
        %2438 = vmatprep.subr.bf16.mxu0 0
        %2439 = vmatpush2.bf16.xpose.msra.mxu0 0
        %2440 = vmatprep.subr.bf16.mxu0 0
        %2441 = vmatpush2.bf16.xpose.msra.mxu0 0
        %2442 = vmatprep.subr.bf16.mxu0 0
        %2443 = vmatpush2.bf16.xpose.msra.mxu0 0
        %2444 = vmatprep.subr.bf16.mxu0 0
        %2445 = vmatpush2.bf16.xpose.msra.mxu0 0
        %2446 = vmatprep.subr.bf16.mxu0 0
        %2447 = vmatpush2.bf16.xpose.msra.mxu0 0
        %2448 = vmatprep.subr.bf16.mxu0 0
        %2449 = vmatpush2.bf16.xpose.msra.mxu0 0
        %2450 = vmatprep.mubr.bf16.mxu0 0
        %2451 = vmatmul.mubr.bf16.gmra.mxu0 %v2413
        %v2452 = vpop.f32.mrf.mxu0
        %v2453 = vadd.f32 %v1241, %v2452
        %v2454 = vpop.f32.mrf.mxu0
        %v2455 = vpop.f32.mrf.mxu0
        %v2456 = vpop.f32.mrf.mxu0
        %2457 = vdwg.mxu0
        %v2458 = vsel %vm1498, %v2453, -inf
        %2459 = vmax.xlane.f32.xlu0 %v2458
        %v2460 = vpop.xlane.xlu0 %2459
        %v2461 = vsub.f32 %v2453, %v2460
        %v2462 = vmul.f32 %v2461, 1.442695
        %v2463 = vpow.pop %v2462
        %v2464 = vsel %vm1498, %v2463, 0.0
        %2465 = vadd.xlane.f32.xlu0 %v2464
        %v2466 = vpop.xlane.xlu0 %2465
        %v2467 = vrcp.pop %v2466
        %v2468 = vmul.f32 %v2463, %v2467
        %v2469 = vpack.c.bf16 %v2468, %v2468
        %2470 = vrot.lane.b32.xlu0 %v2195, 112
        %v2471 = vpop.permute.xlu0 %2470
        %v2474 = vsel %vm1498, %v2469, 0
        %2476 = vmatprep.subr.bf16.mxu0 0
        %2477 = vmatpush1.bf16.msra.mxu0 0
        %2478 = vmatprep.subr.bf16.mxu0 0
        %2479 = vmatpush1.bf16.msra.mxu0 0
        %2480 = vmatprep.subr.bf16.mxu0 0
        %2481 = vmatpush1.bf16.msra.mxu0 0
        %2482 = vmatprep.subr.bf16.mxu0 0
        %2483 = vmatpush1.bf16.msra.mxu0 0
        %2484 = vmatprep.subr.bf16.mxu0 0
        %2485 = vmatpush1.bf16.msra.mxu0 0
        %2486 = vmatprep.subr.bf16.mxu0 0
        %2487 = vmatpush1.bf16.msra.mxu0 0
        %2488 = vmatprep.subr.bf16.mxu0 0
        %2489 = vmatpush1.bf16.msra.mxu0 0
        %2490 = vmatprep.subr.bf16.mxu0 0
        %2491 = vmatpush1.bf16.msra.mxu0 %v2471
        %2492 = vmatprep.subr.bf16.mxu0 0
        %2493 = vmatpush2.bf16.msra.mxu0 0
        %2494 = vmatprep.subr.bf16.mxu0 0
        %2495 = vmatpush2.bf16.msra.mxu0 0
        %2496 = vmatprep.subr.bf16.mxu0 0
        %2497 = vmatpush2.bf16.msra.mxu0 0
        %2498 = vmatprep.subr.bf16.mxu0 0
        %2499 = vmatpush2.bf16.msra.mxu0 0
        %2500 = vmatprep.subr.bf16.mxu0 0
        %2501 = vmatpush2.bf16.msra.mxu0 0
        %2502 = vmatprep.subr.bf16.mxu0 0
        %2503 = vmatpush2.bf16.msra.mxu0 0
        %2504 = vmatprep.subr.bf16.mxu0 0
        %2505 = vmatpush2.bf16.msra.mxu0 0
        %2506 = vmatprep.subr.bf16.mxu0 0
        %2507 = vmatpush2.bf16.msra.mxu0 0
        %2508 = vmatprep.mubr.bf16.mxu0 0
        %2509 = vmatmul.mubr.bf16.gmra.mxu0 %v2474
        %v2510 = vpop.f32.mrf.mxu0
        %v2511 = vadd.f32 0.0, %v2510
        %v2512 = vpop.f32.mrf.mxu0
        %v2513 = vpop.f32.mrf.mxu0
        %v2514 = vpop.f32.mrf.mxu0
        %2515 = vdwg.mxu0
        %2516 = vrot.lane.b32.xlu0 %v2193, 104
        %v2517 = vpop.permute.xlu0 %2516
        %2518 = vrot.lane.b32.xlu0 %v2194, 104
        %v2519 = vpop.permute.xlu0 %2518
        %v2521 = vsel %vm1451, %v2517, 0
        %v2524 = vsel %vm1451, %v2519, 0
        %2526 = vmatprep.subr.bf16.mxu0 0
        %2527 = vmatpush1.bf16.xpose.msra.mxu0 0
        %2528 = vmatprep.subr.bf16.mxu0 0
        %2529 = vmatpush1.bf16.xpose.msra.mxu0 0
        %2530 = vmatprep.subr.bf16.mxu0 0
        %2531 = vmatpush1.bf16.xpose.msra.mxu0 0
        %2532 = vmatprep.subr.bf16.mxu0 0
        %2533 = vmatpush1.bf16.xpose.msra.mxu0 0
        %2534 = vmatprep.subr.bf16.mxu0 0
        %2535 = vmatpush1.bf16.xpose.msra.mxu0 0
        %2536 = vmatprep.subr.bf16.mxu0 0
        %2537 = vmatpush1.bf16.xpose.msra.mxu0 0
        %2538 = vmatprep.subr.bf16.mxu0 0
        %2539 = vmatpush1.bf16.xpose.msra.mxu0 0
        %2540 = vmatprep.subr.bf16.mxu0 0
        %2541 = vmatpush1.bf16.xpose.msra.mxu0 %v2524
        %2542 = vmatprep.subr.bf16.mxu0 0
        %2543 = vmatpush2.bf16.xpose.msra.mxu0 0
        %2544 = vmatprep.subr.bf16.mxu0 0
        %2545 = vmatpush2.bf16.xpose.msra.mxu0 0
        %2546 = vmatprep.subr.bf16.mxu0 0
        %2547 = vmatpush2.bf16.xpose.msra.mxu0 0
        %2548 = vmatprep.subr.bf16.mxu0 0
        %2549 = vmatpush2.bf16.xpose.msra.mxu0 0
        %2550 = vmatprep.subr.bf16.mxu0 0
        %2551 = vmatpush2.bf16.xpose.msra.mxu0 0
        %2552 = vmatprep.subr.bf16.mxu0 0
        %2553 = vmatpush2.bf16.xpose.msra.mxu0 0
        %2554 = vmatprep.subr.bf16.mxu0 0
        %2555 = vmatpush2.bf16.xpose.msra.mxu0 0
        %2556 = vmatprep.subr.bf16.mxu0 0
        %2557 = vmatpush2.bf16.xpose.msra.mxu0 0
        %2558 = vmatprep.mubr.bf16.mxu0 0
        %2559 = vmatmul.mubr.bf16.gmra.mxu0 %v2521
        %v2560 = vpop.f32.mrf.mxu0
        %v2561 = vadd.f32 %v1241, %v2560
        %v2562 = vpop.f32.mrf.mxu0
        %v2563 = vpop.f32.mrf.mxu0
        %v2564 = vpop.f32.mrf.mxu0
        %2565 = vdwg.mxu0
        %v2566 = vsel %vm1498, %v2561, -inf
        %2567 = vmax.xlane.f32.xlu0 %v2566
        %v2568 = vpop.xlane.xlu0 %2567
        %v2569 = vsub.f32 %v2561, %v2568
        %v2570 = vmul.f32 %v2569, 1.442695
        %v2571 = vpow.pop %v2570
        %v2572 = vsel %vm1498, %v2571, 0.0
        %2573 = vadd.xlane.f32.xlu0 %v2572
        %v2574 = vpop.xlane.xlu0 %2573
        %v2575 = vrcp.pop %v2574
        %v2576 = vmul.f32 %v2571, %v2575
        %v2577 = vpack.c.bf16 %v2576, %v2576
        %2578 = vrot.lane.b32.xlu0 %v2195, 104
        %v2579 = vpop.permute.xlu0 %2578
        %v2582 = vsel %vm1498, %v2577, 0
        %2584 = vmatprep.subr.bf16.mxu0 0
        %2585 = vmatpush1.bf16.msra.mxu0 0
        %2586 = vmatprep.subr.bf16.mxu0 0
        %2587 = vmatpush1.bf16.msra.mxu0 0
        %2588 = vmatprep.subr.bf16.mxu0 0
        %2589 = vmatpush1.bf16.msra.mxu0 0
        %2590 = vmatprep.subr.bf16.mxu0 0
        %2591 = vmatpush1.bf16.msra.mxu0 0
        %2592 = vmatprep.subr.bf16.mxu0 0
        %2593 = vmatpush1.bf16.msra.mxu0 0
        %2594 = vmatprep.subr.bf16.mxu0 0
        %2595 = vmatpush1.bf16.msra.mxu0 0
        %2596 = vmatprep.subr.bf16.mxu0 0
        %2597 = vmatpush1.bf16.msra.mxu0 0
        %2598 = vmatprep.subr.bf16.mxu0 0
        %2599 = vmatpush1.bf16.msra.mxu0 %v2579
        %2600 = vmatprep.subr.bf16.mxu0 0
        %2601 = vmatpush2.bf16.msra.mxu0 0
        %2602 = vmatprep.subr.bf16.mxu0 0
        %2603 = vmatpush2.bf16.msra.mxu0 0
        %2604 = vmatprep.subr.bf16.mxu0 0
        %2605 = vmatpush2.bf16.msra.mxu0 0
        %2606 = vmatprep.subr.bf16.mxu0 0
        %2607 = vmatpush2.bf16.msra.mxu0 0
        %2608 = vmatprep.subr.bf16.mxu0 0
        %2609 = vmatpush2.bf16.msra.mxu0 0
        %2610 = vmatprep.subr.bf16.mxu0 0
        %2611 = vmatpush2.bf16.msra.mxu0 0
        %2612 = vmatprep.subr.bf16.mxu0 0
        %2613 = vmatpush2.bf16.msra.mxu0 0
        %2614 = vmatprep.subr.bf16.mxu0 0
        %2615 = vmatpush2.bf16.msra.mxu0 0
        %2616 = vmatprep.mubr.bf16.mxu0 0
        %2617 = vmatmul.mubr.bf16.gmra.mxu0 %v2582
        %v2618 = vpop.f32.mrf.mxu0
        %v2619 = vadd.f32 0.0, %v2618
        %v2620 = vpop.f32.mrf.mxu0
        %v2621 = vpop.f32.mrf.mxu0
        %v2622 = vpop.f32.mrf.mxu0
        %2623 = vdwg.mxu0
        %2625 = vrot.lane.b32.xlu0 %v2403, 8
        %v2626 = vpop.permute.xlu0 %2625
        %2629 = vrot.lane.b32.xlu0 %v2511, 16
        %v2630 = vpop.permute.xlu0 %2629
        %2633 = vrot.lane.b32.xlu0 %v2619, 24
        %v2634 = vpop.permute.xlu0 %2633
        %v2636 = vsel %vm1451, %v2292, %v2626
        %v2637 = vsel %vm1498, %v2636, %v2630
        %v2638 = vsel %vm1895, %v2637, %v2634
        %v2639 = vpack.c.bf16 %v2638, %v2638
        %v2641 = vlaneseq
        %v2642 = vshrl.u32 %v2641, 7
        %v2643 = vsub.s32 0, %v2642
        %v2644 = vrot.slane %v2192, %v2643
        %v2650 = vunpack.c.l.b16 %v2188
        %v2651 = vunpack.c.l.b16 %v2189
        %v2652 = vunpack.c.l.b16 %v2190
        %v2653 = vunpack.c.l.b16 %v2191
        %v2654 = vpack.c.b16 %v2651, %v2650
        %v2655 = vpack.c.b16 %v2653, %v2652
        %v2659 = vsel %vm1268, %v2639, 0
        %2661 = vmatprep.subr.bf16.mxu0 0
        %2662 = vmatpush1.bf16.msra.mxu0 0
        %2663 = vmatprep.subr.bf16.mxu0 0
        %2664 = vmatpush1.bf16.msra.mxu0 0
        %2665 = vmatprep.subr.bf16.mxu0 0
        %2666 = vmatpush1.bf16.msra.mxu0 0
        %2667 = vmatprep.subr.bf16.mxu0 0
        %2668 = vmatpush1.bf16.msra.mxu0 0
        %2669 = vmatprep.subr.bf16.mxu0 0
        %2670 = vmatpush1.bf16.msra.mxu0 0
        %2671 = vmatprep.subr.bf16.mxu0 0
        %2672 = vmatpush1.bf16.msra.mxu0 0
        %2673 = vmatprep.subr.bf16.mxu0 0
        %2674 = vmatpush1.bf16.msra.mxu0 %v2655
        %2675 = vmatprep.subr.bf16.mxu0 0
        %2676 = vmatpush1.bf16.msra.mxu0 %v2654
        %2677 = vmatprep.subr.bf16.mxu0 0
        %2678 = vmatpush2.bf16.msra.mxu0 0
        %2679 = vmatprep.subr.bf16.mxu0 0
        %2680 = vmatpush2.bf16.msra.mxu0 0
        %2681 = vmatprep.subr.bf16.mxu0 0
        %2682 = vmatpush2.bf16.msra.mxu0 0
        %2683 = vmatprep.subr.bf16.mxu0 0
        %2684 = vmatpush2.bf16.msra.mxu0 0
        %2685 = vmatprep.subr.bf16.mxu0 0
        %2686 = vmatpush2.bf16.msra.mxu0 0
        %2687 = vmatprep.subr.bf16.mxu0 0
        %2688 = vmatpush2.bf16.msra.mxu0 0
        %2689 = vmatprep.subr.bf16.mxu0 0
        %2690 = vmatpush2.bf16.msra.mxu0 0
        %2691 = vmatprep.subr.bf16.mxu0 0
        %2692 = vmatpush2.bf16.msra.mxu0 0
        %2693 = vmatprep.mubr.bf16.mxu0 0
        %2694 = vmatmul.mubr.bf16.gmra.mxu0 %v2659
        %v2695 = vpop.f32.mrf.mxu0
        %v2696 = vadd.f32 %v2644, %v2695
        %v2697 = vpop.f32.mrf.mxu0
        %v2698 = vpop.f32.mrf.mxu0
        %v2699 = vpop.f32.mrf.mxu0
        %2700 = vdwg.mxu0
        %v2701 = vadd.f32 %v1989, %v2696
        %v2702 = vld [vmem:[%s45] sm:$0x1]
        %v2703 = vld [vmem:[%s47] sm:$0x1]
        %v2704 = vsel %vm1268, %v2701, 0.0
        %2705 = vadd.xlane.f32.xlu0 %v2704
        %v2706 = vpop.xlane.xlu0 %2705
        %v2707 = vmul.f32 %v2706, %v1965
        %v2708 = vsub.f32 %v2701, %v2707
        %v2709 = vmul.f32 %v2708, %v2708
        %v2710 = vsel %vm1268, %v2709, 0.0
        %2711 = vadd.xlane.f32.xlu0 %v2710
        %v2712 = vpop.xlane.xlu0 %2711
        %v2713 = vmul.f32 %v2712, %v1965
        %v2714 = vadd.f32 %v2713, 1e-05
        %v2715 = vrsqrt.pop %v2714
        %v2716 = vmul.f32 %v2708, %v2715
        %v2718 = vlaneseq
        %v2719 = vshrl.u32 %v2718, 7
        %v2720 = vsub.s32 0, %v2719
        %v2721 = vrot.slane %v2702, %v2720
        %v2723 = vmul.f32 %v2716, %v2721
        %v2725 = vlaneseq
        %v2726 = vshrl.u32 %v2725, 7
        %v2727 = vsub.s32 0, %v2726
        %v2728 = vrot.slane %v2703, %v2727
        %v2730 = vadd.f32 %v2723, %v2728
        %v2731 = vpack.c.bf16 %v2730, %v2730
        %v2732 = vld [vmem:[#allocation26] sm:$0xf]
        %v2733 = vld [vmem:[#allocation26 + $0x4] sm:$0xf]
        %v2734 = vld [vmem:[#allocation26 + $0x8] sm:$0xf]
        %v2735 = vld [vmem:[#allocation26 + $0xc] sm:$0xf]
        %v2736 = vld [vmem:[%s55] sm:$0x1]
        %v2738 = vlaneseq
        %v2739 = vshrl.u32 %v2738, 7
        %v2740 = vsub.s32 0, %v2739
        %v2741 = vrot.slane %v2736, %v2740
        %v2747 = vunpack.c.l.b16 %v2732
        %v2748 = vunpack.c.l.b16 %v2733
        %v2749 = vunpack.c.l.b16 %v2734
        %v2750 = vunpack.c.l.b16 %v2735
        %v2751 = vpack.c.b16 %v2748, %v2747
        %v2752 = vpack.c.b16 %v2750, %v2749
        %v2756 = vsel %vm1268, %v2731, 0
        %2758 = vmatprep.subr.bf16.mxu0 0
        %2759 = vmatpush1.bf16.msra.mxu0 0
        %2760 = vmatprep.subr.bf16.mxu0 0
        %2761 = vmatpush1.bf16.msra.mxu0 0
        %2762 = vmatprep.subr.bf16.mxu0 0
        %2763 = vmatpush1.bf16.msra.mxu0 0
        %2764 = vmatprep.subr.bf16.mxu0 0
        %2765 = vmatpush1.bf16.msra.mxu0 0
        %2766 = vmatprep.subr.bf16.mxu0 0
        %2767 = vmatpush1.bf16.msra.mxu0 0
        %2768 = vmatprep.subr.bf16.mxu0 0
        %2769 = vmatpush1.bf16.msra.mxu0 0
        %2770 = vmatprep.subr.bf16.mxu0 0
        %2771 = vmatpush1.bf16.msra.mxu0 %v2752
        %2772 = vmatprep.subr.bf16.mxu0 0
        %2773 = vmatpush1.bf16.msra.mxu0 %v2751
        %2774 = vmatprep.subr.bf16.mxu0 0
        %2775 = vmatpush2.bf16.msra.mxu0 0
        %2776 = vmatprep.subr.bf16.mxu0 0
        %2777 = vmatpush2.bf16.msra.mxu0 0
        %2778 = vmatprep.subr.bf16.mxu0 0
        %2779 = vmatpush2.bf16.msra.mxu0 0
        %2780 = vmatprep.subr.bf16.mxu0 0
        %2781 = vmatpush2.bf16.msra.mxu0 0
        %2782 = vmatprep.subr.bf16.mxu0 0
        %2783 = vmatpush2.bf16.msra.mxu0 0
        %2784 = vmatprep.subr.bf16.mxu0 0
        %2785 = vmatpush2.bf16.msra.mxu0 0
        %2786 = vmatprep.subr.bf16.mxu0 0
        %2787 = vmatpush2.bf16.msra.mxu0 0
        %2788 = vmatprep.subr.bf16.mxu0 0
        %2789 = vmatpush2.bf16.msra.mxu0 0
        %2790 = vmatprep.mubr.bf16.mxu0 0
        %2791 = vmatmul.mubr.bf16.gmra.mxu0 %v2756
        %v2792 = vpop.f32.mrf.mxu0
        %v2793 = vadd.f32 %v2741, %v2792
        %v2794 = vpop.f32.mrf.mxu0
        %v2795 = vpop.f32.mrf.mxu0
        %v2796 = vpop.f32.mrf.mxu0
        %2797 = vdwg.mxu0
        %v2798 = vmax.f32 %v2793, 0.0
        %v2799 = vpack.c.bf16 %v2798, %v2798
        %v2800 = vld [vmem:[%s57] sm:$0xf]
        %v2801 = vld [vmem:[%s57 + $0x4] sm:$0xf]
        %v2802 = vld [vmem:[%s57 + $0x8] sm:$0xf]
        %v2803 = vld [vmem:[%s57 + $0xc] sm:$0xf]
        %v2804 = vld [vmem:[%s57 + $0x10] sm:$0xf]
        %v2805 = vld [vmem:[%s57 + $0x14] sm:$0xf]
        %v2806 = vld [vmem:[%s57 + $0x18] sm:$0xf]
        %v2807 = vld [vmem:[%s57 + $0x1c] sm:$0xf]
        %v2808 = vld [vmem:[%s57 + $0x20] sm:$0xf]
        %v2809 = vld [vmem:[%s57 + $0x24] sm:$0xf]
        %v2810 = vld [vmem:[%s57 + $0x28] sm:$0xf]
        %v2811 = vld [vmem:[%s57 + $0x2c] sm:$0xf]
        %v2812 = vld [vmem:[%s57 + $0x30] sm:$0xf]
        %v2813 = vld [vmem:[%s57 + $0x34] sm:$0xf]
        %v2814 = vld [vmem:[%s57 + $0x38] sm:$0xf]
        %v2815 = vld [vmem:[%s57 + $0x3c] sm:$0xf]
        %v2816 = vld [vmem:[%s59] sm:$0x1]
        %v2818 = vlaneseq
        %v2819 = vshrl.u32 %v2818, 7
        %v2820 = vsub.s32 0, %v2819
        %v2821 = vrot.slane %v2816, %v2820
        %v2839 = vunpack.c.l.b16 %v2800
        %v2840 = vunpack.c.l.b16 %v2801
        %v2841 = vunpack.c.l.b16 %v2802
        %v2842 = vunpack.c.l.b16 %v2803
        %v2843 = vunpack.c.l.b16 %v2804
        %v2844 = vunpack.c.l.b16 %v2805
        %v2845 = vunpack.c.l.b16 %v2806
        %v2846 = vunpack.c.l.b16 %v2807
        %v2847 = vunpack.c.l.b16 %v2808
        %v2848 = vunpack.c.l.b16 %v2809
        %v2849 = vunpack.c.l.b16 %v2810
        %v2850 = vunpack.c.l.b16 %v2811
        %v2851 = vunpack.c.l.b16 %v2812
        %v2852 = vunpack.c.l.b16 %v2813
        %v2853 = vunpack.c.l.b16 %v2814
        %v2854 = vunpack.c.l.b16 %v2815
        %v2855 = vpack.c.b16 %v2840, %v2839
        %v2856 = vpack.c.b16 %v2842, %v2841
        %v2857 = vpack.c.b16 %v2844, %v2843
        %v2858 = vpack.c.b16 %v2846, %v2845
        %v2859 = vpack.c.b16 %v2848, %v2847
        %v2860 = vpack.c.b16 %v2850, %v2849
        %v2861 = vpack.c.b16 %v2852, %v2851
        %v2862 = vpack.c.b16 %v2854, %v2853
        %2871 = vmatprep.subr.bf16.mxu0 0
        %2872 = vmatpush1.bf16.msra.mxu0 %v2862
        %2873 = vmatprep.subr.bf16.mxu0 0
        %2874 = vmatpush1.bf16.msra.mxu0 %v2861
        %2875 = vmatprep.subr.bf16.mxu0 0
        %2876 = vmatpush1.bf16.msra.mxu0 %v2860
        %2877 = vmatprep.subr.bf16.mxu0 0
        %2878 = vmatpush1.bf16.msra.mxu0 %v2859
        %2879 = vmatprep.subr.bf16.mxu0 0
        %2880 = vmatpush1.bf16.msra.mxu0 %v2858
        %2881 = vmatprep.subr.bf16.mxu0 0
        %2882 = vmatpush1.bf16.msra.mxu0 %v2857
        %2883 = vmatprep.subr.bf16.mxu0 0
        %2884 = vmatpush1.bf16.msra.mxu0 %v2856
        %2885 = vmatprep.subr.bf16.mxu0 0
        %2886 = vmatpush1.bf16.msra.mxu0 %v2855
        %2887 = vmatprep.subr.bf16.mxu0 0
        %2888 = vmatpush2.bf16.msra.mxu0 0
        %2889 = vmatprep.subr.bf16.mxu0 0
        %2890 = vmatpush2.bf16.msra.mxu0 0
        %2891 = vmatprep.subr.bf16.mxu0 0
        %2892 = vmatpush2.bf16.msra.mxu0 0
        %2893 = vmatprep.subr.bf16.mxu0 0
        %2894 = vmatpush2.bf16.msra.mxu0 0
        %2895 = vmatprep.subr.bf16.mxu0 0
        %2896 = vmatpush2.bf16.msra.mxu0 0
        %2897 = vmatprep.subr.bf16.mxu0 0
        %2898 = vmatpush2.bf16.msra.mxu0 0
        %2899 = vmatprep.subr.bf16.mxu0 0
        %2900 = vmatpush2.bf16.msra.mxu0 0
        %2901 = vmatprep.subr.bf16.mxu0 0
        %2902 = vmatpush2.bf16.msra.mxu0 0
        %2903 = vmatprep.mubr.bf16.mxu0 0
        %2904 = vmatmul.mubr.bf16.gmra.mxu0 %v2799
        %v2905 = vpop.f32.mrf.mxu0
        %v2906 = vadd.f32 %v2821, %v2905
        %v2907 = vpop.f32.mrf.mxu0
        %v2908 = vpop.f32.mrf.mxu0
        %v2909 = vpop.f32.mrf.mxu0
        %2910 = vdwg.mxu0
        %v2911 = vadd.f32 %v2730, %v2906
        %v2912 = vld [vmem:[%s49] sm:$0x1]
        %v2913 = vld [vmem:[%s51] sm:$0x1]
        %v2914 = vsel %vm1268, %v2911, 0.0
        %2915 = vadd.xlane.f32.xlu0 %v2914
        %v2916 = vpop.xlane.xlu0 %2915
        %v2917 = vmul.f32 %v2916, %v1965
        %v2918 = vsub.f32 %v2911, %v2917
        %v2919 = vmul.f32 %v2918, %v2918
        %v2920 = vsel %vm1268, %v2919, 0.0
        %2921 = vadd.xlane.f32.xlu0 %v2920
        %v2922 = vpop.xlane.xlu0 %2921
        %v2923 = vmul.f32 %v2922, %v1965
        %v2924 = vadd.f32 %v2923, 1e-05
        %v2925 = vrsqrt.pop %v2924
        %v2926 = vmul.f32 %v2918, %v2925
        %v2928 = vlaneseq
        %v2929 = vshrl.u32 %v2928, 7
        %v2930 = vsub.s32 0, %v2929
        %v2931 = vrot.slane %v2912, %v2930
        %v2933 = vmul.f32 %v2926, %v2931
        %v2935 = vlaneseq
        %v2936 = vshrl.u32 %v2935, 7
        %v2937 = vsub.s32 0, %v2936
        %v2938 = vrot.slane %v2913, %v2937
        %v2940 = vadd.f32 %v2933, %v2938
        %2941 = vst.msk [vmem:[%s1217] sm:$0xff] %vm1268, %v2940
        %s2942 = sand.u32 %s760, 1
        %s2943 = scalar_lea.sflag [#allocation4], %s2942
        %s2944 = sand.u32 %s760, 1
        %s2945 = smul.addr %s2944, 8
        %s2946 = scalar_lea.vmem [#allocation28], %s2945
        // Predicated region
        $region205: #{tpu_custom_call.1} parent=139 // pred_check
          %p2947 = pneg %p770
        $region206: #{tpu_custom_call.1} parent=139 // pred_check_branch
          %2949 = sbr.rel (%p2947) target = $region208
        $region207: #{tpu_custom_call.1} parent=139 // pred_region
          %s2951 = ssub.s32 128, 128
          %2952 = vsyncadd %s2943, %s2951
          %s2953 = smul.addr %s90, 2
          %s2954 = sadd.s32 %s91, %s2953
          %s2955 = smul.addr %s2954, 128
          %s2956 = scalar_lea.hbm %s61, %s2955
          %s2958 = sshll.u32 %s2946, 4
          %s2959 = int_to_ptr.vmem [resolvable:$true] %s2958
          %2961 = dma.vmem_to_hbm [thread:$0]  %s2959, 128, %s2956, %s2943
        $region208: #{tpu_custom_call.1} parent=139 // pred_fallthru
          _
      $region140: #{tpu_custom_call.1} parent=5 // pred_fallthru
        _
      %p2962 = scmp.le.s32.totalorder 2, %s81
      // Predicated region
      $region209: #{tpu_custom_call.1} parent=5 // pred_check
        %p2963 = pneg %p2962
      $region210: #{tpu_custom_call.1} parent=5 // pred_check_branch
        %2965 = sbr.rel (%p2963) target = $region212
      $region211: #{tpu_custom_call.1} parent=5 // pred_region
        %s2966 = ssub.s32 %s81, 2
        // Predicated region
        $region213: #{tpu_custom_call.1} parent=211 // pred_check
          %p2967 = pneg %p776
        $region214: #{tpu_custom_call.1} parent=211 // pred_check_branch
          %2969 = sbr.rel (%p2967) target = $region216
        $region215: #{tpu_custom_call.1} parent=211 // pred_region
          %s2970 = sand.u32 %s761, 1
          %s2971 = scalar_lea.sflag [#allocation4], %s2970
          %s2972 = sand.u32 %s761, 1
          %s2973 = smul.addr %s2972, 8
          %s2974 = scalar_lea.vmem [#allocation28], %s2973
          %2975 = dma.done %s2971, 128
        $region216: #{tpu_custom_call.1} parent=211 // pred_fallthru
          _
      $region212: #{tpu_custom_call.1} parent=5 // pred_fallthru
        _
    $region6: #{tpu_custom_call.1} parent=1 // loop_footer
      %s85 = sadd.s32 1, %s81
    $region7: #{tpu_custom_call.1} parent=1 // loop_footer_branch
      %80 = sbr.rel target = $region3
    $region8: #{tpu_custom_call.1} parent=1 // loop_exit
      _
    %2976 = vsyncpa [#allocation3], 1
    %s2977 = scalar_lea.sflag [#allocation3], 1
    %2978 = vsyncpa %s2977, 1
    %2979 = vsyncpa [#allocation6], 1
    %2980 = vsyncpa [#allocation9], 1
    %2981 = vsyncpa [#allocation12], 1
    %2982 = vsyncpa [#allocation15], 1
    %2983 = vsyncpa [#allocation18], 1
    %2984 = vsyncpa [#allocation21], 1
    %2985 = vsyncpa [#allocation24], 1
    %2986 = vsyncpa [#allocation27], 1
    %2987 = vsyncpa [#allocation4], 1
    %s2988 = scalar_lea.sflag [#allocation4], 1
    %2989 = vsyncpa %s2988, 1

// kernel: tpu_custom_call.1
$region0: #{tpu_custom_call.1}
  #allocation0 [shape = 'u32[]', space=smem, size = 0x4, offset = 0x4, fixed_abs, tag = 'smem constant byte address 0x4 - core index']
  #allocation1 [shape = 'u32[144,128]{1,0:T(1,128)}', space=vmem, size = 0x12000, scoped, tag = 'internal scratch']
  %s0 = inlined_call_operand.smem [shape: u32[31], index: -1, kind: input, shape index: {}]
  %s1 = sld [smem:[%s0]]
  %s2 = scalar_lea.smem %s0, 1
  %s3 = sld [smem:[%s2]]
  %s4 = scalar_lea.smem %s0, 2
  %s5 = sld [smem:[%s4]]
  %s6 = scalar_lea.smem %s0, 3
  %s7 = sld [smem:[%s6]]
  %s8 = scalar_lea.smem %s0, 4
  %s9 = sld [smem:[%s8]]
  %s10 = scalar_lea.smem %s0, 5
  %s11 = sld [smem:[%s10]]
  %s12 = scalar_lea.smem %s0, 6
  %s13 = sld [smem:[%s12]]
  %s14 = scalar_lea.smem %s0, 7
  %s15 = sld [smem:[%s14]]
  %s16 = scalar_lea.smem %s0, 8
  %s17 = sld [smem:[%s16]]
  %s18 = scalar_lea.smem %s0, 9
  %s19 = sld [smem:[%s18]]
  %s20 = scalar_lea.smem %s0, 10
  %s21 = sld [smem:[%s20]]
  %s22 = scalar_lea.smem %s0, 11
  %s23 = sld [smem:[%s22]]
  %s24 = scalar_lea.smem %s0, 12
  %s25 = sld [smem:[%s24]]
  %s26 = scalar_lea.smem %s0, 13
  %s27 = sld [smem:[%s26]]
  %s28 = scalar_lea.smem %s0, 14
  %s29 = sld [smem:[%s28]]
  %s30 = scalar_lea.smem %s0, 15
  %s31 = sld [smem:[%s30]]
  %s32 = scalar_lea.smem %s0, 16
  %s33 = sld [smem:[%s32]]
  %s34 = scalar_lea.smem %s0, 17
  %s35 = sld [smem:[%s34]]
  %s36 = scalar_lea.smem %s0, 18
  %s37 = sld [smem:[%s36]]
  %s38 = scalar_lea.smem %s0, 19
  %s39 = sld [smem:[%s38]]
  %s40 = scalar_lea.smem %s0, 20
  %s41 = sld [smem:[%s40]]
  %s42 = scalar_lea.smem %s0, 21
  %s43 = sld [smem:[%s42]]
  %s44 = scalar_lea.smem %s0, 22
  %s45 = sld [smem:[%s44]]
  %s46 = scalar_lea.smem %s0, 23
  %s47 = sld [smem:[%s46]]
  %s48 = scalar_lea.smem %s0, 24
  %s49 = sld [smem:[%s48]]
  %s50 = scalar_lea.smem %s0, 25
  %s51 = sld [smem:[%s50]]
  %s52 = scalar_lea.smem %s0, 26
  %s53 = sld [smem:[%s52]]
  %s54 = scalar_lea.smem %s0, 27
  %s55 = sld [smem:[%s54]]
  %s56 = scalar_lea.smem %s0, 28
  %s57 = sld [smem:[%s56]]
  %s58 = scalar_lea.smem %s0, 29
  %s59 = sld [smem:[%s58]]
  %s60 = scalar_lea.smem %s0, 30
  %s61 = sld [smem:[%s60]]
  %s62 = sld [smem:[#allocation0]]
  $region217: #{tpu_custom_call.1} parent=0
    _
  %s64 = ssub.s32 1, %s62
  %s65 = scalar_select 0, %s64, %s62
  $region1: #{tpu_custom_call.1} parent=0
    #allocation2 [shape = 'u8[16384]{0}', space=vmem, size = 0x4000, scoped, tag = 'input window, operand 2']
    #allocation3 [shape = 's32[2]{0}', space=sflag, size = 0x8, scoped, tag = 'scoped memory for tpu_custom_call.1']
    #allocation4 [shape = 's32[2]{0}', space=sflag, size = 0x8, scoped, tag = 'scoped memory for tpu_custom_call.1']
    #allocation5 [shape = 'u8[8192]{0}', space=vmem, size = 0x2000, scoped, tag = 'input window, operand 4, single buffered']
    #allocation6 [shape = 's32[1]{0}', space=sflag, size = 0x4, scoped, tag = 'scoped memory for tpu_custom_call.1']
    #allocation7 [shape = 'u8[512]{0}', space=vmem, size = 0x400, scoped, tag = 'input window, operand 5, single buffered']
    #allocation8 [shape = 'u8[8192]{0}', space=vmem, size = 0x2000, scoped, tag = 'input window, operand 6, single buffered']
    #allocation9 [shape = 's32[1]{0}', space=sflag, size = 0x4, scoped, tag = 'scoped memory for tpu_custom_call.1']
    #allocation10 [shape = 'u8[512]{0}', space=vmem, size = 0x400, scoped, tag = 'input window, operand 7, single buffered']
    #allocation11 [shape = 'u8[8192]{0}', space=vmem, size = 0x2000, scoped, tag = 'input window, operand 8, single buffered']
    #allocation12 [shape = 's32[1]{0}', space=sflag, size = 0x4, scoped, tag = 'scoped memory for tpu_custom_call.1']
    #allocation13 [shape = 'u8[512]{0}', space=vmem, size = 0x400, scoped, tag = 'input window, operand 9, single buffered']
    #allocation14 [shape = 'u8[512]{0}', space=vmem, size = 0x400, scoped, tag = 'input window, operand 11, single buffered']
    #allocation15 [shape = 's32[1]{0}', space=sflag, size = 0x4, scoped, tag = 'scoped memory for tpu_custom_call.1']
    #allocation16 [shape = 'u8[8192]{0}', space=vmem, size = 0x2000, scoped, tag = 'input window, operand 12, single buffered']
    #allocation17 [shape = 'u8[512]{0}', space=vmem, size = 0x400, scoped, tag = 'input window, operand 13, single buffered']
    #allocation18 [shape = 's32[1]{0}', space=sflag, size = 0x4, scoped, tag = 'scoped memory for tpu_custom_call.1']
    #allocation19 [shape = 'u8[8192]{0}', space=vmem, size = 0x2000, scoped, tag = 'input window, operand 14, single buffered']
    #allocation20 [shape = 'u8[512]{0}', space=vmem, size = 0x400, scoped, tag = 'input window, operand 15, single buffered']
    #allocation21 [shape = 's32[1]{0}', space=sflag, size = 0x4, scoped, tag = 'scoped memory for tpu_custom_call.1']
    #allocation22 [shape = 'u8[8192]{0}', space=vmem, size = 0x2000, scoped, tag = 'input window, operand 16, single buffered']
    #allocation23 [shape = 'u8[512]{0}', space=vmem, size = 0x400, scoped, tag = 'input window, operand 17, single buffered']
    #allocation24 [shape = 's32[1]{0}', space=sflag, size = 0x4, scoped, tag = 'scoped memory for tpu_custom_call.1']
    #allocation25 [shape = 'u8[8192]{0}', space=vmem, size = 0x2000, scoped, tag = 'input window, operand 18, single buffered']
    #allocation26 [shape = 'u8[8192]{0}', space=vmem, size = 0x2000, scoped, tag = 'input window, operand 26, single buffered']
    #allocation27 [shape = 's32[1]{0}', space=sflag, size = 0x4, scoped, tag = 'scoped memory for tpu_custom_call.1']
    #allocation28 [shape = 'u8[8192]{0}', space=vmem, size = 0x2000, scoped, tag = 'output window, operand 0']
    %66 = vsyncpa [#allocation3], 0
    %s67 = scalar_lea.sflag [#allocation3], 1
    %68 = vsyncpa %s67, 0
    %69 = vsyncpa [#allocation6], 0
    %70 = vsyncpa [#allocation9], 0
    %71 = vsyncpa [#allocation12], 0
    %72 = vsyncpa [#allocation15], 0
    %73 = vsyncpa [#allocation18], 0
    %74 = vsyncpa [#allocation21], 0
    %75 = vsyncpa [#allocation24], 0
    %76 = vsyncpa [#allocation27], 0
    %77 = vsyncpa [#allocation4], 0
    %s78 = scalar_lea.sflag [#allocation4], 1
    %79 = vsyncpa %s78, 0
    loop: start=0, step=1, limit=6
    $region2: #{tpu_custom_call.1} parent=1 // loop_pre_header
      _
    $region3: #{tpu_custom_call.1} parent=1 // loop_header
      %s81 = sphi 0, %s85
      %p82 = scmp.ge.s32.totalorder %s81, 6
      %s88 = sphi 0, %s100
      %s89 = sphi 0, %s96
      %s90 = sphi 0, %s88
      %s91 = sphi 0, %s89
      %s92 = sphi 0, %s90
      %s93 = sphi 0, %s91
      %s105 = sphi 0, %s107
      %s108 = sphi 0, %s105
      %s109 = sphi 0, %s108
      %s125 = sphi 0, %s109
      %s131 = sphi 0, %s133
      %s134 = sphi 0, %s131
      %s135 = sphi 0, %s134
      %s151 = sphi 0, %s135
      %s157 = sphi 0, %s159
      %s160 = sphi 0, %s157
      %s161 = sphi 0, %s160
      %s177 = sphi 0, %s161
      %s183 = sphi 0, %s185
      %s186 = sphi 0, %s183
      %s187 = sphi 0, %s186
      %s203 = sphi 0, %s187
      %s207 = sphi 0, %s207
      %s209 = sphi 0, %s207
      %s210 = sphi 0, %s209
      %s224 = sphi 0, %s210
      %s228 = sphi 0, %s228
      %s230 = sphi 0, %s228
      %s231 = sphi 0, %s230
      %s245 = sphi 0, %s231
      %s249 = sphi 0, %s249
      %s251 = sphi 0, %s249
      %s252 = sphi 0, %s251
      %s266 = sphi 0, %s252
      %s270 = sphi 0, %s270
      %s272 = sphi 0, %s270
      %s273 = sphi 0, %s272
      %s287 = sphi 0, %s273
      %s291 = sphi 0, %s291
      %s293 = sphi 0, %s291
      %s294 = sphi 0, %s293
      %s308 = sphi 0, %s294
      %s312 = sphi 0, %s312
      %s314 = sphi 0, %s312
      %s315 = sphi 0, %s314
      %s329 = sphi 0, %s315
      %s333 = sphi 0, %s333
      %s335 = sphi 0, %s333
      %s336 = sphi 0, %s335
      %s350 = sphi 0, %s336
      %s354 = sphi 0, %s354
      %s356 = sphi 0, %s354
      %s357 = sphi 0, %s356
      %s371 = sphi 0, %s357
      %s375 = sphi 0, %s375
      %s377 = sphi 0, %s375
      %s378 = sphi 0, %s377
      %s392 = sphi 0, %s378
      %s396 = sphi 0, %s396
      %s398 = sphi 0, %s396
      %s399 = sphi 0, %s398
      %s413 = sphi 0, %s399
      %s417 = sphi 0, %s417
      %s419 = sphi 0, %s417
      %s420 = sphi 0, %s419
      %s434 = sphi 0, %s420
      %s438 = sphi 0, %s438
      %s440 = sphi 0, %s438
      %s441 = sphi 0, %s440
      %s455 = sphi 0, %s441
      %s459 = sphi 0, %s459
      %s461 = sphi 0, %s459
      %s462 = sphi 0, %s461
      %s476 = sphi 0, %s462
      %s480 = sphi 0, %s480
      %s482 = sphi 0, %s480
      %s483 = sphi 0, %s482
      %s497 = sphi 0, %s483
      %s501 = sphi 0, %s501
      %s503 = sphi 0, %s501
      %s504 = sphi 0, %s503
      %s518 = sphi 0, %s504
      %s522 = sphi 0, %s522
      %s524 = sphi 0, %s522
      %s525 = sphi 0, %s524
      %s539 = sphi 0, %s525
      %s543 = sphi 0, %s543
      %s545 = sphi 0, %s543
      %s546 = sphi 0, %s545
      %s560 = sphi 0, %s546
      %s564 = sphi 0, %s564
      %s566 = sphi 0, %s564
      %s567 = sphi 0, %s566
      %s581 = sphi 0, %s567
      %s585 = sphi 0, %s585
      %s587 = sphi 0, %s585
      %s588 = sphi 0, %s587
      %s602 = sphi 0, %s588
      %s606 = sphi 0, %s606
      %s608 = sphi 0, %s606
      %s609 = sphi 0, %s608
      %s623 = sphi 0, %s609
      %s627 = sphi 0, %s627
      %s629 = sphi 0, %s627
      %s630 = sphi 0, %s629
      %s644 = sphi 0, %s630
      %s648 = sphi 0, %s648
      %s650 = sphi 0, %s648
      %s651 = sphi 0, %s650
      %s665 = sphi 0, %s651
      %s669 = sphi 0, %s669
      %s671 = sphi 0, %s669
      %s672 = sphi 0, %s671
      %s686 = sphi 0, %s672
      %s690 = sphi 0, %s690
      %s692 = sphi 0, %s690
      %s693 = sphi 0, %s692
      %s707 = sphi 0, %s693
      %s711 = sphi 0, %s711
      %s713 = sphi 0, %s711
      %s714 = sphi 0, %s713
      %s728 = sphi 0, %s714
      %s732 = sphi 0, %s732
      %s734 = sphi 0, %s732
      %s735 = sphi 0, %s734
      %s749 = sphi 0, %s735
      %s757 = sphi 0, %s759
      %s760 = sphi 0, %s757
      %s761 = sphi 0, %s760
      %s777 = sphi 0, %s761
    $region4: #{tpu_custom_call.1} parent=1 // loop_header_branch
      %84 = sbr.rel (%p82) target = $region8
    $region5: #{tpu_custom_call.1} parent=1 // loop_body
      %s86 = ssub.s32 %s81, 1
      %s87 = ssub.s32 %s81, 2
      %s94 = sadd.s32 1, %s89
      %p95 = scmp.ge.s32.totalorder %s94, 2
      %s96 = scalar_select %p95, 0, %s94
      %s97 = sadd.s32 1, %s88
      %s98 = scalar_select %p95, %s97, %s88
      %p99 = scmp.ge.s32.totalorder %s98, 2
      %s100 = scalar_select %p99, 0, %s98
      %s101 = ssub.s32 %s88, %s100
      %s102 = ssub.s32 %s89, %s96
      %s103 = sor.u32 %s101, %s102
      %p104 = scmp.eq.s32.totalorder %s103, 0
      %s106 = sadd.s32 %s105, 1
      %s107 = scalar_select %p104, %s105, %s106
      %p110 = pneg %p104
      %p111 = scmp.eq.s32.totalorder %s81, 3
      %p112 = por %p110, %p111
      %p113 = scmp.ne.s32.totalorder %s105, %s108
      %p114 = scmp.eq.s32.totalorder %s81, 0
      %p115 = por %p113, %p114
      %p116 = scmp.ne.s32.totalorder %s105, %s108
      %p117 = scmp.eq.s32.totalorder %s86, 3
      %p118 = por %p116, %p117
      %p119 = scmp.ne.s32.totalorder %s108, %s109
      %p120 = scmp.eq.s32.totalorder %s86, 0
      %p121 = por %p119, %p120
      %p122 = scmp.ne.s32.totalorder %s108, %s109
      %p123 = scmp.eq.s32.totalorder %s87, 3
      %p124 = por %p122, %p123
      %p126 = scmp.ne.s32.totalorder %s109, %s125
      %p127 = scmp.eq.s32.totalorder %s87, 0
      %p128 = por %p126, %p127
      %s129 = ssub.s32 %s88, %s100
      %p130 = scmp.eq.s32.totalorder %s129, 0
      %s132 = sadd.s32 %s131, 1
      %s133 = scalar_select %p130, %s131, %s132
      %p136 = pneg %p130
      %p137 = scmp.eq.s32.totalorder %s81, 3
      %p138 = por %p136, %p137
      %p139 = scmp.ne.s32.totalorder %s131, %s134
      %p140 = scmp.eq.s32.totalorder %s81, 0
      %p141 = por %p139, %p140
      %p142 = scmp.ne.s32.totalorder %s131, %s134
      %p143 = scmp.eq.s32.totalorder %s86, 3
      %p144 = por %p142, %p143
      %p145 = scmp.ne.s32.totalorder %s134, %s135
      %p146 = scmp.eq.s32.totalorder %s86, 0
      %p147 = por %p145, %p146
      %p148 = scmp.ne.s32.totalorder %s134, %s135
      %p149 = scmp.eq.s32.totalorder %s87, 3
      %p150 = por %p148, %p149
      %p152 = scmp.ne.s32.totalorder %s135, %s151
      %p153 = scmp.eq.s32.totalorder %s87, 0
      %p154 = por %p152, %p153
      %s155 = ssub.s32 %s88, %s100
      %p156 = scmp.eq.s32.totalorder %s155, 0
      %s158 = sadd.s32 %s157, 1
      %s159 = scalar_select %p156, %s157, %s158
      %p162 = pneg %p156
      %p163 = scmp.eq.s32.totalorder %s81, 3
      %p164 = por %p162, %p163
      %p165 = scmp.ne.s32.totalorder %s157, %s160
      %p166 = scmp.eq.s32.totalorder %s81, 0
      %p167 = por %p165, %p166
      %p168 = scmp.ne.s32.totalorder %s157, %s160
      %p169 = scmp.eq.s32.totalorder %s86, 3
      %p170 = por %p168, %p169
      %p171 = scmp.ne.s32.totalorder %s160, %s161
      %p172 = scmp.eq.s32.totalorder %s86, 0
      %p173 = por %p171, %p172
      %p174 = scmp.ne.s32.totalorder %s160, %s161
      %p175 = scmp.eq.s32.totalorder %s87, 3
      %p176 = por %p174, %p175
      %p178 = scmp.ne.s32.totalorder %s161, %s177
      %p179 = scmp.eq.s32.totalorder %s87, 0
      %p180 = por %p178, %p179
      %s181 = ssub.s32 %s89, %s96
      %p182 = scmp.eq.s32.totalorder %s181, 0
      %s184 = sadd.s32 %s183, 1
      %s185 = scalar_select %p182, %s183, %s184
      %p188 = pneg %p182
      %p189 = scmp.eq.s32.totalorder %s81, 3
      %p190 = por %p188, %p189
      %p191 = scmp.ne.s32.totalorder %s183, %s186
      %p192 = scmp.eq.s32.totalorder %s81, 0
      %p193 = por %p191, %p192
      %p194 = scmp.ne.s32.totalorder %s183, %s186
      %p195 = scmp.eq.s32.totalorder %s86, 3
      %p196 = por %p194, %p195
      %p197 = scmp.ne.s32.totalorder %s186, %s187
      %p198 = scmp.eq.s32.totalorder %s86, 0
      %p199 = por %p197, %p198
      %p200 = scmp.ne.s32.totalorder %s186, %s187
      %p201 = scmp.eq.s32.totalorder %s87, 3
      %p202 = por %p200, %p201
      %p204 = scmp.ne.s32.totalorder %s187, %s203
      %p205 = scmp.eq.s32.totalorder %s87, 0
      %p206 = por %p204, %p205
      %s208 = sadd.s32 %s207, 1
      %p211 = scmp.eq.s32.totalorder %s81, 3
      %p212 = scmp.ne.s32.totalorder %s207, %s209
      %p213 = scmp.eq.s32.totalorder %s81, 0
      %p214 = por %p212, %p213
      %p215 = scmp.ne.s32.totalorder %s207, %s209
      %p216 = scmp.eq.s32.totalorder %s86, 3
      %p217 = por %p215, %p216
      %p218 = scmp.ne.s32.totalorder %s209, %s210
      %p219 = scmp.eq.s32.totalorder %s86, 0
      %p220 = por %p218, %p219
      %p221 = scmp.ne.s32.totalorder %s209, %s210
      %p222 = scmp.eq.s32.totalorder %s87, 3
      %p223 = por %p221, %p222
      %p225 = scmp.ne.s32.totalorder %s210, %s224
      %p226 = scmp.eq.s32.totalorder %s87, 0
      %p227 = por %p225, %p226
      %s229 = sadd.s32 %s228, 1
      %p232 = scmp.eq.s32.totalorder %s81, 3
      %p233 = scmp.ne.s32.totalorder %s228, %s230
      %p234 = scmp.eq.s32.totalorder %s81, 0
      %p235 = por %p233, %p234
      %p236 = scmp.ne.s32.totalorder %s228, %s230
      %p237 = scmp.eq.s32.totalorder %s86, 3
      %p238 = por %p236, %p237
      %p239 = scmp.ne.s32.totalorder %s230, %s231
      %p240 = scmp.eq.s32.totalorder %s86, 0
      %p241 = por %p239, %p240
      %p242 = scmp.ne.s32.totalorder %s230, %s231
      %p243 = scmp.eq.s32.totalorder %s87, 3
      %p244 = por %p242, %p243
      %p246 = scmp.ne.s32.totalorder %s231, %s245
      %p247 = scmp.eq.s32.totalorder %s87, 0
      %p248 = por %p246, %p247
      %s250 = sadd.s32 %s249, 1
      %p253 = scmp.eq.s32.totalorder %s81, 3
      %p254 = scmp.ne.s32.totalorder %s249, %s251
      %p255 = scmp.eq.s32.totalorder %s81, 0
      %p256 = por %p254, %p255
      %p257 = scmp.ne.s32.totalorder %s249, %s251
      %p258 = scmp.eq.s32.totalorder %s86, 3
      %p259 = por %p257, %p258
      %p260 = scmp.ne.s32.totalorder %s251, %s252
      %p261 = scmp.eq.s32.totalorder %s86, 0
      %p262 = por %p260, %p261
      %p263 = scmp.ne.s32.totalorder %s251, %s252
      %p264 = scmp.eq.s32.totalorder %s87, 3
      %p265 = por %p263, %p264
      %p267 = scmp.ne.s32.totalorder %s252, %s266
      %p268 = scmp.eq.s32.totalorder %s87, 0
      %p269 = por %p267, %p268
      %s271 = sadd.s32 %s270, 1
      %p274 = scmp.eq.s32.totalorder %s81, 3
      %p275 = scmp.ne.s32.totalorder %s270, %s272
      %p276 = scmp.eq.s32.totalorder %s81, 0
      %p277 = por %p275, %p276
      %p278 = scmp.ne.s32.totalorder %s270, %s272
      %p279 = scmp.eq.s32.totalorder %s86, 3
      %p280 = por %p278, %p279
      %p281 = scmp.ne.s32.totalorder %s272, %s273
      %p282 = scmp.eq.s32.totalorder %s86, 0
      %p283 = por %p281, %p282
      %p284 = scmp.ne.s32.totalorder %s272, %s273
      %p285 = scmp.eq.s32.totalorder %s87, 3
      %p286 = por %p284, %p285
      %p288 = scmp.ne.s32.totalorder %s273, %s287
      %p289 = scmp.eq.s32.totalorder %s87, 0
      %p290 = por %p288, %p289
      %s292 = sadd.s32 %s291, 1
      %p295 = scmp.eq.s32.totalorder %s81, 3
      %p296 = scmp.ne.s32.totalorder %s291, %s293
      %p297 = scmp.eq.s32.totalorder %s81, 0
      %p298 = por %p296, %p297
      %p299 = scmp.ne.s32.totalorder %s291, %s293
      %p300 = scmp.eq.s32.totalorder %s86, 3
      %p301 = por %p299, %p300
      %p302 = scmp.ne.s32.totalorder %s293, %s294
      %p303 = scmp.eq.s32.totalorder %s86, 0
      %p304 = por %p302, %p303
      %p305 = scmp.ne.s32.totalorder %s293, %s294
      %p306 = scmp.eq.s32.totalorder %s87, 3
      %p307 = por %p305, %p306
      %p309 = scmp.ne.s32.totalorder %s294, %s308
      %p310 = scmp.eq.s32.totalorder %s87, 0
      %p311 = por %p309, %p310
      %s313 = sadd.s32 %s312, 1
      %p316 = scmp.eq.s32.totalorder %s81, 3
      %p317 = scmp.ne.s32.totalorder %s312, %s314
      %p318 = scmp.eq.s32.totalorder %s81, 0
      %p319 = por %p317, %p318
      %p320 = scmp.ne.s32.totalorder %s312, %s314
      %p321 = scmp.eq.s32.totalorder %s86, 3
      %p322 = por %p320, %p321
      %p323 = scmp.ne.s32.totalorder %s314, %s315
      %p324 = scmp.eq.s32.totalorder %s86, 0
      %p325 = por %p323, %p324
      %p326 = scmp.ne.s32.totalorder %s314, %s315
      %p327 = scmp.eq.s32.totalorder %s87, 3
      %p328 = por %p326, %p327
      %p330 = scmp.ne.s32.totalorder %s315, %s329
      %p331 = scmp.eq.s32.totalorder %s87, 0
      %p332 = por %p330, %p331
      %s334 = sadd.s32 %s333, 1
      %p337 = scmp.eq.s32.totalorder %s81, 3
      %p338 = scmp.ne.s32.totalorder %s333, %s335
      %p339 = scmp.eq.s32.totalorder %s81, 0
      %p340 = por %p338, %p339
      %p341 = scmp.ne.s32.totalorder %s333, %s335
      %p342 = scmp.eq.s32.totalorder %s86, 3
      %p343 = por %p341, %p342
      %p344 = scmp.ne.s32.totalorder %s335, %s336
      %p345 = scmp.eq.s32.totalorder %s86, 0
      %p346 = por %p344, %p345
      %p347 = scmp.ne.s32.totalorder %s335, %s336
      %p348 = scmp.eq.s32.totalorder %s87, 3
      %p349 = por %p347, %p348
      %p351 = scmp.ne.s32.totalorder %s336, %s350
      %p352 = scmp.eq.s32.totalorder %s87, 0
      %p353 = por %p351, %p352
      %s355 = sadd.s32 %s354, 1
      %p358 = scmp.eq.s32.totalorder %s81, 3
      %p359 = scmp.ne.s32.totalorder %s354, %s356
      %p360 = scmp.eq.s32.totalorder %s81, 0
      %p361 = por %p359, %p360
      %p362 = scmp.ne.s32.totalorder %s354, %s356
      %p363 = scmp.eq.s32.totalorder %s86, 3
      %p364 = por %p362, %p363
      %p365 = scmp.ne.s32.totalorder %s356, %s357
      %p366 = scmp.eq.s32.totalorder %s86, 0
      %p367 = por %p365, %p366
      %p368 = scmp.ne.s32.totalorder %s356, %s357
      %p369 = scmp.eq.s32.totalorder %s87, 3
      %p370 = por %p368, %p369
      %p372 = scmp.ne.s32.totalorder %s357, %s371
      %p373 = scmp.eq.s32.totalorder %s87, 0
      %p374 = por %p372, %p373
      %s376 = sadd.s32 %s375, 1
      %p379 = scmp.eq.s32.totalorder %s81, 3
      %p380 = scmp.ne.s32.totalorder %s375, %s377
      %p381 = scmp.eq.s32.totalorder %s81, 0
      %p382 = por %p380, %p381
      %p383 = scmp.ne.s32.totalorder %s375, %s377
      %p384 = scmp.eq.s32.totalorder %s86, 3
      %p385 = por %p383, %p384
      %p386 = scmp.ne.s32.totalorder %s377, %s378
      %p387 = scmp.eq.s32.totalorder %s86, 0
      %p388 = por %p386, %p387
      %p389 = scmp.ne.s32.totalorder %s377, %s378
      %p390 = scmp.eq.s32.totalorder %s87, 3
      %p391 = por %p389, %p390
      %p393 = scmp.ne.s32.totalorder %s378, %s392
      %p394 = scmp.eq.s32.totalorder %s87, 0
      %p395 = por %p393, %p394
      %s397 = sadd.s32 %s396, 1
      %p400 = scmp.eq.s32.totalorder %s81, 3
      %p401 = scmp.ne.s32.totalorder %s396, %s398
      %p402 = scmp.eq.s32.totalorder %s81, 0
      %p403 = por %p401, %p402
      %p404 = scmp.ne.s32.totalorder %s396, %s398
      %p405 = scmp.eq.s32.totalorder %s86, 3
      %p406 = por %p404, %p405
      %p407 = scmp.ne.s32.totalorder %s398, %s399
      %p408 = scmp.eq.s32.totalorder %s86, 0
      %p409 = por %p407, %p408
      %p410 = scmp.ne.s32.totalorder %s398, %s399
      %p411 = scmp.eq.s32.totalorder %s87, 3
      %p412 = por %p410, %p411
      %p414 = scmp.ne.s32.totalorder %s399, %s413
      %p415 = scmp.eq.s32.totalorder %s87, 0
      %p416 = por %p414, %p415
      %s418 = sadd.s32 %s417, 1
      %p421 = scmp.eq.s32.totalorder %s81, 3
      %p422 = scmp.ne.s32.totalorder %s417, %s419
      %p423 = scmp.eq.s32.totalorder %s81, 0
      %p424 = por %p422, %p423
      %p425 = scmp.ne.s32.totalorder %s417, %s419
      %p426 = scmp.eq.s32.totalorder %s86, 3
      %p427 = por %p425, %p426
      %p428 = scmp.ne.s32.totalorder %s419, %s420
      %p429 = scmp.eq.s32.totalorder %s86, 0
      %p430 = por %p428, %p429
      %p431 = scmp.ne.s32.totalorder %s419, %s420
      %p432 = scmp.eq.s32.totalorder %s87, 3
      %p433 = por %p431, %p432
      %p435 = scmp.ne.s32.totalorder %s420, %s434
      %p436 = scmp.eq.s32.totalorder %s87, 0
      %p437 = por %p435, %p436
      %s439 = sadd.s32 %s438, 1
      %p442 = scmp.eq.s32.totalorder %s81, 3
      %p443 = scmp.ne.s32.totalorder %s438, %s440
      %p444 = scmp.eq.s32.totalorder %s81, 0
      %p445 = por %p443, %p444
      %p446 = scmp.ne.s32.totalorder %s438, %s440
      %p447 = scmp.eq.s32.totalorder %s86, 3
      %p448 = por %p446, %p447
      %p449 = scmp.ne.s32.totalorder %s440, %s441
      %p450 = scmp.eq.s32.totalorder %s86, 0
      %p451 = por %p449, %p450
      %p452 = scmp.ne.s32.totalorder %s440, %s441
      %p453 = scmp.eq.s32.totalorder %s87, 3
      %p454 = por %p452, %p453
      %p456 = scmp.ne.s32.totalorder %s441, %s455
      %p457 = scmp.eq.s32.totalorder %s87, 0
      %p458 = por %p456, %p457
      %s460 = sadd.s32 %s459, 1
      %p463 = scmp.eq.s32.totalorder %s81, 3
      %p464 = scmp.ne.s32.totalorder %s459, %s461
      %p465 = scmp.eq.s32.totalorder %s81, 0
      %p466 = por %p464, %p465
      %p467 = scmp.ne.s32.totalorder %s459, %s461
      %p468 = scmp.eq.s32.totalorder %s86, 3
      %p469 = por %p467, %p468
      %p470 = scmp.ne.s32.totalorder %s461, %s462
      %p471 = scmp.eq.s32.totalorder %s86, 0
      %p472 = por %p470, %p471
      %p473 = scmp.ne.s32.totalorder %s461, %s462
      %p474 = scmp.eq.s32.totalorder %s87, 3
      %p475 = por %p473, %p474
      %p477 = scmp.ne.s32.totalorder %s462, %s476
      %p478 = scmp.eq.s32.totalorder %s87, 0
      %p479 = por %p477, %p478
      %s481 = sadd.s32 %s480, 1
      %p484 = scmp.eq.s32.totalorder %s81, 3
      %p485 = scmp.ne.s32.totalorder %s480, %s482
      %p486 = scmp.eq.s32.totalorder %s81, 0
      %p487 = por %p485, %p486
      %p488 = scmp.ne.s32.totalorder %s480, %s482
      %p489 = scmp.eq.s32.totalorder %s86, 3
      %p490 = por %p488, %p489
      %p491 = scmp.ne.s32.totalorder %s482, %s483
      %p492 = scmp.eq.s32.totalorder %s86, 0
      %p493 = por %p491, %p492
      %p494 = scmp.ne.s32.totalorder %s482, %s483
      %p495 = scmp.eq.s32.totalorder %s87, 3
      %p496 = por %p494, %p495
      %p498 = scmp.ne.s32.totalorder %s483, %s497
      %p499 = scmp.eq.s32.totalorder %s87, 0
      %p500 = por %p498, %p499
      %s502 = sadd.s32 %s501, 1
      %p505 = scmp.eq.s32.totalorder %s81, 3
      %p506 = scmp.ne.s32.totalorder %s501, %s503
      %p507 = scmp.eq.s32.totalorder %s81, 0
      %p508 = por %p506, %p507
      %p509 = scmp.ne.s32.totalorder %s501, %s503
      %p510 = scmp.eq.s32.totalorder %s86, 3
      %p511 = por %p509, %p510
      %p512 = scmp.ne.s32.totalorder %s503, %s504
      %p513 = scmp.eq.s32.totalorder %s86, 0
      %p514 = por %p512, %p513
      %p515 = scmp.ne.s32.totalorder %s503, %s504
      %p516 = scmp.eq.s32.totalorder %s87, 3
      %p517 = por %p515, %p516
      %p519 = scmp.ne.s32.totalorder %s504, %s518
      %p520 = scmp.eq.s32.totalorder %s87, 0
      %p521 = por %p519, %p520
      %s523 = sadd.s32 %s522, 1
      %p526 = scmp.eq.s32.totalorder %s81, 3
      %p527 = scmp.ne.s32.totalorder %s522, %s524
      %p528 = scmp.eq.s32.totalorder %s81, 0
      %p529 = por %p527, %p528
      %p530 = scmp.ne.s32.totalorder %s522, %s524
      %p531 = scmp.eq.s32.totalorder %s86, 3
      %p532 = por %p530, %p531
      %p533 = scmp.ne.s32.totalorder %s524, %s525
      %p534 = scmp.eq.s32.totalorder %s86, 0
      %p535 = por %p533, %p534
      %p536 = scmp.ne.s32.totalorder %s524, %s525
      %p537 = scmp.eq.s32.totalorder %s87, 3
      %p538 = por %p536, %p537
      %p540 = scmp.ne.s32.totalorder %s525, %s539
      %p541 = scmp.eq.s32.totalorder %s87, 0
      %p542 = por %p540, %p541
      %s544 = sadd.s32 %s543, 1
      %p547 = scmp.eq.s32.totalorder %s81, 3
      %p548 = scmp.ne.s32.totalorder %s543, %s545
      %p549 = scmp.eq.s32.totalorder %s81, 0
      %p550 = por %p548, %p549
      %p551 = scmp.ne.s32.totalorder %s543, %s545
      %p552 = scmp.eq.s32.totalorder %s86, 3
      %p553 = por %p551, %p552
      %p554 = scmp.ne.s32.totalorder %s545, %s546
      %p555 = scmp.eq.s32.totalorder %s86, 0
      %p556 = por %p554, %p555
      %p557 = scmp.ne.s32.totalorder %s545, %s546
      %p558 = scmp.eq.s32.totalorder %s87, 3
      %p559 = por %p557, %p558
      %p561 = scmp.ne.s32.totalorder %s546, %s560
      %p562 = scmp.eq.s32.totalorder %s87, 0
      %p563 = por %p561, %p562
      %s565 = sadd.s32 %s564, 1
      %p568 = scmp.eq.s32.totalorder %s81, 3
      %p569 = scmp.ne.s32.totalorder %s564, %s566
      %p570 = scmp.eq.s32.totalorder %s81, 0
      %p571 = por %p569, %p570
      %p572 = scmp.ne.s32.totalorder %s564, %s566
      %p573 = scmp.eq.s32.totalorder %s86, 3
      %p574 = por %p572, %p573
      %p575 = scmp.ne.s32.totalorder %s566, %s567
      %p576 = scmp.eq.s32.totalorder %s86, 0
      %p577 = por %p575, %p576
      %p578 = scmp.ne.s32.totalorder %s566, %s567
      %p579 = scmp.eq.s32.totalorder %s87, 3
      %p580 = por %p578, %p579
      %p582 = scmp.ne.s32.totalorder %s567, %s581
      %p583 = scmp.eq.s32.totalorder %s87, 0
      %p584 = por %p582, %p583
      %s586 = sadd.s32 %s585, 1
      %p589 = scmp.eq.s32.totalorder %s81, 3
      %p590 = scmp.ne.s32.totalorder %s585, %s587
      %p591 = scmp.eq.s32.totalorder %s81, 0
      %p592 = por %p590, %p591
      %p593 = scmp.ne.s32.totalorder %s585, %s587
      %p594 = scmp.eq.s32.totalorder %s86, 3
      %p595 = por %p593, %p594
      %p596 = scmp.ne.s32.totalorder %s587, %s588
      %p597 = scmp.eq.s32.totalorder %s86, 0
      %p598 = por %p596, %p597
      %p599 = scmp.ne.s32.totalorder %s587, %s588
      %p600 = scmp.eq.s32.totalorder %s87, 3
      %p601 = por %p599, %p600
      %p603 = scmp.ne.s32.totalorder %s588, %s602
      %p604 = scmp.eq.s32.totalorder %s87, 0
      %p605 = por %p603, %p604
      %s607 = sadd.s32 %s606, 1
      %p610 = scmp.eq.s32.totalorder %s81, 3
      %p611 = scmp.ne.s32.totalorder %s606, %s608
      %p612 = scmp.eq.s32.totalorder %s81, 0
      %p613 = por %p611, %p612
      %p614 = scmp.ne.s32.totalorder %s606, %s608
      %p615 = scmp.eq.s32.totalorder %s86, 3
      %p616 = por %p614, %p615
      %p617 = scmp.ne.s32.totalorder %s608, %s609
      %p618 = scmp.eq.s32.totalorder %s86, 0
      %p619 = por %p617, %p618
      %p620 = scmp.ne.s32.totalorder %s608, %s609
      %p621 = scmp.eq.s32.totalorder %s87, 3
      %p622 = por %p620, %p621
      %p624 = scmp.ne.s32.totalorder %s609, %s623
      %p625 = scmp.eq.s32.totalorder %s87, 0
      %p626 = por %p624, %p625
      %s628 = sadd.s32 %s627, 1
      %p631 = scmp.eq.s32.totalorder %s81, 3
      %p632 = scmp.ne.s32.totalorder %s627, %s629
      %p633 = scmp.eq.s32.totalorder %s81, 0
      %p634 = por %p632, %p633
      %p635 = scmp.ne.s32.totalorder %s627, %s629
      %p636 = scmp.eq.s32.totalorder %s86, 3
      %p637 = por %p635, %p636
      %p638 = scmp.ne.s32.totalorder %s629, %s630
      %p639 = scmp.eq.s32.totalorder %s86, 0
      %p640 = por %p638, %p639
      %p641 = scmp.ne.s32.totalorder %s629, %s630
      %p642 = scmp.eq.s32.totalorder %s87, 3
      %p643 = por %p641, %p642
      %p645 = scmp.ne.s32.totalorder %s630, %s644
      %p646 = scmp.eq.s32.totalorder %s87, 0
      %p647 = por %p645, %p646
      %s649 = sadd.s32 %s648, 1
      %p652 = scmp.eq.s32.totalorder %s81, 3
      %p653 = scmp.ne.s32.totalorder %s648, %s650
      %p654 = scmp.eq.s32.totalorder %s81, 0
      %p655 = por %p653, %p654
      %p656 = scmp.ne.s32.totalorder %s648, %s650
      %p657 = scmp.eq.s32.totalorder %s86, 3
      %p658 = por %p656, %p657
      %p659 = scmp.ne.s32.totalorder %s650, %s651
      %p660 = scmp.eq.s32.totalorder %s86, 0
      %p661 = por %p659, %p660
      %p662 = scmp.ne.s32.totalorder %s650, %s651
      %p663 = scmp.eq.s32.totalorder %s87, 3
      %p664 = por %p662, %p663
      %p666 = scmp.ne.s32.totalorder %s651, %s665
      %p667 = scmp.eq.s32.totalorder %s87, 0
      %p668 = por %p666, %p667
      %s670 = sadd.s32 %s669, 1
      %p673 = scmp.eq.s32.totalorder %s81, 3
      %p674 = scmp.ne.s32.totalorder %s669, %s671
      %p675 = scmp.eq.s32.totalorder %s81, 0
      %p676 = por %p674, %p675
      %p677 = scmp.ne.s32.totalorder %s669, %s671
      %p678 = scmp.eq.s32.totalorder %s86, 3
      %p679 = por %p677, %p678
      %p680 = scmp.ne.s32.totalorder %s671, %s672
      %p681 = scmp.eq.s32.totalorder %s86, 0
      %p682 = por %p680, %p681
      %p683 = scmp.ne.s32.totalorder %s671, %s672
      %p684 = scmp.eq.s32.totalorder %s87, 3
      %p685 = por %p683, %p684
      %p687 = scmp.ne.s32.totalorder %s672, %s686
      %p688 = scmp.eq.s32.totalorder %s87, 0
      %p689 = por %p687, %p688
      %s691 = sadd.s32 %s690, 1
      %p694 = scmp.eq.s32.totalorder %s81, 3
      %p695 = scmp.ne.s32.totalorder %s690, %s692
      %p696 = scmp.eq.s32.totalorder %s81, 0
      %p697 = por %p695, %p696
      %p698 = scmp.ne.s32.totalorder %s690, %s692
      %p699 = scmp.eq.s32.totalorder %s86, 3
      %p700 = por %p698, %p699
      %p701 = scmp.ne.s32.totalorder %s692, %s693
      %p702 = scmp.eq.s32.totalorder %s86, 0
      %p703 = por %p701, %p702
      %p704 = scmp.ne.s32.totalorder %s692, %s693
      %p705 = scmp.eq.s32.totalorder %s87, 3
      %p706 = por %p704, %p705
      %p708 = scmp.ne.s32.totalorder %s693, %s707
      %p709 = scmp.eq.s32.totalorder %s87, 0
      %p710 = por %p708, %p709
      %s712 = sadd.s32 %s711, 1
      %p715 = scmp.eq.s32.totalorder %s81, 3
      %p716 = scmp.ne.s32.totalorder %s711, %s713
      %p717 = scmp.eq.s32.totalorder %s81, 0
      %p718 = por %p716, %p717
      %p719 = scmp.ne.s32.totalorder %s711, %s713
      %p720 = scmp.eq.s32.totalorder %s86, 3
      %p721 = por %p719, %p720
      %p722 = scmp.ne.s32.totalorder %s713, %s714
      %p723 = scmp.eq.s32.totalorder %s86, 0
      %p724 = por %p722, %p723
      %p725 = scmp.ne.s32.totalorder %s713, %s714
      %p726 = scmp.eq.s32.totalorder %s87, 3
      %p727 = por %p725, %p726
      %p729 = scmp.ne.s32.totalorder %s714, %s728
      %p730 = scmp.eq.s32.totalorder %s87, 0
      %p731 = por %p729, %p730
      %s733 = sadd.s32 %s732, 1
      %p736 = scmp.eq.s32.totalorder %s81, 3
      %p737 = scmp.ne.s32.totalorder %s732, %s734
      %p738 = scmp.eq.s32.totalorder %s81, 0
      %p739 = por %p737, %p738
      %p740 = scmp.ne.s32.totalorder %s732, %s734
      %p741 = scmp.eq.s32.totalorder %s86, 3
      %p742 = por %p740, %p741
      %p743 = scmp.ne.s32.totalorder %s734, %s735
      %p744 = scmp.eq.s32.totalorder %s86, 0
      %p745 = por %p743, %p744
      %p746 = scmp.ne.s32.totalorder %s734, %s735
      %p747 = scmp.eq.s32.totalorder %s87, 3
      %p748 = por %p746, %p747
      %p750 = scmp.ne.s32.totalorder %s735, %s749
      %p751 = scmp.eq.s32.totalorder %s87, 0
      %p752 = por %p750, %p751
      %s753 = ssub.s32 %s88, %s100
      %s754 = ssub.s32 %s89, %s96
      %s755 = sor.u32 %s753, %s754
      %p756 = scmp.eq.s32.totalorder %s755, 0
      %s758 = sadd.s32 %s757, 1
      %s759 = scalar_select %p756, %s757, %s758
      %p762 = pneg %p756
      %p763 = scmp.eq.s32.totalorder %s81, 3
      %p764 = por %p762, %p763
      %p765 = scmp.ne.s32.totalorder %s757, %s760
      %p766 = scmp.eq.s32.totalorder %s81, 0
      %p767 = por %p765, %p766
      %p768 = scmp.ne.s32.totalorder %s757, %s760
      %p769 = scmp.eq.s32.totalorder %s86, 3
      %p770 = por %p768, %p769
      %p771 = scmp.ne.s32.totalorder %s760, %s761
      %p772 = scmp.eq.s32.totalorder %s86, 0
      %p773 = por %p771, %p772
      %p774 = scmp.ne.s32.totalorder %s760, %s761
      %p775 = scmp.eq.s32.totalorder %s87, 3
      %p776 = por %p774, %p775
      %p778 = scmp.ne.s32.totalorder %s761, %s777
      %p779 = scmp.eq.s32.totalorder %s87, 0
      %p780 = por %p778, %p779
      %p781 = scmp.le.s32.totalorder 1, %s81
      %p782 = scmp.lt.s32.totalorder %s81, 5
      %p783 = pnand %p781, %p782
      %p784 = pneg %p783
      // Predicated region
      $region9: #{tpu_custom_call.1} parent=5 // pred_check
        _
      $region10: #{tpu_custom_call.1} parent=5 // pred_check_branch
        %786 = sbr.rel (%p783) target = $region12
      $region11: #{tpu_custom_call.1} parent=5 // pred_region
        %s787 = ssub.s32 %s81, 1
        // Predicated region
        $region13: #{tpu_custom_call.1} parent=11 // pred_check
          %p788 = pneg %p220
        $region14: #{tpu_custom_call.1} parent=11 // pred_check_branch
          %790 = sbr.rel (%p788) target = $region16
        $region15: #{tpu_custom_call.1} parent=11 // pred_region
          %s792 = ssub.s32 256, 256
          %793 = vsyncadd [#allocation6], %s792
          %s794 = sshll.u32 [#allocation5], 4
          %s795 = int_to_ptr.vmem [resolvable:$true] %s794
          %800 = dma.hbm_to_vmem [thread:$0]  %s9, 256, %s795, [#allocation6], 64, 64, 4
        $region16: #{tpu_custom_call.1} parent=11 // pred_fallthru
          _
        // Predicated region
        $region17: #{tpu_custom_call.1} parent=11 // pred_check
          %p801 = pneg %p241
        $region18: #{tpu_custom_call.1} parent=11 // pred_check_branch
          %803 = sbr.rel (%p801) target = $region20
        $region19: #{tpu_custom_call.1} parent=11 // pred_region
          %s805 = ssub.s32 16, 16
          %806 = vsyncadd [#allocation6], %s805
          %s808 = sshll.u32 [#allocation7], 4
          %s809 = int_to_ptr.vmem [resolvable:$true] %s808
          %811 = dma.hbm_to_vmem [thread:$0]  %s11, 16, %s809, [#allocation6]
        $region20: #{tpu_custom_call.1} parent=11 // pred_fallthru
          _
        // Predicated region
        $region21: #{tpu_custom_call.1} parent=11 // pred_check
          %p812 = pneg %p262
        $region22: #{tpu_custom_call.1} parent=11 // pred_check_branch
          %814 = sbr.rel (%p812) target = $region24
        $region23: #{tpu_custom_call.1} parent=11 // pred_region
          %s816 = ssub.s32 256, 256
          %817 = vsyncadd [#allocation9], %s816
          %s818 = sshll.u32 [#allocation8], 4
          %s819 = int_to_ptr.vmem [resolvable:$true] %s818
          %824 = dma.hbm_to_vmem [thread:$0]  %s13, 256, %s819, [#allocation9], 64, 64, 4
        $region24: #{tpu_custom_call.1} parent=11 // pred_fallthru
          _
        // Predicated region
        $region25: #{tpu_custom_call.1} parent=11 // pred_check
          %p825 = pneg %p283
        $region26: #{tpu_custom_call.1} parent=11 // pred_check_branch
          %827 = sbr.rel (%p825) target = $region28
        $region27: #{tpu_custom_call.1} parent=11 // pred_region
          %s829 = ssub.s32 16, 16
          %830 = vsyncadd [#allocation9], %s829
          %s832 = sshll.u32 [#allocation10], 4
          %s833 = int_to_ptr.vmem [resolvable:$true] %s832
          %835 = dma.hbm_to_vmem [thread:$0]  %s15, 16, %s833, [#allocation9]
        $region28: #{tpu_custom_call.1} parent=11 // pred_fallthru
          _
        // Predicated region
        $region29: #{tpu_custom_call.1} parent=11 // pred_check
          %p836 = pneg %p304
        $region30: #{tpu_custom_call.1} parent=11 // pred_check_branch
          %838 = sbr.rel (%p836) target = $region32
        $region31: #{tpu_custom_call.1} parent=11 // pred_region
          %s840 = ssub.s32 256, 256
          %841 = vsyncadd [#allocation12], %s840
          %s842 = sshll.u32 [#allocation11], 4
          %s843 = int_to_ptr.vmem [resolvable:$true] %s842
          %848 = dma.hbm_to_vmem [thread:$0]  %s17, 256, %s843, [#allocation12], 64, 64, 4
        $region32: #{tpu_custom_call.1} parent=11 // pred_fallthru
          _
        // Predicated region
        $region33: #{tpu_custom_call.1} parent=11 // pred_check
          %p849 = pneg %p325
        $region34: #{tpu_custom_call.1} parent=11 // pred_check_branch
          %851 = sbr.rel (%p849) target = $region36
        $region35: #{tpu_custom_call.1} parent=11 // pred_region
          %s853 = ssub.s32 16, 16
          %854 = vsyncadd [#allocation12], %s853
          %s856 = sshll.u32 [#allocation13], 4
          %s857 = int_to_ptr.vmem [resolvable:$true] %s856
          %859 = dma.hbm_to_vmem [thread:$0]  %s19, 16, %s857, [#allocation12]
        $region36: #{tpu_custom_call.1} parent=11 // pred_fallthru
          _
        // Predicated region
        $region37: #{tpu_custom_call.1} parent=11 // pred_check
          %p860 = pneg %p346
        $region38: #{tpu_custom_call.1} parent=11 // pred_check_branch
          %862 = sbr.rel (%p860) target = $region40
        $region39: #{tpu_custom_call.1} parent=11 // pred_region
          _
        $region40: #{tpu_custom_call.1} parent=11 // pred_fallthru
          _
        // Predicated region
        $region41: #{tpu_custom_call.1} parent=11 // pred_check
          %p863 = pneg %p367
        $region42: #{tpu_custom_call.1} parent=11 // pred_check_branch
          %865 = sbr.rel (%p863) target = $region44
        $region43: #{tpu_custom_call.1} parent=11 // pred_region
          %s867 = ssub.s32 16, 16
          %868 = vsyncadd [#allocation15], %s867
          %s870 = sshll.u32 [#allocation14], 4
          %s871 = int_to_ptr.vmem [resolvable:$true] %s870
          %873 = dma.hbm_to_vmem [thread:$0]  %s23, 16, %s871, [#allocation15]
        $region44: #{tpu_custom_call.1} parent=11 // pred_fallthru
          _
        // Predicated region
        $region45: #{tpu_custom_call.1} parent=11 // pred_check
          %p874 = pneg %p388
        $region46: #{tpu_custom_call.1} parent=11 // pred_check_branch
          %876 = sbr.rel (%p874) target = $region48
        $region47: #{tpu_custom_call.1} parent=11 // pred_region
          %s878 = ssub.s32 256, 256
          %879 = vsyncadd [#allocation15], %s878
          %s880 = sshll.u32 [#allocation16], 4
          %s881 = int_to_ptr.vmem [resolvable:$true] %s880
          %886 = dma.hbm_to_vmem [thread:$0]  %s25, 256, %s881, [#allocation15], 64, 64, 4
        $region48: #{tpu_custom_call.1} parent=11 // pred_fallthru
          _
        // Predicated region
        $region49: #{tpu_custom_call.1} parent=11 // pred_check
          %p887 = pneg %p409
        $region50: #{tpu_custom_call.1} parent=11 // pred_check_branch
          %889 = sbr.rel (%p887) target = $region52
        $region51: #{tpu_custom_call.1} parent=11 // pred_region
          %s891 = ssub.s32 16, 16
          %892 = vsyncadd [#allocation18], %s891
          %s894 = sshll.u32 [#allocation17], 4
          %s895 = int_to_ptr.vmem [resolvable:$true] %s894
          %897 = dma.hbm_to_vmem [thread:$0]  %s27, 16, %s895, [#allocation18]
        $region52: #{tpu_custom_call.1} parent=11 // pred_fallthru
          _
        // Predicated region
        $region53: #{tpu_custom_call.1} parent=11 // pred_check
          %p898 = pneg %p430
        $region54: #{tpu_custom_call.1} parent=11 // pred_check_branch
          %900 = sbr.rel (%p898) target = $region56
        $region55: #{tpu_custom_call.1} parent=11 // pred_region
          %s902 = ssub.s32 256, 256
          %903 = vsyncadd [#allocation18], %s902
          %s904 = sshll.u32 [#allocation19], 4
          %s905 = int_to_ptr.vmem [resolvable:$true] %s904
          %910 = dma.hbm_to_vmem [thread:$0]  %s29, 256, %s905, [#allocation18], 64, 64, 4
        $region56: #{tpu_custom_call.1} parent=11 // pred_fallthru
          _
        // Predicated region
        $region57: #{tpu_custom_call.1} parent=11 // pred_check
          %p911 = pneg %p451
        $region58: #{tpu_custom_call.1} parent=11 // pred_check_branch
          %913 = sbr.rel (%p911) target = $region60
        $region59: #{tpu_custom_call.1} parent=11 // pred_region
          %s915 = ssub.s32 16, 16
          %916 = vsyncadd [#allocation21], %s915
          %s918 = sshll.u32 [#allocation20], 4
          %s919 = int_to_ptr.vmem [resolvable:$true] %s918
          %921 = dma.hbm_to_vmem [thread:$0]  %s31, 16, %s919, [#allocation21]
        $region60: #{tpu_custom_call.1} parent=11 // pred_fallthru
          _
        // Predicated region
        $region61: #{tpu_custom_call.1} parent=11 // pred_check
          %p922 = pneg %p472
        $region62: #{tpu_custom_call.1} parent=11 // pred_check_branch
          %924 = sbr.rel (%p922) target = $region64
        $region63: #{tpu_custom_call.1} parent=11 // pred_region
          %s926 = ssub.s32 256, 256
          %927 = vsyncadd [#allocation21], %s926
          %s928 = sshll.u32 [#allocation22], 4
          %s929 = int_to_ptr.vmem [resolvable:$true] %s928
          %934 = dma.hbm_to_vmem [thread:$0]  %s33, 256, %s929, [#allocation21], 64, 64, 4
        $region64: #{tpu_custom_call.1} parent=11 // pred_fallthru
          _
        // Predicated region
        $region65: #{tpu_custom_call.1} parent=11 // pred_check
          %p935 = pneg %p493
        $region66: #{tpu_custom_call.1} parent=11 // pred_check_branch
          %937 = sbr.rel (%p935) target = $region68
        $region67: #{tpu_custom_call.1} parent=11 // pred_region
          %s939 = ssub.s32 16, 16
          %940 = vsyncadd [#allocation24], %s939
          %s942 = sshll.u32 [#allocation23], 4
          %s943 = int_to_ptr.vmem [resolvable:$true] %s942
          %945 = dma.hbm_to_vmem [thread:$0]  %s35, 16, %s943, [#allocation24]
        $region68: #{tpu_custom_call.1} parent=11 // pred_fallthru
          _
        // Predicated region
        $region69: #{tpu_custom_call.1} parent=11 // pred_check
          %p946 = pneg %p514
        $region70: #{tpu_custom_call.1} parent=11 // pred_check_branch
          %948 = sbr.rel (%p946) target = $region72
        $region71: #{tpu_custom_call.1} parent=11 // pred_region
          %s950 = ssub.s32 256, 256
          %951 = vsyncadd [#allocation24], %s950
          %s952 = sshll.u32 [#allocation25], 4
          %s953 = int_to_ptr.vmem [resolvable:$true] %s952
          %958 = dma.hbm_to_vmem [thread:$0]  %s37, 256, %s953, [#allocation24], 64, 64, 4
        $region72: #{tpu_custom_call.1} parent=11 // pred_fallthru
          _
        // Predicated region
        $region73: #{tpu_custom_call.1} parent=11 // pred_check
          %p959 = pneg %p535
        $region74: #{tpu_custom_call.1} parent=11 // pred_check_branch
          %961 = sbr.rel (%p959) target = $region76
        $region75: #{tpu_custom_call.1} parent=11 // pred_region
          _
        $region76: #{tpu_custom_call.1} parent=11 // pred_fallthru
          _
        // Predicated region
        $region77: #{tpu_custom_call.1} parent=11 // pred_check
          %p962 = pneg %p556
        $region78: #{tpu_custom_call.1} parent=11 // pred_check_branch
          %964 = sbr.rel (%p962) target = $region80
        $region79: #{tpu_custom_call.1} parent=11 // pred_region
          _
        $region80: #{tpu_custom_call.1} parent=11 // pred_fallthru
          _
        // Predicated region
        $region81: #{tpu_custom_call.1} parent=11 // pred_check
          %p965 = pneg %p577
        $region82: #{tpu_custom_call.1} parent=11 // pred_check_branch
          %967 = sbr.rel (%p965) target = $region84
        $region83: #{tpu_custom_call.1} parent=11 // pred_region
          _
        $region84: #{tpu_custom_call.1} parent=11 // pred_fallthru
          _
        // Predicated region
        $region85: #{tpu_custom_call.1} parent=11 // pred_check
          %p968 = pneg %p598
        $region86: #{tpu_custom_call.1} parent=11 // pred_check_branch
          %970 = sbr.rel (%p968) target = $region88
        $region87: #{tpu_custom_call.1} parent=11 // pred_region
          _
        $region88: #{tpu_custom_call.1} parent=11 // pred_fallthru
          _
        // Predicated region
        $region89: #{tpu_custom_call.1} parent=11 // pred_check
          %p971 = pneg %p619
        $region90: #{tpu_custom_call.1} parent=11 // pred_check_branch
          %973 = sbr.rel (%p971) target = $region92
        $region91: #{tpu_custom_call.1} parent=11 // pred_region
          _
        $region92: #{tpu_custom_call.1} parent=11 // pred_fallthru
          _
        // Predicated region
        $region93: #{tpu_custom_call.1} parent=11 // pred_check
          %p974 = pneg %p640
        $region94: #{tpu_custom_call.1} parent=11 // pred_check_branch
          %976 = sbr.rel (%p974) target = $region96
        $region95: #{tpu_custom_call.1} parent=11 // pred_region
          _
        $region96: #{tpu_custom_call.1} parent=11 // pred_fallthru
          _
        // Predicated region
        $region97: #{tpu_custom_call.1} parent=11 // pred_check
          %p977 = pneg %p661
        $region98: #{tpu_custom_call.1} parent=11 // pred_check_branch
          %979 = sbr.rel (%p977) target = $region100
        $region99: #{tpu_custom_call.1} parent=11 // pred_region
          _
        $region100: #{tpu_custom_call.1} parent=11 // pred_fallthru
          _
        // Predicated region
        $region101: #{tpu_custom_call.1} parent=11 // pred_check
          %p980 = pneg %p682
        $region102: #{tpu_custom_call.1} parent=11 // pred_check_branch
          %982 = sbr.rel (%p980) target = $region104
        $region103: #{tpu_custom_call.1} parent=11 // pred_region
          %s984 = ssub.s32 256, 256
          %985 = vsyncadd [#allocation27], %s984
          %s986 = sshll.u32 [#allocation26], 4
          %s987 = int_to_ptr.vmem [resolvable:$true] %s986
          %992 = dma.hbm_to_vmem [thread:$0]  %s53, 256, %s987, [#allocation27], 64, 64, 4
        $region104: #{tpu_custom_call.1} parent=11 // pred_fallthru
          _
        // Predicated region
        $region105: #{tpu_custom_call.1} parent=11 // pred_check
          %p993 = pneg %p703
        $region106: #{tpu_custom_call.1} parent=11 // pred_check_branch
          %995 = sbr.rel (%p993) target = $region108
        $region107: #{tpu_custom_call.1} parent=11 // pred_region
          _
        $region108: #{tpu_custom_call.1} parent=11 // pred_fallthru
          _
        // Predicated region
        $region109: #{tpu_custom_call.1} parent=11 // pred_check
          %p996 = pneg %p724
        $region110: #{tpu_custom_call.1} parent=11 // pred_check_branch
          %998 = sbr.rel (%p996) target = $region112
        $region111: #{tpu_custom_call.1} parent=11 // pred_region
          _
        $region112: #{tpu_custom_call.1} parent=11 // pred_fallthru
          _
        // Predicated region
        $region113: #{tpu_custom_call.1} parent=11 // pred_check
          %p999 = pneg %p745
        $region114: #{tpu_custom_call.1} parent=11 // pred_check_branch
          %1001 = sbr.rel (%p999) target = $region116
        $region115: #{tpu_custom_call.1} parent=11 // pred_region
          _
        $region116: #{tpu_custom_call.1} parent=11 // pred_fallthru
          _
      $region12: #{tpu_custom_call.1} parent=5 // pred_fallthru
        _
      %p1002 = scmp.lt.s32.totalorder %s81, 4
      // Predicated region
      $region117: #{tpu_custom_call.1} parent=5 // pred_check
        %p1003 = pneg %p1002
      $region118: #{tpu_custom_call.1} parent=5 // pred_check_branch
        %1005 = sbr.rel (%p1003) target = $region120
      $region119: #{tpu_custom_call.1} parent=5 // pred_region
        // Predicated region
        $region121: #{tpu_custom_call.1} parent=119 // pred_check
          %p1006 = pneg %p115
        $region122: #{tpu_custom_call.1} parent=119 // pred_check_branch
          %1008 = sbr.rel (%p1006) target = $region124
        $region123: #{tpu_custom_call.1} parent=119 // pred_region
          %p1009 = scmp.lt.s32.totalorder %s88, 1
          %s1010 = scalar_select %p1009, %s88, 1
          %p1011 = scmp.lt.s32.totalorder %s89, 1
          %s1012 = scalar_select %p1011, %s89, 1
          %s1013 = smul.addr %s1010, 2
          %s1014 = sadd.s32 %s1012, %s1013
          %s1015 = smul.addr %s1014, 8
          %s1016 = scalar_lea.vmem %s1, %s1015
        $region124: #{tpu_custom_call.1} parent=119 // pred_fallthru
          _
        // Predicated region
        $region125: #{tpu_custom_call.1} parent=119 // pred_check
          %p1017 = pneg %p141
        $region126: #{tpu_custom_call.1} parent=119 // pred_check_branch
          %1019 = sbr.rel (%p1017) target = $region128
        $region127: #{tpu_custom_call.1} parent=119 // pred_region
          %p1020 = scmp.lt.s32.totalorder %s88, 1
          %s1021 = scalar_select %p1020, %s88, 1
          %s1022 = smul.addr %s1021, 2
          %s1023 = smul.addr %s1022, 8
          %s1024 = scalar_lea.vmem %s3, %s1023
        $region128: #{tpu_custom_call.1} parent=119 // pred_fallthru
          _
        // Predicated region
        $region129: #{tpu_custom_call.1} parent=119 // pred_check
          %p1025 = pneg %p167
        $region130: #{tpu_custom_call.1} parent=119 // pred_check_branch
          %1027 = sbr.rel (%p1025) target = $region132
        $region131: #{tpu_custom_call.1} parent=119 // pred_region
          %s1028 = sand.u32 %s157, 1
          %s1029 = scalar_lea.sflag [#allocation3], %s1028
          %s1030 = sand.u32 %s157, 1
          %s1031 = smul.addr %s1030, 16
          %s1032 = scalar_lea.vmem [#allocation2], %s1031
          %s1034 = ssub.s32 256, 256
          %1035 = vsyncadd %s1029, %s1034
          %s1036 = smul.addr %s88, 2
          %s1037 = smul.addr %s1036, 128
          %s1038 = scalar_lea.hbm %s5, %s1037
          %s1039 = sshll.u32 %s1032, 4
          %s1040 = int_to_ptr.vmem [resolvable:$true] %s1039
          %1045 = dma.hbm_to_vmem [thread:$0]  %s1038, 256, %s1040, %s1029, 128, 128, 8
        $region132: #{tpu_custom_call.1} parent=119 // pred_fallthru
          _
        // Predicated region
        $region133: #{tpu_custom_call.1} parent=119 // pred_check
          %p1046 = pneg %p193
        $region134: #{tpu_custom_call.1} parent=119 // pred_check_branch
          %1048 = sbr.rel (%p1046) target = $region136
        $region135: #{tpu_custom_call.1} parent=119 // pred_region
          %p1049 = scmp.lt.s32.totalorder %s89, 1
          %s1050 = scalar_select %p1049, %s89, 1
          %s1051 = smul.addr %s1050, 8
          %s1052 = scalar_lea.vmem %s7, %s1051
        $region136: #{tpu_custom_call.1} parent=119 // pred_fallthru
          _
      $region120: #{tpu_custom_call.1} parent=5 // pred_fallthru
        _
      %p1053 = scmp.le.s32.totalorder 1, %s81
      %p1054 = scmp.lt.s32.totalorder %s81, 5
      %p1055 = pnand %p1053, %p1054
      %p1056 = pneg %p1055
      // Predicated region
      $region137: #{tpu_custom_call.1} parent=5 // pred_check
        _
      $region138: #{tpu_custom_call.1} parent=5 // pred_check_branch
        %1058 = sbr.rel (%p1055) target = $region140
      $region139: #{tpu_custom_call.1} parent=5 // pred_region
        %s1059 = ssub.s32 %s81, 1
        %s1060 = sand.u32 %s160, 1
        %s1061 = scalar_lea.sflag [#allocation3], %s1060
        %s1062 = sand.u32 %s160, 1
        %s1063 = smul.addr %s1062, 16
        %s1064 = scalar_lea.vmem [#allocation2], %s1063
        // Predicated region
        $region141: #{tpu_custom_call.1} parent=139 // pred_check
          %p1065 = pneg %p173
        $region142: #{tpu_custom_call.1} parent=139 // pred_check_branch
          %1067 = sbr.rel (%p1065) target = $region144
        $region143: #{tpu_custom_call.1} parent=139 // pred_region
          %1068 = dma.done %s1061, 256
        $region144: #{tpu_custom_call.1} parent=139 // pred_fallthru
          _
        // Predicated region
        $region145: #{tpu_custom_call.1} parent=139 // pred_check
          %p1069 = pneg %p220
        $region146: #{tpu_custom_call.1} parent=139 // pred_check_branch
          %1071 = sbr.rel (%p1069) target = $region148
        $region147: #{tpu_custom_call.1} parent=139 // pred_region
          %1072 = dma.done [#allocation6], 256
        $region148: #{tpu_custom_call.1} parent=139 // pred_fallthru
          _
        // Predicated region
        $region149: #{tpu_custom_call.1} parent=139 // pred_check
          %p1073 = pneg %p241
        $region150: #{tpu_custom_call.1} parent=139 // pred_check_branch
          %1075 = sbr.rel (%p1073) target = $region152
        $region151: #{tpu_custom_call.1} parent=139 // pred_region
          %1076 = dma.done [#allocation6], 16
        $region152: #{tpu_custom_call.1} parent=139 // pred_fallthru
          _
        // Predicated region
        $region153: #{tpu_custom_call.1} parent=139 // pred_check
          %p1077 = pneg %p262
        $region154: #{tpu_custom_call.1} parent=139 // pred_check_branch
          %1079 = sbr.rel (%p1077) target = $region156
        $region155: #{tpu_custom_call.1} parent=139 // pred_region
          %1080 = dma.done [#allocation9], 256
        $region156: #{tpu_custom_call.1} parent=139 // pred_fallthru
          _
        // Predicated region
        $region157: #{tpu_custom_call.1} parent=139 // pred_check
          %p1081 = pneg %p283
        $region158: #{tpu_custom_call.1} parent=139 // pred_check_branch
          %1083 = sbr.rel (%p1081) target = $region160
        $region159: #{tpu_custom_call.1} parent=139 // pred_region
          %1084 = dma.done [#allocation9], 16
        $region160: #{tpu_custom_call.1} parent=139 // pred_fallthru
          _
        // Predicated region
        $region161: #{tpu_custom_call.1} parent=139 // pred_check
          %p1085 = pneg %p304
        $region162: #{tpu_custom_call.1} parent=139 // pred_check_branch
          %1087 = sbr.rel (%p1085) target = $region164
        $region163: #{tpu_custom_call.1} parent=139 // pred_region
          %1088 = dma.done [#allocation12], 256
        $region164: #{tpu_custom_call.1} parent=139 // pred_fallthru
          _
        // Predicated region
        $region165: #{tpu_custom_call.1} parent=139 // pred_check
          %p1089 = pneg %p325
        $region166: #{tpu_custom_call.1} parent=139 // pred_check_branch
          %1091 = sbr.rel (%p1089) target = $region168
        $region167: #{tpu_custom_call.1} parent=139 // pred_region
          %1092 = dma.done [#allocation12], 16
        $region168: #{tpu_custom_call.1} parent=139 // pred_fallthru
          _
        // Predicated region
        $region169: #{tpu_custom_call.1} parent=139 // pred_check
          %p1093 = pneg %p367
        $region170: #{tpu_custom_call.1} parent=139 // pred_check_branch
          %1095 = sbr.rel (%p1093) target = $region172
        $region171: #{tpu_custom_call.1} parent=139 // pred_region
          %1096 = dma.done [#allocation15], 16
        $region172: #{tpu_custom_call.1} parent=139 // pred_fallthru
          _
        // Predicated region
        $region173: #{tpu_custom_call.1} parent=139 // pred_check
          %p1097 = pneg %p388
        $region174: #{tpu_custom_call.1} parent=139 // pred_check_branch
          %1099 = sbr.rel (%p1097) target = $region176
        $region175: #{tpu_custom_call.1} parent=139 // pred_region
          %1100 = dma.done [#allocation15], 256
        $region176: #{tpu_custom_call.1} parent=139 // pred_fallthru
          _
        // Predicated region
        $region177: #{tpu_custom_call.1} parent=139 // pred_check
          %p1101 = pneg %p409
        $region178: #{tpu_custom_call.1} parent=139 // pred_check_branch
          %1103 = sbr.rel (%p1101) target = $region180
        $region179: #{tpu_custom_call.1} parent=139 // pred_region
          %1104 = dma.done [#allocation18], 16
        $region180: #{tpu_custom_call.1} parent=139 // pred_fallthru
          _
        // Predicated region
        $region181: #{tpu_custom_call.1} parent=139 // pred_check
          %p1105 = pneg %p430
        $region182: #{tpu_custom_call.1} parent=139 // pred_check_branch
          %1107 = sbr.rel (%p1105) target = $region184
        $region183: #{tpu_custom_call.1} parent=139 // pred_region
          %1108 = dma.done [#allocation18], 256
        $region184: #{tpu_custom_call.1} parent=139 // pred_fallthru
          _
        // Predicated region
        $region185: #{tpu_custom_call.1} parent=139 // pred_check
          %p1109 = pneg %p451
        $region186: #{tpu_custom_call.1} parent=139 // pred_check_branch
          %1111 = sbr.rel (%p1109) target = $region188
        $region187: #{tpu_custom_call.1} parent=139 // pred_region
          %1112 = dma.done [#allocation21], 16
        $region188: #{tpu_custom_call.1} parent=139 // pred_fallthru
          _
        // Predicated region
        $region189: #{tpu_custom_call.1} parent=139 // pred_check
          %p1113 = pneg %p472
        $region190: #{tpu_custom_call.1} parent=139 // pred_check_branch
          %1115 = sbr.rel (%p1113) target = $region192
        $region191: #{tpu_custom_call.1} parent=139 // pred_region
          %1116 = dma.done [#allocation21], 256
        $region192: #{tpu_custom_call.1} parent=139 // pred_fallthru
          _
        // Predicated region
        $region193: #{tpu_custom_call.1} parent=139 // pred_check
          %p1117 = pneg %p493
        $region194: #{tpu_custom_call.1} parent=139 // pred_check_branch
          %1119 = sbr.rel (%p1117) target = $region196
        $region195: #{tpu_custom_call.1} parent=139 // pred_region
          %1120 = dma.done [#allocation24], 16
        $region196: #{tpu_custom_call.1} parent=139 // pred_fallthru
          _
        // Predicated region
        $region197: #{tpu_custom_call.1} parent=139 // pred_check
          %p1121 = pneg %p514
        $region198: #{tpu_custom_call.1} parent=139 // pred_check_branch
          %1123 = sbr.rel (%p1121) target = $region200
        $region199: #{tpu_custom_call.1} parent=139 // pred_region
          %1124 = dma.done [#allocation24], 256
        $region200: #{tpu_custom_call.1} parent=139 // pred_fallthru
          _
        // Predicated region
        $region201: #{tpu_custom_call.1} parent=139 // pred_check
          %p1125 = pneg %p682
        $region202: #{tpu_custom_call.1} parent=139 // pred_check_branch
          %1127 = sbr.rel (%p1125) target = $region204
        $region203: #{tpu_custom_call.1} parent=139 // pred_region
          %1128 = dma.done [#allocation27], 256
        $region204: #{tpu_custom_call.1} parent=139 // pred_fallthru
          _
        %p1129 = scmp.lt.s32.totalorder %s90, 1
        %s1130 = scalar_select %p1129, %s90, 1
        %p1131 = scmp.lt.s32.totalorder %s91, 1
        %s1132 = scalar_select %p1131, %s91, 1
        %s1133 = smul.addr %s1130, 2
        %s1134 = sadd.s32 %s1132, %s1133
        %s1135 = smul.addr %s1134, 8
        %s1136 = scalar_lea.vmem %s1, %s1135
        %p1137 = pneg %p121
        %p1138 = pneg %p118
        %p1139 = scmp.lt.s32.totalorder %s90, 1
        %s1140 = scalar_select %p1139, %s90, 1
        %s1141 = smul.addr %s1140, 2
        %s1142 = smul.addr %s1141, 8
        %s1143 = scalar_lea.vmem %s3, %s1142
        %p1144 = pneg %p147
        %p1145 = pneg %p144
        %s1146 = sand.u32 %s160, 1
        %s1147 = scalar_lea.sflag [#allocation3], %s1146
        %s1148 = sand.u32 %s160, 1
        %s1149 = smul.addr %s1148, 16
        %s1150 = scalar_lea.vmem [#allocation2], %s1149
        %p1151 = pneg %p173
        %p1152 = pneg %p170
        %p1153 = scmp.lt.s32.totalorder %s91, 1
        %s1154 = scalar_select %p1153, %s91, 1
        %s1155 = smul.addr %s1154, 8
        %s1156 = scalar_lea.vmem %s7, %s1155
        %p1157 = pneg %p199
        %p1158 = pneg %p196
        %p1159 = pneg %p220
        %p1160 = pneg %p217
        %p1161 = pneg %p241
        %p1162 = pneg %p238
        %p1163 = pneg %p262
        %p1164 = pneg %p259
        %p1165 = pneg %p283
        %p1166 = pneg %p280
        %p1167 = pneg %p304
        %p1168 = pneg %p301
        %p1169 = pneg %p325
        %p1170 = pneg %p322
        %p1171 = pneg %p346
        %p1172 = pneg %p343
        %p1173 = pneg %p367
        %p1174 = pneg %p364
        %p1175 = pneg %p388
        %p1176 = pneg %p385
        %p1177 = pneg %p409
        %p1178 = pneg %p406
        %p1179 = pneg %p430
        %p1180 = pneg %p427
        %p1181 = pneg %p451
        %p1182 = pneg %p448
        %p1183 = pneg %p472
        %p1184 = pneg %p469
        %p1185 = pneg %p493
        %p1186 = pneg %p490
        %p1187 = pneg %p514
        %p1188 = pneg %p511
        %p1189 = pneg %p535
        %p1190 = pneg %p532
        %p1191 = pneg %p556
        %p1192 = pneg %p553
        %p1193 = pneg %p577
        %p1194 = pneg %p574
        %p1195 = pneg %p598
        %p1196 = pneg %p595
        %p1197 = pneg %p619
        %p1198 = pneg %p616
        %p1199 = pneg %p640
        %p1200 = pneg %p637
        %p1201 = pneg %p661
        %p1202 = pneg %p658
        %p1203 = pneg %p682
        %p1204 = pneg %p679
        %p1205 = pneg %p703
        %p1206 = pneg %p700
        %p1207 = pneg %p724
        %p1208 = pneg %p721
        %p1209 = pneg %p745
        %p1210 = pneg %p742
        %p1211 = pneg %p773
        %p1212 = pneg %p770
        %s1213 = sand.u32 %s760, 1
        %s1214 = scalar_lea.sflag [#allocation4], %s1213
        %s1215 = sand.u32 %s760, 1
        %s1216 = smul.addr %s1215, 8
        %s1217 = scalar_lea.vmem [#allocation28], %s1216
        %p1218 = scmp.lt.s32.totalorder %s90, 1
        %s1219 = scalar_select %p1218, %s90, 1
        %p1220 = scmp.lt.s32.totalorder %s91, 1
        %s1221 = scalar_select %p1220, %s91, 1
        %s1222 = smul.addr %s1219, 2
        %s1223 = sadd.s32 %s1221, %s1222
        %s1224 = smul.addr %s1223, 8
        %s1225 = scalar_lea.vmem %s1, %s1224
        %p1226 = scmp.lt.s32.totalorder %s90, 1
        %s1227 = scalar_select %p1226, %s90, 1
        %s1228 = smul.addr %s1227, 2
        %s1229 = smul.addr %s1228, 8
        %s1230 = scalar_lea.vmem %s3, %s1229
        %p1231 = scmp.lt.s32.totalorder %s91, 1
        %s1232 = scalar_select %p1231, %s91, 1
        %s1233 = smul.addr %s1232, 8
        %s1234 = scalar_lea.vmem %s7, %s1233
        %v1236 = vld [vmem:[%s1225] sm:$0xff]
        %v1237 = vld [vmem:[%s1230] sm:$0xff]
        %v1238 = vld [vmem:[%s1230 + $0x8] sm:$0xff]
        %v1239 = vld [vmem:[%s1064] sm:$0xff]
        %v1240 = vld [vmem:[%s1064 + $0x8] sm:$0xff]
        %v1241 = vld [vmem:[%s1234] sm:$0xff]
        %v1242 = vpack.c.bf16 %v1236, %v1236
        %v1243 = vpack.c.bf16 %v1238, %v1237
        %v1244 = vpack.c.bf16 %v1240, %v1239
        %v1245 = vld [vmem:[#allocation5] sm:$0xf]
        %v1246 = vld [vmem:[#allocation5 + $0x4] sm:$0xf]
        %v1247 = vld [vmem:[#allocation5 + $0x8] sm:$0xf]
        %v1248 = vld [vmem:[#allocation5 + $0xc] sm:$0xf]
        %v1249 = vld [vmem:[#allocation7] sm:$0x1]
        %v1251 = vlaneseq
        %v1252 = vshrl.u32 %v1251, 7
        %v1253 = vsub.s32 0, %v1252
        %v1254 = vrot.slane %v1249, %v1253
        %v1260 = vunpack.c.l.b16 %v1245
        %v1261 = vunpack.c.l.b16 %v1246
        %v1262 = vunpack.c.l.b16 %v1247
        %v1263 = vunpack.c.l.b16 %v1248
        %v1264 = vpack.c.b16 %v1261, %v1260
        %v1265 = vpack.c.b16 %v1263, %v1262
        %vm1268 = vcmask 261120
        %v1270 = vsel %vm1268, %v1242, 0
        %1272 = vmatprep.subr.bf16.mxu0 0
        %1273 = vmatpush1.bf16.msra.mxu0 0
        %1274 = vmatprep.subr.bf16.mxu0 0
        %1275 = vmatpush1.bf16.msra.mxu0 0
        %1276 = vmatprep.subr.bf16.mxu0 0
        %1277 = vmatpush1.bf16.msra.mxu0 0
        %1278 = vmatprep.subr.bf16.mxu0 0
        %1279 = vmatpush1.bf16.msra.mxu0 0
        %1280 = vmatprep.subr.bf16.mxu0 0
        %1281 = vmatpush1.bf16.msra.mxu0 0
        %1282 = vmatprep.subr.bf16.mxu0 0
        %1283 = vmatpush1.bf16.msra.mxu0 0
        %1284 = vmatprep.subr.bf16.mxu0 0
        %1285 = vmatpush1.bf16.msra.mxu0 %v1265
        %1286 = vmatprep.subr.bf16.mxu0 0
        %1287 = vmatpush1.bf16.msra.mxu0 %v1264
        %1288 = vmatprep.subr.bf16.mxu0 0
        %1289 = vmatpush2.bf16.msra.mxu0 0
        %1290 = vmatprep.subr.bf16.mxu0 0
        %1291 = vmatpush2.bf16.msra.mxu0 0
        %1292 = vmatprep.subr.bf16.mxu0 0
        %1293 = vmatpush2.bf16.msra.mxu0 0
        %1294 = vmatprep.subr.bf16.mxu0 0
        %1295 = vmatpush2.bf16.msra.mxu0 0
        %1296 = vmatprep.subr.bf16.mxu0 0
        %1297 = vmatpush2.bf16.msra.mxu0 0
        %1298 = vmatprep.subr.bf16.mxu0 0
        %1299 = vmatpush2.bf16.msra.mxu0 0
        %1300 = vmatprep.subr.bf16.mxu0 0
        %1301 = vmatpush2.bf16.msra.mxu0 0
        %1302 = vmatprep.subr.bf16.mxu0 0
        %1303 = vmatpush2.bf16.msra.mxu0 0
        %1304 = vmatprep.mubr.bf16.mxu0 0
        %1305 = vmatmul.mubr.bf16.gmra.mxu0 %v1270
        %v1306 = vpop.f32.mrf.mxu0
        %v1307 = vadd.f32 %v1254, %v1306
        %v1308 = vpop.f32.mrf.mxu0
        %v1309 = vpop.f32.mrf.mxu0
        %v1310 = vpop.f32.mrf.mxu0
        %1311 = vdwg.mxu0
        %v1312 = vld [vmem:[#allocation8] sm:$0xf]
        %v1313 = vld [vmem:[#allocation8 + $0x4] sm:$0xf]
        %v1314 = vld [vmem:[#allocation8 + $0x8] sm:$0xf]
        %v1315 = vld [vmem:[#allocation8 + $0xc] sm:$0xf]
        %v1316 = vld [vmem:[#allocation10] sm:$0x1]
        %v1318 = vlaneseq
        %v1319 = vshrl.u32 %v1318, 7
        %v1320 = vsub.s32 0, %v1319
        %v1321 = vrot.slane %v1316, %v1320
        %v1327 = vunpack.c.l.b16 %v1312
        %v1328 = vunpack.c.l.b16 %v1313
        %v1329 = vunpack.c.l.b16 %v1314
        %v1330 = vunpack.c.l.b16 %v1315
        %v1331 = vpack.c.b16 %v1328, %v1327
        %v1332 = vpack.c.b16 %v1330, %v1329
        %v1336 = vsel %vm1268, %v1243, 0
        %1338 = vmatprep.subr.bf16.mxu0 0
        %1339 = vmatpush1.bf16.msra.mxu0 0
        %1340 = vmatprep.subr.bf16.mxu0 0
        %1341 = vmatpush1.bf16.msra.mxu0 0
        %1342 = vmatprep.subr.bf16.mxu0 0
        %1343 = vmatpush1.bf16.msra.mxu0 0
        %1344 = vmatprep.subr.bf16.mxu0 0
        %1345 = vmatpush1.bf16.msra.mxu0 0
        %1346 = vmatprep.subr.bf16.mxu0 0
        %1347 = vmatpush1.bf16.msra.mxu0 0
        %1348 = vmatprep.subr.bf16.mxu0 0
        %1349 = vmatpush1.bf16.msra.mxu0 0
        %1350 = vmatprep.subr.bf16.mxu0 0
        %1351 = vmatpush1.bf16.msra.mxu0 %v1332
        %1352 = vmatprep.subr.bf16.mxu0 0
        %1353 = vmatpush1.bf16.msra.mxu0 %v1331
        %1354 = vmatprep.subr.bf16.mxu0 0
        %1355 = vmatpush2.bf16.msra.mxu0 0
        %1356 = vmatprep.subr.bf16.mxu0 0
        %1357 = vmatpush2.bf16.msra.mxu0 0
        %1358 = vmatprep.subr.bf16.mxu0 0
        %1359 = vmatpush2.bf16.msra.mxu0 0
        %1360 = vmatprep.subr.bf16.mxu0 0
        %1361 = vmatpush2.bf16.msra.mxu0 0
        %1362 = vmatprep.subr.bf16.mxu0 0
        %1363 = vmatpush2.bf16.msra.mxu0 0
        %1364 = vmatprep.subr.bf16.mxu0 0
        %1365 = vmatpush2.bf16.msra.mxu0 0
        %1366 = vmatprep.subr.bf16.mxu0 0
        %1367 = vmatpush2.bf16.msra.mxu0 0
        %1368 = vmatprep.subr.bf16.mxu0 0
        %1369 = vmatpush2.bf16.msra.mxu0 0
        %1370 = vmatprep.mubr.bf16.mxu0 0
        %1371 = vmatmul.mubr.bf16.gmra.mxu0 %v1336
        %v1372 = vpop.f32.mrf.mxu0
        %v1373 = vadd.f32 %v1321, %v1372
        %v1374 = vpop.f32.mrf.mxu0
        %v1375 = vpop.f32.mrf.mxu0
        %v1376 = vadd.f32 %v1321, %v1375
        %v1377 = vpop.f32.mrf.mxu0
        %1378 = vdwg.mxu0
        %v1379 = vld [vmem:[#allocation11] sm:$0xf]
        %v1380 = vld [vmem:[#allocation11 + $0x4] sm:$0xf]
        %v1381 = vld [vmem:[#allocation11 + $0x8] sm:$0xf]
        %v1382 = vld [vmem:[#allocation11 + $0xc] sm:$0xf]
        %v1383 = vld [vmem:[#allocation13] sm:$0x1]
        %v1385 = vlaneseq
        %v1386 = vshrl.u32 %v1385, 7
        %v1387 = vsub.s32 0, %v1386
        %v1388 = vrot.slane %v1383, %v1387
        %v1394 = vunpack.c.l.b16 %v1379
        %v1395 = vunpack.c.l.b16 %v1380
        %v1396 = vunpack.c.l.b16 %v1381
        %v1397 = vunpack.c.l.b16 %v1382
        %v1398 = vpack.c.b16 %v1395, %v1394
        %v1399 = vpack.c.b16 %v1397, %v1396
        %1402 = vmatprep.subr.bf16.mxu0 0
        %1403 = vmatpush1.bf16.msra.mxu0 0
        %1404 = vmatprep.subr.bf16.mxu0 0
        %1405 = vmatpush1.bf16.msra.mxu0 0
        %1406 = vmatprep.subr.bf16.mxu0 0
        %1407 = vmatpush1.bf16.msra.mxu0 0
        %1408 = vmatprep.subr.bf16.mxu0 0
        %1409 = vmatpush1.bf16.msra.mxu0 0
        %1410 = vmatprep.subr.bf16.mxu0 0
        %1411 = vmatpush1.bf16.msra.mxu0 0
        %1412 = vmatprep.subr.bf16.mxu0 0
        %1413 = vmatpush1.bf16.msra.mxu0 0
        %1414 = vmatprep.subr.bf16.mxu0 0
        %1415 = vmatpush1.bf16.msra.mxu0 %v1399
        %1416 = vmatprep.subr.bf16.mxu0 0
        %1417 = vmatpush1.bf16.msra.mxu0 %v1398
        %1418 = vmatprep.subr.bf16.mxu0 0
        %1419 = vmatpush2.bf16.msra.mxu0 0
        %1420 = vmatprep.subr.bf16.mxu0 0
        %1421 = vmatpush2.bf16.msra.mxu0 0
        %1422 = vmatprep.subr.bf16.mxu0 0
        %1423 = vmatpush2.bf16.msra.mxu0 0
        %1424 = vmatprep.subr.bf16.mxu0 0
        %1425 = vmatpush2.bf16.msra.mxu0 0
        %1426 = vmatprep.subr.bf16.mxu0 0
        %1427 = vmatpush2.bf16.msra.mxu0 0
        %1428 = vmatprep.subr.bf16.mxu0 0
        %1429 = vmatpush2.bf16.msra.mxu0 0
        %1430 = vmatprep.subr.bf16.mxu0 0
        %1431 = vmatpush2.bf16.msra.mxu0 0
        %1432 = vmatprep.subr.bf16.mxu0 0
        %1433 = vmatpush2.bf16.msra.mxu0 0
        %1434 = vmatprep.mubr.bf16.mxu0 0
        %1435 = vmatmul.mubr.bf16.gmra.mxu0 %v1336
        %v1436 = vpop.f32.mrf.mxu0
        %v1437 = vadd.f32 %v1388, %v1436
        %v1438 = vpop.f32.mrf.mxu0
        %v1439 = vpop.f32.mrf.mxu0
        %v1440 = vadd.f32 %v1388, %v1439
        %v1441 = vpop.f32.mrf.mxu0
        %1442 = vdwg.mxu0
        %v1443 = vld [vmem:[%s21] sm:$0xf]
        %v1444 = vld [vmem:[%s21 + $0x4] sm:$0xf]
        %v1445 = vld [vmem:[%s21 + $0x8] sm:$0xf]
        %v1446 = vld [vmem:[%s21 + $0xc] sm:$0xf]
        %v1447 = vld [vmem:[#allocation14] sm:$0x1]
        %v1448 = vpack.c.bf16 %v1307, %v1307
        %v1449 = vpack.c.bf16 %v1376, %v1373
        %v1450 = vpack.c.bf16 %v1440, %v1437
        %vm1451 = vcmask 64512
        %v1453 = vsel %vm1451, %v1448, 0
        %v1456 = vsel %vm1451, %v1449, 0
        %1458 = vmatprep.subr.bf16.mxu0 0
        %1459 = vmatpush1.bf16.xpose.msra.mxu0 0
        %1460 = vmatprep.subr.bf16.mxu0 0
        %1461 = vmatpush1.bf16.xpose.msra.mxu0 0
        %1462 = vmatprep.subr.bf16.mxu0 0
        %1463 = vmatpush1.bf16.xpose.msra.mxu0 0
        %1464 = vmatprep.subr.bf16.mxu0 0
        %1465 = vmatpush1.bf16.xpose.msra.mxu0 0
        %1466 = vmatprep.subr.bf16.mxu0 0
        %1467 = vmatpush1.bf16.xpose.msra.mxu0 0
        %1468 = vmatprep.subr.bf16.mxu0 0
        %1469 = vmatpush1.bf16.xpose.msra.mxu0 0
        %1470 = vmatprep.subr.bf16.mxu0 0
        %1471 = vmatpush1.bf16.xpose.msra.mxu0 0
        %1472 = vmatprep.subr.bf16.mxu0 0
        %1473 = vmatpush1.bf16.xpose.msra.mxu0 %v1456
        %1474 = vmatprep.subr.bf16.mxu0 0
        %1475 = vmatpush2.bf16.xpose.msra.mxu0 0
        %1476 = vmatprep.subr.bf16.mxu0 0
        %1477 = vmatpush2.bf16.xpose.msra.mxu0 0
        %1478 = vmatprep.subr.bf16.mxu0 0
        %1479 = vmatpush2.bf16.xpose.msra.mxu0 0
        %1480 = vmatprep.subr.bf16.mxu0 0
        %1481 = vmatpush2.bf16.xpose.msra.mxu0 0
        %1482 = vmatprep.subr.bf16.mxu0 0
        %1483 = vmatpush2.bf16.xpose.msra.mxu0 0
        %1484 = vmatprep.subr.bf16.mxu0 0
        %1485 = vmatpush2.bf16.xpose.msra.mxu0 0
        %1486 = vmatprep.subr.bf16.mxu0 0
        %1487 = vmatpush2.bf16.xpose.msra.mxu0 0
        %1488 = vmatprep.subr.bf16.mxu0 0
        %1489 = vmatpush2.bf16.xpose.msra.mxu0 0
        %1490 = vmatprep.mubr.bf16.mxu0 0
        %1491 = vmatmul.mubr.bf16.gmra.mxu0 %v1453
        %v1492 = vpop.f32.mrf.mxu0
        %v1493 = vadd.f32 %v1241, %v1492
        %v1494 = vpop.f32.mrf.mxu0
        %v1495 = vpop.f32.mrf.mxu0
        %v1496 = vpop.f32.mrf.mxu0
        %1497 = vdwg.mxu0
        %vm1498 = vcmask 130048
        %v1499 = vsel %vm1498, %v1493, -inf
        %1500 = vmax.xlane.f32.xlu0 %v1499
        %v1501 = vpop.xlane.xlu0 %1500
        %v1502 = vsub.f32 %v1493, %v1501
        %v1503 = vmul.f32 %v1502, 1.442695
        %v1504 = vpow.pop %v1503
        %v1505 = vsel %vm1498, %v1504, 0.0
        %1506 = vadd.xlane.f32.xlu0 %v1505
        %v1507 = vpop.xlane.xlu0 %1506
        %v1508 = vrcp.pop %v1507
        %v1509 = vmul.f32 %v1504, %v1508
        %v1510 = vpack.c.bf16 %v1509, %v1509
        %v1512 = vsel %vm1498, %v1510, 0
        %1514 = vmatprep.subr.bf16.mxu0 0
        %1515 = vmatpush1.bf16.msra.mxu0 0
        %1516 = vmatprep.subr.bf16.mxu0 0
        %1517 = vmatpush1.bf16.msra.mxu0 0
        %1518 = vmatprep.subr.bf16.mxu0 0
        %1519 = vmatpush1.bf16.msra.mxu0 0
        %1520 = vmatprep.subr.bf16.mxu0 0
        %1521 = vmatpush1.bf16.msra.mxu0 0
        %1522 = vmatprep.subr.bf16.mxu0 0
        %1523 = vmatpush1.bf16.msra.mxu0 0
        %1524 = vmatprep.subr.bf16.mxu0 0
        %1525 = vmatpush1.bf16.msra.mxu0 0
        %1526 = vmatprep.subr.bf16.mxu0 0
        %1527 = vmatpush1.bf16.msra.mxu0 0
        %1528 = vmatprep.subr.bf16.mxu0 0
        %1529 = vmatpush1.bf16.msra.mxu0 %v1450
        %1530 = vmatprep.subr.bf16.mxu0 0
        %1531 = vmatpush2.bf16.msra.mxu0 0
        %1532 = vmatprep.subr.bf16.mxu0 0
        %1533 = vmatpush2.bf16.msra.mxu0 0
        %1534 = vmatprep.subr.bf16.mxu0 0
        %1535 = vmatpush2.bf16.msra.mxu0 0
        %1536 = vmatprep.subr.bf16.mxu0 0
        %1537 = vmatpush2.bf16.msra.mxu0 0
        %1538 = vmatprep.subr.bf16.mxu0 0
        %1539 = vmatpush2.bf16.msra.mxu0 0
        %1540 = vmatprep.subr.bf16.mxu0 0
        %1541 = vmatpush2.bf16.msra.mxu0 0
        %1542 = vmatprep.subr.bf16.mxu0 0
        %1543 = vmatpush2.bf16.msra.mxu0 0
        %1544 = vmatprep.subr.bf16.mxu0 0
        %1545 = vmatpush2.bf16.msra.mxu0 0
        %1546 = vmatprep.mubr.bf16.mxu0 0
        %1547 = vmatmul.mubr.bf16.gmra.mxu0 %v1512
        %v1548 = vpop.f32.mrf.mxu0
        %v1549 = vadd.f32 0.0, %v1548
        %v1550 = vpop.f32.mrf.mxu0
        %v1551 = vpop.f32.mrf.mxu0
        %v1552 = vpop.f32.mrf.mxu0
        %1553 = vdwg.mxu0
        %1555 = vrot.lane.b32.xlu0 %v1448, 120
        %v1556 = vpop.permute.xlu0 %1555
        %1558 = vrot.lane.b32.xlu0 %v1449, 120
        %v1559 = vpop.permute.xlu0 %1558
        %v1561 = vsel %vm1451, %v1556, 0
        %v1564 = vsel %vm1451, %v1559, 0
        %1566 = vmatprep.subr.bf16.mxu0 0
        %1567 = vmatpush1.bf16.xpose.msra.mxu0 0
        %1568 = vmatprep.subr.bf16.mxu0 0
        %1569 = vmatpush1.bf16.xpose.msra.mxu0 0
        %1570 = vmatprep.subr.bf16.mxu0 0
        %1571 = vmatpush1.bf16.xpose.msra.mxu0 0
        %1572 = vmatprep.subr.bf16.mxu0 0
        %1573 = vmatpush1.bf16.xpose.msra.mxu0 0
        %1574 = vmatprep.subr.bf16.mxu0 0
        %1575 = vmatpush1.bf16.xpose.msra.mxu0 0
        %1576 = vmatprep.subr.bf16.mxu0 0
        %1577 = vmatpush1.bf16.xpose.msra.mxu0 0
        %1578 = vmatprep.subr.bf16.mxu0 0
        %1579 = vmatpush1.bf16.xpose.msra.mxu0 0
        %1580 = vmatprep.subr.bf16.mxu0 0
        %1581 = vmatpush1.bf16.xpose.msra.mxu0 %v1564
        %1582 = vmatprep.subr.bf16.mxu0 0
        %1583 = vmatpush2.bf16.xpose.msra.mxu0 0
        %1584 = vmatprep.subr.bf16.mxu0 0
        %1585 = vmatpush2.bf16.xpose.msra.mxu0 0
        %1586 = vmatprep.subr.bf16.mxu0 0
        %1587 = vmatpush2.bf16.xpose.msra.mxu0 0
        %1588 = vmatprep.subr.bf16.mxu0 0
        %1589 = vmatpush2.bf16.xpose.msra.mxu0 0
        %1590 = vmatprep.subr.bf16.mxu0 0
        %1591 = vmatpush2.bf16.xpose.msra.mxu0 0
        %1592 = vmatprep.subr.bf16.mxu0 0
        %1593 = vmatpush2.bf16.xpose.msra.mxu0 0
        %1594 = vmatprep.subr.bf16.mxu0 0
        %1595 = vmatpush2.bf16.xpose.msra.mxu0 0
        %1596 = vmatprep.subr.bf16.mxu0 0
        %1597 = vmatpush2.bf16.xpose.msra.mxu0 0
        %1598 = vmatprep.mubr.bf16.mxu0 0
        %1599 = vmatmul.mubr.bf16.gmra.mxu0 %v1561
        %v1600 = vpop.f32.mrf.mxu0
        %v1601 = vadd.f32 %v1241, %v1600
        %v1602 = vpop.f32.mrf.mxu0
        %v1603 = vpop.f32.mrf.mxu0
        %v1604 = vpop.f32.mrf.mxu0
        %1605 = vdwg.mxu0
        %v1606 = vsel %vm1498, %v1601, -inf
        %1607 = vmax.xlane.f32.xlu0 %v1606
        %v1608 = vpop.xlane.xlu0 %1607
        %v1609 = vsub.f32 %v1601, %v1608
        %v1610 = vmul.f32 %v1609, 1.442695
        %v1611 = vpow.pop %v1610
        %v1612 = vsel %vm1498, %v1611, 0.0
        %1613 = vadd.xlane.f32.xlu0 %v1612
        %v1614 = vpop.xlane.xlu0 %1613
        %v1615 = vrcp.pop %v1614
        %v1616 = vmul.f32 %v1611, %v1615
        %v1617 = vpack.c.bf16 %v1616, %v1616
        %1619 = vrot.lane.b32.xlu0 %v1450, 120
        %v1620 = vpop.permute.xlu0 %1619
        %v1623 = vsel %vm1498, %v1617, 0
        %1625 = vmatprep.subr.bf16.mxu0 0
        %1626 = vmatpush1.bf16.msra.mxu0 0
        %1627 = vmatprep.subr.bf16.mxu0 0
        %1628 = vmatpush1.bf16.msra.mxu0 0
        %1629 = vmatprep.subr.bf16.mxu0 0
        %1630 = vmatpush1.bf16.msra.mxu0 0
        %1631 = vmatprep.subr.bf16.mxu0 0
        %1632 = vmatpush1.bf16.msra.mxu0 0
        %1633 = vmatprep.subr.bf16.mxu0 0
        %1634 = vmatpush1.bf16.msra.mxu0 0
        %1635 = vmatprep.subr.bf16.mxu0 0
        %1636 = vmatpush1.bf16.msra.mxu0 0
        %1637 = vmatprep.subr.bf16.mxu0 0
        %1638 = vmatpush1.bf16.msra.mxu0 0
        %1639 = vmatprep.subr.bf16.mxu0 0
        %1640 = vmatpush1.bf16.msra.mxu0 %v1620
        %1641 = vmatprep.subr.bf16.mxu0 0
        %1642 = vmatpush2.bf16.msra.mxu0 0
        %1643 = vmatprep.subr.bf16.mxu0 0
        %1644 = vmatpush2.bf16.msra.mxu0 0
        %1645 = vmatprep.subr.bf16.mxu0 0
        %1646 = vmatpush2.bf16.msra.mxu0 0
        %1647 = vmatprep.subr.bf16.mxu0 0
        %1648 = vmatpush2.bf16.msra.mxu0 0
        %1649 = vmatprep.subr.bf16.mxu0 0
        %1650 = vmatpush2.bf16.msra.mxu0 0
        %1651 = vmatprep.subr.bf16.mxu0 0
        %1652 = vmatpush2.bf16.msra.mxu0 0
        %1653 = vmatprep.subr.bf16.mxu0 0
        %1654 = vmatpush2.bf16.msra.mxu0 0
        %1655 = vmatprep.subr.bf16.mxu0 0
        %1656 = vmatpush2.bf16.msra.mxu0 0
        %1657 = vmatprep.mubr.bf16.mxu0 0
        %1658 = vmatmul.mubr.bf16.gmra.mxu0 %v1623
        %v1659 = vpop.f32.mrf.mxu0
        %v1660 = vadd.f32 0.0, %v1659
        %v1661 = vpop.f32.mrf.mxu0
        %v1662 = vpop.f32.mrf.mxu0
        %v1663 = vpop.f32.mrf.mxu0
        %1664 = vdwg.mxu0
        %1665 = vrot.lane.b32.xlu0 %v1448, 112
        %v1666 = vpop.permute.xlu0 %1665
        %1667 = vrot.lane.b32.xlu0 %v1449, 112
        %v1668 = vpop.permute.xlu0 %1667
        %v1670 = vsel %vm1451, %v1666, 0
        %v1673 = vsel %vm1451, %v1668, 0
        %1675 = vmatprep.subr.bf16.mxu0 0
        %1676 = vmatpush1.bf16.xpose.msra.mxu0 0
        %1677 = vmatprep.subr.bf16.mxu0 0
        %1678 = vmatpush1.bf16.xpose.msra.mxu0 0
        %1679 = vmatprep.subr.bf16.mxu0 0
        %1680 = vmatpush1.bf16.xpose.msra.mxu0 0
        %1681 = vmatprep.subr.bf16.mxu0 0
        %1682 = vmatpush1.bf16.xpose.msra.mxu0 0
        %1683 = vmatprep.subr.bf16.mxu0 0
        %1684 = vmatpush1.bf16.xpose.msra.mxu0 0
        %1685 = vmatprep.subr.bf16.mxu0 0
        %1686 = vmatpush1.bf16.xpose.msra.mxu0 0
        %1687 = vmatprep.subr.bf16.mxu0 0
        %1688 = vmatpush1.bf16.xpose.msra.mxu0 0
        %1689 = vmatprep.subr.bf16.mxu0 0
        %1690 = vmatpush1.bf16.xpose.msra.mxu0 %v1673
        %1691 = vmatprep.subr.bf16.mxu0 0
        %1692 = vmatpush2.bf16.xpose.msra.mxu0 0
        %1693 = vmatprep.subr.bf16.mxu0 0
        %1694 = vmatpush2.bf16.xpose.msra.mxu0 0
        %1695 = vmatprep.subr.bf16.mxu0 0
        %1696 = vmatpush2.bf16.xpose.msra.mxu0 0
        %1697 = vmatprep.subr.bf16.mxu0 0
        %1698 = vmatpush2.bf16.xpose.msra.mxu0 0
        %1699 = vmatprep.subr.bf16.mxu0 0
        %1700 = vmatpush2.bf16.xpose.msra.mxu0 0
        %1701 = vmatprep.subr.bf16.mxu0 0
        %1702 = vmatpush2.bf16.xpose.msra.mxu0 0
        %1703 = vmatprep.subr.bf16.mxu0 0
        %1704 = vmatpush2.bf16.xpose.msra.mxu0 0
        %1705 = vmatprep.subr.bf16.mxu0 0
        %1706 = vmatpush2.bf16.xpose.msra.mxu0 0
        %1707 = vmatprep.mubr.bf16.mxu0 0
        %1708 = vmatmul.mubr.bf16.gmra.mxu0 %v1670
        %v1709 = vpop.f32.mrf.mxu0
        %v1710 = vadd.f32 %v1241, %v1709
        %v1711 = vpop.f32.mrf.mxu0
        %v1712 = vpop.f32.mrf.mxu0
        %v1713 = vpop.f32.mrf.mxu0
        %1714 = vdwg.mxu0
        %v1715 = vsel %vm1498, %v1710, -inf
        %1716 = vmax.xlane.f32.xlu0 %v1715
        %v1717 = vpop.xlane.xlu0 %1716
        %v1718 = vsub.f32 %v1710, %v1717
        %v1719 = vmul.f32 %v1718, 1.442695
        %v1720 = vpow.pop %v1719
        %v1721 = vsel %vm1498, %v1720, 0.0
        %1722 = vadd.xlane.f32.xlu0 %v1721
        %v1723 = vpop.xlane.xlu0 %1722
        %v1724 = vrcp.pop %v1723
        %v1725 = vmul.f32 %v1720, %v1724
        %v1726 = vpack.c.bf16 %v1725, %v1725
        %1727 = vrot.lane.b32.xlu0 %v1450, 112
        %v1728 = vpop.permute.xlu0 %1727
        %v1731 = vsel %vm1498, %v1726, 0
        %1733 = vmatprep.subr.bf16.mxu0 0
        %1734 = vmatpush1.bf16.msra.mxu0 0
        %1735 = vmatprep.subr.bf16.mxu0 0
        %1736 = vmatpush1.bf16.msra.mxu0 0
        %1737 = vmatprep.subr.bf16.mxu0 0
        %1738 = vmatpush1.bf16.msra.mxu0 0
        %1739 = vmatprep.subr.bf16.mxu0 0
        %1740 = vmatpush1.bf16.msra.mxu0 0
        %1741 = vmatprep.subr.bf16.mxu0 0
        %1742 = vmatpush1.bf16.msra.mxu0 0
        %1743 = vmatprep.subr.bf16.mxu0 0
        %1744 = vmatpush1.bf16.msra.mxu0 0
        %1745 = vmatprep.subr.bf16.mxu0 0
        %1746 = vmatpush1.bf16.msra.mxu0 0
        %1747 = vmatprep.subr.bf16.mxu0 0
        %1748 = vmatpush1.bf16.msra.mxu0 %v1728
        %1749 = vmatprep.subr.bf16.mxu0 0
        %1750 = vmatpush2.bf16.msra.mxu0 0
        %1751 = vmatprep.subr.bf16.mxu0 0
        %1752 = vmatpush2.bf16.msra.mxu0 0
        %1753 = vmatprep.subr.bf16.mxu0 0
        %1754 = vmatpush2.bf16.msra.mxu0 0
        %1755 = vmatprep.subr.bf16.mxu0 0
        %1756 = vmatpush2.bf16.msra.mxu0 0
        %1757 = vmatprep.subr.bf16.mxu0 0
        %1758 = vmatpush2.bf16.msra.mxu0 0
        %1759 = vmatprep.subr.bf16.mxu0 0
        %1760 = vmatpush2.bf16.msra.mxu0 0
        %1761 = vmatprep.subr.bf16.mxu0 0
        %1762 = vmatpush2.bf16.msra.mxu0 0
        %1763 = vmatprep.subr.bf16.mxu0 0
        %1764 = vmatpush2.bf16.msra.mxu0 0
        %1765 = vmatprep.mubr.bf16.mxu0 0
        %1766 = vmatmul.mubr.bf16.gmra.mxu0 %v1731
        %v1767 = vpop.f32.mrf.mxu0
        %v1768 = vadd.f32 0.0, %v1767
        %v1769 = vpop.f32.mrf.mxu0
        %v1770 = vpop.f32.mrf.mxu0
        %v1771 = vpop.f32.mrf.mxu0
        %1772 = vdwg.mxu0
        %1773 = vrot.lane.b32.xlu0 %v1448, 104
        %v1774 = vpop.permute.xlu0 %1773
        %1775 = vrot.lane.b32.xlu0 %v1449, 104
        %v1776 = vpop.permute.xlu0 %1775
        %v1778 = vsel %vm1451, %v1774, 0
        %v1781 = vsel %vm1451, %v1776, 0
        %1783 = vmatprep.subr.bf16.mxu0 0
        %1784 = vmatpush1.bf16.xpose.msra.mxu0 0
        %1785 = vmatprep.subr.bf16.mxu0 0
        %1786 = vmatpush1.bf16.xpose.msra.mxu0 0
        %1787 = vmatprep.subr.bf16.mxu0 0
        %1788 = vmatpush1.bf16.xpose.msra.mxu0 0
        %1789 = vmatprep.subr.bf16.mxu0 0
        %1790 = vmatpush1.bf16.xpose.msra.mxu0 0
        %1791 = vmatprep.subr.bf16.mxu0 0
        %1792 = vmatpush1.bf16.xpose.msra.mxu0 0
        %1793 = vmatprep.subr.bf16.mxu0 0
        %1794 = vmatpush1.bf16.xpose.msra.mxu0 0
        %1795 = vmatprep.subr.bf16.mxu0 0
        %1796 = vmatpush1.bf16.xpose.msra.mxu0 0
        %1797 = vmatprep.subr.bf16.mxu0 0
        %1798 = vmatpush1.bf16.xpose.msra.mxu0 %v1781
        %1799 = vmatprep.subr.bf16.mxu0 0
        %1800 = vmatpush2.bf16.xpose.msra.mxu0 0
        %1801 = vmatprep.subr.bf16.mxu0 0
        %1802 = vmatpush2.bf16.xpose.msra.mxu0 0
        %1803 = vmatprep.subr.bf16.mxu0 0
        %1804 = vmatpush2.bf16.xpose.msra.mxu0 0
        %1805 = vmatprep.subr.bf16.mxu0 0
        %1806 = vmatpush2.bf16.xpose.msra.mxu0 0
        %1807 = vmatprep.subr.bf16.mxu0 0
        %1808 = vmatpush2.bf16.xpose.msra.mxu0 0
        %1809 = vmatprep.subr.bf16.mxu0 0
        %1810 = vmatpush2.bf16.xpose.msra.mxu0 0
        %1811 = vmatprep.subr.bf16.mxu0 0
        %1812 = vmatpush2.bf16.xpose.msra.mxu0 0
        %1813 = vmatprep.subr.bf16.mxu0 0
        %1814 = vmatpush2.bf16.xpose.msra.mxu0 0
        %1815 = vmatprep.mubr.bf16.mxu0 0
        %1816 = vmatmul.mubr.bf16.gmra.mxu0 %v1778
        %v1817 = vpop.f32.mrf.mxu0
        %v1818 = vadd.f32 %v1241, %v1817
        %v1819 = vpop.f32.mrf.mxu0
        %v1820 = vpop.f32.mrf.mxu0
        %v1821 = vpop.f32.mrf.mxu0
        %1822 = vdwg.mxu0
        %v1823 = vsel %vm1498, %v1818, -inf
        %1824 = vmax.xlane.f32.xlu0 %v1823
        %v1825 = vpop.xlane.xlu0 %1824
        %v1826 = vsub.f32 %v1818, %v1825
        %v1827 = vmul.f32 %v1826, 1.442695
        %v1828 = vpow.pop %v1827
        %v1829 = vsel %vm1498, %v1828, 0.0
        %1830 = vadd.xlane.f32.xlu0 %v1829
        %v1831 = vpop.xlane.xlu0 %1830
        %v1832 = vrcp.pop %v1831
        %v1833 = vmul.f32 %v1828, %v1832
        %v1834 = vpack.c.bf16 %v1833, %v1833
        %1835 = vrot.lane.b32.xlu0 %v1450, 104
        %v1836 = vpop.permute.xlu0 %1835
        %v1839 = vsel %vm1498, %v1834, 0
        %1841 = vmatprep.subr.bf16.mxu0 0
        %1842 = vmatpush1.bf16.msra.mxu0 0
        %1843 = vmatprep.subr.bf16.mxu0 0
        %1844 = vmatpush1.bf16.msra.mxu0 0
        %1845 = vmatprep.subr.bf16.mxu0 0
        %1846 = vmatpush1.bf16.msra.mxu0 0
        %1847 = vmatprep.subr.bf16.mxu0 0
        %1848 = vmatpush1.bf16.msra.mxu0 0
        %1849 = vmatprep.subr.bf16.mxu0 0
        %1850 = vmatpush1.bf16.msra.mxu0 0
        %1851 = vmatprep.subr.bf16.mxu0 0
        %1852 = vmatpush1.bf16.msra.mxu0 0
        %1853 = vmatprep.subr.bf16.mxu0 0
        %1854 = vmatpush1.bf16.msra.mxu0 0
        %1855 = vmatprep.subr.bf16.mxu0 0
        %1856 = vmatpush1.bf16.msra.mxu0 %v1836
        %1857 = vmatprep.subr.bf16.mxu0 0
        %1858 = vmatpush2.bf16.msra.mxu0 0
        %1859 = vmatprep.subr.bf16.mxu0 0
        %1860 = vmatpush2.bf16.msra.mxu0 0
        %1861 = vmatprep.subr.bf16.mxu0 0
        %1862 = vmatpush2.bf16.msra.mxu0 0
        %1863 = vmatprep.subr.bf16.mxu0 0
        %1864 = vmatpush2.bf16.msra.mxu0 0
        %1865 = vmatprep.subr.bf16.mxu0 0
        %1866 = vmatpush2.bf16.msra.mxu0 0
        %1867 = vmatprep.subr.bf16.mxu0 0
        %1868 = vmatpush2.bf16.msra.mxu0 0
        %1869 = vmatprep.subr.bf16.mxu0 0
        %1870 = vmatpush2.bf16.msra.mxu0 0
        %1871 = vmatprep.subr.bf16.mxu0 0
        %1872 = vmatpush2.bf16.msra.mxu0 0
        %1873 = vmatprep.mubr.bf16.mxu0 0
        %1874 = vmatmul.mubr.bf16.gmra.mxu0 %v1839
        %v1875 = vpop.f32.mrf.mxu0
        %v1876 = vadd.f32 0.0, %v1875
        %v1877 = vpop.f32.mrf.mxu0
        %v1878 = vpop.f32.mrf.mxu0
        %v1879 = vpop.f32.mrf.mxu0
        %1880 = vdwg.mxu0
        %1882 = vrot.lane.b32.xlu0 %v1660, 8
        %v1883 = vpop.permute.xlu0 %1882
        %1886 = vrot.lane.b32.xlu0 %v1768, 16
        %v1887 = vpop.permute.xlu0 %1886
        %1890 = vrot.lane.b32.xlu0 %v1876, 24
        %v1891 = vpop.permute.xlu0 %1890
        %v1893 = vsel %vm1451, %v1549, %v1883
        %v1894 = vsel %vm1498, %v1893, %v1887
        %vm1895 = vcmask 195584
        %v1896 = vsel %vm1895, %v1894, %v1891
        %v1897 = vpack.c.bf16 %v1896, %v1896
        %v1899 = vlaneseq
        %v1900 = vshrl.u32 %v1899, 7
        %v1901 = vsub.s32 0, %v1900
        %v1902 = vrot.slane %v1447, %v1901
        %v1908 = vunpack.c.l.b16 %v1443
        %v1909 = vunpack.c.l.b16 %v1444
        %v1910 = vunpack.c.l.b16 %v1445
        %v1911 = vunpack.c.l.b16 %v1446
        %v1912 = vpack.c.b16 %v1909, %v1908
        %v1913 = vpack.c.b16 %v1911, %v1910
        %v1917 = vsel %vm1268, %v1897, 0
        %1919 = vmatprep.subr.bf16.mxu0 0
        %1920 = vmatpush1.bf16.msra.mxu0 0
        %1921 = vmatprep.subr.bf16.mxu0 0
        %1922 = vmatpush1.bf16.msra.mxu0 0
        %1923 = vmatprep.subr.bf16.mxu0 0
        %1924 = vmatpush1.bf16.msra.mxu0 0
        %1925 = vmatprep.subr.bf16.mxu0 0
        %1926 = vmatpush1.bf16.msra.mxu0 0
        %1927 = vmatprep.subr.bf16.mxu0 0
        %1928 = vmatpush1.bf16.msra.mxu0 0
        %1929 = vmatprep.subr.bf16.mxu0 0
        %1930 = vmatpush1.bf16.msra.mxu0 0
        %1931 = vmatprep.subr.bf16.mxu0 0
        %1932 = vmatpush1.bf16.msra.mxu0 %v1913
        %1933 = vmatprep.subr.bf16.mxu0 0
        %1934 = vmatpush1.bf16.msra.mxu0 %v1912
        %1935 = vmatprep.subr.bf16.mxu0 0
        %1936 = vmatpush2.bf16.msra.mxu0 0
        %1937 = vmatprep.subr.bf16.mxu0 0
        %1938 = vmatpush2.bf16.msra.mxu0 0
        %1939 = vmatprep.subr.bf16.mxu0 0
        %1940 = vmatpush2.bf16.msra.mxu0 0
        %1941 = vmatprep.subr.bf16.mxu0 0
        %1942 = vmatpush2.bf16.msra.mxu0 0
        %1943 = vmatprep.subr.bf16.mxu0 0
        %1944 = vmatpush2.bf16.msra.mxu0 0
        %1945 = vmatprep.subr.bf16.mxu0 0
        %1946 = vmatpush2.bf16.msra.mxu0 0
        %1947 = vmatprep.subr.bf16.mxu0 0
        %1948 = vmatpush2.bf16.msra.mxu0 0
        %1949 = vmatprep.subr.bf16.mxu0 0
        %1950 = vmatpush2.bf16.msra.mxu0 0
        %1951 = vmatprep.mubr.bf16.mxu0 0
        %1952 = vmatmul.mubr.bf16.gmra.mxu0 %v1917
        %v1953 = vpop.f32.mrf.mxu0
        %v1954 = vadd.f32 %v1902, %v1953
        %v1955 = vpop.f32.mrf.mxu0
        %v1956 = vpop.f32.mrf.mxu0
        %v1957 = vpop.f32.mrf.mxu0
        %1958 = vdwg.mxu0
        %v1959 = vadd.f32 %v1236, %v1954
        %v1960 = vld [vmem:[%s41] sm:$0x1]
        %v1961 = vld [vmem:[%s43] sm:$0x1]
        %v1962 = vsel %vm1268, %v1959, 0.0
        %1963 = vadd.xlane.f32.xlu0 %v1962
        %v1964 = vpop.xlane.xlu0 %1963
        %v1965 = vrcp.pop 32.0
        %v1966 = vmul.f32 %v1964, %v1965
        %v1967 = vsub.f32 %v1959, %v1966
        %v1968 = vmul.f32 %v1967, %v1967
        %v1969 = vsel %vm1268, %v1968, 0.0
        %1970 = vadd.xlane.f32.xlu0 %v1969
        %v1971 = vpop.xlane.xlu0 %1970
        %v1972 = vmul.f32 %v1971, %v1965
        %v1973 = vadd.f32 %v1972, 1e-05
        %v1974 = vrsqrt.pop %v1973
        %v1975 = vmul.f32 %v1967, %v1974
        %v1977 = vlaneseq
        %v1978 = vshrl.u32 %v1977, 7
        %v1979 = vsub.s32 0, %v1978
        %v1980 = vrot.slane %v1960, %v1979
        %v1982 = vmul.f32 %v1975, %v1980
        %v1984 = vlaneseq
        %v1985 = vshrl.u32 %v1984, 7
        %v1986 = vsub.s32 0, %v1985
        %v1987 = vrot.slane %v1961, %v1986
        %v1989 = vadd.f32 %v1982, %v1987
        %v1990 = vpack.c.bf16 %v1989, %v1989
        %v1991 = vld [vmem:[#allocation16] sm:$0xf]
        %v1992 = vld [vmem:[#allocation16 + $0x4] sm:$0xf]
        %v1993 = vld [vmem:[#allocation16 + $0x8] sm:$0xf]
        %v1994 = vld [vmem:[#allocation16 + $0xc] sm:$0xf]
        %v1995 = vld [vmem:[#allocation17] sm:$0x1]
        %v1997 = vlaneseq
        %v1998 = vshrl.u32 %v1997, 7
        %v1999 = vsub.s32 0, %v1998
        %v2000 = vrot.slane %v1995, %v1999
        %v2006 = vunpack.c.l.b16 %v1991
        %v2007 = vunpack.c.l.b16 %v1992
        %v2008 = vunpack.c.l.b16 %v1993
        %v2009 = vunpack.c.l.b16 %v1994
        %v2010 = vpack.c.b16 %v2007, %v2006
        %v2011 = vpack.c.b16 %v2009, %v2008
        %v2015 = vsel %vm1268, %v1990, 0
        %2017 = vmatprep.subr.bf16.mxu0 0
        %2018 = vmatpush1.bf16.msra.mxu0 0
        %2019 = vmatprep.subr.bf16.mxu0 0
        %2020 = vmatpush1.bf16.msra.mxu0 0
        %2021 = vmatprep.subr.bf16.mxu0 0
        %2022 = vmatpush1.bf16.msra.mxu0 0
        %2023 = vmatprep.subr.bf16.mxu0 0
        %2024 = vmatpush1.bf16.msra.mxu0 0
        %2025 = vmatprep.subr.bf16.mxu0 0
        %2026 = vmatpush1.bf16.msra.mxu0 0
        %2027 = vmatprep.subr.bf16.mxu0 0
        %2028 = vmatpush1.bf16.msra.mxu0 0
        %2029 = vmatprep.subr.bf16.mxu0 0
        %2030 = vmatpush1.bf16.msra.mxu0 %v2011
        %2031 = vmatprep.subr.bf16.mxu0 0
        %2032 = vmatpush1.bf16.msra.mxu0 %v2010
        %2033 = vmatprep.subr.bf16.mxu0 0
        %2034 = vmatpush2.bf16.msra.mxu0 0
        %2035 = vmatprep.subr.bf16.mxu0 0
        %2036 = vmatpush2.bf16.msra.mxu0 0
        %2037 = vmatprep.subr.bf16.mxu0 0
        %2038 = vmatpush2.bf16.msra.mxu0 0
        %2039 = vmatprep.subr.bf16.mxu0 0
        %2040 = vmatpush2.bf16.msra.mxu0 0
        %2041 = vmatprep.subr.bf16.mxu0 0
        %2042 = vmatpush2.bf16.msra.mxu0 0
        %2043 = vmatprep.subr.bf16.mxu0 0
        %2044 = vmatpush2.bf16.msra.mxu0 0
        %2045 = vmatprep.subr.bf16.mxu0 0
        %2046 = vmatpush2.bf16.msra.mxu0 0
        %2047 = vmatprep.subr.bf16.mxu0 0
        %2048 = vmatpush2.bf16.msra.mxu0 0
        %2049 = vmatprep.mubr.bf16.mxu0 0
        %2050 = vmatmul.mubr.bf16.gmra.mxu0 %v2015
        %v2051 = vpop.f32.mrf.mxu0
        %v2052 = vadd.f32 %v2000, %v2051
        %v2053 = vpop.f32.mrf.mxu0
        %v2054 = vpop.f32.mrf.mxu0
        %v2055 = vpop.f32.mrf.mxu0
        %2056 = vdwg.mxu0
        %v2057 = vld [vmem:[#allocation19] sm:$0xf]
        %v2058 = vld [vmem:[#allocation19 + $0x4] sm:$0xf]
        %v2059 = vld [vmem:[#allocation19 + $0x8] sm:$0xf]
        %v2060 = vld [vmem:[#allocation19 + $0xc] sm:$0xf]
        %v2061 = vld [vmem:[#allocation20] sm:$0x1]
        %v2063 = vlaneseq
        %v2064 = vshrl.u32 %v2063, 7
        %v2065 = vsub.s32 0, %v2064
        %v2066 = vrot.slane %v2061, %v2065
        %v2072 = vunpack.c.l.b16 %v2057
        %v2073 = vunpack.c.l.b16 %v2058
        %v2074 = vunpack.c.l.b16 %v2059
        %v2075 = vunpack.c.l.b16 %v2060
        %v2076 = vpack.c.b16 %v2073, %v2072
        %v2077 = vpack.c.b16 %v2075, %v2074
        %v2081 = vsel %vm1268, %v1244, 0
        %2083 = vmatprep.subr.bf16.mxu0 0
        %2084 = vmatpush1.bf16.msra.mxu0 0
        %2085 = vmatprep.subr.bf16.mxu0 0
        %2086 = vmatpush1.bf16.msra.mxu0 0
        %2087 = vmatprep.subr.bf16.mxu0 0
        %2088 = vmatpush1.bf16.msra.mxu0 0
        %2089 = vmatprep.subr.bf16.mxu0 0
        %2090 = vmatpush1.bf16.msra.mxu0 0
        %2091 = vmatprep.subr.bf16.mxu0 0
        %2092 = vmatpush1.bf16.msra.mxu0 0
        %2093 = vmatprep.subr.bf16.mxu0 0
        %2094 = vmatpush1.bf16.msra.mxu0 0
        %2095 = vmatprep.subr.bf16.mxu0 0
        %2096 = vmatpush1.bf16.msra.mxu0 %v2077
        %2097 = vmatprep.subr.bf16.mxu0 0
        %2098 = vmatpush1.bf16.msra.mxu0 %v2076
        %2099 = vmatprep.subr.bf16.mxu0 0
        %2100 = vmatpush2.bf16.msra.mxu0 0
        %2101 = vmatprep.subr.bf16.mxu0 0
        %2102 = vmatpush2.bf16.msra.mxu0 0
        %2103 = vmatprep.subr.bf16.mxu0 0
        %2104 = vmatpush2.bf16.msra.mxu0 0
        %2105 = vmatprep.subr.bf16.mxu0 0
        %2106 = vmatpush2.bf16.msra.mxu0 0
        %2107 = vmatprep.subr.bf16.mxu0 0
        %2108 = vmatpush2.bf16.msra.mxu0 0
        %2109 = vmatprep.subr.bf16.mxu0 0
        %2110 = vmatpush2.bf16.msra.mxu0 0
        %2111 = vmatprep.subr.bf16.mxu0 0
        %2112 = vmatpush2.bf16.msra.mxu0 0
        %2113 = vmatprep.subr.bf16.mxu0 0
        %2114 = vmatpush2.bf16.msra.mxu0 0
        %2115 = vmatprep.mubr.bf16.mxu0 0
        %2116 = vmatmul.mubr.bf16.gmra.mxu0 %v2081
        %v2117 = vpop.f32.mrf.mxu0
        %v2118 = vadd.f32 %v2066, %v2117
        %v2119 = vpop.f32.mrf.mxu0
        %v2120 = vpop.f32.mrf.mxu0
        %v2121 = vadd.f32 %v2066, %v2120
        %v2122 = vpop.f32.mrf.mxu0
        %2123 = vdwg.mxu0
        %v2124 = vld [vmem:[#allocation22] sm:$0xf]
        %v2125 = vld [vmem:[#allocation22 + $0x4] sm:$0xf]
        %v2126 = vld [vmem:[#allocation22 + $0x8] sm:$0xf]
        %v2127 = vld [vmem:[#allocation22 + $0xc] sm:$0xf]
        %v2128 = vld [vmem:[#allocation23] sm:$0x1]
        %v2130 = vlaneseq
        %v2131 = vshrl.u32 %v2130, 7
        %v2132 = vsub.s32 0, %v2131
        %v2133 = vrot.slane %v2128, %v2132
        %v2139 = vunpack.c.l.b16 %v2124
        %v2140 = vunpack.c.l.b16 %v2125
        %v2141 = vunpack.c.l.b16 %v2126
        %v2142 = vunpack.c.l.b16 %v2127
        %v2143 = vpack.c.b16 %v2140, %v2139
        %v2144 = vpack.c.b16 %v2142, %v2141
        %2147 = vmatprep.subr.bf16.mxu0 0
        %2148 = vmatpush1.bf16.msra.mxu0 0
        %2149 = vmatprep.subr.bf16.mxu0 0
        %2150 = vmatpush1.bf16.msra.mxu0 0
        %2151 = vmatprep.subr.bf16.mxu0 0
        %2152 = vmatpush1.bf16.msra.mxu0 0
        %2153 = vmatprep.subr.bf16.mxu0 0
        %2154 = vmatpush1.bf16.msra.mxu0 0
        %2155 = vmatprep.subr.bf16.mxu0 0
        %2156 = vmatpush1.bf16.msra.mxu0 0
        %2157 = vmatprep.subr.bf16.mxu0 0
        %2158 = vmatpush1.bf16.msra.mxu0 0
        %2159 = vmatprep.subr.bf16.mxu0 0
        %2160 = vmatpush1.bf16.msra.mxu0 %v2144
        %2161 = vmatprep.subr.bf16.mxu0 0
        %2162 = vmatpush1.bf16.msra.mxu0 %v2143
        %2163 = vmatprep.subr.bf16.mxu0 0
        %2164 = vmatpush2.bf16.msra.mxu0 0
        %2165 = vmatprep.subr.bf16.mxu0 0
        %2166 = vmatpush2.bf16.msra.mxu0 0
        %2167 = vmatprep.subr.bf16.mxu0 0
        %2168 = vmatpush2.bf16.msra.mxu0 0
        %2169 = vmatprep.subr.bf16.mxu0 0
        %2170 = vmatpush2.bf16.msra.mxu0 0
        %2171 = vmatprep.subr.bf16.mxu0 0
        %2172 = vmatpush2.bf16.msra.mxu0 0
        %2173 = vmatprep.subr.bf16.mxu0 0
        %2174 = vmatpush2.bf16.msra.mxu0 0
        %2175 = vmatprep.subr.bf16.mxu0 0
        %2176 = vmatpush2.bf16.msra.mxu0 0
        %2177 = vmatprep.subr.bf16.mxu0 0
        %2178 = vmatpush2.bf16.msra.mxu0 0
        %2179 = vmatprep.mubr.bf16.mxu0 0
        %2180 = vmatmul.mubr.bf16.gmra.mxu0 %v2081
        %v2181 = vpop.f32.mrf.mxu0
        %v2182 = vadd.f32 %v2133, %v2181
        %v2183 = vpop.f32.mrf.mxu0
        %v2184 = vpop.f32.mrf.mxu0
        %v2185 = vadd.f32 %v2133, %v2184
        %v2186 = vpop.f32.mrf.mxu0
        %2187 = vdwg.mxu0
        %v2188 = vld [vmem:[#allocation25] sm:$0xf]
        %v2189 = vld [vmem:[#allocation25 + $0x4] sm:$0xf]
        %v2190 = vld [vmem:[#allocation25 + $0x8] sm:$0xf]
        %v2191 = vld [vmem:[#allocation25 + $0xc] sm:$0xf]
        %v2192 = vld [vmem:[%s39] sm:$0x1]
        %v2193 = vpack.c.bf16 %v2052, %v2052
        %v2194 = vpack.c.bf16 %v2121, %v2118
        %v2195 = vpack.c.bf16 %v2185, %v2182
        %v2197 = vsel %vm1451, %v2193, 0
        %v2200 = vsel %vm1451, %v2194, 0
        %2202 = vmatprep.subr.bf16.mxu0 0
        %2203 = vmatpush1.bf16.xpose.msra.mxu0 0
        %2204 = vmatprep.subr.bf16.mxu0 0
        %2205 = vmatpush1.bf16.xpose.msra.mxu0 0
        %2206 = vmatprep.subr.bf16.mxu0 0
        %2207 = vmatpush1.bf16.xpose.msra.mxu0 0
        %2208 = vmatprep.subr.bf16.mxu0 0
        %2209 = vmatpush1.bf16.xpose.msra.mxu0 0
        %2210 = vmatprep.subr.bf16.mxu0 0
        %2211 = vmatpush1.bf16.xpose.msra.mxu0 0
        %2212 = vmatprep.subr.bf16.mxu0 0
        %2213 = vmatpush1.bf16.xpose.msra.mxu0 0
        %2214 = vmatprep.subr.bf16.mxu0 0
        %2215 = vmatpush1.bf16.xpose.msra.mxu0 0
        %2216 = vmatprep.subr.bf16.mxu0 0
        %2217 = vmatpush1.bf16.xpose.msra.mxu0 %v2200
        %2218 = vmatprep.subr.bf16.mxu0 0
        %2219 = vmatpush2.bf16.xpose.msra.mxu0 0
        %2220 = vmatprep.subr.bf16.mxu0 0
        %2221 = vmatpush2.bf16.xpose.msra.mxu0 0
        %2222 = vmatprep.subr.bf16.mxu0 0
        %2223 = vmatpush2.bf16.xpose.msra.mxu0 0
        %2224 = vmatprep.subr.bf16.mxu0 0
        %2225 = vmatpush2.bf16.xpose.msra.mxu0 0
        %2226 = vmatprep.subr.bf16.mxu0 0
        %2227 = vmatpush2.bf16.xpose.msra.mxu0 0
        %2228 = vmatprep.subr.bf16.mxu0 0
        %2229 = vmatpush2.bf16.xpose.msra.mxu0 0
        %2230 = vmatprep.subr.bf16.mxu0 0
        %2231 = vmatpush2.bf16.xpose.msra.mxu0 0
        %2232 = vmatprep.subr.bf16.mxu0 0
        %2233 = vmatpush2.bf16.xpose.msra.mxu0 0
        %2234 = vmatprep.mubr.bf16.mxu0 0
        %2235 = vmatmul.mubr.bf16.gmra.mxu0 %v2197
        %v2236 = vpop.f32.mrf.mxu0
        %v2237 = vadd.f32 %v1241, %v2236
        %v2238 = vpop.f32.mrf.mxu0
        %v2239 = vpop.f32.mrf.mxu0
        %v2240 = vpop.f32.mrf.mxu0
        %2241 = vdwg.mxu0
        %v2242 = vsel %vm1498, %v2237, -inf
        %2243 = vmax.xlane.f32.xlu0 %v2242
        %v2244 = vpop.xlane.xlu0 %2243
        %v2245 = vsub.f32 %v2237, %v2244
        %v2246 = vmul.f32 %v2245, 1.442695
        %v2247 = vpow.pop %v2246
        %v2248 = vsel %vm1498, %v2247, 0.0
        %2249 = vadd.xlane.f32.xlu0 %v2248
        %v2250 = vpop.xlane.xlu0 %2249
        %v2251 = vrcp.pop %v2250
        %v2252 = vmul.f32 %v2247, %v2251
        %v2253 = vpack.c.bf16 %v2252, %v2252
        %v2255 = vsel %vm1498, %v2253, 0
        %2257 = vmatprep.subr.bf16.mxu0 0
        %2258 = vmatpush1.bf16.msra.mxu0 0
        %2259 = vmatprep.subr.bf16.mxu0 0
        %2260 = vmatpush1.bf16.msra.mxu0 0
        %2261 = vmatprep.subr.bf16.mxu0 0
        %2262 = vmatpush1.bf16.msra.mxu0 0
        %2263 = vmatprep.subr.bf16.mxu0 0
        %2264 = vmatpush1.bf16.msra.mxu0 0
        %2265 = vmatprep.subr.bf16.mxu0 0
        %2266 = vmatpush1.bf16.msra.mxu0 0
        %2267 = vmatprep.subr.bf16.mxu0 0
        %2268 = vmatpush1.bf16.msra.mxu0 0
        %2269 = vmatprep.subr.bf16.mxu0 0
        %2270 = vmatpush1.bf16.msra.mxu0 0
        %2271 = vmatprep.subr.bf16.mxu0 0
        %2272 = vmatpush1.bf16.msra.mxu0 %v2195
        %2273 = vmatprep.subr.bf16.mxu0 0
        %2274 = vmatpush2.bf16.msra.mxu0 0
        %2275 = vmatprep.subr.bf16.mxu0 0
        %2276 = vmatpush2.bf16.msra.mxu0 0
        %2277 = vmatprep.subr.bf16.mxu0 0
        %2278 = vmatpush2.bf16.msra.mxu0 0
        %2279 = vmatprep.subr.bf16.mxu0 0
        %2280 = vmatpush2.bf16.msra.mxu0 0
        %2281 = vmatprep.subr.bf16.mxu0 0
        %2282 = vmatpush2.bf16.msra.mxu0 0
        %2283 = vmatprep.subr.bf16.mxu0 0
        %2284 = vmatpush2.bf16.msra.mxu0 0
        %2285 = vmatprep.subr.bf16.mxu0 0
        %2286 = vmatpush2.bf16.msra.mxu0 0
        %2287 = vmatprep.subr.bf16.mxu0 0
        %2288 = vmatpush2.bf16.msra.mxu0 0
        %2289 = vmatprep.mubr.bf16.mxu0 0
        %2290 = vmatmul.mubr.bf16.gmra.mxu0 %v2255
        %v2291 = vpop.f32.mrf.mxu0
        %v2292 = vadd.f32 0.0, %v2291
        %v2293 = vpop.f32.mrf.mxu0
        %v2294 = vpop.f32.mrf.mxu0
        %v2295 = vpop.f32.mrf.mxu0
        %2296 = vdwg.mxu0
        %2298 = vrot.lane.b32.xlu0 %v2193, 120
        %v2299 = vpop.permute.xlu0 %2298
        %2301 = vrot.lane.b32.xlu0 %v2194, 120
        %v2302 = vpop.permute.xlu0 %2301
        %v2304 = vsel %vm1451, %v2299, 0
        %v2307 = vsel %vm1451, %v2302, 0
        %2309 = vmatprep.subr.bf16.mxu0 0
        %2310 = vmatpush1.bf16.xpose.msra.mxu0 0
        %2311 = vmatprep.subr.bf16.mxu0 0
        %2312 = vmatpush1.bf16.xpose.msra.mxu0 0
        %2313 = vmatprep.subr.bf16.mxu0 0
        %2314 = vmatpush1.bf16.xpose.msra.mxu0 0
        %2315 = vmatprep.subr.bf16.mxu0 0
        %2316 = vmatpush1.bf16.xpose.msra.mxu0 0
        %2317 = vmatprep.subr.bf16.mxu0 0
        %2318 = vmatpush1.bf16.xpose.msra.mxu0 0
        %2319 = vmatprep.subr.bf16.mxu0 0
        %2320 = vmatpush1.bf16.xpose.msra.mxu0 0
        %2321 = vmatprep.subr.bf16.mxu0 0
        %2322 = vmatpush1.bf16.xpose.msra.mxu0 0
        %2323 = vmatprep.subr.bf16.mxu0 0
        %2324 = vmatpush1.bf16.xpose.msra.mxu0 %v2307
        %2325 = vmatprep.subr.bf16.mxu0 0
        %2326 = vmatpush2.bf16.xpose.msra.mxu0 0
        %2327 = vmatprep.subr.bf16.mxu0 0
        %2328 = vmatpush2.bf16.xpose.msra.mxu0 0
        %2329 = vmatprep.subr.bf16.mxu0 0
        %2330 = vmatpush2.bf16.xpose.msra.mxu0 0
        %2331 = vmatprep.subr.bf16.mxu0 0
        %2332 = vmatpush2.bf16.xpose.msra.mxu0 0
        %2333 = vmatprep.subr.bf16.mxu0 0
        %2334 = vmatpush2.bf16.xpose.msra.mxu0 0
        %2335 = vmatprep.subr.bf16.mxu0 0
        %2336 = vmatpush2.bf16.xpose.msra.mxu0 0
        %2337 = vmatprep.subr.bf16.mxu0 0
        %2338 = vmatpush2.bf16.xpose.msra.mxu0 0
        %2339 = vmatprep.subr.bf16.mxu0 0
        %2340 = vmatpush2.bf16.xpose.msra.mxu0 0
        %2341 = vmatprep.mubr.bf16.mxu0 0
        %2342 = vmatmul.mubr.bf16.gmra.mxu0 %v2304
        %v2343 = vpop.f32.mrf.mxu0
        %v2344 = vadd.f32 %v1241, %v2343
        %v2345 = vpop.f32.mrf.mxu0
        %v2346 = vpop.f32.mrf.mxu0
        %v2347 = vpop.f32.mrf.mxu0
        %2348 = vdwg.mxu0
        %v2349 = vsel %vm1498, %v2344, -inf
        %2350 = vmax.xlane.f32.xlu0 %v2349
        %v2351 = vpop.xlane.xlu0 %2350
        %v2352 = vsub.f32 %v2344, %v2351
        %v2353 = vmul.f32 %v2352, 1.442695
        %v2354 = vpow.pop %v2353
        %v2355 = vsel %vm1498, %v2354, 0.0
        %2356 = vadd.xlane.f32.xlu0 %v2355
        %v2357 = vpop.xlane.xlu0 %2356
        %v2358 = vrcp.pop %v2357
        %v2359 = vmul.f32 %v2354, %v2358
        %v2360 = vpack.c.bf16 %v2359, %v2359
        %2362 = vrot.lane.b32.xlu0 %v2195, 120
        %v2363 = vpop.permute.xlu0 %2362
        %v2366 = vsel %vm1498, %v2360, 0
        %2368 = vmatprep.subr.bf16.mxu0 0
        %2369 = vmatpush1.bf16.msra.mxu0 0
        %2370 = vmatprep.subr.bf16.mxu0 0
        %2371 = vmatpush1.bf16.msra.mxu0 0
        %2372 = vmatprep.subr.bf16.mxu0 0
        %2373 = vmatpush1.bf16.msra.mxu0 0
        %2374 = vmatprep.subr.bf16.mxu0 0
        %2375 = vmatpush1.bf16.msra.mxu0 0
        %2376 = vmatprep.subr.bf16.mxu0 0
        %2377 = vmatpush1.bf16.msra.mxu0 0
        %2378 = vmatprep.subr.bf16.mxu0 0
        %2379 = vmatpush1.bf16.msra.mxu0 0
        %2380 = vmatprep.subr.bf16.mxu0 0
        %2381 = vmatpush1.bf16.msra.mxu0 0
        %2382 = vmatprep.subr.bf16.mxu0 0
        %2383 = vmatpush1.bf16.msra.mxu0 %v2363
        %2384 = vmatprep.subr.bf16.mxu0 0
        %2385 = vmatpush2.bf16.msra.mxu0 0
        %2386 = vmatprep.subr.bf16.mxu0 0
        %2387 = vmatpush2.bf16.msra.mxu0 0
        %2388 = vmatprep.subr.bf16.mxu0 0
        %2389 = vmatpush2.bf16.msra.mxu0 0
        %2390 = vmatprep.subr.bf16.mxu0 0
        %2391 = vmatpush2.bf16.msra.mxu0 0
        %2392 = vmatprep.subr.bf16.mxu0 0
        %2393 = vmatpush2.bf16.msra.mxu0 0
        %2394 = vmatprep.subr.bf16.mxu0 0
        %2395 = vmatpush2.bf16.msra.mxu0 0
        %2396 = vmatprep.subr.bf16.mxu0 0
        %2397 = vmatpush2.bf16.msra.mxu0 0
        %2398 = vmatprep.subr.bf16.mxu0 0
        %2399 = vmatpush2.bf16.msra.mxu0 0
        %2400 = vmatprep.mubr.bf16.mxu0 0
        %2401 = vmatmul.mubr.bf16.gmra.mxu0 %v2366
        %v2402 = vpop.f32.mrf.mxu0
        %v2403 = vadd.f32 0.0, %v2402
        %v2404 = vpop.f32.mrf.mxu0
        %v2405 = vpop.f32.mrf.mxu0
        %v2406 = vpop.f32.mrf.mxu0
        %2407 = vdwg.mxu0
        %2408 = vrot.lane.b32.xlu0 %v2193, 112
        %v2409 = vpop.permute.xlu0 %2408
        %2410 = vrot.lane.b32.xlu0 %v2194, 112
        %v2411 = vpop.permute.xlu0 %2410
        %v2413 = vsel %vm1451, %v2409, 0
        %v2416 = vsel %vm1451, %v2411, 0
        %2418 = vmatprep.subr.bf16.mxu0 0
        %2419 = vmatpush1.bf16.xpose.msra.mxu0 0
        %2420 = vmatprep.subr.bf16.mxu0 0
        %2421 = vmatpush1.bf16.xpose.msra.mxu0 0
        %2422 = vmatprep.subr.bf16.mxu0 0
        %2423 = vmatpush1.bf16.xpose.msra.mxu0 0
        %2424 = vmatprep.subr.bf16.mxu0 0
        %2425 = vmatpush1.bf16.xpose.msra.mxu0 0
        %2426 = vmatprep.subr.bf16.mxu0 0
        %2427 = vmatpush1.bf16.xpose.msra.mxu0 0
        %2428 = vmatprep.subr.bf16.mxu0 0
        %2429 = vmatpush1.bf16.xpose.msra.mxu0 0
        %2430 = vmatprep.subr.bf16.mxu0 0
        %2431 = vmatpush1.bf16.xpose.msra.mxu0 0
        %2432 = vmatprep.subr.bf16.mxu0 0
        %2433 = vmatpush1.bf16.xpose.msra.mxu0 %v2416
        %2434 = vmatprep.subr.bf16.mxu0 0
        %2435 = vmatpush2.bf16.xpose.msra.mxu0 0
        %2436 = vmatprep.subr.bf16.mxu0 0
        %2437 = vmatpush2.bf16.xpose.msra.mxu0 0
        %2438 = vmatprep.subr.bf16.mxu0 0
        %2439 = vmatpush2.bf16.xpose.msra.mxu0 0
        %2440 = vmatprep.subr.bf16.mxu0 0
        %2441 = vmatpush2.bf16.xpose.msra.mxu0 0
        %2442 = vmatprep.subr.bf16.mxu0 0
        %2443 = vmatpush2.bf16.xpose.msra.mxu0 0
        %2444 = vmatprep.subr.bf16.mxu0 0
        %2445 = vmatpush2.bf16.xpose.msra.mxu0 0
        %2446 = vmatprep.subr.bf16.mxu0 0
        %2447 = vmatpush2.bf16.xpose.msra.mxu0 0
        %2448 = vmatprep.subr.bf16.mxu0 0
        %2449 = vmatpush2.bf16.xpose.msra.mxu0 0
        %2450 = vmatprep.mubr.bf16.mxu0 0
        %2451 = vmatmul.mubr.bf16.gmra.mxu0 %v2413
        %v2452 = vpop.f32.mrf.mxu0
        %v2453 = vadd.f32 %v1241, %v2452
        %v2454 = vpop.f32.mrf.mxu0
        %v2455 = vpop.f32.mrf.mxu0
        %v2456 = vpop.f32.mrf.mxu0
        %2457 = vdwg.mxu0
        %v2458 = vsel %vm1498, %v2453, -inf
        %2459 = vmax.xlane.f32.xlu0 %v2458
        %v2460 = vpop.xlane.xlu0 %2459
        %v2461 = vsub.f32 %v2453, %v2460
        %v2462 = vmul.f32 %v2461, 1.442695
        %v2463 = vpow.pop %v2462
        %v2464 = vsel %vm1498, %v2463, 0.0
        %2465 = vadd.xlane.f32.xlu0 %v2464
        %v2466 = vpop.xlane.xlu0 %2465
        %v2467 = vrcp.pop %v2466
        %v2468 = vmul.f32 %v2463, %v2467
        %v2469 = vpack.c.bf16 %v2468, %v2468
        %2470 = vrot.lane.b32.xlu0 %v2195, 112
        %v2471 = vpop.permute.xlu0 %2470
        %v2474 = vsel %vm1498, %v2469, 0
        %2476 = vmatprep.subr.bf16.mxu0 0
        %2477 = vmatpush1.bf16.msra.mxu0 0
        %2478 = vmatprep.subr.bf16.mxu0 0
        %2479 = vmatpush1.bf16.msra.mxu0 0
        %2480 = vmatprep.subr.bf16.mxu0 0
        %2481 = vmatpush1.bf16.msra.mxu0 0
        %2482 = vmatprep.subr.bf16.mxu0 0
        %2483 = vmatpush1.bf16.msra.mxu0 0
        %2484 = vmatprep.subr.bf16.mxu0 0
        %2485 = vmatpush1.bf16.msra.mxu0 0
        %2486 = vmatprep.subr.bf16.mxu0 0
        %2487 = vmatpush1.bf16.msra.mxu0 0
        %2488 = vmatprep.subr.bf16.mxu0 0
        %2489 = vmatpush1.bf16.msra.mxu0 0
        %2490 = vmatprep.subr.bf16.mxu0 0
        %2491 = vmatpush1.bf16.msra.mxu0 %v2471
        %2492 = vmatprep.subr.bf16.mxu0 0
        %2493 = vmatpush2.bf16.msra.mxu0 0
        %2494 = vmatprep.subr.bf16.mxu0 0
        %2495 = vmatpush2.bf16.msra.mxu0 0
        %2496 = vmatprep.subr.bf16.mxu0 0
        %2497 = vmatpush2.bf16.msra.mxu0 0
        %2498 = vmatprep.subr.bf16.mxu0 0
        %2499 = vmatpush2.bf16.msra.mxu0 0
        %2500 = vmatprep.subr.bf16.mxu0 0
        %2501 = vmatpush2.bf16.msra.mxu0 0
        %2502 = vmatprep.subr.bf16.mxu0 0
        %2503 = vmatpush2.bf16.msra.mxu0 0
        %2504 = vmatprep.subr.bf16.mxu0 0
        %2505 = vmatpush2.bf16.msra.mxu0 0
        %2506 = vmatprep.subr.bf16.mxu0 0
        %2507 = vmatpush2.bf16.msra.mxu0 0
        %2508 = vmatprep.mubr.bf16.mxu0 0
        %2509 = vmatmul.mubr.bf16.gmra.mxu0 %v2474
        %v2510 = vpop.f32.mrf.mxu0
        %v2511 = vadd.f32 0.0, %v2510
        %v2512 = vpop.f32.mrf.mxu0
        %v2513 = vpop.f32.mrf.mxu0
        %v2514 = vpop.f32.mrf.mxu0
        %2515 = vdwg.mxu0
        %2516 = vrot.lane.b32.xlu0 %v2193, 104
        %v2517 = vpop.permute.xlu0 %2516
        %2518 = vrot.lane.b32.xlu0 %v2194, 104
        %v2519 = vpop.permute.xlu0 %2518
        %v2521 = vsel %vm1451, %v2517, 0
        %v2524 = vsel %vm1451, %v2519, 0
        %2526 = vmatprep.subr.bf16.mxu0 0
        %2527 = vmatpush1.bf16.xpose.msra.mxu0 0
        %2528 = vmatprep.subr.bf16.mxu0 0
        %2529 = vmatpush1.bf16.xpose.msra.mxu0 0
        %2530 = vmatprep.subr.bf16.mxu0 0
        %2531 = vmatpush1.bf16.xpose.msra.mxu0 0
        %2532 = vmatprep.subr.bf16.mxu0 0
        %2533 = vmatpush1.bf16.xpose.msra.mxu0 0
        %2534 = vmatprep.subr.bf16.mxu0 0
        %2535 = vmatpush1.bf16.xpose.msra.mxu0 0
        %2536 = vmatprep.subr.bf16.mxu0 0
        %2537 = vmatpush1.bf16.xpose.msra.mxu0 0
        %2538 = vmatprep.subr.bf16.mxu0 0
        %2539 = vmatpush1.bf16.xpose.msra.mxu0 0
        %2540 = vmatprep.subr.bf16.mxu0 0
        %2541 = vmatpush1.bf16.xpose.msra.mxu0 %v2524
        %2542 = vmatprep.subr.bf16.mxu0 0
        %2543 = vmatpush2.bf16.xpose.msra.mxu0 0
        %2544 = vmatprep.subr.bf16.mxu0 0
        %2545 = vmatpush2.bf16.xpose.msra.mxu0 0
        %2546 = vmatprep.subr.bf16.mxu0 0
        %2547 = vmatpush2.bf16.xpose.msra.mxu0 0
        %2548 = vmatprep.subr.bf16.mxu0 0
        %2549 = vmatpush2.bf16.xpose.msra.mxu0 0
        %2550 = vmatprep.subr.bf16.mxu0 0
        %2551 = vmatpush2.bf16.xpose.msra.mxu0 0
        %2552 = vmatprep.subr.bf16.mxu0 0
        %2553 = vmatpush2.bf16.xpose.msra.mxu0 0
        %2554 = vmatprep.subr.bf16.mxu0 0
        %2555 = vmatpush2.bf16.xpose.msra.mxu0 0
        %2556 = vmatprep.subr.bf16.mxu0 0
        %2557 = vmatpush2.bf16.xpose.msra.mxu0 0
        %2558 = vmatprep.mubr.bf16.mxu0 0
        %2559 = vmatmul.mubr.bf16.gmra.mxu0 %v2521
        %v2560 = vpop.f32.mrf.mxu0
        %v2561 = vadd.f32 %v1241, %v2560
        %v2562 = vpop.f32.mrf.mxu0
        %v2563 = vpop.f32.mrf.mxu0
        %v2564 = vpop.f32.mrf.mxu0
        %2565 = vdwg.mxu0
        %v2566 = vsel %vm1498, %v2561, -inf
        %2567 = vmax.xlane.f32.xlu0 %v2566
        %v2568 = vpop.xlane.xlu0 %2567
        %v2569 = vsub.f32 %v2561, %v2568
        %v2570 = vmul.f32 %v2569, 1.442695
        %v2571 = vpow.pop %v2570
        %v2572 = vsel %vm1498, %v2571, 0.0
        %2573 = vadd.xlane.f32.xlu0 %v2572
        %v2574 = vpop.xlane.xlu0 %2573
        %v2575 = vrcp.pop %v2574
        %v2576 = vmul.f32 %v2571, %v2575
        %v2577 = vpack.c.bf16 %v2576, %v2576
        %2578 = vrot.lane.b32.xlu0 %v2195, 104
        %v2579 = vpop.permute.xlu0 %2578
        %v2582 = vsel %vm1498, %v2577, 0
        %2584 = vmatprep.subr.bf16.mxu0 0
        %2585 = vmatpush1.bf16.msra.mxu0 0
        %2586 = vmatprep.subr.bf16.mxu0 0
        %2587 = vmatpush1.bf16.msra.mxu0 0
        %2588 = vmatprep.subr.bf16.mxu0 0
        %2589 = vmatpush1.bf16.msra.mxu0 0
        %2590 = vmatprep.subr.bf16.mxu0 0
        %2591 = vmatpush1.bf16.msra.mxu0 0
        %2592 = vmatprep.subr.bf16.mxu0 0
        %2593 = vmatpush1.bf16.msra.mxu0 0
        %2594 = vmatprep.subr.bf16.mxu0 0
        %2595 = vmatpush1.bf16.msra.mxu0 0
        %2596 = vmatprep.subr.bf16.mxu0 0
        %2597 = vmatpush1.bf16.msra.mxu0 0
        %2598 = vmatprep.subr.bf16.mxu0 0
        %2599 = vmatpush1.bf16.msra.mxu0 %v2579
        %2600 = vmatprep.subr.bf16.mxu0 0
        %2601 = vmatpush2.bf16.msra.mxu0 0
        %2602 = vmatprep.subr.bf16.mxu0 0
        %2603 = vmatpush2.bf16.msra.mxu0 0
        %2604 = vmatprep.subr.bf16.mxu0 0
        %2605 = vmatpush2.bf16.msra.mxu0 0
        %2606 = vmatprep.subr.bf16.mxu0 0
        %2607 = vmatpush2.bf16.msra.mxu0 0
        %2608 = vmatprep.subr.bf16.mxu0 0
        %2609 = vmatpush2.bf16.msra.mxu0 0
        %2610 = vmatprep.subr.bf16.mxu0 0
        %2611 = vmatpush2.bf16.msra.mxu0 0
        %2612 = vmatprep.subr.bf16.mxu0 0
        %2613 = vmatpush2.bf16.msra.mxu0 0
        %2614 = vmatprep.subr.bf16.mxu0 0
        %2615 = vmatpush2.bf16.msra.mxu0 0
        %2616 = vmatprep.mubr.bf16.mxu0 0
        %2617 = vmatmul.mubr.bf16.gmra.mxu0 %v2582
        %v2618 = vpop.f32.mrf.mxu0
        %v2619 = vadd.f32 0.0, %v2618
        %v2620 = vpop.f32.mrf.mxu0
        %v2621 = vpop.f32.mrf.mxu0
        %v2622 = vpop.f32.mrf.mxu0
        %2623 = vdwg.mxu0
        %2625 = vrot.lane.b32.xlu0 %v2403, 8
        %v2626 = vpop.permute.xlu0 %2625
        %2629 = vrot.lane.b32.xlu0 %v2511, 16
        %v2630 = vpop.permute.xlu0 %2629
        %2633 = vrot.lane.b32.xlu0 %v2619, 24
        %v2634 = vpop.permute.xlu0 %2633
        %v2636 = vsel %vm1451, %v2292, %v2626
        %v2637 = vsel %vm1498, %v2636, %v2630
        %v2638 = vsel %vm1895, %v2637, %v2634
        %v2639 = vpack.c.bf16 %v2638, %v2638
        %v2641 = vlaneseq
        %v2642 = vshrl.u32 %v2641, 7
        %v2643 = vsub.s32 0, %v2642
        %v2644 = vrot.slane %v2192, %v2643
        %v2650 = vunpack.c.l.b16 %v2188
        %v2651 = vunpack.c.l.b16 %v2189
        %v2652 = vunpack.c.l.b16 %v2190
        %v2653 = vunpack.c.l.b16 %v2191
        %v2654 = vpack.c.b16 %v2651, %v2650
        %v2655 = vpack.c.b16 %v2653, %v2652
        %v2659 = vsel %vm1268, %v2639, 0
        %2661 = vmatprep.subr.bf16.mxu0 0
        %2662 = vmatpush1.bf16.msra.mxu0 0
        %2663 = vmatprep.subr.bf16.mxu0 0
        %2664 = vmatpush1.bf16.msra.mxu0 0
        %2665 = vmatprep.subr.bf16.mxu0 0
        %2666 = vmatpush1.bf16.msra.mxu0 0
        %2667 = vmatprep.subr.bf16.mxu0 0
        %2668 = vmatpush1.bf16.msra.mxu0 0
        %2669 = vmatprep.subr.bf16.mxu0 0
        %2670 = vmatpush1.bf16.msra.mxu0 0
        %2671 = vmatprep.subr.bf16.mxu0 0
        %2672 = vmatpush1.bf16.msra.mxu0 0
        %2673 = vmatprep.subr.bf16.mxu0 0
        %2674 = vmatpush1.bf16.msra.mxu0 %v2655
        %2675 = vmatprep.subr.bf16.mxu0 0
        %2676 = vmatpush1.bf16.msra.mxu0 %v2654
        %2677 = vmatprep.subr.bf16.mxu0 0
        %2678 = vmatpush2.bf16.msra.mxu0 0
        %2679 = vmatprep.subr.bf16.mxu0 0
        %2680 = vmatpush2.bf16.msra.mxu0 0
        %2681 = vmatprep.subr.bf16.mxu0 0
        %2682 = vmatpush2.bf16.msra.mxu0 0
        %2683 = vmatprep.subr.bf16.mxu0 0
        %2684 = vmatpush2.bf16.msra.mxu0 0
        %2685 = vmatprep.subr.bf16.mxu0 0
        %2686 = vmatpush2.bf16.msra.mxu0 0
        %2687 = vmatprep.subr.bf16.mxu0 0
        %2688 = vmatpush2.bf16.msra.mxu0 0
        %2689 = vmatprep.subr.bf16.mxu0 0
        %2690 = vmatpush2.bf16.msra.mxu0 0
        %2691 = vmatprep.subr.bf16.mxu0 0
        %2692 = vmatpush2.bf16.msra.mxu0 0
        %2693 = vmatprep.mubr.bf16.mxu0 0
        %2694 = vmatmul.mubr.bf16.gmra.mxu0 %v2659
        %v2695 = vpop.f32.mrf.mxu0
        %v2696 = vadd.f32 %v2644, %v2695
        %v2697 = vpop.f32.mrf.mxu0
        %v2698 = vpop.f32.mrf.mxu0
        %v2699 = vpop.f32.mrf.mxu0
        %2700 = vdwg.mxu0
        %v2701 = vadd.f32 %v1989, %v2696
        %v2702 = vld [vmem:[%s45] sm:$0x1]
        %v2703 = vld [vmem:[%s47] sm:$0x1]
        %v2704 = vsel %vm1268, %v2701, 0.0
        %2705 = vadd.xlane.f32.xlu0 %v2704
        %v2706 = vpop.xlane.xlu0 %2705
        %v2707 = vmul.f32 %v2706, %v1965
        %v2708 = vsub.f32 %v2701, %v2707
        %v2709 = vmul.f32 %v2708, %v2708
        %v2710 = vsel %vm1268, %v2709, 0.0
        %2711 = vadd.xlane.f32.xlu0 %v2710
        %v2712 = vpop.xlane.xlu0 %2711
        %v2713 = vmul.f32 %v2712, %v1965
        %v2714 = vadd.f32 %v2713, 1e-05
        %v2715 = vrsqrt.pop %v2714
        %v2716 = vmul.f32 %v2708, %v2715
        %v2718 = vlaneseq
        %v2719 = vshrl.u32 %v2718, 7
        %v2720 = vsub.s32 0, %v2719
        %v2721 = vrot.slane %v2702, %v2720
        %v2723 = vmul.f32 %v2716, %v2721
        %v2725 = vlaneseq
        %v2726 = vshrl.u32 %v2725, 7
        %v2727 = vsub.s32 0, %v2726
        %v2728 = vrot.slane %v2703, %v2727
        %v2730 = vadd.f32 %v2723, %v2728
        %v2731 = vpack.c.bf16 %v2730, %v2730
        %v2732 = vld [vmem:[#allocation26] sm:$0xf]
        %v2733 = vld [vmem:[#allocation26 + $0x4] sm:$0xf]
        %v2734 = vld [vmem:[#allocation26 + $0x8] sm:$0xf]
        %v2735 = vld [vmem:[#allocation26 + $0xc] sm:$0xf]
        %v2736 = vld [vmem:[%s55] sm:$0x1]
        %v2738 = vlaneseq
        %v2739 = vshrl.u32 %v2738, 7
        %v2740 = vsub.s32 0, %v2739
        %v2741 = vrot.slane %v2736, %v2740
        %v2747 = vunpack.c.l.b16 %v2732
        %v2748 = vunpack.c.l.b16 %v2733
        %v2749 = vunpack.c.l.b16 %v2734
        %v2750 = vunpack.c.l.b16 %v2735
        %v2751 = vpack.c.b16 %v2748, %v2747
        %v2752 = vpack.c.b16 %v2750, %v2749
        %v2756 = vsel %vm1268, %v2731, 0
        %2758 = vmatprep.subr.bf16.mxu0 0
        %2759 = vmatpush1.bf16.msra.mxu0 0
        %2760 = vmatprep.subr.bf16.mxu0 0
        %2761 = vmatpush1.bf16.msra.mxu0 0
        %2762 = vmatprep.subr.bf16.mxu0 0
        %2763 = vmatpush1.bf16.msra.mxu0 0
        %2764 = vmatprep.subr.bf16.mxu0 0
        %2765 = vmatpush1.bf16.msra.mxu0 0
        %2766 = vmatprep.subr.bf16.mxu0 0
        %2767 = vmatpush1.bf16.msra.mxu0 0
        %2768 = vmatprep.subr.bf16.mxu0 0
        %2769 = vmatpush1.bf16.msra.mxu0 0
        %2770 = vmatprep.subr.bf16.mxu0 0
        %2771 = vmatpush1.bf16.msra.mxu0 %v2752
        %2772 = vmatprep.subr.bf16.mxu0 0
        %2773 = vmatpush1.bf16.msra.mxu0 %v2751
        %2774 = vmatprep.subr.bf16.mxu0 0
        %2775 = vmatpush2.bf16.msra.mxu0 0
        %2776 = vmatprep.subr.bf16.mxu0 0
        %2777 = vmatpush2.bf16.msra.mxu0 0
        %2778 = vmatprep.subr.bf16.mxu0 0
        %2779 = vmatpush2.bf16.msra.mxu0 0
        %2780 = vmatprep.subr.bf16.mxu0 0
        %2781 = vmatpush2.bf16.msra.mxu0 0
        %2782 = vmatprep.subr.bf16.mxu0 0
        %2783 = vmatpush2.bf16.msra.mxu0 0
        %2784 = vmatprep.subr.bf16.mxu0 0
        %2785 = vmatpush2.bf16.msra.mxu0 0
        %2786 = vmatprep.subr.bf16.mxu0 0
        %2787 = vmatpush2.bf16.msra.mxu0 0
        %2788 = vmatprep.subr.bf16.mxu0 0
        %2789 = vmatpush2.bf16.msra.mxu0 0
        %2790 = vmatprep.mubr.bf16.mxu0 0
        %2791 = vmatmul.mubr.bf16.gmra.mxu0 %v2756
        %v2792 = vpop.f32.mrf.mxu0
        %v2793 = vadd.f32 %v2741, %v2792
        %v2794 = vpop.f32.mrf.mxu0
        %v2795 = vpop.f32.mrf.mxu0
        %v2796 = vpop.f32.mrf.mxu0
        %2797 = vdwg.mxu0
        %v2798 = vmax.f32 %v2793, 0.0
        %v2799 = vpack.c.bf16 %v2798, %v2798
        %v2800 = vld [vmem:[%s57] sm:$0xf]
        %v2801 = vld [vmem:[%s57 + $0x4] sm:$0xf]
        %v2802 = vld [vmem:[%s57 + $0x8] sm:$0xf]
        %v2803 = vld [vmem:[%s57 + $0xc] sm:$0xf]
        %v2804 = vld [vmem:[%s57 + $0x10] sm:$0xf]
        %v2805 = vld [vmem:[%s57 + $0x14] sm:$0xf]
        %v2806 = vld [vmem:[%s57 + $0x18] sm:$0xf]
        %v2807 = vld [vmem:[%s57 + $0x1c] sm:$0xf]
        %v2808 = vld [vmem:[%s57 + $0x20] sm:$0xf]
        %v2809 = vld [vmem:[%s57 + $0x24] sm:$0xf]
        %v2810 = vld [vmem:[%s57 + $0x28] sm:$0xf]
        %v2811 = vld [vmem:[%s57 + $0x2c] sm:$0xf]
        %v2812 = vld [vmem:[%s57 + $0x30] sm:$0xf]
        %v2813 = vld [vmem:[%s57 + $0x34] sm:$0xf]
        %v2814 = vld [vmem:[%s57 + $0x38] sm:$0xf]
        %v2815 = vld [vmem:[%s57 + $0x3c] sm:$0xf]
        %v2816 = vld [vmem:[%s59] sm:$0x1]
        %v2818 = vlaneseq
        %v2819 = vshrl.u32 %v2818, 7
        %v2820 = vsub.s32 0, %v2819
        %v2821 = vrot.slane %v2816, %v2820
        %v2839 = vunpack.c.l.b16 %v2800
        %v2840 = vunpack.c.l.b16 %v2801
        %v2841 = vunpack.c.l.b16 %v2802
        %v2842 = vunpack.c.l.b16 %v2803
        %v2843 = vunpack.c.l.b16 %v2804
        %v2844 = vunpack.c.l.b16 %v2805
        %v2845 = vunpack.c.l.b16 %v2806
        %v2846 = vunpack.c.l.b16 %v2807
        %v2847 = vunpack.c.l.b16 %v2808
        %v2848 = vunpack.c.l.b16 %v2809
        %v2849 = vunpack.c.l.b16 %v2810
        %v2850 = vunpack.c.l.b16 %v2811
        %v2851 = vunpack.c.l.b16 %v2812
        %v2852 = vunpack.c.l.b16 %v2813
        %v2853 = vunpack.c.l.b16 %v2814
        %v2854 = vunpack.c.l.b16 %v2815
        %v2855 = vpack.c.b16 %v2840, %v2839
        %v2856 = vpack.c.b16 %v2842, %v2841
        %v2857 = vpack.c.b16 %v2844, %v2843
        %v2858 = vpack.c.b16 %v2846, %v2845
        %v2859 = vpack.c.b16 %v2848, %v2847
        %v2860 = vpack.c.b16 %v2850, %v2849
        %v2861 = vpack.c.b16 %v2852, %v2851
        %v2862 = vpack.c.b16 %v2854, %v2853
        %2871 = vmatprep.subr.bf16.mxu0 0
        %2872 = vmatpush1.bf16.msra.mxu0 %v2862
        %2873 = vmatprep.subr.bf16.mxu0 0
        %2874 = vmatpush1.bf16.msra.mxu0 %v2861
        %2875 = vmatprep.subr.bf16.mxu0 0
        %2876 = vmatpush1.bf16.msra.mxu0 %v2860
        %2877 = vmatprep.subr.bf16.mxu0 0
        %2878 = vmatpush1.bf16.msra.mxu0 %v2859
        %2879 = vmatprep.subr.bf16.mxu0 0
        %2880 = vmatpush1.bf16.msra.mxu0 %v2858
        %2881 = vmatprep.subr.bf16.mxu0 0
        %2882 = vmatpush1.bf16.msra.mxu0 %v2857
        %2883 = vmatprep.subr.bf16.mxu0 0
        %2884 = vmatpush1.bf16.msra.mxu0 %v2856
        %2885 = vmatprep.subr.bf16.mxu0 0
        %2886 = vmatpush1.bf16.msra.mxu0 %v2855
        %2887 = vmatprep.subr.bf16.mxu0 0
        %2888 = vmatpush2.bf16.msra.mxu0 0
        %2889 = vmatprep.subr.bf16.mxu0 0
        %2890 = vmatpush2.bf16.msra.mxu0 0
        %2891 = vmatprep.subr.bf16.mxu0 0
        %2892 = vmatpush2.bf16.msra.mxu0 0
        %2893 = vmatprep.subr.bf16.mxu0 0
        %2894 = vmatpush2.bf16.msra.mxu0 0
        %2895 = vmatprep.subr.bf16.mxu0 0
        %2896 = vmatpush2.bf16.msra.mxu0 0
        %2897 = vmatprep.subr.bf16.mxu0 0
        %2898 = vmatpush2.bf16.msra.mxu0 0
        %2899 = vmatprep.subr.bf16.mxu0 0
        %2900 = vmatpush2.bf16.msra.mxu0 0
        %2901 = vmatprep.subr.bf16.mxu0 0
        %2902 = vmatpush2.bf16.msra.mxu0 0
        %2903 = vmatprep.mubr.bf16.mxu0 0
        %2904 = vmatmul.mubr.bf16.gmra.mxu0 %v2799
        %v2905 = vpop.f32.mrf.mxu0
        %v2906 = vadd.f32 %v2821, %v2905
        %v2907 = vpop.f32.mrf.mxu0
        %v2908 = vpop.f32.mrf.mxu0
        %v2909 = vpop.f32.mrf.mxu0
        %2910 = vdwg.mxu0
        %v2911 = vadd.f32 %v2730, %v2906
        %v2912 = vld [vmem:[%s49] sm:$0x1]
        %v2913 = vld [vmem:[%s51] sm:$0x1]
        %v2914 = vsel %vm1268, %v2911, 0.0
        %2915 = vadd.xlane.f32.xlu0 %v2914
        %v2916 = vpop.xlane.xlu0 %2915
        %v2917 = vmul.f32 %v2916, %v1965
        %v2918 = vsub.f32 %v2911, %v2917
        %v2919 = vmul.f32 %v2918, %v2918
        %v2920 = vsel %vm1268, %v2919, 0.0
        %2921 = vadd.xlane.f32.xlu0 %v2920
        %v2922 = vpop.xlane.xlu0 %2921
        %v2923 = vmul.f32 %v2922, %v1965
        %v2924 = vadd.f32 %v2923, 1e-05
        %v2925 = vrsqrt.pop %v2924
        %v2926 = vmul.f32 %v2918, %v2925
        %v2928 = vlaneseq
        %v2929 = vshrl.u32 %v2928, 7
        %v2930 = vsub.s32 0, %v2929
        %v2931 = vrot.slane %v2912, %v2930
        %v2933 = vmul.f32 %v2926, %v2931
        %v2935 = vlaneseq
        %v2936 = vshrl.u32 %v2935, 7
        %v2937 = vsub.s32 0, %v2936
        %v2938 = vrot.slane %v2913, %v2937
        %v2940 = vadd.f32 %v2933, %v2938
        %2941 = vst.msk [vmem:[%s1217] sm:$0xff] %vm1268, %v2940
        %s2942 = sand.u32 %s760, 1
        %s2943 = scalar_lea.sflag [#allocation4], %s2942
        %s2944 = sand.u32 %s760, 1
        %s2945 = smul.addr %s2944, 8
        %s2946 = scalar_lea.vmem [#allocation28], %s2945
        // Predicated region
        $region205: #{tpu_custom_call.1} parent=139 // pred_check
          %p2947 = pneg %p770
        $region206: #{tpu_custom_call.1} parent=139 // pred_check_branch
          %2949 = sbr.rel (%p2947) target = $region208
        $region207: #{tpu_custom_call.1} parent=139 // pred_region
          %s2951 = ssub.s32 128, 128
          %2952 = vsyncadd %s2943, %s2951
          %s2953 = smul.addr %s90, 2
          %s2954 = sadd.s32 %s91, %s2953
          %s2955 = smul.addr %s2954, 128
          %s2956 = scalar_lea.hbm %s61, %s2955
          %s2958 = sshll.u32 %s2946, 4
          %s2959 = int_to_ptr.vmem [resolvable:$true] %s2958
          %2961 = dma.vmem_to_hbm [thread:$0]  %s2959, 128, %s2956, %s2943
        $region208: #{tpu_custom_call.1} parent=139 // pred_fallthru
          _
      $region140: #{tpu_custom_call.1} parent=5 // pred_fallthru
        _
      %p2962 = scmp.le.s32.totalorder 2, %s81
      // Predicated region
      $region209: #{tpu_custom_call.1} parent=5 // pred_check
        %p2963 = pneg %p2962
      $region210: #{tpu_custom_call.1} parent=5 // pred_check_branch
        %2965 = sbr.rel (%p2963) target = $region212
      $region211: #{tpu_custom_call.1} parent=5 // pred_region
        %s2966 = ssub.s32 %s81, 2
        // Predicated region
        $region213: #{tpu_custom_call.1} parent=211 // pred_check
          %p2967 = pneg %p776
        $region214: #{tpu_custom_call.1} parent=211 // pred_check_branch
          %2969 = sbr.rel (%p2967) target = $region216
        $region215: #{tpu_custom_call.1} parent=211 // pred_region
          %s2970 = sand.u32 %s761, 1
          %s2971 = scalar_lea.sflag [#allocation4], %s2970
          %s2972 = sand.u32 %s761, 1
          %s2973 = smul.addr %s2972, 8
          %s2974 = scalar_lea.vmem [#allocation28], %s2973
          %2975 = dma.done %s2971, 128
        $region216: #{tpu_custom_call.1} parent=211 // pred_fallthru
          _
      $region212: #{tpu_custom_call.1} parent=5 // pred_fallthru
        _
    $region6: #{tpu_custom_call.1} parent=1 // loop_footer
      %s85 = sadd.s32 1, %s81
    $region7: #{tpu_custom_call.1} parent=1 // loop_footer_branch
      %80 = sbr.rel target = $region3
    $region8: #{tpu_custom_call.1} parent=1 // loop_exit
      _
    %2976 = vsyncpa [#allocation3], 1
    %s2977 = scalar_lea.sflag [#allocation3], 1
    %2978 = vsyncpa %s2977, 1
    %2979 = vsyncpa [#allocation6], 1
    %2980 = vsyncpa [#allocation9], 1
    %2981 = vsyncpa [#allocation12], 1
    %2982 = vsyncpa [#allocation15], 1
    %2983 = vsyncpa [#allocation18], 1
    %2984 = vsyncpa [#allocation21], 1
    %2985 = vsyncpa [#allocation24], 1
    %2986 = vsyncpa [#allocation27], 1
    %2987 = vsyncpa [#allocation4], 1
    %s2988 = scalar_lea.sflag [#allocation4], 1
    %2989 = vsyncpa %s2988, 1

</llo_original>
